<compile_context>
chip_gen: v7x
topology: tpu7x:2x2x1
jax: 0.10.0
libtpu: 0.0.40
codegen_flags: <defaults>
</compile_context>

<pallas_src>
import numpy as np
import jax
import jax.numpy as jnp
from jax import lax
from jax.experimental import pallas as pl
from jax.experimental.pallas import tpu as pltpu

LANE = 128      # TPU lane width; channel dims are padded up to a multiple of this
_EPS = 1e-5


# ------------------------------ small helpers --------------------------------


def _round_up(n, m):
    return ((n + m - 1) // m) * m


def _phys_vmem_bytes():
    try:
        return int(pltpu.get_tpu_info().vmem_capacity_bytes)
    except Exception:
        return 128 << 20


def _choose_tile_rows(H, W, cin_p, cout_p, phys_vmem):
    """Largest row tile (multiple of 8 dividing H, else H) whose per-tile working set
    fits a generation-aware budget (bigger tiles -> better MXU pipeline fill)."""
    budget = max(phys_vmem // 12, 2 << 20)
    cands = [t for t in range(8, H + 1, 8) if H % t == 0] or [H]

    def foot(t):
        m = t * W
        return (3 * m * cin_p * 2      # concat slab for one dy group (bf16)
                + m * cout_p * 4       # f32 matmul accumulator
                + 2 * m * cout_p * 2   # double-buffered bf16 output tile
                + 2 * m * cin_p * 2)   # double-buffered bf16 input band

    fit = [t for t in cands if foot(t) <= budget] or [cands[0]]
    return max(fit)


def _vmem_limit(H, W, cin_p, cout_p, tile_rows, phys_vmem):
    """Explicit scoped-VMEM limit derived from the tile budget, capped at 3/4 of the
    physical per-core VMEM (v7x: ~48 MiB, v5e/v6e: ~96 MiB)."""
    m = tile_rows * W
    est = ((H + 2) * (W + 2) * cin_p * 2        # bf16 zero-padded image scratch
           + 2 * m * cin_p * 2                  # double-buffered input band (bf16)
           + 2 * m * cout_p * 2                 # double-buffered output tile (bf16)
           + 2 * 9 * cin_p * cout_p * 2         # packed weights (double-buffered)
           + 3 * m * cin_p * 2                  # in-kernel concat slab (bf16)
           + m * cout_p * 4                     # f32 accumulator
           + 16 * cout_p * 4)                   # stats scratch / output
    cap = (phys_vmem * 3) // 4
    return int(min(max(est + (8 << 20), 32 << 20), cap))


def _pack_weights(w_oihw, cin_p, cout_p):
    """PyTorch OIHW -> padded HWIO, reshaped to (3, 3*Cin_p, Cout_p), bf16 for the MXU.
    K index within a dy group is dx*Cin_p + ci, matching the in-kernel slab layout."""
    cout, cin, kh, kw = w_oihw.shape
    w = jnp.transpose(w_oihw, (2, 3, 1, 0))                       # -> HWIO
    w = jnp.pad(w, ((0, 0), (0, 0), (0, cin_p - cin), (0, cout_p - cout)))
    return w.reshape(kh, kw * cin_p, cout_p).astype(jnp.bfloat16)


def _pad_vec(v, n):
    return jnp.pad(v, (0, n - v.shape[0]))


# ------------------------------ Pallas kernels --------------------------------


def _make_conv_kernel(H, W, cin_p, cout_p, tile_rows, n_row_tiles, apply_input_act):
    """Fused: [optional BN+ReLU prologue on the input band] -> bf16 staging into the
    zero-bordered scratch -> 3x3 'same' conv for the previous band (3 accumulating
    K=3*Cin_p MXU matmuls, f32 accumulation) -> per-channel BN-stats epilogue."""
    R = n_row_tiles

    def kernel(*refs):
        if apply_input_act:
            (x_ref, w_ref, scale_ref, shift_ref,
             y_ref, stats_ref, xpad_ref, sacc_ref) = refs
        else:
            x_ref, w_ref, y_ref, stats_ref, xpad_ref, sacc_ref = refs
            scale_ref = shift_ref = None

        r = pl.program_id(1)

        # --- per-batch init: zero ONLY the 1-pixel halo border (the interior is fully
        # overwritten by band staging) and reset the BN-statistics accumulator.
        @pl.when(r == 0)
        def _init():
            zrow = jnp.zeros((1, W + 2, cin_p), jnp.bfloat16)
            zcol = jnp.zeros((H + 2, 1, cin_p), jnp.bfloat16)
            xpad_ref[0:1, :, :] = zrow
            xpad_ref[H + 1:H + 2, :, :] = zrow
            xpad_ref[:, 0:1, :] = zcol
            xpad_ref[:, W + 1:W + 2, :] = zcol
            sacc_ref[...] = jnp.zeros_like(sacc_ref)

        # --- stage band r into the padded bf16 scratch, applying the previous layer's
        # BN+ReLU on the fly (conv2 prologue).  Math in f32, store bf16.
        @pl.when(r < R)
        def _stage():
            rows = x_ref[0, :, :, :]
            if apply_input_act:
                rows = rows.astype(jnp.float32)
                rows = rows * scale_ref[...].reshape(1, 1, cin_p)
                rows = rows + shift_ref[...].reshape(1, 1, cin_p)
                rows = jnp.maximum(rows, 0.0)
            xpad_ref[pl.ds(r * tile_rows + 1, tile_rows), 1:W + 1, :] = (
                rows.astype(jnp.bfloat16))

        # --- compute band r-1 (1-step lag: its bottom halo row was staged just above).
        @pl.when(r >= 1)
        def _compute():
            row0 = (r - 1) * tile_rows
            acc = None
            for dy in range(3):
                band = xpad_ref[pl.ds(row0 + dy, tile_rows), :, :]   # (T, W+2, Cin_p)
                slab = jnp.concatenate(
                    [band[:, 0:W, :], band[:, 1:W + 1, :], band[:, 2:W + 2, :]],
                    axis=-1).reshape(tile_rows * W, 3 * cin_p)
                part = jnp.dot(slab, w_ref[dy],
                               preferred_element_type=jnp.float32)
                acc = part if acc is None else acc + part
            # Lane-dense bf16 store of the pre-BN conv output.
            y_ref[...] = acc.reshape(1, tile_rows, W, cout_p).astype(y_ref.dtype)
            # BN statistics epilogue (f32, from the un-rounded accumulator).
            sacc_ref[0:1, :] = sacc_ref[0:1, :] + jnp.sum(acc, axis=0, keepdims=True)
            sacc_ref[1:2, :] = sacc_ref[1:2, :] + jnp.sum(acc * acc, axis=0,
                                                          keepdims=True)

        # --- emit the per-batch stats block once, at the last (extra) grid step.
        @pl.when(r == R)
        def _emit():
            stats_ref[...] = sacc_ref[...].reshape(1, 2, cout_p)

    return kernel


def _bn_relu_kernel(x_ref, scale_ref, shift_ref, o_ref):
    """Final BatchNorm (affine form) + ReLU.  Stores the full channel-padded width so
    every store is lane-dense; the channel un-pad happens at the XLA boundary."""
    cp = x_ref.shape[-1]
    scale = scale_ref[...].reshape(1, 1, 1, cp)
    shift = shift_ref[...].reshape(1, 1, 1, cp)
    o_ref[...] = jnp.maximum(x_ref[...].astype(jnp.float32) * scale + shift, 0.0)


# ------------------------------ kernel wrappers --------------------------------


def _conv3x3_bn_stats(x_p, w_packed, in_scale=None, in_shift=None, *,
                      tile_rows, vmem_limit):
    """Returns (pre-BN conv output (N,H,W,Cout_p) bf16, per-batch stats (N,2,Cout_p))."""
    N, H, W, cin_p = x_p.shape
    _, _, cout_p = w_packed.shape
    R = H // tile_rows
    apply_act = in_scale is not None

    kernel = _make_conv_kernel(H, W, cin_p, cout_p, tile_rows, R, apply_act)

    in_specs = [
        # streamed per-row-tile band (clamped at the extra last step)
        pl.BlockSpec((1, tile_rows, W, cin_p),
                     lambda n, r: (n, jnp.minimum(r, R - 1), 0, 0)),
        pl.BlockSpec((3, 3 * cin_p, cout_p), lambda n, r: (0, 0, 0)),
    ]
    operands = [x_p, w_packed]
    if apply_act:
        in_specs += [pl.BlockSpec((1, cin_p), lambda n, r: (0, 0)),
                     pl.BlockSpec((1, cin_p), lambda n, r: (0, 0))]
        operands += [in_scale.reshape(1, cin_p), in_shift.reshape(1, cin_p)]

    grid_spec = pltpu.PrefetchScalarGridSpec(
        num_scalar_prefetch=0,
        grid=(N, R + 1),               # +1 step: compute of band r-1 lags staging of r
        in_specs=in_specs,
        out_specs=(
            pl.BlockSpec((1, tile_rows, W, cout_p),
                         lambda n, r: (n, jnp.maximum(r - 1, 0), 0, 0)),
            pl.BlockSpec((1, 2, cout_p), lambda n, r: (n, 0, 0)),   # revisited across r
        ),
        scratch_shapes=[
            pltpu.VMEM((H + 2, W + 2, cin_p), jnp.bfloat16),   # zero-bordered image
            pltpu.VMEM((2, cout_p), jnp.float32),              # BN stats accumulator
        ],
    )

    return pl.pallas_call(
        kernel,
        out_shape=(
            jax.ShapeDtypeStruct((N, H, W, cout_p), jnp.bfloat16),
            jax.ShapeDtypeStruct((N, 2, cout_p), jnp.float32),
        ),
        grid_spec=grid_spec,
        compiler_params=pltpu.CompilerParams(
            # row-tile axis carries the padded-image scratch + stats accumulation and
            # must be sequential per core; batch elements shard across TensorCores.
            dimension_semantics=("parallel", "arbitrary"),
            vmem_limit_bytes=vmem_limit),
    )(*operands)


def _bn_relu_finalize(y_p, scale, shift, *, tile_rows, vmem_limit):
    N, H, W, cp = y_p.shape
    R = H // tile_rows
    return pl.pallas_call(
        _bn_relu_kernel,
        out_shape=jax.ShapeDtypeStruct((N, H, W, cp), jnp.float32),
        grid_spec=pltpu.PrefetchScalarGridSpec(
            num_scalar_prefetch=0,
            grid=(N, R),
            in_specs=[pl.BlockSpec((1, tile_rows, W, cp), lambda n, r: (n, r, 0, 0)),
                      pl.BlockSpec((1, cp), lambda n, r: (0, 0)),
                      pl.BlockSpec((1, cp), lambda n, r: (0, 0))],
            out_specs=pl.BlockSpec((1, tile_rows, W, cp), lambda n, r: (n, r, 0, 0)),
        ),
        compiler_params=pltpu.CompilerParams(
            dimension_semantics=("parallel", "parallel"),
            vmem_limit_bytes=vmem_limit),
    )(y_p, scale.reshape(1, cp), shift.reshape(1, cp))


def _bn_scale_shift(stats, gamma_p, beta_p, count, eps=_EPS):
    """Finish the (tiny) BN reduction in JAX: training-mode biased variance over (N,H,W).
    Padded channels have gamma=0 -> scale=0 -> they stay exactly zero."""
    s = jnp.sum(stats[:, 0, :], axis=0)
    ss = jnp.sum(stats[:, 1, :], axis=0)
    mean = s / count
    var = jnp.maximum(ss / count - mean * mean, 0.0)
    scale = gamma_p * lax.rsqrt(var + eps)
    shift = beta_p - mean * scale
    return scale, shift


# ------------------------------- DoubleConv ------------------------------------


def _double_conv_impl(x_nchw, params):
    """Forward pass of DoubleConv.  Input/output are NCHW like PyTorch."""
    N, cin, H, W = x_nchw.shape
    cout = params["gamma1"].shape[0]
    cin_p = _round_up(cin, LANE)
    cmid_p = _round_up(cout, LANE)

    phys_vmem = _phys_vmem_bytes()
    tile_rows = _choose_tile_rows(H, W, max(cin_p, cmid_p), cmid_p, phys_vmem)
    vmem_limit = _vmem_limit(H, W, max(cin_p, cmid_p), cmid_p, tile_rows, phys_vmem)

    # NCHW -> NHWC, pad channels to a lane multiple, cast to the MXU operand dtype.
    x = jnp.transpose(x_nchw, (0, 2, 3, 1)).astype(jnp.bfloat16)
    x = jnp.pad(x, ((0, 0), (0, 0), (0, 0), (0, cin_p - cin)))

    # Conv biases (params["b1"]/["b2"]) are intentionally NOT used: under training-mode
    # BatchNorm the per-channel bias is removed exactly by the batch-mean subtraction.
    # (If eval-mode / running-stats BN were substituted, the bias must be re-added.)
    w1 = _pack_weights(params["w1"], cin_p, cmid_p)
    w2 = _pack_weights(params["w2"], cmid_p, cmid_p)
    g1 = _pad_vec(params["gamma1"], cmid_p)
    b1 = _pad_vec(params["beta1"], cmid_p)
    g2 = _pad_vec(params["gamma2"], cmid_p)
    b2 = _pad_vec(params["beta2"], cmid_p)

    count = float(N * H * W)

    # conv1 + BN1 statistics (single fused kernel)
    y1, st1 = _conv3x3_bn_stats(x, w1, tile_rows=tile_rows, vmem_limit=vmem_limit)
    s1, sh1 = _bn_scale_shift(st1, g1, b1, count)
    # BN1 + ReLU fused into conv2's band-staging prologue; conv2 + BN2 statistics
    y2, st2 = _conv3x3_bn_stats(y1, w2, s1, sh1, tile_rows=tile_rows,
                                vmem_limit=vmem_limit)
    s2, sh2 = _bn_scale_shift(st2, g2, b2, count)
    # final BN2 + ReLU (lane-dense, channel-padded stores)
    out_nhwc = _bn_relu_finalize(y2, s2, sh2, tile_rows=tile_rows,
                                 vmem_limit=vmem_limit)
    # Boundary XLA slice drops the channel padding; transpose restores NCHW.
    return jnp.transpose(out_nhwc[..., :cout], (0, 3, 1, 2))


double_conv = jax.jit(_double_conv_impl)


# --------------------------- pure-JAX reference ---------------------------------


def double_conv_ref(x_nchw, params, eps=_EPS):
    """Faithful PyTorch semantics (conv bias included, training-mode BN).  Conv operands
    are cast to bf16 to match the kernel's MXU precision."""

    def conv(x_nhwc, w_oihw, bias):
        w = jnp.transpose(w_oihw, (2, 3, 1, 0)).astype(jnp.bfloat16)
        y = lax.conv_general_dilated(
            x_nhwc.astype(jnp.bfloat16), w, window_strides=(1, 1), padding="SAME",
            dimension_numbers=("NHWC", "HWIO", "NHWC"),
            preferred_element_type=jnp.float32)
        return y + bias[None, None, None, :]

    def bn_relu(y, gamma, beta):
        mean = jnp.mean(y, axis=(0, 1, 2))
        var = jnp.mean((y - mean) ** 2, axis=(0, 1, 2))
        return jnp.maximum((y - mean) * lax.rsqrt(var + eps) * gamma + beta, 0.0)

    x = jnp.transpose(x_nchw, (0, 2, 3, 1))
    a1 = bn_relu(conv(x, params["w1"], params["b1"]),
                 params["gamma1"], params["beta1"])
    a2 = bn_relu(conv(a1, params["w2"], params["b2"]),
                 params["gamma2"], params["beta2"])
    return jnp.transpose(a2, (0, 3, 1, 2))


# ---------------------------------- main -----------------------------------------


def init_params(key, in_channels, out_channels):
    k1, k2, k3, k4 = jax.random.split(key, 4)
    fan1 = in_channels * 9
    fan2 = out_channels * 9
    w1 = jax.random.uniform(k1, (out_channels, in_channels, 3, 3),
                            jnp.float32, -1.0, 1.0) / np.sqrt(fan1)
    b1 = jax.random.uniform(k2, (out_channels,), jnp.float32, -1.0, 1.0) / np.sqrt(fan1)
    w2 = jax.random.uniform(k3, (out_channels, out_channels, 3, 3),
                            jnp.float32, -1.0, 1.0) / np.sqrt(fan2)
    b2 = jax.random.uniform(k4, (out_channels,), jnp.float32, -1.0, 1.0) / np.sqrt(fan2)
    return {
        "w1": w1, "b1": b1,
        "gamma1": jnp.ones((out_channels,), jnp.float32),
        "beta1": jnp.zeros((out_channels,), jnp.float32),
        "w2": w2, "b2": b2,
        "gamma2": jnp.ones((out_channels,), jnp.float32),
        "beta2": jnp.zeros((out_channels,), jnp.float32),
    }


if __name__ == "__main__":
    key = jax.random.PRNGKey(0)
    k_x, k_p = jax.random.split(key)

    in_channels, out_channels = 4, 8
    N, H, W = 2, 16, 16

    x = jax.random.normal(k_x, (N, in_channels, H, W), jnp.float32)   # NCHW
    params = init_params(k_p, in_channels, out_channels)

    out = jax.block_until_ready(double_conv(x, params))
    ref = jax.block_until_ready(double_conv_ref(x, params))

    assert out.shape == (N, out_channels, H, W), out.shape
    # bf16 MXU operands and bf16 inter-layer intermediates -> looser tolerance than f32.
    np.testing.assert_allclose(np.asarray(out), np.asarray(ref), rtol=2e-2, atol=2e-2)
    print("KERNEL_OK")
</pallas_src>

<mosaic_0001>
module attributes {stable_mosaic.version = 11 : i64} {
  func.func @kernel(%arg0: i32, %arg1: i32, %arg2: memref<1x16x16x128xbf16, #tpu.memory_space<vmem>>, %arg3: memref<3x384x128xbf16, #tpu.memory_space<vmem>>, %arg4: memref<1x128xf32, #tpu.memory_space<vmem>>, %arg5: memref<1x128xf32, #tpu.memory_space<vmem>>, %arg6: memref<1x16x16x128xbf16, #tpu.memory_space<vmem>>, %arg7: memref<1x2x128xf32, #tpu.memory_space<vmem>>, %arg8: memref<18x18x128xbf16, #tpu.memory_space<vmem>>, %arg9: memref<2x128xf32, #tpu.memory_space<vmem>>) attributes {dimension_semantics = [#tpu.dimension_semantics<parallel>, #tpu.dimension_semantics<arbitrary>], iteration_bounds = array<i64: 2, 2>, scalar_prefetch = 0 : i64, scratch_operands = 2 : i64, tpu.core_type = #tpu.core_type<tc>, window_params = [{transform_indices = @transform_0, window_bounds = array<i64: 1, 16, 16, 128>}, {pipeline_mode = #tpu.pipeline_mode<synchronous>, transform_indices = @transform_1, window_bounds = array<i64: 3, 384, 128>}, {pipeline_mode = #tpu.pipeline_mode<synchronous>, transform_indices = @transform_2, window_bounds = array<i64: 1, 128>}, {pipeline_mode = #tpu.pipeline_mode<synchronous>, transform_indices = @transform_3, window_bounds = array<i64: 1, 128>}, {transform_indices = @transform_4, window_bounds = array<i64: 1, 16, 16, 128>}, {transform_indices = @transform_5, window_bounds = array<i64: 1, 2, 128>}]} {
    %c0_i32 = arith.constant 0 : i32
    %0 = arith.cmpi eq, %arg1, %c0_i32 : i32
    %1 = arith.extui %0 : i1 to i32
    %c0_i32_0 = arith.constant 0 : i32
    %2 = arith.cmpi ne, %1, %c0_i32_0 : i32
    scf.if %2 {
      %cst = arith.constant 0.000000e+00 : bf16
      %12 = vector.broadcast %cst : bf16 to vector<1x18x128xbf16>
      %cst_6 = arith.constant 0.000000e+00 : bf16
      %13 = vector.broadcast %cst_6 : bf16 to vector<18x1x128xbf16>
      %c0 = arith.constant 0 : index
      %c0_7 = arith.constant 0 : index
      %c0_8 = arith.constant 0 : index
      %14 = vector.load %arg8[%c0, %c0_7, %c0_8] : memref<18x18x128xbf16, #tpu.memory_space<vmem>>, vector<1x18x128xbf16>
      tpu.vector_store %arg8[%c0, %c0_7, %c0_8], %12 {strides = array<i32>} : memref<18x18x128xbf16, #tpu.memory_space<vmem>>, vector<1x18x128xbf16>,
      %c17 = arith.constant 17 : index
      %c0_9 = arith.constant 0 : index
      %c0_10 = arith.constant 0 : index
      %15 = vector.load %arg8[%c17, %c0_9, %c0_10] : memref<18x18x128xbf16, #tpu.memory_space<vmem>>, vector<1x18x128xbf16>
      tpu.vector_store %arg8[%c17, %c0_9, %c0_10], %12 {strides = array<i32>} : memref<18x18x128xbf16, #tpu.memory_space<vmem>>, vector<1x18x128xbf16>,
      %c0_11 = arith.constant 0 : index
      %c0_12 = arith.constant 0 : index
      %c0_13 = arith.constant 0 : index
      %16 = vector.load %arg8[%c0_11, %c0_12, %c0_13] : memref<18x18x128xbf16, #tpu.memory_space<vmem>>, vector<18x1x128xbf16>
      tpu.vector_store %arg8[%c0_11, %c0_12, %c0_13], %13 {strides = array<i32>} : memref<18x18x128xbf16, #tpu.memory_space<vmem>>, vector<18x1x128xbf16>,
      %c0_14 = arith.constant 0 : index
      %c17_15 = arith.constant 17 : index
      %c0_16 = arith.constant 0 : index
      %17 = vector.load %arg8[%c0_14, %c17_15, %c0_16] : memref<18x18x128xbf16, #tpu.memory_space<vmem>>, vector<18x1x128xbf16>
      tpu.vector_store %arg8[%c0_14, %c17_15, %c0_16], %13 {strides = array<i32>} : memref<18x18x128xbf16, #tpu.memory_space<vmem>>, vector<18x1x128xbf16>,
      %cst_17 = arith.constant 0.000000e+00 : f32
      %18 = vector.broadcast %cst_17 : f32 to vector<2x128xf32>
      %c0_18 = arith.constant 0 : index
      %c0_19 = arith.constant 0 : index
      %19 = vector.load %arg9[%c0_18, %c0_19] : memref<2x128xf32, #tpu.memory_space<vmem>>, vector<2x128xf32>
      tpu.vector_store %arg9[%c0_18, %c0_19], %18 {strides = array<i32>} : memref<2x128xf32, #tpu.memory_space<vmem>>, vector<2x128xf32>,
    } else {
    }
    %c1_i32 = arith.constant 1 : i32
    %3 = arith.cmpi slt, %arg1, %c1_i32 : i32
    %4 = arith.extui %3 : i1 to i32
    %c0_i32_1 = arith.constant 0 : i32
    %5 = arith.cmpi ne, %4, %c0_i32_1 : i32
    scf.if %5 {
      %c0 = arith.constant 0 : index
      %c0_6 = arith.constant 0 : index
      %c0_7 = arith.constant 0 : index
      %c0_8 = arith.constant 0 : index
      %12 = vector.load %arg2[%c0, %c0_6, %c0_7, %c0_8] : memref<1x16x16x128xbf16, #tpu.memory_space<vmem>>, vector<1x16x16x128xbf16>
      %13 = vector.shape_cast %12 : vector<1x16x16x128xbf16> to vector<16x16x128xbf16>
      %14 = arith.extf %13 : vector<16x16x128xbf16> to vector<16x16x128xf32>
      %c0_9 = arith.constant 0 : index
      %c0_10 = arith.constant 0 : index
      %15 = vector.load %arg4[%c0_9, %c0_10] : memref<1x128xf32, #tpu.memory_space<vmem>>, vector<1x128xf32>
      %16 = vector.shape_cast %15 : vector<1x128xf32> to vector<1x1x128xf32>
      %17 = vector.broadcast %16 : vector<1x1x128xf32> to vector<16x16x128xf32>
      %18 = arith.mulf %14, %17 : vector<16x16x128xf32>
      %c0_11 = arith.constant 0 : index
      %c0_12 = arith.constant 0 : index
      %19 = vector.load %arg5[%c0_11, %c0_12] : memref<1x128xf32, #tpu.memory_space<vmem>>, vector<1x128xf32>
      %20 = vector.shape_cast %19 : vector<1x128xf32> to vector<1x1x128xf32>
      %21 = vector.broadcast %20 : vector<1x1x128xf32> to vector<16x16x128xf32>
      %22 = arith.addf %18, %21 : vector<16x16x128xf32>
      %cst = arith.constant 0.000000e+00 : f32
      %23 = vector.broadcast %cst : f32 to vector<16x16x128xf32>
      %24 = arith.maximumf %22, %23 : vector<16x16x128xf32>
      %25 = arith.truncf %24 : vector<16x16x128xf32> to vector<16x16x128xbf16>
      %c16_i32 = arith.constant 16 : i32
      %26 = arith.muli %arg1, %c16_i32 : i32
      %c1_i32_13 = arith.constant 1 : i32
      %27 = arith.addi %26, %c1_i32_13 : i32
      %28 = arith.index_cast %27 : i32 to index
      %c1 = arith.constant 1 : index
      %c0_14 = arith.constant 0 : index
      %29 = vector.load %arg8[%28, %c1, %c0_14] : memref<18x18x128xbf16, #tpu.memory_space<vmem>>, vector<16x16x128xbf16>
      tpu.vector_store %arg8[%28, %c1, %c0_14], %25 {strides = array<i32>} : memref<18x18x128xbf16, #tpu.memory_space<vmem>>, vector<16x16x128xbf16>,
    } else {
    }
    %c1_i32_2 = arith.constant 1 : i32
    %6 = arith.cmpi sge, %arg1, %c1_i32_2 : i32
    %7 = arith.extui %6 : i1 to i32
    %c0_i32_3 = arith.constant 0 : i32
    %8 = arith.cmpi ne, %7, %c0_i32_3 : i32
    scf.if %8 {
      %c1_i32_6 = arith.constant 1 : i32
      %12 = arith.subi %arg1, %c1_i32_6 : i32
      %c16_i32 = arith.constant 16 : i32
      %13 = arith.muli %12, %c16_i32 : i32
      %c0_i32_7 = arith.constant 0 : i32
      %14 = arith.addi %13, %c0_i32_7 : i32
      %15 = arith.index_cast %14 : i32 to index
      %c0 = arith.constant 0 : index
      %c0_8 = arith.constant 0 : index
      %16 = vector.load %arg8[%15, %c0, %c0_8] : memref<18x18x128xbf16, #tpu.memory_space<vmem>>, vector<16x18x128xbf16>
      %17 = vector.extract_strided_slice %16 {offsets = [0, 0, 0], sizes = [16, 16, 128], strides = [1, 1, 1]} : vector<16x18x128xbf16> to vector<16x16x128xbf16>
      %18 = vector.extract_strided_slice %16 {offsets = [0, 1, 0], sizes = [16, 16, 128], strides = [1, 1, 1]} : vector<16x18x128xbf16> to vector<16x16x128xbf16>
      %19 = vector.extract_strided_slice %16 {offsets = [0, 2, 0], sizes = [16, 16, 128], strides = [1, 1, 1]} : vector<16x18x128xbf16> to vector<16x16x128xbf16>
      %20 = tpu.concatenate %17, %18, %19 in 2 : vector<16x16x128xbf16>, vector<16x16x128xbf16>, vector<16x16x128xbf16> -> vector<16x16x384xbf16>
      %21 = vector.shape_cast %20 : vector<16x16x384xbf16> to vector<256x384xbf16>
      %c0_9 = arith.constant 0 : index
      %c0_10 = arith.constant 0 : index
      %c0_11 = arith.constant 0 : index
      %22 = vector.load %arg3[%c0_9, %c0_10, %c0_11] : memref<3x384x128xbf16, #tpu.memory_space<vmem>>, vector<1x384x128xbf16>
      %23 = vector.shape_cast %22 : vector<1x384x128xbf16> to vector<384x128xbf16>
      %cst = arith.constant dense<0.000000e+00> : vector<256x128xf32>
      %24 = tpu.matmul %21, %23, %cst {dimension_numbers = #tpu.dot_dimension_numbers<[1], [0], [0], [1], [0, 0, 1, 1], [], []>} : vector<256x384xbf16>, vector<384x128xbf16>, vector<256x128xf32> -> vector<256x128xf32>
      %c1_i32_12 = arith.constant 1 : i32
      %25 = arith.addi %13, %c1_i32_12 : i32
      %26 = arith.index_cast %25 : i32 to index
      %c0_13 = arith.constant 0 : index
      %c0_14 = arith.constant 0 : index
      %27 = vector.load %arg8[%26, %c0_13, %c0_14] : memref<18x18x128xbf16, #tpu.memory_space<vmem>>, vector<16x18x128xbf16>
      %28 = vector.extract_strided_slice %27 {offsets = [0, 0, 0], sizes = [16, 16, 128], strides = [1, 1, 1]} : vector<16x18x128xbf16> to vector<16x16x128xbf16>
      %29 = vector.extract_strided_slice %27 {offsets = [0, 1, 0], sizes = [16, 16, 128], strides = [1, 1, 1]} : vector<16x18x128xbf16> to vector<16x16x128xbf16>
      %30 = vector.extract_strided_slice %27 {offsets = [0, 2, 0], sizes = [16, 16, 128], strides = [1, 1, 1]} : vector<16x18x128xbf16> to vector<16x16x128xbf16>
      %31 = tpu.concatenate %28, %29, %30 in 2 : vector<16x16x128xbf16>, vector<16x16x128xbf16>, vector<16x16x128xbf16> -> vector<16x16x384xbf16>
      %32 = vector.shape_cast %31 : vector<16x16x384xbf16> to vector<256x384xbf16>
      %c1 = arith.constant 1 : index
      %c0_15 = arith.constant 0 : index
      %c0_16 = arith.constant 0 : index
      %33 = vector.load %arg3[%c1, %c0_15, %c0_16] : memref<3x384x128xbf16, #tpu.memory_space<vmem>>, vector<1x384x128xbf16>
      %34 = vector.shape_cast %33 : vector<1x384x128xbf16> to vector<384x128xbf16>
      %cst_17 = arith.constant dense<0.000000e+00> : vector<256x128xf32>
      %35 = tpu.matmul %32, %34, %cst_17 {dimension_numbers = #tpu.dot_dimension_numbers<[1], [0], [0], [1], [0, 0, 1, 1], [], []>} : vector<256x384xbf16>, vector<384x128xbf16>, vector<256x128xf32> -> vector<256x128xf32>
      %36 = arith.addf %24, %35 : vector<256x128xf32>
      %c2_i32 = arith.constant 2 : i32
      %37 = arith.addi %13, %c2_i32 : i32
      %38 = arith.index_cast %37 : i32 to index
      %c0_18 = arith.constant 0 : index
      %c0_19 = arith.constant 0 : index
      %39 = vector.load %arg8[%38, %c0_18, %c0_19] : memref<18x18x128xbf16, #tpu.memory_space<vmem>>, vector<16x18x128xbf16>
      %40 = vector.extract_strided_slice %39 {offsets = [0, 0, 0], sizes = [16, 16, 128], strides = [1, 1, 1]} : vector<16x18x128xbf16> to vector<16x16x128xbf16>
      %41 = vector.extract_strided_slice %39 {offsets = [0, 1, 0], sizes = [16, 16, 128], strides = [1, 1, 1]} : vector<16x18x128xbf16> to vector<16x16x128xbf16>
      %42 = vector.extract_strided_slice %39 {offsets = [0, 2, 0], sizes = [16, 16, 128], strides = [1, 1, 1]} : vector<16x18x128xbf16> to vector<16x16x128xbf16>
      %43 = tpu.concatenate %40, %41, %42 in 2 : vector<16x16x128xbf16>, vector<16x16x128xbf16>, vector<16x16x128xbf16> -> vector<16x16x384xbf16>
      %44 = vector.shape_cast %43 : vector<16x16x384xbf16> to vector<256x384xbf16>
      %c2 = arith.constant 2 : index
      %c0_20 = arith.constant 0 : index
      %c0_21 = arith.constant 0 : index
      %45 = vector.load %arg3[%c2, %c0_20, %c0_21] : memref<3x384x128xbf16, #tpu.memory_space<vmem>>, vector<1x384x128xbf16>
      %46 = vector.shape_cast %45 : vector<1x384x128xbf16> to vector<384x128xbf16>
      %cst_22 = arith.constant dense<0.000000e+00> : vector<256x128xf32>
      %47 = tpu.matmul %44, %46, %cst_22 {dimension_numbers = #tpu.dot_dimension_numbers<[1], [0], [0], [1], [0, 0, 1, 1], [], []>} : vector<256x384xbf16>, vector<384x128xbf16>, vector<256x128xf32> -> vector<256x128xf32>
      %48 = arith.addf %36, %47 : vector<256x128xf32>
      %49 = vector.shape_cast %48 : vector<256x128xf32> to vector<1x16x16x128xf32>
      %50 = arith.truncf %49 : vector<1x16x16x128xf32> to vector<1x16x16x128xbf16>
      %c0_23 = arith.constant 0 : index
      %c0_24 = arith.constant 0 : index
      %c0_25 = arith.constant 0 : index
      %c0_26 = arith.constant 0 : index
      %51 = vector.load %arg6[%c0_23, %c0_24, %c0_25, %c0_26] : memref<1x16x16x128xbf16, #tpu.memory_space<vmem>>, vector<1x16x16x128xbf16>
      tpu.vector_store %arg6[%c0_23, %c0_24, %c0_25, %c0_26], %50 {strides = array<i32>} : memref<1x16x16x128xbf16, #tpu.memory_space<vmem>>, vector<1x16x16x128xbf16>,
      %c0_27 = arith.constant 0 : index
      %c0_28 = arith.constant 0 : index
      %52 = vector.load %arg9[%c0_27, %c0_28] : memref<2x128xf32, #tpu.memory_space<vmem>>, vector<1x128xf32>
      %cst_29 = arith.constant dense<0.000000e+00> : vector<128xf32>
      %53 = vector.multi_reduction <add>, %48, %cst_29 [0] : vector<256x128xf32> to vector<128xf32>
      %54 = vector.shape_cast %53 : vector<128xf32> to vector<1x128xf32>
      %55 = arith.addf %52, %54 : vector<1x128xf32>
      %c0_30 = arith.constant 0 : index
      %c0_31 = arith.constant 0 : index
      %56 = vector.load %arg9[%c0_30, %c0_31] : memref<2x128xf32, #tpu.memory_space<vmem>>, vector<1x128xf32>
      tpu.vector_store %arg9[%c0_30, %c0_31], %55 {strides = array<i32>} : memref<2x128xf32, #tpu.memory_space<vmem>>, vector<1x128xf32>,
      %c1_32 = arith.constant 1 : index
      %c0_33 = arith.constant 0 : index
      %57 = vector.load %arg9[%c1_32, %c0_33] : memref<2x128xf32, #tpu.memory_space<vmem>>, vector<1x128xf32>
      %58 = arith.mulf %48, %48 : vector<256x128xf32>
      %cst_34 = arith.constant dense<0.000000e+00> : vector<128xf32>
      %59 = vector.multi_reduction <add>, %58, %cst_34 [0] : vector<256x128xf32> to vector<128xf32>
      %60 = vector.shape_cast %59 : vector<128xf32> to vector<1x128xf32>
      %61 = arith.addf %57, %60 : vector<1x128xf32>
      %c1_35 = arith.constant 1 : index
      %c0_36 = arith.constant 0 : index
      %62 = vector.load %arg9[%c1_35, %c0_36] : memref<2x128xf32, #tpu.memory_space<vmem>>, vector<1x128xf32>
      tpu.vector_store %arg9[%c1_35, %c0_36], %61 {strides = array<i32>} : memref<2x128xf32, #tpu.memory_space<vmem>>, vector<1x128xf32>,
    } else {
    }
    %c1_i32_4 = arith.constant 1 : i32
    %9 = arith.cmpi eq, %arg1, %c1_i32_4 : i32
    %10 = arith.extui %9 : i1 to i32
    %c0_i32_5 = arith.constant 0 : i32
    %11 = arith.cmpi ne, %10, %c0_i32_5 : i32
    scf.if %11 {
      %c0 = arith.constant 0 : index
      %c0_6 = arith.constant 0 : index
      %12 = vector.load %arg9[%c0, %c0_6] : memref<2x128xf32, #tpu.memory_space<vmem>>, vector<2x128xf32>
      %13 = vector.shape_cast %12 : vector<2x128xf32> to vector<1x2x128xf32>
      %c0_7 = arith.constant 0 : index
      %c0_8 = arith.constant 0 : index
      %c0_9 = arith.constant 0 : index
      %14 = vector.load %arg7[%c0_7, %c0_8, %c0_9] : memref<1x2x128xf32, #tpu.memory_space<vmem>>, vector<1x2x128xf32>
      tpu.vector_store %arg7[%c0_7, %c0_8, %c0_9], %13 {strides = array<i32>} : memref<1x2x128xf32, #tpu.memory_space<vmem>>, vector<1x2x128xf32>,
    } else {
    }
    return
  }
  func.func @transform_0(%arg0: i32, %arg1: i32) -> (i32, i32, i32, i32) {
    %c0_i32 = arith.constant 0 : i32
    %0 = arith.minsi %arg1, %c0_i32 : i32
    %c0_i32_0 = arith.constant 0 : i32
    %c0_i32_1 = arith.constant 0 : i32
    %c0_i32_2 = arith.constant 0 : i32
    return %arg0, %0, %c0_i32_0, %c0_i32_1 : i32, i32, i32, i32
  }
  func.func @transform_1(%arg0: i32, %arg1: i32) -> (i32, i32, i32) {
    %c0_i32 = arith.constant 0 : i32
    %c0_i32_0 = arith.constant 0 : i32
    %c0_i32_1 = arith.constant 0 : i32
    %c0_i32_2 = arith.constant 0 : i32
    return %c0_i32, %c0_i32_0, %c0_i32_1 : i32, i32, i32
  }
  func.func @transform_2(%arg0: i32, %arg1: i32) -> (i32, i32) {
    %c0_i32 = arith.constant 0 : i32
    %c0_i32_0 = arith.constant 0 : i32
    %c0_i32_1 = arith.constant 0 : i32
    return %c0_i32, %c0_i32_0 : i32, i32
  }
  func.func @transform_3(%arg0: i32, %arg1: i32) -> (i32, i32) {
    %c0_i32 = arith.constant 0 : i32
    %c0_i32_0 = arith.constant 0 : i32
    %c0_i32_1 = arith.constant 0 : i32
    return %c0_i32, %c0_i32_0 : i32, i32
  }
  func.func @transform_4(%arg0: i32, %arg1: i32) -> (i32, i32, i32, i32) {
    %c1_i32 = arith.constant 1 : i32
    %0 = arith.subi %arg1, %c1_i32 : i32
    %c0_i32 = arith.constant 0 : i32
    %1 = arith.maxsi %0, %c0_i32 : i32
    %c0_i32_0 = arith.constant 0 : i32
    %c0_i32_1 = arith.constant 0 : i32
    %c0_i32_2 = arith.constant 0 : i32
    return %arg0, %1, %c0_i32_0, %c0_i32_1 : i32, i32, i32, i32
  }
  func.func @transform_5(%arg0: i32, %arg1: i32) -> (i32, i32, i32) {
    %c0_i32 = arith.constant 0 : i32
    %c0_i32_0 = arith.constant 0 : i32
    %c0_i32_1 = arith.constant 0 : i32
    return %arg0, %c0_i32, %c0_i32_0 : i32, i32, i32
  }
}

module attributes {stable_mosaic.version = 11 : i64} {
  func.func @kernel(%arg0: i32, %arg1: i32, %arg2: memref<1x16x16x128xbf16, #tpu.memory_space<vmem>>, %arg3: memref<3x384x128xbf16, #tpu.memory_space<vmem>>, %arg4: memref<1x16x16x128xbf16, #tpu.memory_space<vmem>>, %arg5: memref<1x2x128xf32, #tpu.memory_space<vmem>>, %arg6: memref<18x18x128xbf16, #tpu.memory_space<vmem>>, %arg7: memref<2x128xf32, #tpu.memory_space<vmem>>) attributes {dimension_semantics = [#tpu.dimension_semantics<parallel>, #tpu.dimension_semantics<arbitrary>], iteration_bounds = array<i64: 2, 2>, scalar_prefetch = 0 : i64, scratch_operands = 2 : i64, tpu.core_type = #tpu.core_type<tc>, window_params = [{transform_indices = @transform_0, window_bounds = array<i64: 1, 16, 16, 128>}, {pipeline_mode = #tpu.pipeline_mode<synchronous>, transform_indices = @transform_1, window_bounds = array<i64: 3, 384, 128>}, {transform_indices = @transform_2, window_bounds = array<i64: 1, 16, 16, 128>}, {transform_indices = @transform_3, window_bounds = array<i64: 1, 2, 128>}]} {
    %c0_i32 = arith.constant 0 : i32
    %0 = arith.cmpi eq, %arg1, %c0_i32 : i32
    %1 = arith.extui %0 : i1 to i32
    %c0_i32_0 = arith.constant 0 : i32
    %2 = arith.cmpi ne, %1, %c0_i32_0 : i32
    scf.if %2 {
      %cst = arith.constant 0.000000e+00 : bf16
      %12 = vector.broadcast %cst : bf16 to vector<1x18x128xbf16>
      %cst_6 = arith.constant 0.000000e+00 : bf16
      %13 = vector.broadcast %cst_6 : bf16 to vector<18x1x128xbf16>
      %c0 = arith.constant 0 : index
      %c0_7 = arith.constant 0 : index
      %c0_8 = arith.constant 0 : index
      %14 = vector.load %arg6[%c0, %c0_7, %c0_8] : memref<18x18x128xbf16, #tpu.memory_space<vmem>>, vector<1x18x128xbf16>
      tpu.vector_store %arg6[%c0, %c0_7, %c0_8], %12 {strides = array<i32>} : memref<18x18x128xbf16, #tpu.memory_space<vmem>>, vector<1x18x128xbf16>,
      %c17 = arith.constant 17 : index
      %c0_9 = arith.constant 0 : index
      %c0_10 = arith.constant 0 : index
      %15 = vector.load %arg6[%c17, %c0_9, %c0_10] : memref<18x18x128xbf16, #tpu.memory_space<vmem>>, vector<1x18x128xbf16>
      tpu.vector_store %arg6[%c17, %c0_9, %c0_10], %12 {strides = array<i32>} : memref<18x18x128xbf16, #tpu.memory_space<vmem>>, vector<1x18x128xbf16>,
      %c0_11 = arith.constant 0 : index
      %c0_12 = arith.constant 0 : index
      %c0_13 = arith.constant 0 : index
      %16 = vector.load %arg6[%c0_11, %c0_12, %c0_13] : memref<18x18x128xbf16, #tpu.memory_space<vmem>>, vector<18x1x128xbf16>
      tpu.vector_store %arg6[%c0_11, %c0_12, %c0_13], %13 {strides = array<i32>} : memref<18x18x128xbf16, #tpu.memory_space<vmem>>, vector<18x1x128xbf16>,
      %c0_14 = arith.constant 0 : index
      %c17_15 = arith.constant 17 : index
      %c0_16 = arith.constant 0 : index
      %17 = vector.load %arg6[%c0_14, %c17_15, %c0_16] : memref<18x18x128xbf16, #tpu.memory_space<vmem>>, vector<18x1x128xbf16>
      tpu.vector_store %arg6[%c0_14, %c17_15, %c0_16], %13 {strides = array<i32>} : memref<18x18x128xbf16, #tpu.memory_space<vmem>>, vector<18x1x128xbf16>,
      %cst_17 = arith.constant 0.000000e+00 : f32
      %18 = vector.broadcast %cst_17 : f32 to vector<2x128xf32>
      %c0_18 = arith.constant 0 : index
      %c0_19 = arith.constant 0 : index
      %19 = vector.load %arg7[%c0_18, %c0_19] : memref<2x128xf32, #tpu.memory_space<vmem>>, vector<2x128xf32>
      tpu.vector_store %arg7[%c0_18, %c0_19], %18 {strides = array<i32>} : memref<2x128xf32, #tpu.memory_space<vmem>>, vector<2x128xf32>,
    } else {
    }
    %c1_i32 = arith.constant 1 : i32
    %3 = arith.cmpi slt, %arg1, %c1_i32 : i32
    %4 = arith.extui %3 : i1 to i32
    %c0_i32_1 = arith.constant 0 : i32
    %5 = arith.cmpi ne, %4, %c0_i32_1 : i32
    scf.if %5 {
      %c0 = arith.constant 0 : index
      %c0_6 = arith.constant 0 : index
      %c0_7 = arith.constant 0 : index
      %c0_8 = arith.constant 0 : index
      %12 = vector.load %arg2[%c0, %c0_6, %c0_7, %c0_8] : memref<1x16x16x128xbf16, #tpu.memory_space<vmem>>, vector<1x16x16x128xbf16>
      %13 = vector.shape_cast %12 : vector<1x16x16x128xbf16> to vector<16x16x128xbf16>
      %c16_i32 = arith.constant 16 : i32
      %14 = arith.muli %arg1, %c16_i32 : i32
      %c1_i32_9 = arith.constant 1 : i32
      %15 = arith.addi %14, %c1_i32_9 : i32
      %16 = arith.index_cast %15 : i32 to index
      %c1 = arith.constant 1 : index
      %c0_10 = arith.constant 0 : index
      %17 = vector.load %arg6[%16, %c1, %c0_10] : memref<18x18x128xbf16, #tpu.memory_space<vmem>>, vector<16x16x128xbf16>
      tpu.vector_store %arg6[%16, %c1, %c0_10], %13 {strides = array<i32>} : memref<18x18x128xbf16, #tpu.memory_space<vmem>>, vector<16x16x128xbf16>,
    } else {
    }
    %c1_i32_2 = arith.constant 1 : i32
    %6 = arith.cmpi sge, %arg1, %c1_i32_2 : i32
    %7 = arith.extui %6 : i1 to i32
    %c0_i32_3 = arith.constant 0 : i32
    %8 = arith.cmpi ne, %7, %c0_i32_3 : i32
    scf.if %8 {
      %c1_i32_6 = arith.constant 1 : i32
      %12 = arith.subi %arg1, %c1_i32_6 : i32
      %c16_i32 = arith.constant 16 : i32
      %13 = arith.muli %12, %c16_i32 : i32
      %c0_i32_7 = arith.constant 0 : i32
      %14 = arith.addi %13, %c0_i32_7 : i32
      %15 = arith.index_cast %14 : i32 to index
      %c0 = arith.constant 0 : index
      %c0_8 = arith.constant 0 : index
      %16 = vector.load %arg6[%15, %c0, %c0_8] : memref<18x18x128xbf16, #tpu.memory_space<vmem>>, vector<16x18x128xbf16>
      %17 = vector.extract_strided_slice %16 {offsets = [0, 0, 0], sizes = [16, 16, 128], strides = [1, 1, 1]} : vector<16x18x128xbf16> to vector<16x16x128xbf16>
      %18 = vector.extract_strided_slice %16 {offsets = [0, 1, 0], sizes = [16, 16, 128], strides = [1, 1, 1]} : vector<16x18x128xbf16> to vector<16x16x128xbf16>
      %19 = vector.extract_strided_slice %16 {offsets = [0, 2, 0], sizes = [16, 16, 128], strides = [1, 1, 1]} : vector<16x18x128xbf16> to vector<16x16x128xbf16>
      %20 = tpu.concatenate %17, %18, %19 in 2 : vector<16x16x128xbf16>, vector<16x16x128xbf16>, vector<16x16x128xbf16> -> vector<16x16x384xbf16>
      %21 = vector.shape_cast %20 : vector<16x16x384xbf16> to vector<256x384xbf16>
      %c0_9 = arith.constant 0 : index
      %c0_10 = arith.constant 0 : index
      %c0_11 = arith.constant 0 : index
      %22 = vector.load %arg3[%c0_9, %c0_10, %c0_11] : memref<3x384x128xbf16, #tpu.memory_space<vmem>>, vector<1x384x128xbf16>
      %23 = vector.shape_cast %22 : vector<1x384x128xbf16> to vector<384x128xbf16>
      %cst = arith.constant dense<0.000000e+00> : vector<256x128xf32>
      %24 = tpu.matmul %21, %23, %cst {dimension_numbers = #tpu.dot_dimension_numbers<[1], [0], [0], [1], [0, 0, 1, 1], [], []>} : vector<256x384xbf16>, vector<384x128xbf16>, vector<256x128xf32> -> vector<256x128xf32>
      %c1_i32_12 = arith.constant 1 : i32
      %25 = arith.addi %13, %c1_i32_12 : i32
      %26 = arith.index_cast %25 : i32 to index
      %c0_13 = arith.constant 0 : index
      %c0_14 = arith.constant 0 : index
      %27 = vector.load %arg6[%26, %c0_13, %c0_14] : memref<18x18x128xbf16, #tpu.memory_space<vmem>>, vector<16x18x128xbf16>
      %28 = vector.extract_strided_slice %27 {offsets = [0, 0, 0], sizes = [16, 16, 128], strides = [1, 1, 1]} : vector<16x18x128xbf16> to vector<16x16x128xbf16>
      %29 = vector.extract_strided_slice %27 {offsets = [0, 1, 0], sizes = [16, 16, 128], strides = [1, 1, 1]} : vector<16x18x128xbf16> to vector<16x16x128xbf16>
      %30 = vector.extract_strided_slice %27 {offsets = [0, 2, 0], sizes = [16, 16, 128], strides = [1, 1, 1]} : vector<16x18x128xbf16> to vector<16x16x128xbf16>
      %31 = tpu.concatenate %28, %29, %30 in 2 : vector<16x16x128xbf16>, vector<16x16x128xbf16>, vector<16x16x128xbf16> -> vector<16x16x384xbf16>
      %32 = vector.shape_cast %31 : vector<16x16x384xbf16> to vector<256x384xbf16>
      %c1 = arith.constant 1 : index
      %c0_15 = arith.constant 0 : index
      %c0_16 = arith.constant 0 : index
      %33 = vector.load %arg3[%c1, %c0_15, %c0_16] : memref<3x384x128xbf16, #tpu.memory_space<vmem>>, vector<1x384x128xbf16>
      %34 = vector.shape_cast %33 : vector<1x384x128xbf16> to vector<384x128xbf16>
      %cst_17 = arith.constant dense<0.000000e+00> : vector<256x128xf32>
      %35 = tpu.matmul %32, %34, %cst_17 {dimension_numbers = #tpu.dot_dimension_numbers<[1], [0], [0], [1], [0, 0, 1, 1], [], []>} : vector<256x384xbf16>, vector<384x128xbf16>, vector<256x128xf32> -> vector<256x128xf32>
      %36 = arith.addf %24, %35 : vector<256x128xf32>
      %c2_i32 = arith.constant 2 : i32
      %37 = arith.addi %13, %c2_i32 : i32
      %38 = arith.index_cast %37 : i32 to index
      %c0_18 = arith.constant 0 : index
      %c0_19 = arith.constant 0 : index
      %39 = vector.load %arg6[%38, %c0_18, %c0_19] : memref<18x18x128xbf16, #tpu.memory_space<vmem>>, vector<16x18x128xbf16>
      %40 = vector.extract_strided_slice %39 {offsets = [0, 0, 0], sizes = [16, 16, 128], strides = [1, 1, 1]} : vector<16x18x128xbf16> to vector<16x16x128xbf16>
      %41 = vector.extract_strided_slice %39 {offsets = [0, 1, 0], sizes = [16, 16, 128], strides = [1, 1, 1]} : vector<16x18x128xbf16> to vector<16x16x128xbf16>
      %42 = vector.extract_strided_slice %39 {offsets = [0, 2, 0], sizes = [16, 16, 128], strides = [1, 1, 1]} : vector<16x18x128xbf16> to vector<16x16x128xbf16>
      %43 = tpu.concatenate %40, %41, %42 in 2 : vector<16x16x128xbf16>, vector<16x16x128xbf16>, vector<16x16x128xbf16> -> vector<16x16x384xbf16>
      %44 = vector.shape_cast %43 : vector<16x16x384xbf16> to vector<256x384xbf16>
      %c2 = arith.constant 2 : index
      %c0_20 = arith.constant 0 : index
      %c0_21 = arith.constant 0 : index
      %45 = vector.load %arg3[%c2, %c0_20, %c0_21] : memref<3x384x128xbf16, #tpu.memory_space<vmem>>, vector<1x384x128xbf16>
      %46 = vector.shape_cast %45 : vector<1x384x128xbf16> to vector<384x128xbf16>
      %cst_22 = arith.constant dense<0.000000e+00> : vector<256x128xf32>
      %47 = tpu.matmul %44, %46, %cst_22 {dimension_numbers = #tpu.dot_dimension_numbers<[1], [0], [0], [1], [0, 0, 1, 1], [], []>} : vector<256x384xbf16>, vector<384x128xbf16>, vector<256x128xf32> -> vector<256x128xf32>
      %48 = arith.addf %36, %47 : vector<256x128xf32>
      %49 = vector.shape_cast %48 : vector<256x128xf32> to vector<1x16x16x128xf32>
      %50 = arith.truncf %49 : vector<1x16x16x128xf32> to vector<1x16x16x128xbf16>
      %c0_23 = arith.constant 0 : index
      %c0_24 = arith.constant 0 : index
      %c0_25 = arith.constant 0 : index
      %c0_26 = arith.constant 0 : index
      %51 = vector.load %arg4[%c0_23, %c0_24, %c0_25, %c0_26] : memref<1x16x16x128xbf16, #tpu.memory_space<vmem>>, vector<1x16x16x128xbf16>
      tpu.vector_store %arg4[%c0_23, %c0_24, %c0_25, %c0_26], %50 {strides = array<i32>} : memref<1x16x16x128xbf16, #tpu.memory_space<vmem>>, vector<1x16x16x128xbf16>,
      %c0_27 = arith.constant 0 : index
      %c0_28 = arith.constant 0 : index
      %52 = vector.load %arg7[%c0_27, %c0_28] : memref<2x128xf32, #tpu.memory_space<vmem>>, vector<1x128xf32>
      %cst_29 = arith.constant dense<0.000000e+00> : vector<128xf32>
      %53 = vector.multi_reduction <add>, %48, %cst_29 [0] : vector<256x128xf32> to vector<128xf32>
      %54 = vector.shape_cast %53 : vector<128xf32> to vector<1x128xf32>
      %55 = arith.addf %52, %54 : vector<1x128xf32>
      %c0_30 = arith.constant 0 : index
      %c0_31 = arith.constant 0 : index
      %56 = vector.load %arg7[%c0_30, %c0_31] : memref<2x128xf32, #tpu.memory_space<vmem>>, vector<1x128xf32>
      tpu.vector_store %arg7[%c0_30, %c0_31], %55 {strides = array<i32>} : memref<2x128xf32, #tpu.memory_space<vmem>>, vector<1x128xf32>,
      %c1_32 = arith.constant 1 : index
      %c0_33 = arith.constant 0 : index
      %57 = vector.load %arg7[%c1_32, %c0_33] : memref<2x128xf32, #tpu.memory_space<vmem>>, vector<1x128xf32>
      %58 = arith.mulf %48, %48 : vector<256x128xf32>
      %cst_34 = arith.constant dense<0.000000e+00> : vector<128xf32>
      %59 = vector.multi_reduction <add>, %58, %cst_34 [0] : vector<256x128xf32> to vector<128xf32>
      %60 = vector.shape_cast %59 : vector<128xf32> to vector<1x128xf32>
      %61 = arith.addf %57, %60 : vector<1x128xf32>
      %c1_35 = arith.constant 1 : index
      %c0_36 = arith.constant 0 : index
      %62 = vector.load %arg7[%c1_35, %c0_36] : memref<2x128xf32, #tpu.memory_space<vmem>>, vector<1x128xf32>
      tpu.vector_store %arg7[%c1_35, %c0_36], %61 {strides = array<i32>} : memref<2x128xf32, #tpu.memory_space<vmem>>, vector<1x128xf32>,
    } else {
    }
    %c1_i32_4 = arith.constant 1 : i32
    %9 = arith.cmpi eq, %arg1, %c1_i32_4 : i32
    %10 = arith.extui %9 : i1 to i32
    %c0_i32_5 = arith.constant 0 : i32
    %11 = arith.cmpi ne, %10, %c0_i32_5 : i32
    scf.if %11 {
      %c0 = arith.constant 0 : index
      %c0_6 = arith.constant 0 : index
      %12 = vector.load %arg7[%c0, %c0_6] : memref<2x128xf32, #tpu.memory_space<vmem>>, vector<2x128xf32>
      %13 = vector.shape_cast %12 : vector<2x128xf32> to vector<1x2x128xf32>
      %c0_7 = arith.constant 0 : index
      %c0_8 = arith.constant 0 : index
      %c0_9 = arith.constant 0 : index
      %14 = vector.load %arg5[%c0_7, %c0_8, %c0_9] : memref<1x2x128xf32, #tpu.memory_space<vmem>>, vector<1x2x128xf32>
      tpu.vector_store %arg5[%c0_7, %c0_8, %c0_9], %13 {strides = array<i32>} : memref<1x2x128xf32, #tpu.memory_space<vmem>>, vector<1x2x128xf32>,
    } else {
    }
    return
  }
  func.func @transform_0(%arg0: i32, %arg1: i32) -> (i32, i32, i32, i32) {
    %c0_i32 = arith.constant 0 : i32
    %0 = arith.minsi %arg1, %c0_i32 : i32
    %c0_i32_0 = arith.constant 0 : i32
    %c0_i32_1 = arith.constant 0 : i32
    %c0_i32_2 = arith.constant 0 : i32
    return %arg0, %0, %c0_i32_0, %c0_i32_1 : i32, i32, i32, i32
  }
  func.func @transform_1(%arg0: i32, %arg1: i32) -> (i32, i32, i32) {
    %c0_i32 = arith.constant 0 : i32
    %c0_i32_0 = arith.constant 0 : i32
    %c0_i32_1 = arith.constant 0 : i32
    %c0_i32_2 = arith.constant 0 : i32
    return %c0_i32, %c0_i32_0, %c0_i32_1 : i32, i32, i32
  }
  func.func @transform_2(%arg0: i32, %arg1: i32) -> (i32, i32, i32, i32) {
    %c1_i32 = arith.constant 1 : i32
    %0 = arith.subi %arg1, %c1_i32 : i32
    %c0_i32 = arith.constant 0 : i32
    %1 = arith.maxsi %0, %c0_i32 : i32
    %c0_i32_0 = arith.constant 0 : i32
    %c0_i32_1 = arith.constant 0 : i32
    %c0_i32_2 = arith.constant 0 : i32
    return %arg0, %1, %c0_i32_0, %c0_i32_1 : i32, i32, i32, i32
  }
  func.func @transform_3(%arg0: i32, %arg1: i32) -> (i32, i32, i32) {
    %c0_i32 = arith.constant 0 : i32
    %c0_i32_0 = arith.constant 0 : i32
    %c0_i32_1 = arith.constant 0 : i32
    return %arg0, %c0_i32, %c0_i32_0 : i32, i32, i32
  }
}

module attributes {stable_mosaic.version = 11 : i64} {
  func.func @_bn_relu_kernel(%arg0: i32, %arg1: i32, %arg2: memref<1x16x16x128xbf16, #tpu.memory_space<vmem>>, %arg3: memref<1x128xf32, #tpu.memory_space<vmem>>, %arg4: memref<1x128xf32, #tpu.memory_space<vmem>>, %arg5: memref<1x16x16x128xf32, #tpu.memory_space<vmem>>) attributes {dimension_semantics = [#tpu.dimension_semantics<parallel>, #tpu.dimension_semantics<parallel>], iteration_bounds = array<i64: 2, 1>, scalar_prefetch = 0 : i64, scratch_operands = 0 : i64, tpu.core_type = #tpu.core_type<tc>, window_params = [{transform_indices = @transform_0, window_bounds = array<i64: 1, 16, 16, 128>}, {pipeline_mode = #tpu.pipeline_mode<synchronous>, transform_indices = @transform_1, window_bounds = array<i64: 1, 128>}, {pipeline_mode = #tpu.pipeline_mode<synchronous>, transform_indices = @transform_2, window_bounds = array<i64: 1, 128>}, {transform_indices = @transform_3, window_bounds = array<i64: 1, 16, 16, 128>}]} {
    %c0 = arith.constant 0 : index
    %c0_0 = arith.constant 0 : index
    %0 = vector.load %arg3[%c0, %c0_0] : memref<1x128xf32, #tpu.memory_space<vmem>>, vector<1x128xf32>
    %1 = vector.shape_cast %0 : vector<1x128xf32> to vector<1x1x1x128xf32>
    %c0_1 = arith.constant 0 : index
    %c0_2 = arith.constant 0 : index
    %2 = vector.load %arg4[%c0_1, %c0_2] : memref<1x128xf32, #tpu.memory_space<vmem>>, vector<1x128xf32>
    %3 = vector.shape_cast %2 : vector<1x128xf32> to vector<1x1x1x128xf32>
    %c0_3 = arith.constant 0 : index
    %c0_4 = arith.constant 0 : index
    %c0_5 = arith.constant 0 : index
    %c0_6 = arith.constant 0 : index
    %4 = vector.load %arg2[%c0_3, %c0_4, %c0_5, %c0_6] : memref<1x16x16x128xbf16, #tpu.memory_space<vmem>>, vector<1x16x16x128xbf16>
    %5 = arith.extf %4 : vector<1x16x16x128xbf16> to vector<1x16x16x128xf32>
    %6 = vector.broadcast %1 : vector<1x1x1x128xf32> to vector<1x16x16x128xf32>
    %7 = arith.mulf %5, %6 : vector<1x16x16x128xf32>
    %8 = vector.broadcast %3 : vector<1x1x1x128xf32> to vector<1x16x16x128xf32>
    %9 = arith.addf %7, %8 : vector<1x16x16x128xf32>
    %cst = arith.constant 0.000000e+00 : f32
    %10 = vector.broadcast %cst : f32 to vector<1x16x16x128xf32>
    %11 = arith.maximumf %9, %10 : vector<1x16x16x128xf32>
    %c0_7 = arith.constant 0 : index
    %c0_8 = arith.constant 0 : index
    %c0_9 = arith.constant 0 : index
    %c0_10 = arith.constant 0 : index
    %12 = vector.load %arg5[%c0_7, %c0_8, %c0_9, %c0_10] : memref<1x16x16x128xf32, #tpu.memory_space<vmem>>, vector<1x16x16x128xf32>
    tpu.vector_store %arg5[%c0_7, %c0_8, %c0_9, %c0_10], %11 {strides = array<i32>} : memref<1x16x16x128xf32, #tpu.memory_space<vmem>>, vector<1x16x16x128xf32>,
    return
  }
  func.func @transform_0(%arg0: i32, %arg1: i32) -> (i32, i32, i32, i32) {
    %c0_i32 = arith.constant 0 : i32
    %c0_i32_0 = arith.constant 0 : i32
    %c0_i32_1 = arith.constant 0 : i32
    return %arg0, %arg1, %c0_i32, %c0_i32_0 : i32, i32, i32, i32
  }
  func.func @transform_1(%arg0: i32, %arg1: i32) -> (i32, i32) {
    %c0_i32 = arith.constant 0 : i32
    %c0_i32_0 = arith.constant 0 : i32
    %c0_i32_1 = arith.constant 0 : i32
    return %c0_i32, %c0_i32_0 : i32, i32
  }
  func.func @transform_2(%arg0: i32, %arg1: i32) -> (i32, i32) {
    %c0_i32 = arith.constant 0 : i32
    %c0_i32_0 = arith.constant 0 : i32
    %c0_i32_1 = arith.constant 0 : i32
    return %c0_i32, %c0_i32_0 : i32, i32
  }
  func.func @transform_3(%arg0: i32, %arg1: i32) -> (i32, i32, i32, i32) {
    %c0_i32 = arith.constant 0 : i32
    %c0_i32_0 = arith.constant 0 : i32
    %c0_i32_1 = arith.constant 0 : i32
    return %arg0, %arg1, %c0_i32, %c0_i32_0 : i32, i32, i32, i32
  }
}

</mosaic_0001>

<llo_original>
// kernel: _double_conv_impl.5
$region0: #{_double_conv_impl.5}
  #allocation0 [shape = 'u32[]', space=smem, size = 0x4, offset = 0x4, fixed_abs, tag = 'smem constant byte address 0x4 - core index']
  #allocation1 [shape = 'u32[144,128]{1,0:T(1,128)}', space=vmem, size = 0x12000, scoped, tag = 'internal scratch']
  %s0 = inlined_call_operand.vmem [shape: bf16[2,16,16,128], index: 0, kind: input, shape index: {}]
  %s1 = inlined_call_operand.vmem [shape: f32[1,128], index: 1, kind: input, shape index: {}]
  %s2 = inlined_call_operand.vmem [shape: f32[1,128], index: 2, kind: input, shape index: {}]
  %s3 = inlined_call_operand.vmem [shape: f32[2,16,16,128], index: 3, kind: output, shape index: {}]
  %s4 = sld [smem:[#allocation0]]
  $region45: #{_double_conv_impl.5} parent=0
    _
  %s6 = ssub.s32 1, %s4
  %s7 = scalar_select 0, %s6, %s4
  loop: start=0, step=1, limit=4
  $region2: #{_double_conv_impl.5} parent=0 // loop_pre_header
    _
  $region3: #{_double_conv_impl.5} parent=0 // loop_header
    %s9 = sphi 0, %s13
    %p10 = scmp.ge.s32.totalorder %s9, 4
    %s16 = sphi 0, %s28
    %s17 = sphi 0, %s24
    %s18 = sphi 0, %s16
    %s19 = sphi 0, %s17
    %s20 = sphi 0, %s18
    %s21 = sphi 0, %s19
    %s33 = sphi 0, %s35
    %s36 = sphi 0, %s33
    %s37 = sphi 0, %s36
    %s53 = sphi 0, %s37
    %s57 = sphi 0, %s57
    %s59 = sphi 0, %s57
    %s60 = sphi 0, %s59
    %s74 = sphi 0, %s60
    %s78 = sphi 0, %s78
    %s80 = sphi 0, %s78
    %s81 = sphi 0, %s80
    %s95 = sphi 0, %s81
    %s103 = sphi 0, %s105
    %s106 = sphi 0, %s103
    %s107 = sphi 0, %s106
    %s123 = sphi 0, %s107
  $region4: #{_double_conv_impl.5} parent=0 // loop_header_branch
    %12 = sbr.rel (%p10) target = $region8
  $region5: #{_double_conv_impl.5} parent=0 // loop_body
    %s14 = ssub.s32 %s9, 1
    %s15 = ssub.s32 %s9, 2
    %s22 = sadd.s32 1, %s17
    %p23 = scmp.ge.s32.totalorder %s22, 1
    %s24 = scalar_select %p23, 0, %s22
    %s25 = sadd.s32 1, %s16
    %s26 = scalar_select %p23, %s25, %s16
    %p27 = scmp.ge.s32.totalorder %s26, 2
    %s28 = scalar_select %p27, 0, %s26
    %s29 = ssub.s32 %s16, %s28
    %s30 = ssub.s32 %s17, %s24
    %s31 = sor.u32 %s29, %s30
    %p32 = scmp.eq.s32.totalorder %s31, 0
    %s34 = sadd.s32 %s33, 1
    %s35 = scalar_select %p32, %s33, %s34
    %p38 = pneg %p32
    %p39 = scmp.eq.s32.totalorder %s9, 1
    %p40 = por %p38, %p39
    %p41 = scmp.ne.s32.totalorder %s33, %s36
    %p42 = scmp.eq.s32.totalorder %s9, 0
    %p43 = por %p41, %p42
    %p44 = scmp.ne.s32.totalorder %s33, %s36
    %p45 = scmp.eq.s32.totalorder %s14, 1
    %p46 = por %p44, %p45
    %p47 = scmp.ne.s32.totalorder %s36, %s37
    %p48 = scmp.eq.s32.totalorder %s14, 0
    %p49 = por %p47, %p48
    %p50 = scmp.ne.s32.totalorder %s36, %s37
    %p51 = scmp.eq.s32.totalorder %s15, 1
    %p52 = por %p50, %p51
    %p54 = scmp.ne.s32.totalorder %s37, %s53
    %p55 = scmp.eq.s32.totalorder %s15, 0
    %p56 = por %p54, %p55
    %s58 = sadd.s32 %s57, 1
    %p61 = scmp.eq.s32.totalorder %s9, 1
    %p62 = scmp.ne.s32.totalorder %s57, %s59
    %p63 = scmp.eq.s32.totalorder %s9, 0
    %p64 = por %p62, %p63
    %p65 = scmp.ne.s32.totalorder %s57, %s59
    %p66 = scmp.eq.s32.totalorder %s14, 1
    %p67 = por %p65, %p66
    %p68 = scmp.ne.s32.totalorder %s59, %s60
    %p69 = scmp.eq.s32.totalorder %s14, 0
    %p70 = por %p68, %p69
    %p71 = scmp.ne.s32.totalorder %s59, %s60
    %p72 = scmp.eq.s32.totalorder %s15, 1
    %p73 = por %p71, %p72
    %p75 = scmp.ne.s32.totalorder %s60, %s74
    %p76 = scmp.eq.s32.totalorder %s15, 0
    %p77 = por %p75, %p76
    %s79 = sadd.s32 %s78, 1
    %p82 = scmp.eq.s32.totalorder %s9, 1
    %p83 = scmp.ne.s32.totalorder %s78, %s80
    %p84 = scmp.eq.s32.totalorder %s9, 0
    %p85 = por %p83, %p84
    %p86 = scmp.ne.s32.totalorder %s78, %s80
    %p87 = scmp.eq.s32.totalorder %s14, 1
    %p88 = por %p86, %p87
    %p89 = scmp.ne.s32.totalorder %s80, %s81
    %p90 = scmp.eq.s32.totalorder %s14, 0
    %p91 = por %p89, %p90
    %p92 = scmp.ne.s32.totalorder %s80, %s81
    %p93 = scmp.eq.s32.totalorder %s15, 1
    %p94 = por %p92, %p93
    %p96 = scmp.ne.s32.totalorder %s81, %s95
    %p97 = scmp.eq.s32.totalorder %s15, 0
    %p98 = por %p96, %p97
    %s99 = ssub.s32 %s16, %s28
    %s100 = ssub.s32 %s17, %s24
    %s101 = sor.u32 %s99, %s100
    %p102 = scmp.eq.s32.totalorder %s101, 0
    %s104 = sadd.s32 %s103, 1
    %s105 = scalar_select %p102, %s103, %s104
    %p108 = pneg %p102
    %p109 = scmp.eq.s32.totalorder %s9, 1
    %p110 = por %p108, %p109
    %p111 = scmp.ne.s32.totalorder %s103, %s106
    %p112 = scmp.eq.s32.totalorder %s9, 0
    %p113 = por %p111, %p112
    %p114 = scmp.ne.s32.totalorder %s103, %s106
    %p115 = scmp.eq.s32.totalorder %s14, 1
    %p116 = por %p114, %p115
    %p117 = scmp.ne.s32.totalorder %s106, %s107
    %p118 = scmp.eq.s32.totalorder %s14, 0
    %p119 = por %p117, %p118
    %p120 = scmp.ne.s32.totalorder %s106, %s107
    %p121 = scmp.eq.s32.totalorder %s15, 1
    %p122 = por %p120, %p121
    %p124 = scmp.ne.s32.totalorder %s107, %s123
    %p125 = scmp.eq.s32.totalorder %s15, 0
    %p126 = por %p124, %p125
    %p127 = scmp.le.s32.totalorder 1, %s9
    %p128 = scmp.lt.s32.totalorder %s9, 3
    %p129 = pnand %p127, %p128
    %p130 = pneg %p129
    // Predicated region
    $region9: #{_double_conv_impl.5} parent=5 // pred_check
      _
    $region10: #{_double_conv_impl.5} parent=5 // pred_check_branch
      %132 = sbr.rel (%p129) target = $region12
    $region11: #{_double_conv_impl.5} parent=5 // pred_region
      %s133 = ssub.s32 %s9, 1
      // Predicated region
      $region13: #{_double_conv_impl.5} parent=11 // pred_check
        %p134 = pneg %p70
      $region14: #{_double_conv_impl.5} parent=11 // pred_check_branch
        %136 = sbr.rel (%p134) target = $region16
      $region15: #{_double_conv_impl.5} parent=11 // pred_region
        _
      $region16: #{_double_conv_impl.5} parent=11 // pred_fallthru
        _
      // Predicated region
      $region17: #{_double_conv_impl.5} parent=11 // pred_check
        %p137 = pneg %p91
      $region18: #{_double_conv_impl.5} parent=11 // pred_check_branch
        %139 = sbr.rel (%p137) target = $region20
      $region19: #{_double_conv_impl.5} parent=11 // pred_region
        _
      $region20: #{_double_conv_impl.5} parent=11 // pred_fallthru
        _
    $region12: #{_double_conv_impl.5} parent=5 // pred_fallthru
      _
    %p140 = scmp.lt.s32.totalorder %s9, 2
    // Predicated region
    $region21: #{_double_conv_impl.5} parent=5 // pred_check
      %p141 = pneg %p140
    $region22: #{_double_conv_impl.5} parent=5 // pred_check_branch
      %143 = sbr.rel (%p141) target = $region24
    $region23: #{_double_conv_impl.5} parent=5 // pred_region
      // Predicated region
      $region25: #{_double_conv_impl.5} parent=23 // pred_check
        %p144 = pneg %p43
      $region26: #{_double_conv_impl.5} parent=23 // pred_check_branch
        %146 = sbr.rel (%p144) target = $region28
      $region27: #{_double_conv_impl.5} parent=23 // pred_region
        %s147 = smul.u32 16, %s17
        %p148 = scmp.lt.s32.totalorder %s16, 1
        %s149 = scalar_select %p148, %s16, 1
        %p150 = scmp.lt.s32.totalorder %s147, 15
        %s151 = scalar_select %p150, %s147, 15
        %s152 = smul.addr %s151, 2
        %s153 = smul.addr %s149, 32
        %s154 = sadd.s32 %s152, %s153
        %s155 = smul.addr %s154, 4
        %s156 = scalar_lea.vmem %s0, %s155
        %s157 = smul.u32 16, %s17
      $region28: #{_double_conv_impl.5} parent=23 // pred_fallthru
        _
    $region24: #{_double_conv_impl.5} parent=5 // pred_fallthru
      _
    %p158 = scmp.le.s32.totalorder 1, %s9
    %p159 = scmp.lt.s32.totalorder %s9, 3
    %p160 = pnand %p158, %p159
    %p161 = pneg %p160
    // Predicated region
    $region29: #{_double_conv_impl.5} parent=5 // pred_check
      _
    $region30: #{_double_conv_impl.5} parent=5 // pred_check_branch
      %163 = sbr.rel (%p160) target = $region32
    $region31: #{_double_conv_impl.5} parent=5 // pred_region
      %s164 = ssub.s32 %s9, 1
      %s165 = smul.u32 16, %s19
      %p166 = scmp.lt.s32.totalorder %s18, 1
      %s167 = scalar_select %p166, %s18, 1
      %p168 = scmp.lt.s32.totalorder %s165, 15
      %s169 = scalar_select %p168, %s165, 15
      %s170 = smul.addr %s169, 2
      %s171 = smul.addr %s167, 32
      %s172 = sadd.s32 %s170, %s171
      %s173 = smul.addr %s172, 4
      %s174 = scalar_lea.vmem %s0, %s173
      %p175 = pneg %p49
      %p176 = pneg %p46
      %p177 = pneg %p70
      %p178 = pneg %p67
      %p179 = pneg %p91
      %p180 = pneg %p88
      %p181 = pneg %p119
      %p182 = pneg %p116
      %s183 = smul.u32 16, %s19
      %p184 = scmp.lt.s32.totalorder %s18, 1
      %s185 = scalar_select %p184, %s18, 1
      %p186 = scmp.lt.s32.totalorder %s183, 15
      %s187 = scalar_select %p186, %s183, 15
      %s188 = smul.addr %s187, 2
      %s189 = smul.addr %s185, 32
      %s190 = sadd.s32 %s188, %s189
      %s191 = smul.addr %s190, 8
      %s192 = scalar_lea.vmem %s3, %s191
      %s193 = smul.u32 16, %s19
      %p194 = scmp.lt.s32.totalorder %s18, 1
      %s195 = scalar_select %p194, %s18, 1
      %p196 = scmp.lt.s32.totalorder %s193, 15
      %s197 = scalar_select %p196, %s193, 15
      %s198 = smul.addr %s197, 2
      %s199 = smul.addr %s195, 32
      %s200 = sadd.s32 %s198, %s199
      %s201 = smul.addr %s200, 4
      %s202 = scalar_lea.vmem %s0, %s201
      %s203 = smul.u32 16, %s19
      %s204 = smul.u32 16, %s19
      %p205 = scmp.lt.s32.totalorder %s18, 1
      %s206 = scalar_select %p205, %s18, 1
      %p207 = scmp.lt.s32.totalorder %s204, 15
      %s208 = scalar_select %p207, %s204, 15
      %s209 = smul.addr %s208, 2
      %s210 = smul.addr %s206, 32
      %s211 = sadd.s32 %s209, %s210
      %s212 = smul.addr %s211, 8
      %s213 = scalar_lea.vmem %s3, %s212
      %s214 = smul.u32 16, %s19
      %v215 = vld [vmem:[%s1] sm:$0x1]
      %v216 = vld [vmem:[%s2] sm:$0x1]
      %v217 = vld [vmem:[%s202] sm:$0xf]
      %v218 = vld [vmem:[%s202 + $0x4] sm:$0xf]
      %v219 = vld [vmem:[%s202 + $0x8] sm:$0xf]
      %v220 = vld [vmem:[%s202 + $0xc] sm:$0xf]
      %v221 = vld [vmem:[%s202 + $0x10] sm:$0xf]
      %v222 = vld [vmem:[%s202 + $0x14] sm:$0xf]
      %v223 = vld [vmem:[%s202 + $0x18] sm:$0xf]
      %v224 = vld [vmem:[%s202 + $0x1c] sm:$0xf]
      %v225 = vld [vmem:[%s202 + $0x20] sm:$0xf]
      %v226 = vld [vmem:[%s202 + $0x24] sm:$0xf]
      %v227 = vld [vmem:[%s202 + $0x28] sm:$0xf]
      %v228 = vld [vmem:[%s202 + $0x2c] sm:$0xf]
      %v229 = vld [vmem:[%s202 + $0x30] sm:$0xf]
      %v230 = vld [vmem:[%s202 + $0x34] sm:$0xf]
      %v231 = vld [vmem:[%s202 + $0x38] sm:$0xf]
      %v232 = vld [vmem:[%s202 + $0x3c] sm:$0xf]
      %v233 = vld [vmem:[%s202 + $0x40] sm:$0xf]
      %v234 = vld [vmem:[%s202 + $0x44] sm:$0xf]
      %v235 = vld [vmem:[%s202 + $0x48] sm:$0xf]
      %v236 = vld [vmem:[%s202 + $0x4c] sm:$0xf]
      %v237 = vld [vmem:[%s202 + $0x50] sm:$0xf]
      %v238 = vld [vmem:[%s202 + $0x54] sm:$0xf]
      %v239 = vld [vmem:[%s202 + $0x58] sm:$0xf]
      %v240 = vld [vmem:[%s202 + $0x5c] sm:$0xf]
      %v241 = vld [vmem:[%s202 + $0x60] sm:$0xf]
      %v242 = vld [vmem:[%s202 + $0x64] sm:$0xf]
      %v243 = vld [vmem:[%s202 + $0x68] sm:$0xf]
      %v244 = vld [vmem:[%s202 + $0x6c] sm:$0xf]
      %v245 = vld [vmem:[%s202 + $0x70] sm:$0xf]
      %v246 = vld [vmem:[%s202 + $0x74] sm:$0xf]
      %v247 = vld [vmem:[%s202 + $0x78] sm:$0xf]
      %v248 = vld [vmem:[%s202 + $0x7c] sm:$0xf]
      %v249 = vunpack.c.l.bf16 %v217
      %v250 = vunpack.c.l.bf16 %v218
      %v251 = vunpack.c.l.bf16 %v219
      %v252 = vunpack.c.l.bf16 %v220
      %v253 = vunpack.c.l.bf16 %v221
      %v254 = vunpack.c.l.bf16 %v222
      %v255 = vunpack.c.l.bf16 %v223
      %v256 = vunpack.c.l.bf16 %v224
      %v257 = vunpack.c.l.bf16 %v225
      %v258 = vunpack.c.l.bf16 %v226
      %v259 = vunpack.c.l.bf16 %v227
      %v260 = vunpack.c.l.bf16 %v228
      %v261 = vunpack.c.l.bf16 %v229
      %v262 = vunpack.c.l.bf16 %v230
      %v263 = vunpack.c.l.bf16 %v231
      %v264 = vunpack.c.l.bf16 %v232
      %v265 = vunpack.c.l.bf16 %v233
      %v266 = vunpack.c.l.bf16 %v234
      %v267 = vunpack.c.l.bf16 %v235
      %v268 = vunpack.c.l.bf16 %v236
      %v269 = vunpack.c.l.bf16 %v237
      %v270 = vunpack.c.l.bf16 %v238
      %v271 = vunpack.c.l.bf16 %v239
      %v272 = vunpack.c.l.bf16 %v240
      %v273 = vunpack.c.l.bf16 %v241
      %v274 = vunpack.c.l.bf16 %v242
      %v275 = vunpack.c.l.bf16 %v243
      %v276 = vunpack.c.l.bf16 %v244
      %v277 = vunpack.c.l.bf16 %v245
      %v278 = vunpack.c.l.bf16 %v246
      %v279 = vunpack.c.l.bf16 %v247
      %v280 = vunpack.c.l.bf16 %v248
      %v282 = vlaneseq
      %v283 = vshrl.u32 %v282, 7
      %v284 = vsub.s32 0, %v283
      %v285 = vrot.slane %v215, %v284
      %v287 = vmul.f32 %v249, %v285
      %v288 = vmul.f32 %v250, %v285
      %v289 = vmul.f32 %v251, %v285
      %v290 = vmul.f32 %v252, %v285
      %v291 = vmul.f32 %v253, %v285
      %v292 = vmul.f32 %v254, %v285
      %v293 = vmul.f32 %v255, %v285
      %v294 = vmul.f32 %v256, %v285
      %v295 = vmul.f32 %v257, %v285
      %v296 = vmul.f32 %v258, %v285
      %v297 = vmul.f32 %v259, %v285
      %v298 = vmul.f32 %v260, %v285
      %v299 = vmul.f32 %v261, %v285
      %v300 = vmul.f32 %v262, %v285
      %v301 = vmul.f32 %v263, %v285
      %v302 = vmul.f32 %v264, %v285
      %v303 = vmul.f32 %v265, %v285
      %v304 = vmul.f32 %v266, %v285
      %v305 = vmul.f32 %v267, %v285
      %v306 = vmul.f32 %v268, %v285
      %v307 = vmul.f32 %v269, %v285
      %v308 = vmul.f32 %v270, %v285
      %v309 = vmul.f32 %v271, %v285
      %v310 = vmul.f32 %v272, %v285
      %v311 = vmul.f32 %v273, %v285
      %v312 = vmul.f32 %v274, %v285
      %v313 = vmul.f32 %v275, %v285
      %v314 = vmul.f32 %v276, %v285
      %v315 = vmul.f32 %v277, %v285
      %v316 = vmul.f32 %v278, %v285
      %v317 = vmul.f32 %v279, %v285
      %v318 = vmul.f32 %v280, %v285
      %v320 = vlaneseq
      %v321 = vshrl.u32 %v320, 7
      %v322 = vsub.s32 0, %v321
      %v323 = vrot.slane %v216, %v322
      %v325 = vadd.f32 %v287, %v323
      %v326 = vadd.f32 %v288, %v323
      %v327 = vadd.f32 %v289, %v323
      %v328 = vadd.f32 %v290, %v323
      %v329 = vadd.f32 %v291, %v323
      %v330 = vadd.f32 %v292, %v323
      %v331 = vadd.f32 %v293, %v323
      %v332 = vadd.f32 %v294, %v323
      %v333 = vadd.f32 %v295, %v323
      %v334 = vadd.f32 %v296, %v323
      %v335 = vadd.f32 %v297, %v323
      %v336 = vadd.f32 %v298, %v323
      %v337 = vadd.f32 %v299, %v323
      %v338 = vadd.f32 %v300, %v323
      %v339 = vadd.f32 %v301, %v323
      %v340 = vadd.f32 %v302, %v323
      %v341 = vadd.f32 %v303, %v323
      %v342 = vadd.f32 %v304, %v323
      %v343 = vadd.f32 %v305, %v323
      %v344 = vadd.f32 %v306, %v323
      %v345 = vadd.f32 %v307, %v323
      %v346 = vadd.f32 %v308, %v323
      %v347 = vadd.f32 %v309, %v323
      %v348 = vadd.f32 %v310, %v323
      %v349 = vadd.f32 %v311, %v323
      %v350 = vadd.f32 %v312, %v323
      %v351 = vadd.f32 %v313, %v323
      %v352 = vadd.f32 %v314, %v323
      %v353 = vadd.f32 %v315, %v323
      %v354 = vadd.f32 %v316, %v323
      %v355 = vadd.f32 %v317, %v323
      %v356 = vadd.f32 %v318, %v323
      %v357 = vmax.f32 %v325, 0.0
      %v358 = vmax.f32 %v326, 0.0
      %v359 = vmax.f32 %v327, 0.0
      %v360 = vmax.f32 %v328, 0.0
      %v361 = vmax.f32 %v329, 0.0
      %v362 = vmax.f32 %v330, 0.0
      %v363 = vmax.f32 %v331, 0.0
      %v364 = vmax.f32 %v332, 0.0
      %v365 = vmax.f32 %v333, 0.0
      %v366 = vmax.f32 %v334, 0.0
      %v367 = vmax.f32 %v335, 0.0
      %v368 = vmax.f32 %v336, 0.0
      %v369 = vmax.f32 %v337, 0.0
      %v370 = vmax.f32 %v338, 0.0
      %v371 = vmax.f32 %v339, 0.0
      %v372 = vmax.f32 %v340, 0.0
      %v373 = vmax.f32 %v341, 0.0
      %v374 = vmax.f32 %v342, 0.0
      %v375 = vmax.f32 %v343, 0.0
      %v376 = vmax.f32 %v344, 0.0
      %v377 = vmax.f32 %v345, 0.0
      %v378 = vmax.f32 %v346, 0.0
      %v379 = vmax.f32 %v347, 0.0
      %v380 = vmax.f32 %v348, 0.0
      %v381 = vmax.f32 %v349, 0.0
      %v382 = vmax.f32 %v350, 0.0
      %v383 = vmax.f32 %v351, 0.0
      %v384 = vmax.f32 %v352, 0.0
      %v385 = vmax.f32 %v353, 0.0
      %v386 = vmax.f32 %v354, 0.0
      %v387 = vmax.f32 %v355, 0.0
      %v388 = vmax.f32 %v356, 0.0
      %389 = vst [vmem:[%s213] sm:$0xff] %v357
      %390 = vst [vmem:[%s213 + $0x8] sm:$0xff] %v358
      %391 = vst [vmem:[%s213 + $0x10] sm:$0xff] %v359
      %392 = vst [vmem:[%s213 + $0x18] sm:$0xff] %v360
      %393 = vst [vmem:[%s213 + $0x20] sm:$0xff] %v361
      %394 = vst [vmem:[%s213 + $0x28] sm:$0xff] %v362
      %395 = vst [vmem:[%s213 + $0x30] sm:$0xff] %v363
      %396 = vst [vmem:[%s213 + $0x38] sm:$0xff] %v364
      %397 = vst [vmem:[%s213 + $0x40] sm:$0xff] %v365
      %398 = vst [vmem:[%s213 + $0x48] sm:$0xff] %v366
      %399 = vst [vmem:[%s213 + $0x50] sm:$0xff] %v367
      %400 = vst [vmem:[%s213 + $0x58] sm:$0xff] %v368
      %401 = vst [vmem:[%s213 + $0x60] sm:$0xff] %v369
      %402 = vst [vmem:[%s213 + $0x68] sm:$0xff] %v370
      %403 = vst [vmem:[%s213 + $0x70] sm:$0xff] %v371
      %404 = vst [vmem:[%s213 + $0x78] sm:$0xff] %v372
      %405 = vst [vmem:[%s213 + $0x80] sm:$0xff] %v373
      %406 = vst [vmem:[%s213 + $0x88] sm:$0xff] %v374
      %407 = vst [vmem:[%s213 + $0x90] sm:$0xff] %v375
      %408 = vst [vmem:[%s213 + $0x98] sm:$0xff] %v376
      %409 = vst [vmem:[%s213 + $0xa0] sm:$0xff] %v377
      %410 = vst [vmem:[%s213 + $0xa8] sm:$0xff] %v378
      %411 = vst [vmem:[%s213 + $0xb0] sm:$0xff] %v379
      %412 = vst [vmem:[%s213 + $0xb8] sm:$0xff] %v380
      %413 = vst [vmem:[%s213 + $0xc0] sm:$0xff] %v381
      %414 = vst [vmem:[%s213 + $0xc8] sm:$0xff] %v382
      %415 = vst [vmem:[%s213 + $0xd0] sm:$0xff] %v383
      %416 = vst [vmem:[%s213 + $0xd8] sm:$0xff] %v384
      %417 = vst [vmem:[%s213 + $0xe0] sm:$0xff] %v385
      %418 = vst [vmem:[%s213 + $0xe8] sm:$0xff] %v386
      %419 = vst [vmem:[%s213 + $0xf0] sm:$0xff] %v387
      %420 = vst [vmem:[%s213 + $0xf8] sm:$0xff] %v388
      %s421 = smul.u32 16, %s19
      %p422 = scmp.lt.s32.totalorder %s18, 1
      %s423 = scalar_select %p422, %s18, 1
      %p424 = scmp.lt.s32.totalorder %s421, 15
      %s425 = scalar_select %p424, %s421, 15
      %s426 = smul.addr %s425, 2
      %s427 = smul.addr %s423, 32
      %s428 = sadd.s32 %s426, %s427
      %s429 = smul.addr %s428, 8
      %s430 = scalar_lea.vmem %s3, %s429
      // Predicated region
      $region33: #{_double_conv_impl.5} parent=31 // pred_check
        %p431 = pneg %p116
      $region34: #{_double_conv_impl.5} parent=31 // pred_check_branch
        %433 = sbr.rel (%p431) target = $region36
      $region35: #{_double_conv_impl.5} parent=31 // pred_region
        %s434 = smul.u32 16, %s19
      $region36: #{_double_conv_impl.5} parent=31 // pred_fallthru
        _
    $region32: #{_double_conv_impl.5} parent=5 // pred_fallthru
      _
    %p435 = scmp.le.s32.totalorder 2, %s9
    // Predicated region
    $region37: #{_double_conv_impl.5} parent=5 // pred_check
      %p436 = pneg %p435
    $region38: #{_double_conv_impl.5} parent=5 // pred_check_branch
      %438 = sbr.rel (%p436) target = $region40
    $region39: #{_double_conv_impl.5} parent=5 // pred_region
      %s439 = ssub.s32 %s9, 2
      // Predicated region
      $region41: #{_double_conv_impl.5} parent=39 // pred_check
        %p440 = pneg %p122
      $region42: #{_double_conv_impl.5} parent=39 // pred_check_branch
        %442 = sbr.rel (%p440) target = $region44
      $region43: #{_double_conv_impl.5} parent=39 // pred_region
        %s443 = smul.u32 16, %s21
        %p444 = scmp.lt.s32.totalorder %s20, 1
        %s445 = scalar_select %p444, %s20, 1
        %p446 = scmp.lt.s32.totalorder %s443, 15
        %s447 = scalar_select %p446, %s443, 15
        %s448 = smul.addr %s447, 2
        %s449 = smul.addr %s445, 32
        %s450 = sadd.s32 %s448, %s449
        %s451 = smul.addr %s450, 8
        %s452 = scalar_lea.vmem %s3, %s451
      $region44: #{_double_conv_impl.5} parent=39 // pred_fallthru
        _
    $region40: #{_double_conv_impl.5} parent=5 // pred_fallthru
      _
  $region6: #{_double_conv_impl.5} parent=0 // loop_footer
    %s13 = sadd.s32 1, %s9
  $region7: #{_double_conv_impl.5} parent=0 // loop_footer_branch
    %8 = sbr.rel target = $region3
  $region8: #{_double_conv_impl.5} parent=0 // loop_exit
    _

// kernel: _double_conv_impl.3
$region0: #{_double_conv_impl.3}
  #allocation0 [shape = 'u32[]', space=smem, size = 0x4, offset = 0x4, fixed_abs, tag = 'smem constant byte address 0x4 - core index']
  #allocation1 [shape = 'u32[144,128]{1,0:T(1,128)}', space=vmem, size = 0x12000, scoped, tag = 'internal scratch']
  #allocation2 [shape = 'bf16[18,18,128]{2,1,0:T(8,128)(2,1)}', space=vmem, size = 0x1b000, scoped, tag = 'scratch operand']
  #allocation3 [shape = 'f32[2,128]{1,0:T(2,128)}', space=vmem, size = 0x400, scoped, tag = 'scratch operand']
  %s0 = inlined_call_operand.vmem [shape: bf16[2,16,16,128], index: 0, kind: input, shape index: {}]
  %s1 = inlined_call_operand.vmem [shape: bf16[3,384,128], index: 1, kind: input, shape index: {}]
  %s2 = inlined_call_operand.vmem [shape: bf16[2,16,16,128], index: 2, kind: output, shape index: {0}]
  %s3 = inlined_call_operand.vmem [shape: f32[2,2,128], index: 3, kind: output, shape index: {1}]
  %4 = xla_tuple %s2, %s3
  %s5 = sld [smem:[#allocation0]]
  $region65: #{_double_conv_impl.3} parent=0
    _
  %s7 = ssub.s32 1, %s5
  %s8 = scalar_select 0, %s7, %s5
  loop: start=0, step=1, limit=6
  $region2: #{_double_conv_impl.3} parent=0 // loop_pre_header
    _
  $region3: #{_double_conv_impl.3} parent=0 // loop_header
    %s10 = sphi 0, %s14
    %p11 = scmp.ge.s32.totalorder %s10, 6
    %s17 = sphi 0, %s29
    %s18 = sphi 0, %s25
    %s19 = sphi 0, %s17
    %s20 = sphi 0, %s18
    %s21 = sphi 0, %s19
    %s22 = sphi 0, %s20
    %s38 = sphi 0, %s40
    %s41 = sphi 0, %s38
    %s42 = sphi 0, %s41
    %s58 = sphi 0, %s42
    %s62 = sphi 0, %s62
    %s64 = sphi 0, %s62
    %s65 = sphi 0, %s64
    %s79 = sphi 0, %s65
    %s93 = sphi 0, %s95
    %s96 = sphi 0, %s93
    %s97 = sphi 0, %s96
    %s113 = sphi 0, %s97
    %s119 = sphi 0, %s121
    %s122 = sphi 0, %s119
    %s123 = sphi 0, %s122
    %s139 = sphi 0, %s123
  $region4: #{_double_conv_impl.3} parent=0 // loop_header_branch
    %13 = sbr.rel (%p11) target = $region8
  $region5: #{_double_conv_impl.3} parent=0 // loop_body
    %s15 = ssub.s32 %s10, 1
    %s16 = ssub.s32 %s10, 2
    %s23 = sadd.s32 1, %s18
    %p24 = scmp.ge.s32.totalorder %s23, 2
    %s25 = scalar_select %p24, 0, %s23
    %s26 = sadd.s32 1, %s17
    %s27 = scalar_select %p24, %s26, %s17
    %p28 = scmp.ge.s32.totalorder %s27, 2
    %s29 = scalar_select %p28, 0, %s27
    %p30 = scmp.lt.s32.totalorder %s18, 0
    %s31 = scalar_select %p30, %s18, 0
    %p32 = scmp.lt.s32.totalorder %s25, 0
    %s33 = scalar_select %p32, %s25, 0
    %s34 = ssub.s32 %s17, %s29
    %s35 = ssub.s32 %s31, %s33
    %s36 = sor.u32 %s34, %s35
    %p37 = scmp.eq.s32.totalorder %s36, 0
    %s39 = sadd.s32 %s38, 1
    %s40 = scalar_select %p37, %s38, %s39
    %p43 = pneg %p37
    %p44 = scmp.eq.s32.totalorder %s10, 3
    %p45 = por %p43, %p44
    %p46 = scmp.ne.s32.totalorder %s38, %s41
    %p47 = scmp.eq.s32.totalorder %s10, 0
    %p48 = por %p46, %p47
    %p49 = scmp.ne.s32.totalorder %s38, %s41
    %p50 = scmp.eq.s32.totalorder %s15, 3
    %p51 = por %p49, %p50
    %p52 = scmp.ne.s32.totalorder %s41, %s42
    %p53 = scmp.eq.s32.totalorder %s15, 0
    %p54 = por %p52, %p53
    %p55 = scmp.ne.s32.totalorder %s41, %s42
    %p56 = scmp.eq.s32.totalorder %s16, 3
    %p57 = por %p55, %p56
    %p59 = scmp.ne.s32.totalorder %s42, %s58
    %p60 = scmp.eq.s32.totalorder %s16, 0
    %p61 = por %p59, %p60
    %s63 = sadd.s32 %s62, 1
    %p66 = scmp.eq.s32.totalorder %s10, 3
    %p67 = scmp.ne.s32.totalorder %s62, %s64
    %p68 = scmp.eq.s32.totalorder %s10, 0
    %p69 = por %p67, %p68
    %p70 = scmp.ne.s32.totalorder %s62, %s64
    %p71 = scmp.eq.s32.totalorder %s15, 3
    %p72 = por %p70, %p71
    %p73 = scmp.ne.s32.totalorder %s64, %s65
    %p74 = scmp.eq.s32.totalorder %s15, 0
    %p75 = por %p73, %p74
    %p76 = scmp.ne.s32.totalorder %s64, %s65
    %p77 = scmp.eq.s32.totalorder %s16, 3
    %p78 = por %p76, %p77
    %p80 = scmp.ne.s32.totalorder %s65, %s79
    %p81 = scmp.eq.s32.totalorder %s16, 0
    %p82 = por %p80, %p81
    %s83 = ssub.s32 %s18, 1
    %p84 = scmp.gt.s32.totalorder %s83, 0
    %s85 = scalar_select %p84, %s83, 0
    %s86 = ssub.s32 %s25, 1
    %p87 = scmp.gt.s32.totalorder %s86, 0
    %s88 = scalar_select %p87, %s86, 0
    %s89 = ssub.s32 %s17, %s29
    %s90 = ssub.s32 %s85, %s88
    %s91 = sor.u32 %s89, %s90
    %p92 = scmp.eq.s32.totalorder %s91, 0
    %s94 = sadd.s32 %s93, 1
    %s95 = scalar_select %p92, %s93, %s94
    %p98 = pneg %p92
    %p99 = scmp.eq.s32.totalorder %s10, 3
    %p100 = por %p98, %p99
    %p101 = scmp.ne.s32.totalorder %s93, %s96
    %p102 = scmp.eq.s32.totalorder %s10, 0
    %p103 = por %p101, %p102
    %p104 = scmp.ne.s32.totalorder %s93, %s96
    %p105 = scmp.eq.s32.totalorder %s15, 3
    %p106 = por %p104, %p105
    %p107 = scmp.ne.s32.totalorder %s96, %s97
    %p108 = scmp.eq.s32.totalorder %s15, 0
    %p109 = por %p107, %p108
    %p110 = scmp.ne.s32.totalorder %s96, %s97
    %p111 = scmp.eq.s32.totalorder %s16, 3
    %p112 = por %p110, %p111
    %p114 = scmp.ne.s32.totalorder %s97, %s113
    %p115 = scmp.eq.s32.totalorder %s16, 0
    %p116 = por %p114, %p115
    %s117 = ssub.s32 %s17, %s29
    %p118 = scmp.eq.s32.totalorder %s117, 0
    %s120 = sadd.s32 %s119, 1
    %s121 = scalar_select %p118, %s119, %s120
    %p124 = pneg %p118
    %p125 = scmp.eq.s32.totalorder %s10, 3
    %p126 = por %p124, %p125
    %p127 = scmp.ne.s32.totalorder %s119, %s122
    %p128 = scmp.eq.s32.totalorder %s10, 0
    %p129 = por %p127, %p128
    %p130 = scmp.ne.s32.totalorder %s119, %s122
    %p131 = scmp.eq.s32.totalorder %s15, 3
    %p132 = por %p130, %p131
    %p133 = scmp.ne.s32.totalorder %s122, %s123
    %p134 = scmp.eq.s32.totalorder %s15, 0
    %p135 = por %p133, %p134
    %p136 = scmp.ne.s32.totalorder %s122, %s123
    %p137 = scmp.eq.s32.totalorder %s16, 3
    %p138 = por %p136, %p137
    %p140 = scmp.ne.s32.totalorder %s123, %s139
    %p141 = scmp.eq.s32.totalorder %s16, 0
    %p142 = por %p140, %p141
    %p143 = scmp.le.s32.totalorder 1, %s10
    %p144 = scmp.lt.s32.totalorder %s10, 5
    %p145 = pnand %p143, %p144
    %p146 = pneg %p145
    // Predicated region
    $region9: #{_double_conv_impl.3} parent=5 // pred_check
      _
    $region10: #{_double_conv_impl.3} parent=5 // pred_check_branch
      %148 = sbr.rel (%p145) target = $region12
    $region11: #{_double_conv_impl.3} parent=5 // pred_region
      %s149 = ssub.s32 %s10, 1
      // Predicated region
      $region13: #{_double_conv_impl.3} parent=11 // pred_check
        %p150 = pneg %p75
      $region14: #{_double_conv_impl.3} parent=11 // pred_check_branch
        %152 = sbr.rel (%p150) target = $region16
      $region15: #{_double_conv_impl.3} parent=11 // pred_region
        _
      $region16: #{_double_conv_impl.3} parent=11 // pred_fallthru
        _
    $region12: #{_double_conv_impl.3} parent=5 // pred_fallthru
      _
    %p153 = scmp.lt.s32.totalorder %s10, 4
    // Predicated region
    $region17: #{_double_conv_impl.3} parent=5 // pred_check
      %p154 = pneg %p153
    $region18: #{_double_conv_impl.3} parent=5 // pred_check_branch
      %156 = sbr.rel (%p154) target = $region20
    $region19: #{_double_conv_impl.3} parent=5 // pred_region
      // Predicated region
      $region21: #{_double_conv_impl.3} parent=19 // pred_check
        %p157 = pneg %p48
      $region22: #{_double_conv_impl.3} parent=19 // pred_check_branch
        %159 = sbr.rel (%p157) target = $region24
      $region23: #{_double_conv_impl.3} parent=19 // pred_region
        %p160 = scmp.lt.s32.totalorder %s18, 0
        %s161 = scalar_select %p160, %s18, 0
        %s162 = smul.u32 16, %s161
        %p163 = scmp.lt.s32.totalorder %s17, 1
        %s164 = scalar_select %p163, %s17, 1
        %p165 = scmp.lt.s32.totalorder %s162, 15
        %s166 = scalar_select %p165, %s162, 15
        %s167 = smul.addr %s166, 2
        %s168 = smul.addr %s164, 32
        %s169 = sadd.s32 %s167, %s168
        %s170 = smul.addr %s169, 4
        %s171 = scalar_lea.vmem %s0, %s170
        %p172 = scmp.lt.s32.totalorder %s18, 0
        %s173 = scalar_select %p172, %s18, 0
        %s174 = smul.u32 16, %s173
      $region24: #{_double_conv_impl.3} parent=19 // pred_fallthru
        _
    $region20: #{_double_conv_impl.3} parent=5 // pred_fallthru
      _
    %p175 = scmp.le.s32.totalorder 1, %s10
    %p176 = scmp.lt.s32.totalorder %s10, 5
    %p177 = pnand %p175, %p176
    %p178 = pneg %p177
    // Predicated region
    $region25: #{_double_conv_impl.3} parent=5 // pred_check
      _
    $region26: #{_double_conv_impl.3} parent=5 // pred_check_branch
      %180 = sbr.rel (%p177) target = $region28
    $region27: #{_double_conv_impl.3} parent=5 // pred_region
      %s181 = ssub.s32 %s10, 1
      %p182 = scmp.lt.s32.totalorder %s20, 0
      %s183 = scalar_select %p182, %s20, 0
      %s184 = smul.u32 16, %s183
      %p185 = scmp.lt.s32.totalorder %s19, 1
      %s186 = scalar_select %p185, %s19, 1
      %p187 = scmp.lt.s32.totalorder %s184, 15
      %s188 = scalar_select %p187, %s184, 15
      %s189 = smul.addr %s188, 2
      %s190 = smul.addr %s186, 32
      %s191 = sadd.s32 %s189, %s190
      %s192 = smul.addr %s191, 4
      %s193 = scalar_lea.vmem %s0, %s192
      %p194 = pneg %p54
      %p195 = pneg %p51
      %p196 = pneg %p75
      %p197 = pneg %p72
      %p198 = pneg %p109
      %p199 = pneg %p106
      %s200 = ssub.s32 %s20, 1
      %p201 = scmp.gt.s32.totalorder %s200, 0
      %s202 = scalar_select %p201, %s200, 0
      %s203 = smul.u32 16, %s202
      %p204 = scmp.lt.s32.totalorder %s19, 1
      %s205 = scalar_select %p204, %s19, 1
      %p206 = scmp.lt.s32.totalorder %s203, 15
      %s207 = scalar_select %p206, %s203, 15
      %s208 = smul.addr %s207, 2
      %s209 = smul.addr %s205, 32
      %s210 = sadd.s32 %s208, %s209
      %s211 = smul.addr %s210, 4
      %s212 = scalar_lea.vmem %s2, %s211
      %p213 = pneg %p135
      %p214 = pneg %p132
      %p215 = scmp.lt.s32.totalorder %s19, 1
      %s216 = scalar_select %p215, %s19, 1
      %s217 = smul.addr %s216, 2
      %s218 = scalar_lea.vmem %s3, %s217
      %p219 = scmp.lt.s32.totalorder %s20, 0
      %s220 = scalar_select %p219, %s20, 0
      %s221 = smul.u32 16, %s220
      %p222 = scmp.lt.s32.totalorder %s19, 1
      %s223 = scalar_select %p222, %s19, 1
      %p224 = scmp.lt.s32.totalorder %s221, 15
      %s225 = scalar_select %p224, %s221, 15
      %s226 = smul.addr %s225, 2
      %s227 = smul.addr %s223, 32
      %s228 = sadd.s32 %s226, %s227
      %s229 = smul.addr %s228, 4
      %s230 = scalar_lea.vmem %s0, %s229
      %p231 = scmp.lt.s32.totalorder %s20, 0
      %s232 = scalar_select %p231, %s20, 0
      %s233 = smul.u32 16, %s232
      %s234 = ssub.s32 %s20, 1
      %p235 = scmp.gt.s32.totalorder %s234, 0
      %s236 = scalar_select %p235, %s234, 0
      %s237 = smul.u32 16, %s236
      %p238 = scmp.lt.s32.totalorder %s19, 1
      %s239 = scalar_select %p238, %s19, 1
      %p240 = scmp.lt.s32.totalorder %s237, 15
      %s241 = scalar_select %p240, %s237, 15
      %s242 = smul.addr %s241, 2
      %s243 = smul.addr %s239, 32
      %s244 = sadd.s32 %s242, %s243
      %s245 = smul.addr %s244, 4
      %s246 = scalar_lea.vmem %s2, %s245
      %s247 = ssub.s32 %s20, 1
      %p248 = scmp.gt.s32.totalorder %s247, 0
      %s249 = scalar_select %p248, %s247, 0
      %s250 = smul.u32 16, %s249
      %p251 = scmp.lt.s32.totalorder %s19, 1
      %s252 = scalar_select %p251, %s19, 1
      %s253 = smul.addr %s252, 2
      %s254 = scalar_lea.vmem %s3, %s253
      %p256 = scmp.eq.s32.totalorder %s20, 0
      // Predicated region
      $region29: #{_double_conv_impl.3} parent=27 // pred_check
        %p257 = pneg %p256
      $region30: #{_double_conv_impl.3} parent=27 // pred_check_branch
        %259 = sbr.rel (%p257) target = $region32
      $region31: #{_double_conv_impl.3} parent=27 // pred_region
        %260 = vst [vmem:[#allocation2] sm:$0xf] 0
        %261 = vst [vmem:[#allocation2 + $0x4] sm:$0xf] 0
        %262 = vst [vmem:[#allocation2 + $0x8] sm:$0x1] 0
        %s263 = scalar_lea.vmem [#allocation2], 204
        %264 = vst [vmem:[%s263] sm:$0xf] 0
        %265 = vst [vmem:[%s263 + $0x4] sm:$0xf] 0
        %266 = vst [vmem:[%s263 + $0x8] sm:$0x1] 0
        %vm267 = vcmask 1040384
        %vm268 = vsmask.f32 256
        %vm269 = vmand %vm267, %vm268
        %v270 = vld [vmem:[#allocation2] sm:$0x1]
        %v271 = vsel %vm269, 0, %v270
        %272 = vst [vmem:[#allocation2] sm:$0x1] %v271
        %v273 = vld [vmem:[#allocation2 + $0xc] sm:$0x1]
        %v274 = vsel %vm269, 0, %v273
        %275 = vst [vmem:[#allocation2 + $0xc] sm:$0x1] %v274
        %v276 = vld [vmem:[#allocation2 + $0x18] sm:$0x1]
        %v277 = vsel %vm269, 0, %v276
        %278 = vst [vmem:[#allocation2 + $0x18] sm:$0x1] %v277
        %v279 = vld [vmem:[#allocation2 + $0x24] sm:$0x1]
        %v280 = vsel %vm269, 0, %v279
        %281 = vst [vmem:[#allocation2 + $0x24] sm:$0x1] %v280
        %v282 = vld [vmem:[#allocation2 + $0x30] sm:$0x1]
        %v283 = vsel %vm269, 0, %v282
        %284 = vst [vmem:[#allocation2 + $0x30] sm:$0x1] %v283
        %v285 = vld [vmem:[#allocation2 + $0x3c] sm:$0x1]
        %v286 = vsel %vm269, 0, %v285
        %287 = vst [vmem:[#allocation2 + $0x3c] sm:$0x1] %v286
        %v288 = vld [vmem:[#allocation2 + $0x48] sm:$0x1]
        %v289 = vsel %vm269, 0, %v288
        %290 = vst [vmem:[#allocation2 + $0x48] sm:$0x1] %v289
        %v291 = vld [vmem:[#allocation2 + $0x54] sm:$0x1]
        %v292 = vsel %vm269, 0, %v291
        %293 = vst [vmem:[#allocation2 + $0x54] sm:$0x1] %v292
        %v294 = vld [vmem:[#allocation2 + $0x60] sm:$0x1]
        %v295 = vsel %vm269, 0, %v294
        %296 = vst [vmem:[#allocation2 + $0x60] sm:$0x1] %v295
        %v297 = vld [vmem:[#allocation2 + $0x6c] sm:$0x1]
        %v298 = vsel %vm269, 0, %v297
        %299 = vst [vmem:[#allocation2 + $0x6c] sm:$0x1] %v298
        %v300 = vld [vmem:[#allocation2 + $0x78] sm:$0x1]
        %v301 = vsel %vm269, 0, %v300
        %302 = vst [vmem:[#allocation2 + $0x78] sm:$0x1] %v301
        %v303 = vld [vmem:[#allocation2 + $0x84] sm:$0x1]
        %v304 = vsel %vm269, 0, %v303
        %305 = vst [vmem:[#allocation2 + $0x84] sm:$0x1] %v304
        %v306 = vld [vmem:[#allocation2 + $0x90] sm:$0x1]
        %v307 = vsel %vm269, 0, %v306
        %308 = vst [vmem:[#allocation2 + $0x90] sm:$0x1] %v307
        %v309 = vld [vmem:[#allocation2 + $0x9c] sm:$0x1]
        %v310 = vsel %vm269, 0, %v309
        %311 = vst [vmem:[#allocation2 + $0x9c] sm:$0x1] %v310
        %v312 = vld [vmem:[#allocation2 + $0xa8] sm:$0x1]
        %v313 = vsel %vm269, 0, %v312
        %314 = vst [vmem:[#allocation2 + $0xa8] sm:$0x1] %v313
        %v315 = vld [vmem:[#allocation2 + $0xb4] sm:$0x1]
        %v316 = vsel %vm269, 0, %v315
        %317 = vst [vmem:[#allocation2 + $0xb4] sm:$0x1] %v316
        %v318 = vld [vmem:[#allocation2 + $0xc0] sm:$0x1]
        %v319 = vsel %vm269, 0, %v318
        %320 = vst [vmem:[#allocation2 + $0xc0] sm:$0x1] %v319
        %v321 = vld [vmem:[#allocation2 + $0xcc] sm:$0x1]
        %v322 = vsel %vm269, 0, %v321
        %323 = vst [vmem:[#allocation2 + $0xcc] sm:$0x1] %v322
        %vm324 = vsmask.f32 7938
        %vm325 = vmand %vm267, %vm324
        %v326 = vld [vmem:[#allocation2 + $0x8] sm:$0x1]
        %v327 = vsel %vm325, 0, %v326
        %328 = vst [vmem:[#allocation2 + $0x8] sm:$0x1] %v327
        %v329 = vld [vmem:[#allocation2 + $0x14] sm:$0x1]
        %v330 = vsel %vm325, 0, %v329
        %331 = vst [vmem:[#allocation2 + $0x14] sm:$0x1] %v330
        %v332 = vld [vmem:[#allocation2 + $0x20] sm:$0x1]
        %v333 = vsel %vm325, 0, %v332
        %334 = vst [vmem:[#allocation2 + $0x20] sm:$0x1] %v333
        %v335 = vld [vmem:[#allocation2 + $0x2c] sm:$0x1]
        %v336 = vsel %vm325, 0, %v335
        %337 = vst [vmem:[#allocation2 + $0x2c] sm:$0x1] %v336
        %v338 = vld [vmem:[#allocation2 + $0x38] sm:$0x1]
        %v339 = vsel %vm325, 0, %v338
        %340 = vst [vmem:[#allocation2 + $0x38] sm:$0x1] %v339
        %v341 = vld [vmem:[#allocation2 + $0x44] sm:$0x1]
        %v342 = vsel %vm325, 0, %v341
        %343 = vst [vmem:[#allocation2 + $0x44] sm:$0x1] %v342
        %v344 = vld [vmem:[#allocation2 + $0x50] sm:$0x1]
        %v345 = vsel %vm325, 0, %v344
        %346 = vst [vmem:[#allocation2 + $0x50] sm:$0x1] %v345
        %v347 = vld [vmem:[#allocation2 + $0x5c] sm:$0x1]
        %v348 = vsel %vm325, 0, %v347
        %349 = vst [vmem:[#allocation2 + $0x5c] sm:$0x1] %v348
        %v350 = vld [vmem:[#allocation2 + $0x68] sm:$0x1]
        %v351 = vsel %vm325, 0, %v350
        %352 = vst [vmem:[#allocation2 + $0x68] sm:$0x1] %v351
        %v353 = vld [vmem:[#allocation2 + $0x74] sm:$0x1]
        %v354 = vsel %vm325, 0, %v353
        %355 = vst [vmem:[#allocation2 + $0x74] sm:$0x1] %v354
        %v356 = vld [vmem:[#allocation2 + $0x80] sm:$0x1]
        %v357 = vsel %vm325, 0, %v356
        %358 = vst [vmem:[#allocation2 + $0x80] sm:$0x1] %v357
        %v359 = vld [vmem:[#allocation2 + $0x8c] sm:$0x1]
        %v360 = vsel %vm325, 0, %v359
        %361 = vst [vmem:[#allocation2 + $0x8c] sm:$0x1] %v360
        %v362 = vld [vmem:[#allocation2 + $0x98] sm:$0x1]
        %v363 = vsel %vm325, 0, %v362
        %364 = vst [vmem:[#allocation2 + $0x98] sm:$0x1] %v363
        %v365 = vld [vmem:[#allocation2 + $0xa4] sm:$0x1]
        %v366 = vsel %vm325, 0, %v365
        %367 = vst [vmem:[#allocation2 + $0xa4] sm:$0x1] %v366
        %v368 = vld [vmem:[#allocation2 + $0xb0] sm:$0x1]
        %v369 = vsel %vm325, 0, %v368
        %370 = vst [vmem:[#allocation2 + $0xb0] sm:$0x1] %v369
        %v371 = vld [vmem:[#allocation2 + $0xbc] sm:$0x1]
        %v372 = vsel %vm325, 0, %v371
        %373 = vst [vmem:[#allocation2 + $0xbc] sm:$0x1] %v372
        %v374 = vld [vmem:[#allocation2 + $0xc8] sm:$0x1]
        %v375 = vsel %vm325, 0, %v374
        %376 = vst [vmem:[#allocation2 + $0xc8] sm:$0x1] %v375
        %v377 = vld [vmem:[#allocation2 + $0xd4] sm:$0x1]
        %v378 = vsel %vm325, 0, %v377
        %379 = vst [vmem:[#allocation2 + $0xd4] sm:$0x1] %v378
        %380 = vst [vmem:[#allocation3] sm:$0x3] 0.0
      $region32: #{_double_conv_impl.3} parent=27 // pred_fallthru
        _
      %p381 = scmp.lt.s32.totalorder %s20, 1
      // Predicated region
      $region33: #{_double_conv_impl.3} parent=27 // pred_check
        %p382 = pneg %p381
      $region34: #{_double_conv_impl.3} parent=27 // pred_check_branch
        %384 = sbr.rel (%p382) target = $region36
      $region35: #{_double_conv_impl.3} parent=27 // pred_region
        %v385 = vld [vmem:[%s230] sm:$0xf]
        %v386 = vld [vmem:[%s230 + $0x4] sm:$0xf]
        %v387 = vld [vmem:[%s230 + $0x8] sm:$0xf]
        %v388 = vld [vmem:[%s230 + $0xc] sm:$0xf]
        %v389 = vld [vmem:[%s230 + $0x10] sm:$0xf]
        %v390 = vld [vmem:[%s230 + $0x14] sm:$0xf]
        %v391 = vld [vmem:[%s230 + $0x18] sm:$0xf]
        %v392 = vld [vmem:[%s230 + $0x1c] sm:$0xf]
        %v393 = vld [vmem:[%s230 + $0x20] sm:$0xf]
        %v394 = vld [vmem:[%s230 + $0x24] sm:$0xf]
        %v395 = vld [vmem:[%s230 + $0x28] sm:$0xf]
        %v396 = vld [vmem:[%s230 + $0x2c] sm:$0xf]
        %v397 = vld [vmem:[%s230 + $0x30] sm:$0xf]
        %v398 = vld [vmem:[%s230 + $0x34] sm:$0xf]
        %v399 = vld [vmem:[%s230 + $0x38] sm:$0xf]
        %v400 = vld [vmem:[%s230 + $0x3c] sm:$0xf]
        %v401 = vld [vmem:[%s230 + $0x40] sm:$0xf]
        %v402 = vld [vmem:[%s230 + $0x44] sm:$0xf]
        %v403 = vld [vmem:[%s230 + $0x48] sm:$0xf]
        %v404 = vld [vmem:[%s230 + $0x4c] sm:$0xf]
        %v405 = vld [vmem:[%s230 + $0x50] sm:$0xf]
        %v406 = vld [vmem:[%s230 + $0x54] sm:$0xf]
        %v407 = vld [vmem:[%s230 + $0x58] sm:$0xf]
        %v408 = vld [vmem:[%s230 + $0x5c] sm:$0xf]
        %v409 = vld [vmem:[%s230 + $0x60] sm:$0xf]
        %v410 = vld [vmem:[%s230 + $0x64] sm:$0xf]
        %v411 = vld [vmem:[%s230 + $0x68] sm:$0xf]
        %v412 = vld [vmem:[%s230 + $0x6c] sm:$0xf]
        %v413 = vld [vmem:[%s230 + $0x70] sm:$0xf]
        %v414 = vld [vmem:[%s230 + $0x74] sm:$0xf]
        %v415 = vld [vmem:[%s230 + $0x78] sm:$0xf]
        %v416 = vld [vmem:[%s230 + $0x7c] sm:$0xf]
        %s417 = smul.u32 %s20, 16
        %s418 = sadd.s32 %s417, 1
        %vm419 = vsmask.f32 256
        %vm420 = vsmask.f32 4368
        %vm421 = vmor %vm419, %vm420
        %v423 = vshrl.u32 %v385, 16
        %v425 = vrot.slane %v423, 7
        %v426 = vshll.u32 %v385, 16
        %v428 = vor.u32 %v425, %v426
        %v429 = vrot.slane %v425, 4
        %v431 = vshrl.u32 %v386, 16
        %v433 = vrot.slane %v431, 7
        %v434 = vshll.u32 %v386, 16
        %v436 = vor.u32 %v433, %v434
        %v437 = vsel %vm421, %v429, %v436
        %v438 = vrot.slane %v433, 4
        %v440 = vshrl.u32 %v387, 16
        %v442 = vrot.slane %v440, 7
        %v443 = vshll.u32 %v387, 16
        %v445 = vor.u32 %v442, %v443
        %v446 = vrot.slane %v442, 4
        %v448 = vshrl.u32 %v388, 16
        %v450 = vrot.slane %v448, 7
        %v451 = vshll.u32 %v388, 16
        %v453 = vor.u32 %v450, %v451
        %v454 = vsel %vm421, %v446, %v453
        %v455 = vrot.slane %v450, 4
        %v457 = vshrl.u32 %v389, 16
        %v459 = vrot.slane %v457, 7
        %v460 = vshll.u32 %v389, 16
        %v462 = vor.u32 %v459, %v460
        %v463 = vrot.slane %v459, 4
        %v465 = vshrl.u32 %v390, 16
        %v467 = vrot.slane %v465, 7
        %v468 = vshll.u32 %v390, 16
        %v470 = vor.u32 %v467, %v468
        %v471 = vsel %vm421, %v463, %v470
        %v472 = vrot.slane %v467, 4
        %v474 = vshrl.u32 %v391, 16
        %v476 = vrot.slane %v474, 7
        %v477 = vshll.u32 %v391, 16
        %v479 = vor.u32 %v476, %v477
        %v480 = vrot.slane %v476, 4
        %v482 = vshrl.u32 %v392, 16
        %v484 = vrot.slane %v482, 7
        %v485 = vshll.u32 %v392, 16
        %v487 = vor.u32 %v484, %v485
        %v488 = vsel %vm421, %v480, %v487
        %v489 = vrot.slane %v484, 4
        %v491 = vshrl.u32 %v393, 16
        %v493 = vrot.slane %v491, 7
        %v494 = vshll.u32 %v393, 16
        %v496 = vor.u32 %v493, %v494
        %v497 = vrot.slane %v493, 4
        %v499 = vshrl.u32 %v394, 16
        %v501 = vrot.slane %v499, 7
        %v502 = vshll.u32 %v394, 16
        %v504 = vor.u32 %v501, %v502
        %v505 = vsel %vm421, %v497, %v504
        %v506 = vrot.slane %v501, 4
        %v508 = vshrl.u32 %v395, 16
        %v510 = vrot.slane %v508, 7
        %v511 = vshll.u32 %v395, 16
        %v513 = vor.u32 %v510, %v511
        %v514 = vrot.slane %v510, 4
        %v516 = vshrl.u32 %v396, 16
        %v518 = vrot.slane %v516, 7
        %v519 = vshll.u32 %v396, 16
        %v521 = vor.u32 %v518, %v519
        %v522 = vsel %vm421, %v514, %v521
        %v523 = vrot.slane %v518, 4
        %v525 = vshrl.u32 %v397, 16
        %v527 = vrot.slane %v525, 7
        %v528 = vshll.u32 %v397, 16
        %v530 = vor.u32 %v527, %v528
        %v531 = vrot.slane %v527, 4
        %v533 = vshrl.u32 %v398, 16
        %v535 = vrot.slane %v533, 7
        %v536 = vshll.u32 %v398, 16
        %v538 = vor.u32 %v535, %v536
        %v539 = vsel %vm421, %v531, %v538
        %v540 = vrot.slane %v535, 4
        %v542 = vshrl.u32 %v399, 16
        %v544 = vrot.slane %v542, 7
        %v545 = vshll.u32 %v399, 16
        %v547 = vor.u32 %v544, %v545
        %v548 = vrot.slane %v544, 4
        %v550 = vshrl.u32 %v400, 16
        %v552 = vrot.slane %v550, 7
        %v553 = vshll.u32 %v400, 16
        %v555 = vor.u32 %v552, %v553
        %v556 = vsel %vm421, %v548, %v555
        %v557 = vrot.slane %v552, 4
        %v559 = vshrl.u32 %v401, 16
        %v561 = vrot.slane %v559, 7
        %v562 = vshll.u32 %v401, 16
        %v564 = vor.u32 %v561, %v562
        %v565 = vrot.slane %v561, 4
        %v567 = vshrl.u32 %v402, 16
        %v569 = vrot.slane %v567, 7
        %v570 = vshll.u32 %v402, 16
        %v572 = vor.u32 %v569, %v570
        %v573 = vsel %vm421, %v565, %v572
        %v574 = vrot.slane %v569, 4
        %v576 = vshrl.u32 %v403, 16
        %v578 = vrot.slane %v576, 7
        %v579 = vshll.u32 %v403, 16
        %v581 = vor.u32 %v578, %v579
        %v582 = vrot.slane %v578, 4
        %v584 = vshrl.u32 %v404, 16
        %v586 = vrot.slane %v584, 7
        %v587 = vshll.u32 %v404, 16
        %v589 = vor.u32 %v586, %v587
        %v590 = vsel %vm421, %v582, %v589
        %v591 = vrot.slane %v586, 4
        %v593 = vshrl.u32 %v405, 16
        %v595 = vrot.slane %v593, 7
        %v596 = vshll.u32 %v405, 16
        %v598 = vor.u32 %v595, %v596
        %v599 = vrot.slane %v595, 4
        %v601 = vshrl.u32 %v406, 16
        %v603 = vrot.slane %v601, 7
        %v604 = vshll.u32 %v406, 16
        %v606 = vor.u32 %v603, %v604
        %v607 = vsel %vm421, %v599, %v606
        %v608 = vrot.slane %v603, 4
        %v610 = vshrl.u32 %v407, 16
        %v612 = vrot.slane %v610, 7
        %v613 = vshll.u32 %v407, 16
        %v615 = vor.u32 %v612, %v613
        %v616 = vrot.slane %v612, 4
        %v618 = vshrl.u32 %v408, 16
        %v620 = vrot.slane %v618, 7
        %v621 = vshll.u32 %v408, 16
        %v623 = vor.u32 %v620, %v621
        %v624 = vsel %vm421, %v616, %v623
        %v625 = vrot.slane %v620, 4
        %v627 = vshrl.u32 %v409, 16
        %v629 = vrot.slane %v627, 7
        %v630 = vshll.u32 %v409, 16
        %v632 = vor.u32 %v629, %v630
        %v633 = vrot.slane %v629, 4
        %v635 = vshrl.u32 %v410, 16
        %v637 = vrot.slane %v635, 7
        %v638 = vshll.u32 %v410, 16
        %v640 = vor.u32 %v637, %v638
        %v641 = vsel %vm421, %v633, %v640
        %v642 = vrot.slane %v637, 4
        %v644 = vshrl.u32 %v411, 16
        %v646 = vrot.slane %v644, 7
        %v647 = vshll.u32 %v411, 16
        %v649 = vor.u32 %v646, %v647
        %v650 = vrot.slane %v646, 4
        %v652 = vshrl.u32 %v412, 16
        %v654 = vrot.slane %v652, 7
        %v655 = vshll.u32 %v412, 16
        %v657 = vor.u32 %v654, %v655
        %v658 = vsel %vm421, %v650, %v657
        %v659 = vrot.slane %v654, 4
        %v661 = vshrl.u32 %v413, 16
        %v663 = vrot.slane %v661, 7
        %v664 = vshll.u32 %v413, 16
        %v666 = vor.u32 %v663, %v664
        %v667 = vrot.slane %v663, 4
        %v669 = vshrl.u32 %v414, 16
        %v671 = vrot.slane %v669, 7
        %v672 = vshll.u32 %v414, 16
        %v674 = vor.u32 %v671, %v672
        %v675 = vsel %vm421, %v667, %v674
        %v676 = vrot.slane %v671, 4
        %v678 = vshrl.u32 %v415, 16
        %v680 = vrot.slane %v678, 7
        %v681 = vshll.u32 %v415, 16
        %v683 = vor.u32 %v680, %v681
        %v684 = vrot.slane %v680, 4
        %v686 = vshrl.u32 %v416, 16
        %v688 = vrot.slane %v686, 7
        %v689 = vshll.u32 %v416, 16
        %v691 = vor.u32 %v688, %v689
        %v692 = vsel %vm421, %v684, %v691
        %v693 = vrot.slane %v688, 4
        %s742 = smul.u32 %s418, 3
        %s743 = smul.addr %s742, 4
        %s744 = scalar_lea.vmem [#allocation2], %s743
        %vm745 = vcmask 1043456
        %vm746 = vsmask.f32 7938
        %vm747 = vmand %vm745, %vm746
        %v748 = vld [vmem:[%s744] sm:$0xf]
        %v749 = vsel %vm747, %v428, %v748
        %750 = vst [vmem:[%s744] sm:$0xf] %v749
        %751 = vst [vmem:[%s744 + $0x4] sm:$0xf] %v437
        %vm752 = vcmask 1040384
        %vm753 = vmand %vm752, %vm419
        %v754 = vld [vmem:[%s744 + $0x8] sm:$0x1]
        %v755 = vsel %vm753, %v438, %v754
        %756 = vst [vmem:[%s744 + $0x8] sm:$0x1] %v755
        %v757 = vld [vmem:[%s744 + $0xc] sm:$0xf]
        %v758 = vsel %vm747, %v445, %v757
        %759 = vst [vmem:[%s744 + $0xc] sm:$0xf] %v758
        %760 = vst [vmem:[%s744 + $0x10] sm:$0xf] %v454
        %v761 = vld [vmem:[%s744 + $0x14] sm:$0x1]
        %v762 = vsel %vm753, %v455, %v761
        %763 = vst [vmem:[%s744 + $0x14] sm:$0x1] %v762
        %v764 = vld [vmem:[%s744 + $0x18] sm:$0xf]
        %v765 = vsel %vm747, %v462, %v764
        %766 = vst [vmem:[%s744 + $0x18] sm:$0xf] %v765
        %767 = vst [vmem:[%s744 + $0x1c] sm:$0xf] %v471
        %v768 = vld [vmem:[%s744 + $0x20] sm:$0x1]
        %v769 = vsel %vm753, %v472, %v768
        %770 = vst [vmem:[%s744 + $0x20] sm:$0x1] %v769
        %v771 = vld [vmem:[%s744 + $0x24] sm:$0xf]
        %v772 = vsel %vm747, %v479, %v771
        %773 = vst [vmem:[%s744 + $0x24] sm:$0xf] %v772
        %774 = vst [vmem:[%s744 + $0x28] sm:$0xf] %v488
        %v775 = vld [vmem:[%s744 + $0x2c] sm:$0x1]
        %v776 = vsel %vm753, %v489, %v775
        %777 = vst [vmem:[%s744 + $0x2c] sm:$0x1] %v776
        %v778 = vld [vmem:[%s744 + $0x30] sm:$0xf]
        %v779 = vsel %vm747, %v496, %v778
        %780 = vst [vmem:[%s744 + $0x30] sm:$0xf] %v779
        %781 = vst [vmem:[%s744 + $0x34] sm:$0xf] %v505
        %v782 = vld [vmem:[%s744 + $0x38] sm:$0x1]
        %v783 = vsel %vm753, %v506, %v782
        %784 = vst [vmem:[%s744 + $0x38] sm:$0x1] %v783
        %v785 = vld [vmem:[%s744 + $0x3c] sm:$0xf]
        %v786 = vsel %vm747, %v513, %v785
        %787 = vst [vmem:[%s744 + $0x3c] sm:$0xf] %v786
        %788 = vst [vmem:[%s744 + $0x40] sm:$0xf] %v522
        %v789 = vld [vmem:[%s744 + $0x44] sm:$0x1]
        %v790 = vsel %vm753, %v523, %v789
        %791 = vst [vmem:[%s744 + $0x44] sm:$0x1] %v790
        %v792 = vld [vmem:[%s744 + $0x48] sm:$0xf]
        %v793 = vsel %vm747, %v530, %v792
        %794 = vst [vmem:[%s744 + $0x48] sm:$0xf] %v793
        %795 = vst [vmem:[%s744 + $0x4c] sm:$0xf] %v539
        %v796 = vld [vmem:[%s744 + $0x50] sm:$0x1]
        %v797 = vsel %vm753, %v540, %v796
        %798 = vst [vmem:[%s744 + $0x50] sm:$0x1] %v797
        %v799 = vld [vmem:[%s744 + $0x54] sm:$0xf]
        %v800 = vsel %vm747, %v547, %v799
        %801 = vst [vmem:[%s744 + $0x54] sm:$0xf] %v800
        %802 = vst [vmem:[%s744 + $0x58] sm:$0xf] %v556
        %v803 = vld [vmem:[%s744 + $0x5c] sm:$0x1]
        %v804 = vsel %vm753, %v557, %v803
        %805 = vst [vmem:[%s744 + $0x5c] sm:$0x1] %v804
        %v806 = vld [vmem:[%s744 + $0x60] sm:$0xf]
        %v807 = vsel %vm747, %v564, %v806
        %808 = vst [vmem:[%s744 + $0x60] sm:$0xf] %v807
        %809 = vst [vmem:[%s744 + $0x64] sm:$0xf] %v573
        %v810 = vld [vmem:[%s744 + $0x68] sm:$0x1]
        %v811 = vsel %vm753, %v574, %v810
        %812 = vst [vmem:[%s744 + $0x68] sm:$0x1] %v811
        %v813 = vld [vmem:[%s744 + $0x6c] sm:$0xf]
        %v814 = vsel %vm747, %v581, %v813
        %815 = vst [vmem:[%s744 + $0x6c] sm:$0xf] %v814
        %816 = vst [vmem:[%s744 + $0x70] sm:$0xf] %v590
        %v817 = vld [vmem:[%s744 + $0x74] sm:$0x1]
        %v818 = vsel %vm753, %v591, %v817
        %819 = vst [vmem:[%s744 + $0x74] sm:$0x1] %v818
        %v820 = vld [vmem:[%s744 + $0x78] sm:$0xf]
        %v821 = vsel %vm747, %v598, %v820
        %822 = vst [vmem:[%s744 + $0x78] sm:$0xf] %v821
        %823 = vst [vmem:[%s744 + $0x7c] sm:$0xf] %v607
        %v824 = vld [vmem:[%s744 + $0x80] sm:$0x1]
        %v825 = vsel %vm753, %v608, %v824
        %826 = vst [vmem:[%s744 + $0x80] sm:$0x1] %v825
        %v827 = vld [vmem:[%s744 + $0x84] sm:$0xf]
        %v828 = vsel %vm747, %v615, %v827
        %829 = vst [vmem:[%s744 + $0x84] sm:$0xf] %v828
        %830 = vst [vmem:[%s744 + $0x88] sm:$0xf] %v624
        %v831 = vld [vmem:[%s744 + $0x8c] sm:$0x1]
        %v832 = vsel %vm753, %v625, %v831
        %833 = vst [vmem:[%s744 + $0x8c] sm:$0x1] %v832
        %v834 = vld [vmem:[%s744 + $0x90] sm:$0xf]
        %v835 = vsel %vm747, %v632, %v834
        %836 = vst [vmem:[%s744 + $0x90] sm:$0xf] %v835
        %837 = vst [vmem:[%s744 + $0x94] sm:$0xf] %v641
        %v838 = vld [vmem:[%s744 + $0x98] sm:$0x1]
        %v839 = vsel %vm753, %v642, %v838
        %840 = vst [vmem:[%s744 + $0x98] sm:$0x1] %v839
        %v841 = vld [vmem:[%s744 + $0x9c] sm:$0xf]
        %v842 = vsel %vm747, %v649, %v841
        %843 = vst [vmem:[%s744 + $0x9c] sm:$0xf] %v842
        %844 = vst [vmem:[%s744 + $0xa0] sm:$0xf] %v658
        %v845 = vld [vmem:[%s744 + $0xa4] sm:$0x1]
        %v846 = vsel %vm753, %v659, %v845
        %847 = vst [vmem:[%s744 + $0xa4] sm:$0x1] %v846
        %v848 = vld [vmem:[%s744 + $0xa8] sm:$0xf]
        %v849 = vsel %vm747, %v666, %v848
        %850 = vst [vmem:[%s744 + $0xa8] sm:$0xf] %v849
        %851 = vst [vmem:[%s744 + $0xac] sm:$0xf] %v675
        %v852 = vld [vmem:[%s744 + $0xb0] sm:$0x1]
        %v853 = vsel %vm753, %v676, %v852
        %854 = vst [vmem:[%s744 + $0xb0] sm:$0x1] %v853
        %v855 = vld [vmem:[%s744 + $0xb4] sm:$0xf]
        %v856 = vsel %vm747, %v683, %v855
        %857 = vst [vmem:[%s744 + $0xb4] sm:$0xf] %v856
        %858 = vst [vmem:[%s744 + $0xb8] sm:$0xf] %v692
        %v859 = vld [vmem:[%s744 + $0xbc] sm:$0x1]
        %v860 = vsel %vm753, %v693, %v859
        %861 = vst [vmem:[%s744 + $0xbc] sm:$0x1] %v860
      $region36: #{_double_conv_impl.3} parent=27 // pred_fallthru
        _
      %p862 = scmp.ge.s32.totalorder %s20, 1
      // Predicated region
      $region37: #{_double_conv_impl.3} parent=27 // pred_check
        %p863 = pneg %p862
      $region38: #{_double_conv_impl.3} parent=27 // pred_check_branch
        %865 = sbr.rel (%p863) target = $region40
      $region39: #{_double_conv_impl.3} parent=27 // pred_region
        %s866 = ssub.s32 %s20, 1
        %s867 = smul.u32 %s866, 16
        %s868 = smul.u32 %s867, 3
        %s869 = smul.addr %s868, 4
        %s870 = scalar_lea.vmem [#allocation2], %s869
        %v871 = vld [vmem:[%s870] sm:$0xf]
        %v872 = vld [vmem:[%s870 + $0x4] sm:$0xf]
        %v873 = vld [vmem:[%s870 + $0x8] sm:$0x1]
        %v874 = vld [vmem:[%s870 + $0xc] sm:$0xf]
        %v875 = vld [vmem:[%s870 + $0x10] sm:$0xf]
        %v876 = vld [vmem:[%s870 + $0x14] sm:$0x1]
        %v877 = vld [vmem:[%s870 + $0x18] sm:$0xf]
        %v878 = vld [vmem:[%s870 + $0x1c] sm:$0xf]
        %v879 = vld [vmem:[%s870 + $0x20] sm:$0x1]
        %v880 = vld [vmem:[%s870 + $0x24] sm:$0xf]
        %v881 = vld [vmem:[%s870 + $0x28] sm:$0xf]
        %v882 = vld [vmem:[%s870 + $0x2c] sm:$0x1]
        %v883 = vld [vmem:[%s870 + $0x30] sm:$0xf]
        %v884 = vld [vmem:[%s870 + $0x34] sm:$0xf]
        %v885 = vld [vmem:[%s870 + $0x38] sm:$0x1]
        %v886 = vld [vmem:[%s870 + $0x3c] sm:$0xf]
        %v887 = vld [vmem:[%s870 + $0x40] sm:$0xf]
        %v888 = vld [vmem:[%s870 + $0x44] sm:$0x1]
        %v889 = vld [vmem:[%s870 + $0x48] sm:$0xf]
        %v890 = vld [vmem:[%s870 + $0x4c] sm:$0xf]
        %v891 = vld [vmem:[%s870 + $0x50] sm:$0x1]
        %v892 = vld [vmem:[%s870 + $0x54] sm:$0xf]
        %v893 = vld [vmem:[%s870 + $0x58] sm:$0xf]
        %v894 = vld [vmem:[%s870 + $0x5c] sm:$0x1]
        %v895 = vld [vmem:[%s870 + $0x60] sm:$0xf]
        %v896 = vld [vmem:[%s870 + $0x64] sm:$0xf]
        %v897 = vld [vmem:[%s870 + $0x68] sm:$0x1]
        %v898 = vld [vmem:[%s870 + $0x6c] sm:$0xf]
        %v899 = vld [vmem:[%s870 + $0x70] sm:$0xf]
        %v900 = vld [vmem:[%s870 + $0x74] sm:$0x1]
        %v901 = vld [vmem:[%s870 + $0x78] sm:$0xf]
        %v902 = vld [vmem:[%s870 + $0x7c] sm:$0xf]
        %v903 = vld [vmem:[%s870 + $0x80] sm:$0x1]
        %v904 = vld [vmem:[%s870 + $0x84] sm:$0xf]
        %v905 = vld [vmem:[%s870 + $0x88] sm:$0xf]
        %v906 = vld [vmem:[%s870 + $0x8c] sm:$0x1]
        %v907 = vld [vmem:[%s870 + $0x90] sm:$0xf]
        %v908 = vld [vmem:[%s870 + $0x94] sm:$0xf]
        %v909 = vld [vmem:[%s870 + $0x98] sm:$0x1]
        %v910 = vld [vmem:[%s870 + $0x9c] sm:$0xf]
        %v911 = vld [vmem:[%s870 + $0xa0] sm:$0xf]
        %v912 = vld [vmem:[%s870 + $0xa4] sm:$0x1]
        %v913 = vld [vmem:[%s870 + $0xa8] sm:$0xf]
        %v914 = vld [vmem:[%s870 + $0xac] sm:$0xf]
        %v915 = vld [vmem:[%s870 + $0xb0] sm:$0x1]
        %v916 = vld [vmem:[%s870 + $0xb4] sm:$0xf]
        %v917 = vld [vmem:[%s870 + $0xb8] sm:$0xf]
        %v918 = vld [vmem:[%s870 + $0xbc] sm:$0x1]
        %v951 = vunpack.c.l.b16 %v871
        %v952 = vunpack.c.l.b16 %v872
        %v953 = vunpack.c.l.b16 %v874
        %v954 = vunpack.c.l.b16 %v875
        %v955 = vunpack.c.l.b16 %v877
        %v956 = vunpack.c.l.b16 %v878
        %v957 = vunpack.c.l.b16 %v880
        %v958 = vunpack.c.l.b16 %v881
        %v959 = vunpack.c.l.b16 %v883
        %v960 = vunpack.c.l.b16 %v884
        %v961 = vunpack.c.l.b16 %v886
        %v962 = vunpack.c.l.b16 %v887
        %v963 = vunpack.c.l.b16 %v889
        %v964 = vunpack.c.l.b16 %v890
        %v965 = vunpack.c.l.b16 %v892
        %v966 = vunpack.c.l.b16 %v893
        %v967 = vunpack.c.l.b16 %v895
        %v968 = vunpack.c.l.b16 %v896
        %v969 = vunpack.c.l.b16 %v898
        %v970 = vunpack.c.l.b16 %v899
        %v971 = vunpack.c.l.b16 %v901
        %v972 = vunpack.c.l.b16 %v902
        %v973 = vunpack.c.l.b16 %v904
        %v974 = vunpack.c.l.b16 %v905
        %v975 = vunpack.c.l.b16 %v907
        %v976 = vunpack.c.l.b16 %v908
        %v977 = vunpack.c.l.b16 %v910
        %v978 = vunpack.c.l.b16 %v911
        %v979 = vunpack.c.l.b16 %v913
        %v980 = vunpack.c.l.b16 %v914
        %v981 = vunpack.c.l.b16 %v916
        %v982 = vunpack.c.l.b16 %v917
        %v983 = vpack.c.b16 %v952, %v951
        %v984 = vpack.c.b16 %v954, %v953
        %v985 = vpack.c.b16 %v956, %v955
        %v986 = vpack.c.b16 %v958, %v957
        %v987 = vpack.c.b16 %v960, %v959
        %v988 = vpack.c.b16 %v962, %v961
        %v989 = vpack.c.b16 %v964, %v963
        %v990 = vpack.c.b16 %v966, %v965
        %v991 = vpack.c.b16 %v968, %v967
        %v992 = vpack.c.b16 %v970, %v969
        %v993 = vpack.c.b16 %v972, %v971
        %v994 = vpack.c.b16 %v974, %v973
        %v995 = vpack.c.b16 %v976, %v975
        %v996 = vpack.c.b16 %v978, %v977
        %v997 = vpack.c.b16 %v980, %v979
        %v998 = vpack.c.b16 %v982, %v981
        %v1031 = vunpack.c.l.b16 %v873
        %v1032 = vunpack.c.l.b16 %v876
        %v1033 = vunpack.c.l.b16 %v879
        %v1034 = vunpack.c.l.b16 %v882
        %v1035 = vunpack.c.l.b16 %v885
        %v1036 = vunpack.c.l.b16 %v888
        %v1037 = vunpack.c.l.b16 %v891
        %v1038 = vunpack.c.l.b16 %v894
        %v1039 = vunpack.c.l.b16 %v897
        %v1040 = vunpack.c.l.b16 %v900
        %v1041 = vunpack.c.l.b16 %v903
        %v1042 = vunpack.c.l.b16 %v906
        %v1043 = vunpack.c.l.b16 %v909
        %v1044 = vunpack.c.l.b16 %v912
        %v1045 = vunpack.c.l.b16 %v915
        %v1046 = vunpack.c.l.b16 %v918
        %v1047 = vpack.c.b16 %v1031, %v1031
        %v1048 = vpack.c.b16 %v1032, %v1032
        %v1049 = vpack.c.b16 %v1033, %v1033
        %v1050 = vpack.c.b16 %v1034, %v1034
        %v1051 = vpack.c.b16 %v1035, %v1035
        %v1052 = vpack.c.b16 %v1036, %v1036
        %v1053 = vpack.c.b16 %v1037, %v1037
        %v1054 = vpack.c.b16 %v1038, %v1038
        %v1055 = vpack.c.b16 %v1039, %v1039
        %v1056 = vpack.c.b16 %v1040, %v1040
        %v1057 = vpack.c.b16 %v1041, %v1041
        %v1058 = vpack.c.b16 %v1042, %v1042
        %v1059 = vpack.c.b16 %v1043, %v1043
        %v1060 = vpack.c.b16 %v1044, %v1044
        %v1061 = vpack.c.b16 %v1045, %v1045
        %v1062 = vpack.c.b16 %v1046, %v1046
        %vm1063 = vsmask.f32 7424
        %v1065 = vshrl.u32 %v983, 16
        %v1067 = vshll.u32 %v983, 16
        %v1069 = vrot.slane %v1067, 1
        %v1070 = vor.u32 %v1065, %v1069
        %v1072 = vshll.u32 %v1047, 16
        %v1074 = vrot.slane %v1072, 1
        %v1075 = vsel %vm1063, %v1070, %v1074
        %v1077 = vshrl.u32 %v984, 16
        %v1079 = vshll.u32 %v984, 16
        %v1081 = vrot.slane %v1079, 1
        %v1082 = vor.u32 %v1077, %v1081
        %v1084 = vshll.u32 %v1048, 16
        %v1086 = vrot.slane %v1084, 1
        %v1087 = vsel %vm1063, %v1082, %v1086
        %v1089 = vshrl.u32 %v985, 16
        %v1091 = vshll.u32 %v985, 16
        %v1093 = vrot.slane %v1091, 1
        %v1094 = vor.u32 %v1089, %v1093
        %v1096 = vshll.u32 %v1049, 16
        %v1098 = vrot.slane %v1096, 1
        %v1099 = vsel %vm1063, %v1094, %v1098
        %v1101 = vshrl.u32 %v986, 16
        %v1103 = vshll.u32 %v986, 16
        %v1105 = vrot.slane %v1103, 1
        %v1106 = vor.u32 %v1101, %v1105
        %v1108 = vshll.u32 %v1050, 16
        %v1110 = vrot.slane %v1108, 1
        %v1111 = vsel %vm1063, %v1106, %v1110
        %v1113 = vshrl.u32 %v987, 16
        %v1115 = vshll.u32 %v987, 16
        %v1117 = vrot.slane %v1115, 1
        %v1118 = vor.u32 %v1113, %v1117
        %v1120 = vshll.u32 %v1051, 16
        %v1122 = vrot.slane %v1120, 1
        %v1123 = vsel %vm1063, %v1118, %v1122
        %v1125 = vshrl.u32 %v988, 16
        %v1127 = vshll.u32 %v988, 16
        %v1129 = vrot.slane %v1127, 1
        %v1130 = vor.u32 %v1125, %v1129
        %v1132 = vshll.u32 %v1052, 16
        %v1134 = vrot.slane %v1132, 1
        %v1135 = vsel %vm1063, %v1130, %v1134
        %v1137 = vshrl.u32 %v989, 16
        %v1139 = vshll.u32 %v989, 16
        %v1141 = vrot.slane %v1139, 1
        %v1142 = vor.u32 %v1137, %v1141
        %v1144 = vshll.u32 %v1053, 16
        %v1146 = vrot.slane %v1144, 1
        %v1147 = vsel %vm1063, %v1142, %v1146
        %v1149 = vshrl.u32 %v990, 16
        %v1151 = vshll.u32 %v990, 16
        %v1153 = vrot.slane %v1151, 1
        %v1154 = vor.u32 %v1149, %v1153
        %v1156 = vshll.u32 %v1054, 16
        %v1158 = vrot.slane %v1156, 1
        %v1159 = vsel %vm1063, %v1154, %v1158
        %v1161 = vshrl.u32 %v991, 16
        %v1163 = vshll.u32 %v991, 16
        %v1165 = vrot.slane %v1163, 1
        %v1166 = vor.u32 %v1161, %v1165
        %v1168 = vshll.u32 %v1055, 16
        %v1170 = vrot.slane %v1168, 1
        %v1171 = vsel %vm1063, %v1166, %v1170
        %v1173 = vshrl.u32 %v992, 16
        %v1175 = vshll.u32 %v992, 16
        %v1177 = vrot.slane %v1175, 1
        %v1178 = vor.u32 %v1173, %v1177
        %v1180 = vshll.u32 %v1056, 16
        %v1182 = vrot.slane %v1180, 1
        %v1183 = vsel %vm1063, %v1178, %v1182
        %v1185 = vshrl.u32 %v993, 16
        %v1187 = vshll.u32 %v993, 16
        %v1189 = vrot.slane %v1187, 1
        %v1190 = vor.u32 %v1185, %v1189
        %v1192 = vshll.u32 %v1057, 16
        %v1194 = vrot.slane %v1192, 1
        %v1195 = vsel %vm1063, %v1190, %v1194
        %v1197 = vshrl.u32 %v994, 16
        %v1199 = vshll.u32 %v994, 16
        %v1201 = vrot.slane %v1199, 1
        %v1202 = vor.u32 %v1197, %v1201
        %v1204 = vshll.u32 %v1058, 16
        %v1206 = vrot.slane %v1204, 1
        %v1207 = vsel %vm1063, %v1202, %v1206
        %v1209 = vshrl.u32 %v995, 16
        %v1211 = vshll.u32 %v995, 16
        %v1213 = vrot.slane %v1211, 1
        %v1214 = vor.u32 %v1209, %v1213
        %v1216 = vshll.u32 %v1059, 16
        %v1218 = vrot.slane %v1216, 1
        %v1219 = vsel %vm1063, %v1214, %v1218
        %v1221 = vshrl.u32 %v996, 16
        %v1223 = vshll.u32 %v996, 16
        %v1225 = vrot.slane %v1223, 1
        %v1226 = vor.u32 %v1221, %v1225
        %v1228 = vshll.u32 %v1060, 16
        %v1230 = vrot.slane %v1228, 1
        %v1231 = vsel %vm1063, %v1226, %v1230
        %v1233 = vshrl.u32 %v997, 16
        %v1235 = vshll.u32 %v997, 16
        %v1237 = vrot.slane %v1235, 1
        %v1238 = vor.u32 %v1233, %v1237
        %v1240 = vshll.u32 %v1061, 16
        %v1242 = vrot.slane %v1240, 1
        %v1243 = vsel %vm1063, %v1238, %v1242
        %v1245 = vshrl.u32 %v998, 16
        %v1247 = vshll.u32 %v998, 16
        %v1249 = vrot.slane %v1247, 1
        %v1250 = vor.u32 %v1245, %v1249
        %v1252 = vshll.u32 %v1062, 16
        %v1254 = vrot.slane %v1252, 1
        %v1255 = vsel %vm1063, %v1250, %v1254
        %vm1272 = vcmask 1046528
        %v1273 = vrot.slane %v983, 1
        %v1274 = vrot.slane %v1047, 1
        %v1275 = vsel %vm1272, %v1273, %v1274
        %v1276 = vrot.slane %v984, 1
        %v1277 = vrot.slane %v1048, 1
        %v1278 = vsel %vm1272, %v1276, %v1277
        %v1279 = vrot.slane %v985, 1
        %v1280 = vrot.slane %v1049, 1
        %v1281 = vsel %vm1272, %v1279, %v1280
        %v1282 = vrot.slane %v986, 1
        %v1283 = vrot.slane %v1050, 1
        %v1284 = vsel %vm1272, %v1282, %v1283
        %v1285 = vrot.slane %v987, 1
        %v1286 = vrot.slane %v1051, 1
        %v1287 = vsel %vm1272, %v1285, %v1286
        %v1288 = vrot.slane %v988, 1
        %v1289 = vrot.slane %v1052, 1
        %v1290 = vsel %vm1272, %v1288, %v1289
        %v1291 = vrot.slane %v989, 1
        %v1292 = vrot.slane %v1053, 1
        %v1293 = vsel %vm1272, %v1291, %v1292
        %v1294 = vrot.slane %v990, 1
        %v1295 = vrot.slane %v1054, 1
        %v1296 = vsel %vm1272, %v1294, %v1295
        %v1297 = vrot.slane %v991, 1
        %v1298 = vrot.slane %v1055, 1
        %v1299 = vsel %vm1272, %v1297, %v1298
        %v1300 = vrot.slane %v992, 1
        %v1301 = vrot.slane %v1056, 1
        %v1302 = vsel %vm1272, %v1300, %v1301
        %v1303 = vrot.slane %v993, 1
        %v1304 = vrot.slane %v1057, 1
        %v1305 = vsel %vm1272, %v1303, %v1304
        %v1306 = vrot.slane %v994, 1
        %v1307 = vrot.slane %v1058, 1
        %v1308 = vsel %vm1272, %v1306, %v1307
        %v1309 = vrot.slane %v995, 1
        %v1310 = vrot.slane %v1059, 1
        %v1311 = vsel %vm1272, %v1309, %v1310
        %v1312 = vrot.slane %v996, 1
        %v1313 = vrot.slane %v1060, 1
        %v1314 = vsel %vm1272, %v1312, %v1313
        %v1315 = vrot.slane %v997, 1
        %v1316 = vrot.slane %v1061, 1
        %v1317 = vsel %vm1272, %v1315, %v1316
        %v1318 = vrot.slane %v998, 1
        %v1319 = vrot.slane %v1062, 1
        %v1320 = vsel %vm1272, %v1318, %v1319
        %v1337 = vld [vmem:[%s1] sm:$0xf]
        %v1338 = vld [vmem:[%s1 + $0x4] sm:$0xf]
        %v1339 = vld [vmem:[%s1 + $0x8] sm:$0xf]
        %v1340 = vld [vmem:[%s1 + $0xc] sm:$0xf]
        %v1341 = vld [vmem:[%s1 + $0x10] sm:$0xf]
        %v1342 = vld [vmem:[%s1 + $0x14] sm:$0xf]
        %v1343 = vld [vmem:[%s1 + $0x18] sm:$0xf]
        %v1344 = vld [vmem:[%s1 + $0x1c] sm:$0xf]
        %v1345 = vld [vmem:[%s1 + $0x20] sm:$0xf]
        %v1346 = vld [vmem:[%s1 + $0x24] sm:$0xf]
        %v1347 = vld [vmem:[%s1 + $0x28] sm:$0xf]
        %v1348 = vld [vmem:[%s1 + $0x2c] sm:$0xf]
        %v1349 = vld [vmem:[%s1 + $0x30] sm:$0xf]
        %v1350 = vld [vmem:[%s1 + $0x34] sm:$0xf]
        %v1351 = vld [vmem:[%s1 + $0x38] sm:$0xf]
        %v1352 = vld [vmem:[%s1 + $0x3c] sm:$0xf]
        %v1353 = vld [vmem:[%s1 + $0x40] sm:$0xf]
        %v1354 = vld [vmem:[%s1 + $0x44] sm:$0xf]
        %v1355 = vld [vmem:[%s1 + $0x48] sm:$0xf]
        %v1356 = vld [vmem:[%s1 + $0x4c] sm:$0xf]
        %v1357 = vld [vmem:[%s1 + $0x50] sm:$0xf]
        %v1358 = vld [vmem:[%s1 + $0x54] sm:$0xf]
        %v1359 = vld [vmem:[%s1 + $0x58] sm:$0xf]
        %v1360 = vld [vmem:[%s1 + $0x5c] sm:$0xf]
        %v1361 = vld [vmem:[%s1 + $0x60] sm:$0xf]
        %v1362 = vld [vmem:[%s1 + $0x64] sm:$0xf]
        %v1363 = vld [vmem:[%s1 + $0x68] sm:$0xf]
        %v1364 = vld [vmem:[%s1 + $0x6c] sm:$0xf]
        %v1365 = vld [vmem:[%s1 + $0x70] sm:$0xf]
        %v1366 = vld [vmem:[%s1 + $0x74] sm:$0xf]
        %v1367 = vld [vmem:[%s1 + $0x78] sm:$0xf]
        %v1368 = vld [vmem:[%s1 + $0x7c] sm:$0xf]
        %v1369 = vld [vmem:[%s1 + $0x80] sm:$0xf]
        %v1370 = vld [vmem:[%s1 + $0x84] sm:$0xf]
        %v1371 = vld [vmem:[%s1 + $0x88] sm:$0xf]
        %v1372 = vld [vmem:[%s1 + $0x8c] sm:$0xf]
        %v1373 = vld [vmem:[%s1 + $0x90] sm:$0xf]
        %v1374 = vld [vmem:[%s1 + $0x94] sm:$0xf]
        %v1375 = vld [vmem:[%s1 + $0x98] sm:$0xf]
        %v1376 = vld [vmem:[%s1 + $0x9c] sm:$0xf]
        %v1377 = vld [vmem:[%s1 + $0xa0] sm:$0xf]
        %v1378 = vld [vmem:[%s1 + $0xa4] sm:$0xf]
        %v1379 = vld [vmem:[%s1 + $0xa8] sm:$0xf]
        %v1380 = vld [vmem:[%s1 + $0xac] sm:$0xf]
        %v1381 = vld [vmem:[%s1 + $0xb0] sm:$0xf]
        %v1382 = vld [vmem:[%s1 + $0xb4] sm:$0xf]
        %v1383 = vld [vmem:[%s1 + $0xb8] sm:$0xf]
        %v1384 = vld [vmem:[%s1 + $0xbc] sm:$0xf]
        %s1385 = sadd.s32 %s867, 1
        %s1386 = smul.u32 %s1385, 3
        %s1387 = smul.addr %s1386, 4
        %s1388 = scalar_lea.vmem [#allocation2], %s1387
        %v1389 = vld [vmem:[%s1388] sm:$0xf]
        %v1390 = vld [vmem:[%s1388 + $0x4] sm:$0xf]
        %v1391 = vld [vmem:[%s1388 + $0x8] sm:$0x1]
        %v1392 = vld [vmem:[%s1388 + $0xc] sm:$0xf]
        %v1393 = vld [vmem:[%s1388 + $0x10] sm:$0xf]
        %v1394 = vld [vmem:[%s1388 + $0x14] sm:$0x1]
        %v1395 = vld [vmem:[%s1388 + $0x18] sm:$0xf]
        %v1396 = vld [vmem:[%s1388 + $0x1c] sm:$0xf]
        %v1397 = vld [vmem:[%s1388 + $0x20] sm:$0x1]
        %v1398 = vld [vmem:[%s1388 + $0x24] sm:$0xf]
        %v1399 = vld [vmem:[%s1388 + $0x28] sm:$0xf]
        %v1400 = vld [vmem:[%s1388 + $0x2c] sm:$0x1]
        %v1401 = vld [vmem:[%s1388 + $0x30] sm:$0xf]
        %v1402 = vld [vmem:[%s1388 + $0x34] sm:$0xf]
        %v1403 = vld [vmem:[%s1388 + $0x38] sm:$0x1]
        %v1404 = vld [vmem:[%s1388 + $0x3c] sm:$0xf]
        %v1405 = vld [vmem:[%s1388 + $0x40] sm:$0xf]
        %v1406 = vld [vmem:[%s1388 + $0x44] sm:$0x1]
        %v1407 = vld [vmem:[%s1388 + $0x48] sm:$0xf]
        %v1408 = vld [vmem:[%s1388 + $0x4c] sm:$0xf]
        %v1409 = vld [vmem:[%s1388 + $0x50] sm:$0x1]
        %v1410 = vld [vmem:[%s1388 + $0x54] sm:$0xf]
        %v1411 = vld [vmem:[%s1388 + $0x58] sm:$0xf]
        %v1412 = vld [vmem:[%s1388 + $0x5c] sm:$0x1]
        %v1413 = vld [vmem:[%s1388 + $0x60] sm:$0xf]
        %v1414 = vld [vmem:[%s1388 + $0x64] sm:$0xf]
        %v1415 = vld [vmem:[%s1388 + $0x68] sm:$0x1]
        %v1416 = vld [vmem:[%s1388 + $0x6c] sm:$0xf]
        %v1417 = vld [vmem:[%s1388 + $0x70] sm:$0xf]
        %v1418 = vld [vmem:[%s1388 + $0x74] sm:$0x1]
        %v1419 = vld [vmem:[%s1388 + $0x78] sm:$0xf]
        %v1420 = vld [vmem:[%s1388 + $0x7c] sm:$0xf]
        %v1421 = vld [vmem:[%s1388 + $0x80] sm:$0x1]
        %v1422 = vld [vmem:[%s1388 + $0x84] sm:$0xf]
        %v1423 = vld [vmem:[%s1388 + $0x88] sm:$0xf]
        %v1424 = vld [vmem:[%s1388 + $0x8c] sm:$0x1]
        %v1425 = vld [vmem:[%s1388 + $0x90] sm:$0xf]
        %v1426 = vld [vmem:[%s1388 + $0x94] sm:$0xf]
        %v1427 = vld [vmem:[%s1388 + $0x98] sm:$0x1]
        %v1428 = vld [vmem:[%s1388 + $0x9c] sm:$0xf]
        %v1429 = vld [vmem:[%s1388 + $0xa0] sm:$0xf]
        %v1430 = vld [vmem:[%s1388 + $0xa4] sm:$0x1]
        %v1431 = vld [vmem:[%s1388 + $0xa8] sm:$0xf]
        %v1432 = vld [vmem:[%s1388 + $0xac] sm:$0xf]
        %v1433 = vld [vmem:[%s1388 + $0xb0] sm:$0x1]
        %v1434 = vld [vmem:[%s1388 + $0xb4] sm:$0xf]
        %v1435 = vld [vmem:[%s1388 + $0xb8] sm:$0xf]
        %v1436 = vld [vmem:[%s1388 + $0xbc] sm:$0x1]
        %v1469 = vunpack.c.l.b16 %v1389
        %v1470 = vunpack.c.l.b16 %v1390
        %v1471 = vunpack.c.l.b16 %v1392
        %v1472 = vunpack.c.l.b16 %v1393
        %v1473 = vunpack.c.l.b16 %v1395
        %v1474 = vunpack.c.l.b16 %v1396
        %v1475 = vunpack.c.l.b16 %v1398
        %v1476 = vunpack.c.l.b16 %v1399
        %v1477 = vunpack.c.l.b16 %v1401
        %v1478 = vunpack.c.l.b16 %v1402
        %v1479 = vunpack.c.l.b16 %v1404
        %v1480 = vunpack.c.l.b16 %v1405
        %v1481 = vunpack.c.l.b16 %v1407
        %v1482 = vunpack.c.l.b16 %v1408
        %v1483 = vunpack.c.l.b16 %v1410
        %v1484 = vunpack.c.l.b16 %v1411
        %v1485 = vunpack.c.l.b16 %v1413
        %v1486 = vunpack.c.l.b16 %v1414
        %v1487 = vunpack.c.l.b16 %v1416
        %v1488 = vunpack.c.l.b16 %v1417
        %v1489 = vunpack.c.l.b16 %v1419
        %v1490 = vunpack.c.l.b16 %v1420
        %v1491 = vunpack.c.l.b16 %v1422
        %v1492 = vunpack.c.l.b16 %v1423
        %v1493 = vunpack.c.l.b16 %v1425
        %v1494 = vunpack.c.l.b16 %v1426
        %v1495 = vunpack.c.l.b16 %v1428
        %v1496 = vunpack.c.l.b16 %v1429
        %v1497 = vunpack.c.l.b16 %v1431
        %v1498 = vunpack.c.l.b16 %v1432
        %v1499 = vunpack.c.l.b16 %v1434
        %v1500 = vunpack.c.l.b16 %v1435
        %v1501 = vpack.c.b16 %v1470, %v1469
        %v1502 = vpack.c.b16 %v1472, %v1471
        %v1503 = vpack.c.b16 %v1474, %v1473
        %v1504 = vpack.c.b16 %v1476, %v1475
        %v1505 = vpack.c.b16 %v1478, %v1477
        %v1506 = vpack.c.b16 %v1480, %v1479
        %v1507 = vpack.c.b16 %v1482, %v1481
        %v1508 = vpack.c.b16 %v1484, %v1483
        %v1509 = vpack.c.b16 %v1486, %v1485
        %v1510 = vpack.c.b16 %v1488, %v1487
        %v1511 = vpack.c.b16 %v1490, %v1489
        %v1512 = vpack.c.b16 %v1492, %v1491
        %v1513 = vpack.c.b16 %v1494, %v1493
        %v1514 = vpack.c.b16 %v1496, %v1495
        %v1515 = vpack.c.b16 %v1498, %v1497
        %v1516 = vpack.c.b16 %v1500, %v1499
        %v1549 = vunpack.c.l.b16 %v1391
        %v1550 = vunpack.c.l.b16 %v1394
        %v1551 = vunpack.c.l.b16 %v1397
        %v1552 = vunpack.c.l.b16 %v1400
        %v1553 = vunpack.c.l.b16 %v1403
        %v1554 = vunpack.c.l.b16 %v1406
        %v1555 = vunpack.c.l.b16 %v1409
        %v1556 = vunpack.c.l.b16 %v1412
        %v1557 = vunpack.c.l.b16 %v1415
        %v1558 = vunpack.c.l.b16 %v1418
        %v1559 = vunpack.c.l.b16 %v1421
        %v1560 = vunpack.c.l.b16 %v1424
        %v1561 = vunpack.c.l.b16 %v1427
        %v1562 = vunpack.c.l.b16 %v1430
        %v1563 = vunpack.c.l.b16 %v1433
        %v1564 = vunpack.c.l.b16 %v1436
        %v1565 = vpack.c.b16 %v1549, %v1549
        %v1566 = vpack.c.b16 %v1550, %v1550
        %v1567 = vpack.c.b16 %v1551, %v1551
        %v1568 = vpack.c.b16 %v1552, %v1552
        %v1569 = vpack.c.b16 %v1553, %v1553
        %v1570 = vpack.c.b16 %v1554, %v1554
        %v1571 = vpack.c.b16 %v1555, %v1555
        %v1572 = vpack.c.b16 %v1556, %v1556
        %v1573 = vpack.c.b16 %v1557, %v1557
        %v1574 = vpack.c.b16 %v1558, %v1558
        %v1575 = vpack.c.b16 %v1559, %v1559
        %v1576 = vpack.c.b16 %v1560, %v1560
        %v1577 = vpack.c.b16 %v1561, %v1561
        %v1578 = vpack.c.b16 %v1562, %v1562
        %v1579 = vpack.c.b16 %v1563, %v1563
        %v1580 = vpack.c.b16 %v1564, %v1564
        %v1582 = vshrl.u32 %v1501, 16
        %v1584 = vshll.u32 %v1501, 16
        %v1586 = vrot.slane %v1584, 1
        %v1587 = vor.u32 %v1582, %v1586
        %v1589 = vshll.u32 %v1565, 16
        %v1591 = vrot.slane %v1589, 1
        %v1592 = vsel %vm1063, %v1587, %v1591
        %v1594 = vshrl.u32 %v1502, 16
        %v1596 = vshll.u32 %v1502, 16
        %v1598 = vrot.slane %v1596, 1
        %v1599 = vor.u32 %v1594, %v1598
        %v1601 = vshll.u32 %v1566, 16
        %v1603 = vrot.slane %v1601, 1
        %v1604 = vsel %vm1063, %v1599, %v1603
        %v1606 = vshrl.u32 %v1503, 16
        %v1608 = vshll.u32 %v1503, 16
        %v1610 = vrot.slane %v1608, 1
        %v1611 = vor.u32 %v1606, %v1610
        %v1613 = vshll.u32 %v1567, 16
        %v1615 = vrot.slane %v1613, 1
        %v1616 = vsel %vm1063, %v1611, %v1615
        %v1618 = vshrl.u32 %v1504, 16
        %v1620 = vshll.u32 %v1504, 16
        %v1622 = vrot.slane %v1620, 1
        %v1623 = vor.u32 %v1618, %v1622
        %v1625 = vshll.u32 %v1568, 16
        %v1627 = vrot.slane %v1625, 1
        %v1628 = vsel %vm1063, %v1623, %v1627
        %v1630 = vshrl.u32 %v1505, 16
        %v1632 = vshll.u32 %v1505, 16
        %v1634 = vrot.slane %v1632, 1
        %v1635 = vor.u32 %v1630, %v1634
        %v1637 = vshll.u32 %v1569, 16
        %v1639 = vrot.slane %v1637, 1
        %v1640 = vsel %vm1063, %v1635, %v1639
        %v1642 = vshrl.u32 %v1506, 16
        %v1644 = vshll.u32 %v1506, 16
        %v1646 = vrot.slane %v1644, 1
        %v1647 = vor.u32 %v1642, %v1646
        %v1649 = vshll.u32 %v1570, 16
        %v1651 = vrot.slane %v1649, 1
        %v1652 = vsel %vm1063, %v1647, %v1651
        %v1654 = vshrl.u32 %v1507, 16
        %v1656 = vshll.u32 %v1507, 16
        %v1658 = vrot.slane %v1656, 1
        %v1659 = vor.u32 %v1654, %v1658
        %v1661 = vshll.u32 %v1571, 16
        %v1663 = vrot.slane %v1661, 1
        %v1664 = vsel %vm1063, %v1659, %v1663
        %v1666 = vshrl.u32 %v1508, 16
        %v1668 = vshll.u32 %v1508, 16
        %v1670 = vrot.slane %v1668, 1
        %v1671 = vor.u32 %v1666, %v1670
        %v1673 = vshll.u32 %v1572, 16
        %v1675 = vrot.slane %v1673, 1
        %v1676 = vsel %vm1063, %v1671, %v1675
        %v1678 = vshrl.u32 %v1509, 16
        %v1680 = vshll.u32 %v1509, 16
        %v1682 = vrot.slane %v1680, 1
        %v1683 = vor.u32 %v1678, %v1682
        %v1685 = vshll.u32 %v1573, 16
        %v1687 = vrot.slane %v1685, 1
        %v1688 = vsel %vm1063, %v1683, %v1687
        %v1690 = vshrl.u32 %v1510, 16
        %v1692 = vshll.u32 %v1510, 16
        %v1694 = vrot.slane %v1692, 1
        %v1695 = vor.u32 %v1690, %v1694
        %v1697 = vshll.u32 %v1574, 16
        %v1699 = vrot.slane %v1697, 1
        %v1700 = vsel %vm1063, %v1695, %v1699
        %v1702 = vshrl.u32 %v1511, 16
        %v1704 = vshll.u32 %v1511, 16
        %v1706 = vrot.slane %v1704, 1
        %v1707 = vor.u32 %v1702, %v1706
        %v1709 = vshll.u32 %v1575, 16
        %v1711 = vrot.slane %v1709, 1
        %v1712 = vsel %vm1063, %v1707, %v1711
        %v1714 = vshrl.u32 %v1512, 16
        %v1716 = vshll.u32 %v1512, 16
        %v1718 = vrot.slane %v1716, 1
        %v1719 = vor.u32 %v1714, %v1718
        %v1721 = vshll.u32 %v1576, 16
        %v1723 = vrot.slane %v1721, 1
        %v1724 = vsel %vm1063, %v1719, %v1723
        %v1726 = vshrl.u32 %v1513, 16
        %v1728 = vshll.u32 %v1513, 16
        %v1730 = vrot.slane %v1728, 1
        %v1731 = vor.u32 %v1726, %v1730
        %v1733 = vshll.u32 %v1577, 16
        %v1735 = vrot.slane %v1733, 1
        %v1736 = vsel %vm1063, %v1731, %v1735
        %v1738 = vshrl.u32 %v1514, 16
        %v1740 = vshll.u32 %v1514, 16
        %v1742 = vrot.slane %v1740, 1
        %v1743 = vor.u32 %v1738, %v1742
        %v1745 = vshll.u32 %v1578, 16
        %v1747 = vrot.slane %v1745, 1
        %v1748 = vsel %vm1063, %v1743, %v1747
        %v1750 = vshrl.u32 %v1515, 16
        %v1752 = vshll.u32 %v1515, 16
        %v1754 = vrot.slane %v1752, 1
        %v1755 = vor.u32 %v1750, %v1754
        %v1757 = vshll.u32 %v1579, 16
        %v1759 = vrot.slane %v1757, 1
        %v1760 = vsel %vm1063, %v1755, %v1759
        %v1762 = vshrl.u32 %v1516, 16
        %v1764 = vshll.u32 %v1516, 16
        %v1766 = vrot.slane %v1764, 1
        %v1767 = vor.u32 %v1762, %v1766
        %v1769 = vshll.u32 %v1580, 16
        %v1771 = vrot.slane %v1769, 1
        %v1772 = vsel %vm1063, %v1767, %v1771
        %v1789 = vrot.slane %v1501, 1
        %v1790 = vrot.slane %v1565, 1
        %v1791 = vsel %vm1272, %v1789, %v1790
        %v1792 = vrot.slane %v1502, 1
        %v1793 = vrot.slane %v1566, 1
        %v1794 = vsel %vm1272, %v1792, %v1793
        %v1795 = vrot.slane %v1503, 1
        %v1796 = vrot.slane %v1567, 1
        %v1797 = vsel %vm1272, %v1795, %v1796
        %v1798 = vrot.slane %v1504, 1
        %v1799 = vrot.slane %v1568, 1
        %v1800 = vsel %vm1272, %v1798, %v1799
        %v1801 = vrot.slane %v1505, 1
        %v1802 = vrot.slane %v1569, 1
        %v1803 = vsel %vm1272, %v1801, %v1802
        %v1804 = vrot.slane %v1506, 1
        %v1805 = vrot.slane %v1570, 1
        %v1806 = vsel %vm1272, %v1804, %v1805
        %v1807 = vrot.slane %v1507, 1
        %v1808 = vrot.slane %v1571, 1
        %v1809 = vsel %vm1272, %v1807, %v1808
        %v1810 = vrot.slane %v1508, 1
        %v1811 = vrot.slane %v1572, 1
        %v1812 = vsel %vm1272, %v1810, %v1811
        %v1813 = vrot.slane %v1509, 1
        %v1814 = vrot.slane %v1573, 1
        %v1815 = vsel %vm1272, %v1813, %v1814
        %v1816 = vrot.slane %v1510, 1
        %v1817 = vrot.slane %v1574, 1
        %v1818 = vsel %vm1272, %v1816, %v1817
        %v1819 = vrot.slane %v1511, 1
        %v1820 = vrot.slane %v1575, 1
        %v1821 = vsel %vm1272, %v1819, %v1820
        %v1822 = vrot.slane %v1512, 1
        %v1823 = vrot.slane %v1576, 1
        %v1824 = vsel %vm1272, %v1822, %v1823
        %v1825 = vrot.slane %v1513, 1
        %v1826 = vrot.slane %v1577, 1
        %v1827 = vsel %vm1272, %v1825, %v1826
        %v1828 = vrot.slane %v1514, 1
        %v1829 = vrot.slane %v1578, 1
        %v1830 = vsel %vm1272, %v1828, %v1829
        %v1831 = vrot.slane %v1515, 1
        %v1832 = vrot.slane %v1579, 1
        %v1833 = vsel %vm1272, %v1831, %v1832
        %v1834 = vrot.slane %v1516, 1
        %v1835 = vrot.slane %v1580, 1
        %v1836 = vsel %vm1272, %v1834, %v1835
        %s1853 = scalar_lea.vmem %s1, 192
        %v1854 = vld [vmem:[%s1853] sm:$0xf]
        %v1855 = vld [vmem:[%s1853 + $0x4] sm:$0xf]
        %v1856 = vld [vmem:[%s1853 + $0x8] sm:$0xf]
        %v1857 = vld [vmem:[%s1853 + $0xc] sm:$0xf]
        %v1858 = vld [vmem:[%s1853 + $0x10] sm:$0xf]
        %v1859 = vld [vmem:[%s1853 + $0x14] sm:$0xf]
        %v1860 = vld [vmem:[%s1853 + $0x18] sm:$0xf]
        %v1861 = vld [vmem:[%s1853 + $0x1c] sm:$0xf]
        %v1862 = vld [vmem:[%s1853 + $0x20] sm:$0xf]
        %v1863 = vld [vmem:[%s1853 + $0x24] sm:$0xf]
        %v1864 = vld [vmem:[%s1853 + $0x28] sm:$0xf]
        %v1865 = vld [vmem:[%s1853 + $0x2c] sm:$0xf]
        %v1866 = vld [vmem:[%s1853 + $0x30] sm:$0xf]
        %v1867 = vld [vmem:[%s1853 + $0x34] sm:$0xf]
        %v1868 = vld [vmem:[%s1853 + $0x38] sm:$0xf]
        %v1869 = vld [vmem:[%s1853 + $0x3c] sm:$0xf]
        %v1870 = vld [vmem:[%s1853 + $0x40] sm:$0xf]
        %v1871 = vld [vmem:[%s1853 + $0x44] sm:$0xf]
        %v1872 = vld [vmem:[%s1853 + $0x48] sm:$0xf]
        %v1873 = vld [vmem:[%s1853 + $0x4c] sm:$0xf]
        %v1874 = vld [vmem:[%s1853 + $0x50] sm:$0xf]
        %v1875 = vld [vmem:[%s1853 + $0x54] sm:$0xf]
        %v1876 = vld [vmem:[%s1853 + $0x58] sm:$0xf]
        %v1877 = vld [vmem:[%s1853 + $0x5c] sm:$0xf]
        %v1878 = vld [vmem:[%s1853 + $0x60] sm:$0xf]
        %v1879 = vld [vmem:[%s1853 + $0x64] sm:$0xf]
        %v1880 = vld [vmem:[%s1853 + $0x68] sm:$0xf]
        %v1881 = vld [vmem:[%s1853 + $0x6c] sm:$0xf]
        %v1882 = vld [vmem:[%s1853 + $0x70] sm:$0xf]
        %v1883 = vld [vmem:[%s1853 + $0x74] sm:$0xf]
        %v1884 = vld [vmem:[%s1853 + $0x78] sm:$0xf]
        %v1885 = vld [vmem:[%s1853 + $0x7c] sm:$0xf]
        %v1886 = vld [vmem:[%s1853 + $0x80] sm:$0xf]
        %v1887 = vld [vmem:[%s1853 + $0x84] sm:$0xf]
        %v1888 = vld [vmem:[%s1853 + $0x88] sm:$0xf]
        %v1889 = vld [vmem:[%s1853 + $0x8c] sm:$0xf]
        %v1890 = vld [vmem:[%s1853 + $0x90] sm:$0xf]
        %v1891 = vld [vmem:[%s1853 + $0x94] sm:$0xf]
        %v1892 = vld [vmem:[%s1853 + $0x98] sm:$0xf]
        %v1893 = vld [vmem:[%s1853 + $0x9c] sm:$0xf]
        %v1894 = vld [vmem:[%s1853 + $0xa0] sm:$0xf]
        %v1895 = vld [vmem:[%s1853 + $0xa4] sm:$0xf]
        %v1896 = vld [vmem:[%s1853 + $0xa8] sm:$0xf]
        %v1897 = vld [vmem:[%s1853 + $0xac] sm:$0xf]
        %v1898 = vld [vmem:[%s1853 + $0xb0] sm:$0xf]
        %v1899 = vld [vmem:[%s1853 + $0xb4] sm:$0xf]
        %v1900 = vld [vmem:[%s1853 + $0xb8] sm:$0xf]
        %v1901 = vld [vmem:[%s1853 + $0xbc] sm:$0xf]
        %v1950 = vunpack.c.l.b16 %v1854
        %v1951 = vunpack.c.l.b16 %v1855
        %v1952 = vunpack.c.l.b16 %v1856
        %v1953 = vunpack.c.l.b16 %v1857
        %v1954 = vunpack.c.l.b16 %v1858
        %v1955 = vunpack.c.l.b16 %v1859
        %v1956 = vunpack.c.l.b16 %v1860
        %v1957 = vunpack.c.l.b16 %v1861
        %v1958 = vunpack.c.l.b16 %v1862
        %v1959 = vunpack.c.l.b16 %v1863
        %v1960 = vunpack.c.l.b16 %v1864
        %v1961 = vunpack.c.l.b16 %v1865
        %v1962 = vunpack.c.l.b16 %v1866
        %v1963 = vunpack.c.l.b16 %v1867
        %v1964 = vunpack.c.l.b16 %v1868
        %v1965 = vunpack.c.l.b16 %v1869
        %v1966 = vunpack.c.l.b16 %v1870
        %v1967 = vunpack.c.l.b16 %v1871
        %v1968 = vunpack.c.l.b16 %v1872
        %v1969 = vunpack.c.l.b16 %v1873
        %v1970 = vunpack.c.l.b16 %v1874
        %v1971 = vunpack.c.l.b16 %v1875
        %v1972 = vunpack.c.l.b16 %v1876
        %v1973 = vunpack.c.l.b16 %v1877
        %v1974 = vunpack.c.l.b16 %v1878
        %v1975 = vunpack.c.l.b16 %v1879
        %v1976 = vunpack.c.l.b16 %v1880
        %v1977 = vunpack.c.l.b16 %v1881
        %v1978 = vunpack.c.l.b16 %v1882
        %v1979 = vunpack.c.l.b16 %v1883
        %v1980 = vunpack.c.l.b16 %v1884
        %v1981 = vunpack.c.l.b16 %v1885
        %v1982 = vunpack.c.l.b16 %v1886
        %v1983 = vunpack.c.l.b16 %v1887
        %v1984 = vunpack.c.l.b16 %v1888
        %v1985 = vunpack.c.l.b16 %v1889
        %v1986 = vunpack.c.l.b16 %v1890
        %v1987 = vunpack.c.l.b16 %v1891
        %v1988 = vunpack.c.l.b16 %v1892
        %v1989 = vunpack.c.l.b16 %v1893
        %v1990 = vunpack.c.l.b16 %v1894
        %v1991 = vunpack.c.l.b16 %v1895
        %v1992 = vunpack.c.l.b16 %v1896
        %v1993 = vunpack.c.l.b16 %v1897
        %v1994 = vunpack.c.l.b16 %v1898
        %v1995 = vunpack.c.l.b16 %v1899
        %v1996 = vunpack.c.l.b16 %v1900
        %v1997 = vunpack.c.l.b16 %v1901
        %v1998 = vpack.c.b16 %v1951, %v1950
        %v1999 = vpack.c.b16 %v1953, %v1952
        %v2000 = vpack.c.b16 %v1955, %v1954
        %v2001 = vpack.c.b16 %v1957, %v1956
        %v2002 = vpack.c.b16 %v1959, %v1958
        %v2003 = vpack.c.b16 %v1961, %v1960
        %v2004 = vpack.c.b16 %v1963, %v1962
        %v2005 = vpack.c.b16 %v1965, %v1964
        %v2006 = vpack.c.b16 %v1967, %v1966
        %v2007 = vpack.c.b16 %v1969, %v1968
        %v2008 = vpack.c.b16 %v1971, %v1970
        %v2009 = vpack.c.b16 %v1973, %v1972
        %v2010 = vpack.c.b16 %v1975, %v1974
        %v2011 = vpack.c.b16 %v1977, %v1976
        %v2012 = vpack.c.b16 %v1979, %v1978
        %v2013 = vpack.c.b16 %v1981, %v1980
        %v2014 = vpack.c.b16 %v1983, %v1982
        %v2015 = vpack.c.b16 %v1985, %v1984
        %v2016 = vpack.c.b16 %v1987, %v1986
        %v2017 = vpack.c.b16 %v1989, %v1988
        %v2018 = vpack.c.b16 %v1991, %v1990
        %v2019 = vpack.c.b16 %v1993, %v1992
        %v2020 = vpack.c.b16 %v1995, %v1994
        %v2021 = vpack.c.b16 %v1997, %v1996
        %2046 = vmatprep.subr.bf16.mxu0 0
        %2047 = vmatpush1.bf16.msra.mxu0 %v1998
        %2048 = vmatprep.subr.bf16.mxu0 0
        %2049 = vmatpush1.bf16.msra.mxu0 %v1999
        %2050 = vmatprep.subr.bf16.mxu0 0
        %2051 = vmatpush1.bf16.msra.mxu0 %v2000
        %2052 = vmatprep.subr.bf16.mxu0 0
        %2053 = vmatpush1.bf16.msra.mxu0 %v2001
        %2054 = vmatprep.subr.bf16.mxu0 0
        %2055 = vmatpush1.bf16.msra.mxu0 %v2002
        %2056 = vmatprep.subr.bf16.mxu0 0
        %2057 = vmatpush1.bf16.msra.mxu0 %v2003
        %2058 = vmatprep.subr.bf16.mxu0 0
        %2059 = vmatpush1.bf16.msra.mxu0 %v2004
        %2060 = vmatprep.subr.bf16.mxu0 0
        %2061 = vmatpush1.bf16.msra.mxu0 %v2005
        %2062 = vmatprep.subr.bf16.mxu0 0
        %2063 = vmatpush1.bf16.msra.mxu0 %v2006
        %2064 = vmatprep.subr.bf16.mxu0 0
        %2065 = vmatpush1.bf16.msra.mxu0 %v2007
        %2066 = vmatprep.subr.bf16.mxu0 0
        %2067 = vmatpush1.bf16.msra.mxu0 %v2008
        %2068 = vmatprep.subr.bf16.mxu0 0
        %2069 = vmatpush1.bf16.msra.mxu0 %v2009
        %2070 = vmatprep.subr.bf16.mxu0 0
        %2071 = vmatpush1.bf16.msra.mxu0 %v2010
        %2072 = vmatprep.subr.bf16.mxu0 0
        %2073 = vmatpush1.bf16.msra.mxu0 %v2011
        %2074 = vmatprep.subr.bf16.mxu0 0
        %2075 = vmatpush1.bf16.msra.mxu0 %v2012
        %2076 = vmatprep.subr.bf16.mxu0 0
        %2077 = vmatpush1.bf16.msra.mxu0 %v2013
        %2078 = vmatprep.mubr.bf16.mxu0 %v1592
        %2079 = vmatmul.mubr.bf16.gmra.mrb[0].mxu0 %v1501
        %v2080 = vpop.f32.mrb[0].mxu0
        %v2081 = vadd.f32 0.0, %v2080
        %v2082 = vpop.f32.mrb[0].mxu0
        %v2083 = vpop.f32.mrb[0].mxu0
        %v2084 = vadd.f32 0.0, %v2083
        %v2085 = vpop.f32.mrb[0].mxu0
        %2086 = vmatprep.mubr.bf16.mxu0 %v1604
        %2087 = vmatmul.mubr.bf16.gmra.mrb[0].mxu0 %v1502
        %v2088 = vpop.f32.mrb[0].mxu0
        %v2089 = vadd.f32 0.0, %v2088
        %v2090 = vpop.f32.mrb[0].mxu0
        %v2091 = vpop.f32.mrb[0].mxu0
        %v2092 = vadd.f32 0.0, %v2091
        %v2093 = vpop.f32.mrb[0].mxu0
        %2094 = vmatprep.mubr.bf16.mxu0 %v1616
        %2095 = vmatmul.mubr.bf16.gmra.mrb[0].mxu0 %v1503
        %v2096 = vpop.f32.mrb[0].mxu0
        %v2097 = vadd.f32 0.0, %v2096
        %v2098 = vpop.f32.mrb[0].mxu0
        %v2099 = vpop.f32.mrb[0].mxu0
        %v2100 = vadd.f32 0.0, %v2099
        %v2101 = vpop.f32.mrb[0].mxu0
        %2102 = vmatprep.mubr.bf16.mxu0 %v1628
        %2103 = vmatmul.mubr.bf16.gmra.mrb[0].mxu0 %v1504
        %v2104 = vpop.f32.mrb[0].mxu0
        %v2105 = vadd.f32 0.0, %v2104
        %v2106 = vpop.f32.mrb[0].mxu0
        %v2107 = vpop.f32.mrb[0].mxu0
        %v2108 = vadd.f32 0.0, %v2107
        %v2109 = vpop.f32.mrb[0].mxu0
        %2110 = vmatprep.mubr.bf16.mxu0 %v1640
        %2111 = vmatmul.mubr.bf16.gmra.mrb[0].mxu0 %v1505
        %v2112 = vpop.f32.mrb[0].mxu0
        %v2113 = vadd.f32 0.0, %v2112
        %v2114 = vpop.f32.mrb[0].mxu0
        %v2115 = vpop.f32.mrb[0].mxu0
        %v2116 = vadd.f32 0.0, %v2115
        %v2117 = vpop.f32.mrb[0].mxu0
        %2118 = vmatprep.mubr.bf16.mxu0 %v1652
        %2119 = vmatmul.mubr.bf16.gmra.mrb[0].mxu0 %v1506
        %v2120 = vpop.f32.mrb[0].mxu0
        %v2121 = vadd.f32 0.0, %v2120
        %v2122 = vpop.f32.mrb[0].mxu0
        %v2123 = vpop.f32.mrb[0].mxu0
        %v2124 = vadd.f32 0.0, %v2123
        %v2125 = vpop.f32.mrb[0].mxu0
        %2126 = vmatprep.mubr.bf16.mxu0 %v1664
        %2127 = vmatmul.mubr.bf16.gmra.mrb[0].mxu0 %v1507
        %v2128 = vpop.f32.mrb[0].mxu0
        %v2129 = vadd.f32 0.0, %v2128
        %v2130 = vpop.f32.mrb[0].mxu0
        %v2131 = vpop.f32.mrb[0].mxu0
        %v2132 = vadd.f32 0.0, %v2131
        %v2133 = vpop.f32.mrb[0].mxu0
        %2134 = vmatprep.mubr.bf16.mxu0 %v1676
        %2135 = vmatmul.mubr.bf16.gmra.mrb[0].mxu0 %v1508
        %v2136 = vpop.f32.mrb[0].mxu0
        %v2137 = vadd.f32 0.0, %v2136
        %v2138 = vpop.f32.mrb[0].mxu0
        %v2139 = vpop.f32.mrb[0].mxu0
        %v2140 = vadd.f32 0.0, %v2139
        %v2141 = vpop.f32.mrb[0].mxu0
        %2142 = vmatprep.mubr.bf16.mxu0 %v1688
        %2143 = vmatmul.mubr.bf16.gmra.mrb[0].mxu0 %v1509
        %v2144 = vpop.f32.mrb[0].mxu0
        %v2145 = vadd.f32 0.0, %v2144
        %v2146 = vpop.f32.mrb[0].mxu0
        %v2147 = vpop.f32.mrb[0].mxu0
        %v2148 = vadd.f32 0.0, %v2147
        %v2149 = vpop.f32.mrb[0].mxu0
        %2150 = vmatprep.mubr.bf16.mxu0 %v1700
        %2151 = vmatmul.mubr.bf16.gmra.mrb[0].mxu0 %v1510
        %v2152 = vpop.f32.mrb[0].mxu0
        %v2153 = vadd.f32 0.0, %v2152
        %v2154 = vpop.f32.mrb[0].mxu0
        %v2155 = vpop.f32.mrb[0].mxu0
        %v2156 = vadd.f32 0.0, %v2155
        %v2157 = vpop.f32.mrb[0].mxu0
        %2158 = vmatprep.mubr.bf16.mxu0 %v1712
        %2159 = vmatmul.mubr.bf16.gmra.mrb[0].mxu0 %v1511
        %v2160 = vpop.f32.mrb[0].mxu0
        %v2161 = vadd.f32 0.0, %v2160
        %v2162 = vpop.f32.mrb[0].mxu0
        %v2163 = vpop.f32.mrb[0].mxu0
        %v2164 = vadd.f32 0.0, %v2163
        %v2165 = vpop.f32.mrb[0].mxu0
        %2166 = vmatprep.mubr.bf16.mxu0 %v1724
        %2167 = vmatmul.mubr.bf16.gmra.mrb[0].mxu0 %v1512
        %v2168 = vpop.f32.mrb[0].mxu0
        %v2169 = vadd.f32 0.0, %v2168
        %v2170 = vpop.f32.mrb[0].mxu0
        %v2171 = vpop.f32.mrb[0].mxu0
        %v2172 = vadd.f32 0.0, %v2171
        %v2173 = vpop.f32.mrb[0].mxu0
        %2174 = vmatprep.mubr.bf16.mxu0 %v1736
        %2175 = vmatmul.mubr.bf16.gmra.mrb[0].mxu0 %v1513
        %v2176 = vpop.f32.mrb[0].mxu0
        %v2177 = vadd.f32 0.0, %v2176
        %v2178 = vpop.f32.mrb[0].mxu0
        %v2179 = vpop.f32.mrb[0].mxu0
        %v2180 = vadd.f32 0.0, %v2179
        %v2181 = vpop.f32.mrb[0].mxu0
        %2182 = vmatprep.mubr.bf16.mxu0 %v1748
        %2183 = vmatmul.mubr.bf16.gmra.mrb[0].mxu0 %v1514
        %v2184 = vpop.f32.mrb[0].mxu0
        %v2185 = vadd.f32 0.0, %v2184
        %v2186 = vpop.f32.mrb[0].mxu0
        %v2187 = vpop.f32.mrb[0].mxu0
        %v2188 = vadd.f32 0.0, %v2187
        %v2189 = vpop.f32.mrb[0].mxu0
        %2190 = vmatprep.mubr.bf16.mxu0 %v1760
        %2191 = vmatmul.mubr.bf16.gmra.mrb[0].mxu0 %v1515
        %v2192 = vpop.f32.mrb[0].mxu0
        %v2193 = vadd.f32 0.0, %v2192
        %v2194 = vpop.f32.mrb[0].mxu0
        %v2195 = vpop.f32.mrb[0].mxu0
        %v2196 = vadd.f32 0.0, %v2195
        %v2197 = vpop.f32.mrb[0].mxu0
        %2198 = vmatprep.mubr.bf16.mxu0 %v1772
        %2199 = vmatmul.mubr.bf16.gmra.mrb[0].mxu0 %v1516
        %v2200 = vpop.f32.mrb[0].mxu0
        %v2201 = vadd.f32 0.0, %v2200
        %v2202 = vpop.f32.mrb[0].mxu0
        %v2203 = vpop.f32.mrb[0].mxu0
        %v2204 = vadd.f32 0.0, %v2203
        %v2205 = vpop.f32.mrb[0].mxu0
        %2206 = vdwg.mxu0
        %2207 = vmatprep.subr.bf16.mxu0 0
        %2208 = vmatpush1.bf16.msra.mxu0 %v2014
        %2209 = vmatprep.subr.bf16.mxu0 0
        %2210 = vmatpush1.bf16.msra.mxu0 %v2015
        %2211 = vmatprep.subr.bf16.mxu0 0
        %2212 = vmatpush1.bf16.msra.mxu0 %v2016
        %2213 = vmatprep.subr.bf16.mxu0 0
        %2214 = vmatpush1.bf16.msra.mxu0 %v2017
        %2215 = vmatprep.subr.bf16.mxu0 0
        %2216 = vmatpush1.bf16.msra.mxu0 %v2018
        %2217 = vmatprep.subr.bf16.mxu0 0
        %2218 = vmatpush1.bf16.msra.mxu0 %v2019
        %2219 = vmatprep.subr.bf16.mxu0 0
        %2220 = vmatpush1.bf16.msra.mxu0 %v2020
        %2221 = vmatprep.subr.bf16.mxu0 0
        %2222 = vmatpush1.bf16.msra.mxu0 %v2021
        %2223 = vmatprep.subr.bf16.mxu0 0
        %2224 = vmatpush1.bf16.msra.mxu0 0
        %2225 = vmatprep.subr.bf16.mxu0 0
        %2226 = vmatpush1.bf16.msra.mxu0 0
        %2227 = vmatprep.subr.bf16.mxu0 0
        %2228 = vmatpush1.bf16.msra.mxu0 0
        %2229 = vmatprep.subr.bf16.mxu0 0
        %2230 = vmatpush1.bf16.msra.mxu0 0
        %2231 = vmatprep.subr.bf16.mxu0 0
        %2232 = vmatpush1.bf16.msra.mxu0 0
        %2233 = vmatprep.subr.bf16.mxu0 0
        %2234 = vmatpush1.bf16.msra.mxu0 0
        %2235 = vmatprep.subr.bf16.mxu0 0
        %2236 = vmatpush1.bf16.msra.mxu0 0
        %2237 = vmatprep.subr.bf16.mxu0 0
        %2238 = vmatpush1.bf16.msra.mxu0 0
        %2239 = vmatprep.mubr.bf16.mxu0 0
        %2240 = vmatmul.mubr.bf16.gmra.mrb[0].mxu0 %v1791
        %v2241 = vpop.f32.mrb[0].mxu0
        %v2242 = vadd.f32 %v2081, %v2241
        %v2243 = vpop.f32.mrb[0].mxu0
        %v2244 = vpop.f32.mrb[0].mxu0
        %v2245 = vadd.f32 %v2084, %v2244
        %v2246 = vpop.f32.mrb[0].mxu0
        %2247 = vmatprep.mubr.bf16.mxu0 0
        %2248 = vmatmul.mubr.bf16.gmra.mrb[0].mxu0 %v1794
        %v2249 = vpop.f32.mrb[0].mxu0
        %v2250 = vadd.f32 %v2089, %v2249
        %v2251 = vpop.f32.mrb[0].mxu0
        %v2252 = vpop.f32.mrb[0].mxu0
        %v2253 = vadd.f32 %v2092, %v2252
        %v2254 = vpop.f32.mrb[0].mxu0
        %2255 = vmatprep.mubr.bf16.mxu0 0
        %2256 = vmatmul.mubr.bf16.gmra.mrb[0].mxu0 %v1797
        %v2257 = vpop.f32.mrb[0].mxu0
        %v2258 = vadd.f32 %v2097, %v2257
        %v2259 = vpop.f32.mrb[0].mxu0
        %v2260 = vpop.f32.mrb[0].mxu0
        %v2261 = vadd.f32 %v2100, %v2260
        %v2262 = vpop.f32.mrb[0].mxu0
        %2263 = vmatprep.mubr.bf16.mxu0 0
        %2264 = vmatmul.mubr.bf16.gmra.mrb[0].mxu0 %v1800
        %v2265 = vpop.f32.mrb[0].mxu0
        %v2266 = vadd.f32 %v2105, %v2265
        %v2267 = vpop.f32.mrb[0].mxu0
        %v2268 = vpop.f32.mrb[0].mxu0
        %v2269 = vadd.f32 %v2108, %v2268
        %v2270 = vpop.f32.mrb[0].mxu0
        %2271 = vmatprep.mubr.bf16.mxu0 0
        %2272 = vmatmul.mubr.bf16.gmra.mrb[0].mxu0 %v1803
        %v2273 = vpop.f32.mrb[0].mxu0
        %v2274 = vadd.f32 %v2113, %v2273
        %v2275 = vpop.f32.mrb[0].mxu0
        %v2276 = vpop.f32.mrb[0].mxu0
        %v2277 = vadd.f32 %v2116, %v2276
        %v2278 = vpop.f32.mrb[0].mxu0
        %2279 = vmatprep.mubr.bf16.mxu0 0
        %2280 = vmatmul.mubr.bf16.gmra.mrb[0].mxu0 %v1806
        %v2281 = vpop.f32.mrb[0].mxu0
        %v2282 = vadd.f32 %v2121, %v2281
        %v2283 = vpop.f32.mrb[0].mxu0
        %v2284 = vpop.f32.mrb[0].mxu0
        %v2285 = vadd.f32 %v2124, %v2284
        %v2286 = vpop.f32.mrb[0].mxu0
        %2287 = vmatprep.mubr.bf16.mxu0 0
        %2288 = vmatmul.mubr.bf16.gmra.mrb[0].mxu0 %v1809
        %v2289 = vpop.f32.mrb[0].mxu0
        %v2290 = vadd.f32 %v2129, %v2289
        %v2291 = vpop.f32.mrb[0].mxu0
        %v2292 = vpop.f32.mrb[0].mxu0
        %v2293 = vadd.f32 %v2132, %v2292
        %v2294 = vpop.f32.mrb[0].mxu0
        %2295 = vmatprep.mubr.bf16.mxu0 0
        %2296 = vmatmul.mubr.bf16.gmra.mrb[0].mxu0 %v1812
        %v2297 = vpop.f32.mrb[0].mxu0
        %v2298 = vadd.f32 %v2137, %v2297
        %v2299 = vpop.f32.mrb[0].mxu0
        %v2300 = vpop.f32.mrb[0].mxu0
        %v2301 = vadd.f32 %v2140, %v2300
        %v2302 = vpop.f32.mrb[0].mxu0
        %2303 = vmatprep.mubr.bf16.mxu0 0
        %2304 = vmatmul.mubr.bf16.gmra.mrb[0].mxu0 %v1815
        %v2305 = vpop.f32.mrb[0].mxu0
        %v2306 = vadd.f32 %v2145, %v2305
        %v2307 = vpop.f32.mrb[0].mxu0
        %v2308 = vpop.f32.mrb[0].mxu0
        %v2309 = vadd.f32 %v2148, %v2308
        %v2310 = vpop.f32.mrb[0].mxu0
        %2311 = vmatprep.mubr.bf16.mxu0 0
        %2312 = vmatmul.mubr.bf16.gmra.mrb[0].mxu0 %v1818
        %v2313 = vpop.f32.mrb[0].mxu0
        %v2314 = vadd.f32 %v2153, %v2313
        %v2315 = vpop.f32.mrb[0].mxu0
        %v2316 = vpop.f32.mrb[0].mxu0
        %v2317 = vadd.f32 %v2156, %v2316
        %v2318 = vpop.f32.mrb[0].mxu0
        %2319 = vmatprep.mubr.bf16.mxu0 0
        %2320 = vmatmul.mubr.bf16.gmra.mrb[0].mxu0 %v1821
        %v2321 = vpop.f32.mrb[0].mxu0
        %v2322 = vadd.f32 %v2161, %v2321
        %v2323 = vpop.f32.mrb[0].mxu0
        %v2324 = vpop.f32.mrb[0].mxu0
        %v2325 = vadd.f32 %v2164, %v2324
        %v2326 = vpop.f32.mrb[0].mxu0
        %2327 = vmatprep.mubr.bf16.mxu0 0
        %2328 = vmatmul.mubr.bf16.gmra.mrb[0].mxu0 %v1824
        %v2329 = vpop.f32.mrb[0].mxu0
        %v2330 = vadd.f32 %v2169, %v2329
        %v2331 = vpop.f32.mrb[0].mxu0
        %v2332 = vpop.f32.mrb[0].mxu0
        %v2333 = vadd.f32 %v2172, %v2332
        %v2334 = vpop.f32.mrb[0].mxu0
        %2335 = vmatprep.mubr.bf16.mxu0 0
        %2336 = vmatmul.mubr.bf16.gmra.mrb[0].mxu0 %v1827
        %v2337 = vpop.f32.mrb[0].mxu0
        %v2338 = vadd.f32 %v2177, %v2337
        %v2339 = vpop.f32.mrb[0].mxu0
        %v2340 = vpop.f32.mrb[0].mxu0
        %v2341 = vadd.f32 %v2180, %v2340
        %v2342 = vpop.f32.mrb[0].mxu0
        %2343 = vmatprep.mubr.bf16.mxu0 0
        %2344 = vmatmul.mubr.bf16.gmra.mrb[0].mxu0 %v1830
        %v2345 = vpop.f32.mrb[0].mxu0
        %v2346 = vadd.f32 %v2185, %v2345
        %v2347 = vpop.f32.mrb[0].mxu0
        %v2348 = vpop.f32.mrb[0].mxu0
        %v2349 = vadd.f32 %v2188, %v2348
        %v2350 = vpop.f32.mrb[0].mxu0
        %2351 = vmatprep.mubr.bf16.mxu0 0
        %2352 = vmatmul.mubr.bf16.gmra.mrb[0].mxu0 %v1833
        %v2353 = vpop.f32.mrb[0].mxu0
        %v2354 = vadd.f32 %v2193, %v2353
        %v2355 = vpop.f32.mrb[0].mxu0
        %v2356 = vpop.f32.mrb[0].mxu0
        %v2357 = vadd.f32 %v2196, %v2356
        %v2358 = vpop.f32.mrb[0].mxu0
        %2359 = vmatprep.mubr.bf16.mxu0 0
        %2360 = vmatmul.mubr.bf16.gmra.mrb[0].mxu0 %v1836
        %v2361 = vpop.f32.mrb[0].mxu0
        %v2362 = vadd.f32 %v2201, %v2361
        %v2363 = vpop.f32.mrb[0].mxu0
        %v2364 = vpop.f32.mrb[0].mxu0
        %v2365 = vadd.f32 %v2204, %v2364
        %v2366 = vpop.f32.mrb[0].mxu0
        %2367 = vdwg.mxu0
        %v2416 = vunpack.c.l.b16 %v1337
        %v2417 = vunpack.c.l.b16 %v1338
        %v2418 = vunpack.c.l.b16 %v1339
        %v2419 = vunpack.c.l.b16 %v1340
        %v2420 = vunpack.c.l.b16 %v1341
        %v2421 = vunpack.c.l.b16 %v1342
        %v2422 = vunpack.c.l.b16 %v1343
        %v2423 = vunpack.c.l.b16 %v1344
        %v2424 = vunpack.c.l.b16 %v1345
        %v2425 = vunpack.c.l.b16 %v1346
        %v2426 = vunpack.c.l.b16 %v1347
        %v2427 = vunpack.c.l.b16 %v1348
        %v2428 = vunpack.c.l.b16 %v1349
        %v2429 = vunpack.c.l.b16 %v1350
        %v2430 = vunpack.c.l.b16 %v1351
        %v2431 = vunpack.c.l.b16 %v1352
        %v2432 = vunpack.c.l.b16 %v1353
        %v2433 = vunpack.c.l.b16 %v1354
        %v2434 = vunpack.c.l.b16 %v1355
        %v2435 = vunpack.c.l.b16 %v1356
        %v2436 = vunpack.c.l.b16 %v1357
        %v2437 = vunpack.c.l.b16 %v1358
        %v2438 = vunpack.c.l.b16 %v1359
        %v2439 = vunpack.c.l.b16 %v1360
        %v2440 = vunpack.c.l.b16 %v1361
        %v2441 = vunpack.c.l.b16 %v1362
        %v2442 = vunpack.c.l.b16 %v1363
        %v2443 = vunpack.c.l.b16 %v1364
        %v2444 = vunpack.c.l.b16 %v1365
        %v2445 = vunpack.c.l.b16 %v1366
        %v2446 = vunpack.c.l.b16 %v1367
        %v2447 = vunpack.c.l.b16 %v1368
        %v2448 = vunpack.c.l.b16 %v1369
        %v2449 = vunpack.c.l.b16 %v1370
        %v2450 = vunpack.c.l.b16 %v1371
        %v2451 = vunpack.c.l.b16 %v1372
        %v2452 = vunpack.c.l.b16 %v1373
        %v2453 = vunpack.c.l.b16 %v1374
        %v2454 = vunpack.c.l.b16 %v1375
        %v2455 = vunpack.c.l.b16 %v1376
        %v2456 = vunpack.c.l.b16 %v1377
        %v2457 = vunpack.c.l.b16 %v1378
        %v2458 = vunpack.c.l.b16 %v1379
        %v2459 = vunpack.c.l.b16 %v1380
        %v2460 = vunpack.c.l.b16 %v1381
        %v2461 = vunpack.c.l.b16 %v1382
        %v2462 = vunpack.c.l.b16 %v1383
        %v2463 = vunpack.c.l.b16 %v1384
        %v2464 = vpack.c.b16 %v2417, %v2416
        %v2465 = vpack.c.b16 %v2419, %v2418
        %v2466 = vpack.c.b16 %v2421, %v2420
        %v2467 = vpack.c.b16 %v2423, %v2422
        %v2468 = vpack.c.b16 %v2425, %v2424
        %v2469 = vpack.c.b16 %v2427, %v2426
        %v2470 = vpack.c.b16 %v2429, %v2428
        %v2471 = vpack.c.b16 %v2431, %v2430
        %v2472 = vpack.c.b16 %v2433, %v2432
        %v2473 = vpack.c.b16 %v2435, %v2434
        %v2474 = vpack.c.b16 %v2437, %v2436
        %v2475 = vpack.c.b16 %v2439, %v2438
        %v2476 = vpack.c.b16 %v2441, %v2440
        %v2477 = vpack.c.b16 %v2443, %v2442
        %v2478 = vpack.c.b16 %v2445, %v2444
        %v2479 = vpack.c.b16 %v2447, %v2446
        %v2480 = vpack.c.b16 %v2449, %v2448
        %v2481 = vpack.c.b16 %v2451, %v2450
        %v2482 = vpack.c.b16 %v2453, %v2452
        %v2483 = vpack.c.b16 %v2455, %v2454
        %v2484 = vpack.c.b16 %v2457, %v2456
        %v2485 = vpack.c.b16 %v2459, %v2458
        %v2486 = vpack.c.b16 %v2461, %v2460
        %v2487 = vpack.c.b16 %v2463, %v2462
        %2512 = vmatprep.subr.bf16.mxu0 0
        %2513 = vmatpush1.bf16.msra.mxu0 %v2464
        %2514 = vmatprep.subr.bf16.mxu0 0
        %2515 = vmatpush1.bf16.msra.mxu0 %v2465
        %2516 = vmatprep.subr.bf16.mxu0 0
        %2517 = vmatpush1.bf16.msra.mxu0 %v2466
        %2518 = vmatprep.subr.bf16.mxu0 0
        %2519 = vmatpush1.bf16.msra.mxu0 %v2467
        %2520 = vmatprep.subr.bf16.mxu0 0
        %2521 = vmatpush1.bf16.msra.mxu0 %v2468
        %2522 = vmatprep.subr.bf16.mxu0 0
        %2523 = vmatpush1.bf16.msra.mxu0 %v2469
        %2524 = vmatprep.subr.bf16.mxu0 0
        %2525 = vmatpush1.bf16.msra.mxu0 %v2470
        %2526 = vmatprep.subr.bf16.mxu0 0
        %2527 = vmatpush1.bf16.msra.mxu0 %v2471
        %2528 = vmatprep.subr.bf16.mxu0 0
        %2529 = vmatpush1.bf16.msra.mxu0 %v2472
        %2530 = vmatprep.subr.bf16.mxu0 0
        %2531 = vmatpush1.bf16.msra.mxu0 %v2473
        %2532 = vmatprep.subr.bf16.mxu0 0
        %2533 = vmatpush1.bf16.msra.mxu0 %v2474
        %2534 = vmatprep.subr.bf16.mxu0 0
        %2535 = vmatpush1.bf16.msra.mxu0 %v2475
        %2536 = vmatprep.subr.bf16.mxu0 0
        %2537 = vmatpush1.bf16.msra.mxu0 %v2476
        %2538 = vmatprep.subr.bf16.mxu0 0
        %2539 = vmatpush1.bf16.msra.mxu0 %v2477
        %2540 = vmatprep.subr.bf16.mxu0 0
        %2541 = vmatpush1.bf16.msra.mxu0 %v2478
        %2542 = vmatprep.subr.bf16.mxu0 0
        %2543 = vmatpush1.bf16.msra.mxu0 %v2479
        %2544 = vmatprep.mubr.bf16.mxu0 %v1075
        %2545 = vmatmul.mubr.bf16.gmra.mrb[0].mxu0 %v983
        %v2546 = vpop.f32.mrb[0].mxu0
        %v2547 = vadd.f32 %v2242, %v2546
        %v2548 = vpop.f32.mrb[0].mxu0
        %v2549 = vpop.f32.mrb[0].mxu0
        %v2550 = vadd.f32 %v2245, %v2549
        %v2551 = vpop.f32.mrb[0].mxu0
        %2552 = vmatprep.mubr.bf16.mxu0 %v1087
        %2553 = vmatmul.mubr.bf16.gmra.mrb[0].mxu0 %v984
        %v2554 = vpop.f32.mrb[0].mxu0
        %v2555 = vadd.f32 %v2250, %v2554
        %v2556 = vpop.f32.mrb[0].mxu0
        %v2557 = vpop.f32.mrb[0].mxu0
        %v2558 = vadd.f32 %v2253, %v2557
        %v2559 = vpop.f32.mrb[0].mxu0
        %2560 = vmatprep.mubr.bf16.mxu0 %v1099
        %2561 = vmatmul.mubr.bf16.gmra.mrb[0].mxu0 %v985
        %v2562 = vpop.f32.mrb[0].mxu0
        %v2563 = vadd.f32 %v2258, %v2562
        %v2564 = vpop.f32.mrb[0].mxu0
        %v2565 = vpop.f32.mrb[0].mxu0
        %v2566 = vadd.f32 %v2261, %v2565
        %v2567 = vpop.f32.mrb[0].mxu0
        %2568 = vmatprep.mubr.bf16.mxu0 %v1111
        %2569 = vmatmul.mubr.bf16.gmra.mrb[0].mxu0 %v986
        %v2570 = vpop.f32.mrb[0].mxu0
        %v2571 = vadd.f32 %v2266, %v2570
        %v2572 = vpop.f32.mrb[0].mxu0
        %v2573 = vpop.f32.mrb[0].mxu0
        %v2574 = vadd.f32 %v2269, %v2573
        %v2575 = vpop.f32.mrb[0].mxu0
        %2576 = vmatprep.mubr.bf16.mxu0 %v1123
        %2577 = vmatmul.mubr.bf16.gmra.mrb[0].mxu0 %v987
        %v2578 = vpop.f32.mrb[0].mxu0
        %v2579 = vadd.f32 %v2274, %v2578
        %v2580 = vpop.f32.mrb[0].mxu0
        %v2581 = vpop.f32.mrb[0].mxu0
        %v2582 = vadd.f32 %v2277, %v2581
        %v2583 = vpop.f32.mrb[0].mxu0
        %2584 = vmatprep.mubr.bf16.mxu0 %v1135
        %2585 = vmatmul.mubr.bf16.gmra.mrb[0].mxu0 %v988
        %v2586 = vpop.f32.mrb[0].mxu0
        %v2587 = vadd.f32 %v2282, %v2586
        %v2588 = vpop.f32.mrb[0].mxu0
        %v2589 = vpop.f32.mrb[0].mxu0
        %v2590 = vadd.f32 %v2285, %v2589
        %v2591 = vpop.f32.mrb[0].mxu0
        %2592 = vmatprep.mubr.bf16.mxu0 %v1147
        %2593 = vmatmul.mubr.bf16.gmra.mrb[0].mxu0 %v989
        %v2594 = vpop.f32.mrb[0].mxu0
        %v2595 = vadd.f32 %v2290, %v2594
        %v2596 = vpop.f32.mrb[0].mxu0
        %v2597 = vpop.f32.mrb[0].mxu0
        %v2598 = vadd.f32 %v2293, %v2597
        %v2599 = vpop.f32.mrb[0].mxu0
        %2600 = vmatprep.mubr.bf16.mxu0 %v1159
        %2601 = vmatmul.mubr.bf16.gmra.mrb[0].mxu0 %v990
        %v2602 = vpop.f32.mrb[0].mxu0
        %v2603 = vadd.f32 %v2298, %v2602
        %v2604 = vpop.f32.mrb[0].mxu0
        %v2605 = vpop.f32.mrb[0].mxu0
        %v2606 = vadd.f32 %v2301, %v2605
        %v2607 = vpop.f32.mrb[0].mxu0
        %2608 = vmatprep.mubr.bf16.mxu0 %v1171
        %2609 = vmatmul.mubr.bf16.gmra.mrb[0].mxu0 %v991
        %v2610 = vpop.f32.mrb[0].mxu0
        %v2611 = vadd.f32 %v2306, %v2610
        %v2612 = vpop.f32.mrb[0].mxu0
        %v2613 = vpop.f32.mrb[0].mxu0
        %v2614 = vadd.f32 %v2309, %v2613
        %v2615 = vpop.f32.mrb[0].mxu0
        %2616 = vmatprep.mubr.bf16.mxu0 %v1183
        %2617 = vmatmul.mubr.bf16.gmra.mrb[0].mxu0 %v992
        %v2618 = vpop.f32.mrb[0].mxu0
        %v2619 = vadd.f32 %v2314, %v2618
        %v2620 = vpop.f32.mrb[0].mxu0
        %v2621 = vpop.f32.mrb[0].mxu0
        %v2622 = vadd.f32 %v2317, %v2621
        %v2623 = vpop.f32.mrb[0].mxu0
        %2624 = vmatprep.mubr.bf16.mxu0 %v1195
        %2625 = vmatmul.mubr.bf16.gmra.mrb[0].mxu0 %v993
        %v2626 = vpop.f32.mrb[0].mxu0
        %v2627 = vadd.f32 %v2322, %v2626
        %v2628 = vpop.f32.mrb[0].mxu0
        %v2629 = vpop.f32.mrb[0].mxu0
        %v2630 = vadd.f32 %v2325, %v2629
        %v2631 = vpop.f32.mrb[0].mxu0
        %2632 = vmatprep.mubr.bf16.mxu0 %v1207
        %2633 = vmatmul.mubr.bf16.gmra.mrb[0].mxu0 %v994
        %v2634 = vpop.f32.mrb[0].mxu0
        %v2635 = vadd.f32 %v2330, %v2634
        %v2636 = vpop.f32.mrb[0].mxu0
        %v2637 = vpop.f32.mrb[0].mxu0
        %v2638 = vadd.f32 %v2333, %v2637
        %v2639 = vpop.f32.mrb[0].mxu0
        %2640 = vmatprep.mubr.bf16.mxu0 %v1219
        %2641 = vmatmul.mubr.bf16.gmra.mrb[0].mxu0 %v995
        %v2642 = vpop.f32.mrb[0].mxu0
        %v2643 = vadd.f32 %v2338, %v2642
        %v2644 = vpop.f32.mrb[0].mxu0
        %v2645 = vpop.f32.mrb[0].mxu0
        %v2646 = vadd.f32 %v2341, %v2645
        %v2647 = vpop.f32.mrb[0].mxu0
        %2648 = vmatprep.mubr.bf16.mxu0 %v1231
        %2649 = vmatmul.mubr.bf16.gmra.mrb[0].mxu0 %v996
        %v2650 = vpop.f32.mrb[0].mxu0
        %v2651 = vadd.f32 %v2346, %v2650
        %v2652 = vpop.f32.mrb[0].mxu0
        %v2653 = vpop.f32.mrb[0].mxu0
        %v2654 = vadd.f32 %v2349, %v2653
        %v2655 = vpop.f32.mrb[0].mxu0
        %2656 = vmatprep.mubr.bf16.mxu0 %v1243
        %2657 = vmatmul.mubr.bf16.gmra.mrb[0].mxu0 %v997
        %v2658 = vpop.f32.mrb[0].mxu0
        %v2659 = vadd.f32 %v2354, %v2658
        %v2660 = vpop.f32.mrb[0].mxu0
        %v2661 = vpop.f32.mrb[0].mxu0
        %v2662 = vadd.f32 %v2357, %v2661
        %v2663 = vpop.f32.mrb[0].mxu0
        %2664 = vmatprep.mubr.bf16.mxu0 %v1255
        %2665 = vmatmul.mubr.bf16.gmra.mrb[0].mxu0 %v998
        %v2666 = vpop.f32.mrb[0].mxu0
        %v2667 = vadd.f32 %v2362, %v2666
        %v2668 = vpop.f32.mrb[0].mxu0
        %v2669 = vpop.f32.mrb[0].mxu0
        %v2670 = vadd.f32 %v2365, %v2669
        %v2671 = vpop.f32.mrb[0].mxu0
        %2672 = vdwg.mxu0
        %2673 = vmatprep.subr.bf16.mxu0 0
        %2674 = vmatpush1.bf16.msra.mxu0 %v2480
        %2675 = vmatprep.subr.bf16.mxu0 0
        %2676 = vmatpush1.bf16.msra.mxu0 %v2481
        %2677 = vmatprep.subr.bf16.mxu0 0
        %2678 = vmatpush1.bf16.msra.mxu0 %v2482
        %2679 = vmatprep.subr.bf16.mxu0 0
        %2680 = vmatpush1.bf16.msra.mxu0 %v2483
        %2681 = vmatprep.subr.bf16.mxu0 0
        %2682 = vmatpush1.bf16.msra.mxu0 %v2484
        %2683 = vmatprep.subr.bf16.mxu0 0
        %2684 = vmatpush1.bf16.msra.mxu0 %v2485
        %2685 = vmatprep.subr.bf16.mxu0 0
        %2686 = vmatpush1.bf16.msra.mxu0 %v2486
        %2687 = vmatprep.subr.bf16.mxu0 0
        %2688 = vmatpush1.bf16.msra.mxu0 %v2487
        %2689 = vmatprep.subr.bf16.mxu0 0
        %2690 = vmatpush1.bf16.msra.mxu0 0
        %2691 = vmatprep.subr.bf16.mxu0 0
        %2692 = vmatpush1.bf16.msra.mxu0 0
        %2693 = vmatprep.subr.bf16.mxu0 0
        %2694 = vmatpush1.bf16.msra.mxu0 0
        %2695 = vmatprep.subr.bf16.mxu0 0
        %2696 = vmatpush1.bf16.msra.mxu0 0
        %2697 = vmatprep.subr.bf16.mxu0 0
        %2698 = vmatpush1.bf16.msra.mxu0 0
        %2699 = vmatprep.subr.bf16.mxu0 0
        %2700 = vmatpush1.bf16.msra.mxu0 0
        %2701 = vmatprep.subr.bf16.mxu0 0
        %2702 = vmatpush1.bf16.msra.mxu0 0
        %2703 = vmatprep.subr.bf16.mxu0 0
        %2704 = vmatpush1.bf16.msra.mxu0 0
        %2705 = vmatprep.mubr.bf16.mxu0 0
        %2706 = vmatmul.mubr.bf16.gmra.mrb[0].mxu0 %v1275
        %v2707 = vpop.f32.mrb[0].mxu0
        %v2708 = vadd.f32 %v2547, %v2707
        %v2709 = vpop.f32.mrb[0].mxu0
        %v2710 = vpop.f32.mrb[0].mxu0
        %v2711 = vadd.f32 %v2550, %v2710
        %v2712 = vpop.f32.mrb[0].mxu0
        %2713 = vmatprep.mubr.bf16.mxu0 0
        %2714 = vmatmul.mubr.bf16.gmra.mrb[0].mxu0 %v1278
        %v2715 = vpop.f32.mrb[0].mxu0
        %v2716 = vadd.f32 %v2555, %v2715
        %v2717 = vpop.f32.mrb[0].mxu0
        %v2718 = vpop.f32.mrb[0].mxu0
        %v2719 = vadd.f32 %v2558, %v2718
        %v2720 = vpop.f32.mrb[0].mxu0
        %2721 = vmatprep.mubr.bf16.mxu0 0
        %2722 = vmatmul.mubr.bf16.gmra.mrb[0].mxu0 %v1281
        %v2723 = vpop.f32.mrb[0].mxu0
        %v2724 = vadd.f32 %v2563, %v2723
        %v2725 = vpop.f32.mrb[0].mxu0
        %v2726 = vpop.f32.mrb[0].mxu0
        %v2727 = vadd.f32 %v2566, %v2726
        %v2728 = vpop.f32.mrb[0].mxu0
        %2729 = vmatprep.mubr.bf16.mxu0 0
        %2730 = vmatmul.mubr.bf16.gmra.mrb[0].mxu0 %v1284
        %v2731 = vpop.f32.mrb[0].mxu0
        %v2732 = vadd.f32 %v2571, %v2731
        %v2733 = vpop.f32.mrb[0].mxu0
        %v2734 = vpop.f32.mrb[0].mxu0
        %v2735 = vadd.f32 %v2574, %v2734
        %v2736 = vpop.f32.mrb[0].mxu0
        %2737 = vmatprep.mubr.bf16.mxu0 0
        %2738 = vmatmul.mubr.bf16.gmra.mrb[0].mxu0 %v1287
        %v2739 = vpop.f32.mrb[0].mxu0
        %v2740 = vadd.f32 %v2579, %v2739
        %v2741 = vpop.f32.mrb[0].mxu0
        %v2742 = vpop.f32.mrb[0].mxu0
        %v2743 = vadd.f32 %v2582, %v2742
        %v2744 = vpop.f32.mrb[0].mxu0
        %2745 = vmatprep.mubr.bf16.mxu0 0
        %2746 = vmatmul.mubr.bf16.gmra.mrb[0].mxu0 %v1290
        %v2747 = vpop.f32.mrb[0].mxu0
        %v2748 = vadd.f32 %v2587, %v2747
        %v2749 = vpop.f32.mrb[0].mxu0
        %v2750 = vpop.f32.mrb[0].mxu0
        %v2751 = vadd.f32 %v2590, %v2750
        %v2752 = vpop.f32.mrb[0].mxu0
        %2753 = vmatprep.mubr.bf16.mxu0 0
        %2754 = vmatmul.mubr.bf16.gmra.mrb[0].mxu0 %v1293
        %v2755 = vpop.f32.mrb[0].mxu0
        %v2756 = vadd.f32 %v2595, %v2755
        %v2757 = vpop.f32.mrb[0].mxu0
        %v2758 = vpop.f32.mrb[0].mxu0
        %v2759 = vadd.f32 %v2598, %v2758
        %v2760 = vpop.f32.mrb[0].mxu0
        %2761 = vmatprep.mubr.bf16.mxu0 0
        %2762 = vmatmul.mubr.bf16.gmra.mrb[0].mxu0 %v1296
        %v2763 = vpop.f32.mrb[0].mxu0
        %v2764 = vadd.f32 %v2603, %v2763
        %v2765 = vpop.f32.mrb[0].mxu0
        %v2766 = vpop.f32.mrb[0].mxu0
        %v2767 = vadd.f32 %v2606, %v2766
        %v2768 = vpop.f32.mrb[0].mxu0
        %2769 = vmatprep.mubr.bf16.mxu0 0
        %2770 = vmatmul.mubr.bf16.gmra.mrb[0].mxu0 %v1299
        %v2771 = vpop.f32.mrb[0].mxu0
        %v2772 = vadd.f32 %v2611, %v2771
        %v2773 = vpop.f32.mrb[0].mxu0
        %v2774 = vpop.f32.mrb[0].mxu0
        %v2775 = vadd.f32 %v2614, %v2774
        %v2776 = vpop.f32.mrb[0].mxu0
        %2777 = vmatprep.mubr.bf16.mxu0 0
        %2778 = vmatmul.mubr.bf16.gmra.mrb[0].mxu0 %v1302
        %v2779 = vpop.f32.mrb[0].mxu0
        %v2780 = vadd.f32 %v2619, %v2779
        %v2781 = vpop.f32.mrb[0].mxu0
        %v2782 = vpop.f32.mrb[0].mxu0
        %v2783 = vadd.f32 %v2622, %v2782
        %v2784 = vpop.f32.mrb[0].mxu0
        %2785 = vmatprep.mubr.bf16.mxu0 0
        %2786 = vmatmul.mubr.bf16.gmra.mrb[0].mxu0 %v1305
        %v2787 = vpop.f32.mrb[0].mxu0
        %v2788 = vadd.f32 %v2627, %v2787
        %v2789 = vpop.f32.mrb[0].mxu0
        %v2790 = vpop.f32.mrb[0].mxu0
        %v2791 = vadd.f32 %v2630, %v2790
        %v2792 = vpop.f32.mrb[0].mxu0
        %2793 = vmatprep.mubr.bf16.mxu0 0
        %2794 = vmatmul.mubr.bf16.gmra.mrb[0].mxu0 %v1308
        %v2795 = vpop.f32.mrb[0].mxu0
        %v2796 = vadd.f32 %v2635, %v2795
        %v2797 = vpop.f32.mrb[0].mxu0
        %v2798 = vpop.f32.mrb[0].mxu0
        %v2799 = vadd.f32 %v2638, %v2798
        %v2800 = vpop.f32.mrb[0].mxu0
        %2801 = vmatprep.mubr.bf16.mxu0 0
        %2802 = vmatmul.mubr.bf16.gmra.mrb[0].mxu0 %v1311
        %v2803 = vpop.f32.mrb[0].mxu0
        %v2804 = vadd.f32 %v2643, %v2803
        %v2805 = vpop.f32.mrb[0].mxu0
        %v2806 = vpop.f32.mrb[0].mxu0
        %v2807 = vadd.f32 %v2646, %v2806
        %v2808 = vpop.f32.mrb[0].mxu0
        %2809 = vmatprep.mubr.bf16.mxu0 0
        %2810 = vmatmul.mubr.bf16.gmra.mrb[0].mxu0 %v1314
        %v2811 = vpop.f32.mrb[0].mxu0
        %v2812 = vadd.f32 %v2651, %v2811
        %v2813 = vpop.f32.mrb[0].mxu0
        %v2814 = vpop.f32.mrb[0].mxu0
        %v2815 = vadd.f32 %v2654, %v2814
        %v2816 = vpop.f32.mrb[0].mxu0
        %2817 = vmatprep.mubr.bf16.mxu0 0
        %2818 = vmatmul.mubr.bf16.gmra.mrb[0].mxu0 %v1317
        %v2819 = vpop.f32.mrb[0].mxu0
        %v2820 = vadd.f32 %v2659, %v2819
        %v2821 = vpop.f32.mrb[0].mxu0
        %v2822 = vpop.f32.mrb[0].mxu0
        %v2823 = vadd.f32 %v2662, %v2822
        %v2824 = vpop.f32.mrb[0].mxu0
        %2825 = vmatprep.mubr.bf16.mxu0 0
        %2826 = vmatmul.mubr.bf16.gmra.mrb[0].mxu0 %v1320
        %v2827 = vpop.f32.mrb[0].mxu0
        %v2828 = vadd.f32 %v2667, %v2827
        %v2829 = vpop.f32.mrb[0].mxu0
        %v2830 = vpop.f32.mrb[0].mxu0
        %v2831 = vadd.f32 %v2670, %v2830
        %v2832 = vpop.f32.mrb[0].mxu0
        %2833 = vdwg.mxu0
        %s2834 = sadd.s32 %s867, 2
        %s2835 = smul.u32 %s2834, 3
        %s2836 = smul.addr %s2835, 4
        %s2837 = scalar_lea.vmem [#allocation2], %s2836
        %v2838 = vld [vmem:[%s2837] sm:$0xf]
        %v2839 = vld [vmem:[%s2837 + $0x4] sm:$0xf]
        %v2840 = vld [vmem:[%s2837 + $0x8] sm:$0x1]
        %v2841 = vld [vmem:[%s2837 + $0xc] sm:$0xf]
        %v2842 = vld [vmem:[%s2837 + $0x10] sm:$0xf]
        %v2843 = vld [vmem:[%s2837 + $0x14] sm:$0x1]
        %v2844 = vld [vmem:[%s2837 + $0x18] sm:$0xf]
        %v2845 = vld [vmem:[%s2837 + $0x1c] sm:$0xf]
        %v2846 = vld [vmem:[%s2837 + $0x20] sm:$0x1]
        %v2847 = vld [vmem:[%s2837 + $0x24] sm:$0xf]
        %v2848 = vld [vmem:[%s2837 + $0x28] sm:$0xf]
        %v2849 = vld [vmem:[%s2837 + $0x2c] sm:$0x1]
        %v2850 = vld [vmem:[%s2837 + $0x30] sm:$0xf]
        %v2851 = vld [vmem:[%s2837 + $0x34] sm:$0xf]
        %v2852 = vld [vmem:[%s2837 + $0x38] sm:$0x1]
        %v2853 = vld [vmem:[%s2837 + $0x3c] sm:$0xf]
        %v2854 = vld [vmem:[%s2837 + $0x40] sm:$0xf]
        %v2855 = vld [vmem:[%s2837 + $0x44] sm:$0x1]
        %v2856 = vld [vmem:[%s2837 + $0x48] sm:$0xf]
        %v2857 = vld [vmem:[%s2837 + $0x4c] sm:$0xf]
        %v2858 = vld [vmem:[%s2837 + $0x50] sm:$0x1]
        %v2859 = vld [vmem:[%s2837 + $0x54] sm:$0xf]
        %v2860 = vld [vmem:[%s2837 + $0x58] sm:$0xf]
        %v2861 = vld [vmem:[%s2837 + $0x5c] sm:$0x1]
        %v2862 = vld [vmem:[%s2837 + $0x60] sm:$0xf]
        %v2863 = vld [vmem:[%s2837 + $0x64] sm:$0xf]
        %v2864 = vld [vmem:[%s2837 + $0x68] sm:$0x1]
        %v2865 = vld [vmem:[%s2837 + $0x6c] sm:$0xf]
        %v2866 = vld [vmem:[%s2837 + $0x70] sm:$0xf]
        %v2867 = vld [vmem:[%s2837 + $0x74] sm:$0x1]
        %v2868 = vld [vmem:[%s2837 + $0x78] sm:$0xf]
        %v2869 = vld [vmem:[%s2837 + $0x7c] sm:$0xf]
        %v2870 = vld [vmem:[%s2837 + $0x80] sm:$0x1]
        %v2871 = vld [vmem:[%s2837 + $0x84] sm:$0xf]
        %v2872 = vld [vmem:[%s2837 + $0x88] sm:$0xf]
        %v2873 = vld [vmem:[%s2837 + $0x8c] sm:$0x1]
        %v2874 = vld [vmem:[%s2837 + $0x90] sm:$0xf]
        %v2875 = vld [vmem:[%s2837 + $0x94] sm:$0xf]
        %v2876 = vld [vmem:[%s2837 + $0x98] sm:$0x1]
        %v2877 = vld [vmem:[%s2837 + $0x9c] sm:$0xf]
        %v2878 = vld [vmem:[%s2837 + $0xa0] sm:$0xf]
        %v2879 = vld [vmem:[%s2837 + $0xa4] sm:$0x1]
        %v2880 = vld [vmem:[%s2837 + $0xa8] sm:$0xf]
        %v2881 = vld [vmem:[%s2837 + $0xac] sm:$0xf]
        %v2882 = vld [vmem:[%s2837 + $0xb0] sm:$0x1]
        %v2883 = vld [vmem:[%s2837 + $0xb4] sm:$0xf]
        %v2884 = vld [vmem:[%s2837 + $0xb8] sm:$0xf]
        %v2885 = vld [vmem:[%s2837 + $0xbc] sm:$0x1]
        %v2918 = vunpack.c.l.b16 %v2838
        %v2919 = vunpack.c.l.b16 %v2839
        %v2920 = vunpack.c.l.b16 %v2841
        %v2921 = vunpack.c.l.b16 %v2842
        %v2922 = vunpack.c.l.b16 %v2844
        %v2923 = vunpack.c.l.b16 %v2845
        %v2924 = vunpack.c.l.b16 %v2847
        %v2925 = vunpack.c.l.b16 %v2848
        %v2926 = vunpack.c.l.b16 %v2850
        %v2927 = vunpack.c.l.b16 %v2851
        %v2928 = vunpack.c.l.b16 %v2853
        %v2929 = vunpack.c.l.b16 %v2854
        %v2930 = vunpack.c.l.b16 %v2856
        %v2931 = vunpack.c.l.b16 %v2857
        %v2932 = vunpack.c.l.b16 %v2859
        %v2933 = vunpack.c.l.b16 %v2860
        %v2934 = vunpack.c.l.b16 %v2862
        %v2935 = vunpack.c.l.b16 %v2863
        %v2936 = vunpack.c.l.b16 %v2865
        %v2937 = vunpack.c.l.b16 %v2866
        %v2938 = vunpack.c.l.b16 %v2868
        %v2939 = vunpack.c.l.b16 %v2869
        %v2940 = vunpack.c.l.b16 %v2871
        %v2941 = vunpack.c.l.b16 %v2872
        %v2942 = vunpack.c.l.b16 %v2874
        %v2943 = vunpack.c.l.b16 %v2875
        %v2944 = vunpack.c.l.b16 %v2877
        %v2945 = vunpack.c.l.b16 %v2878
        %v2946 = vunpack.c.l.b16 %v2880
        %v2947 = vunpack.c.l.b16 %v2881
        %v2948 = vunpack.c.l.b16 %v2883
        %v2949 = vunpack.c.l.b16 %v2884
        %v2950 = vpack.c.b16 %v2919, %v2918
        %v2951 = vpack.c.b16 %v2921, %v2920
        %v2952 = vpack.c.b16 %v2923, %v2922
        %v2953 = vpack.c.b16 %v2925, %v2924
        %v2954 = vpack.c.b16 %v2927, %v2926
        %v2955 = vpack.c.b16 %v2929, %v2928
        %v2956 = vpack.c.b16 %v2931, %v2930
        %v2957 = vpack.c.b16 %v2933, %v2932
        %v2958 = vpack.c.b16 %v2935, %v2934
        %v2959 = vpack.c.b16 %v2937, %v2936
        %v2960 = vpack.c.b16 %v2939, %v2938
        %v2961 = vpack.c.b16 %v2941, %v2940
        %v2962 = vpack.c.b16 %v2943, %v2942
        %v2963 = vpack.c.b16 %v2945, %v2944
        %v2964 = vpack.c.b16 %v2947, %v2946
        %v2965 = vpack.c.b16 %v2949, %v2948
        %v2998 = vunpack.c.l.b16 %v2840
        %v2999 = vunpack.c.l.b16 %v2843
        %v3000 = vunpack.c.l.b16 %v2846
        %v3001 = vunpack.c.l.b16 %v2849
        %v3002 = vunpack.c.l.b16 %v2852
        %v3003 = vunpack.c.l.b16 %v2855
        %v3004 = vunpack.c.l.b16 %v2858
        %v3005 = vunpack.c.l.b16 %v2861
        %v3006 = vunpack.c.l.b16 %v2864
        %v3007 = vunpack.c.l.b16 %v2867
        %v3008 = vunpack.c.l.b16 %v2870
        %v3009 = vunpack.c.l.b16 %v2873
        %v3010 = vunpack.c.l.b16 %v2876
        %v3011 = vunpack.c.l.b16 %v2879
        %v3012 = vunpack.c.l.b16 %v2882
        %v3013 = vunpack.c.l.b16 %v2885
        %v3014 = vpack.c.b16 %v2998, %v2998
        %v3015 = vpack.c.b16 %v2999, %v2999
        %v3016 = vpack.c.b16 %v3000, %v3000
        %v3017 = vpack.c.b16 %v3001, %v3001
        %v3018 = vpack.c.b16 %v3002, %v3002
        %v3019 = vpack.c.b16 %v3003, %v3003
        %v3020 = vpack.c.b16 %v3004, %v3004
        %v3021 = vpack.c.b16 %v3005, %v3005
        %v3022 = vpack.c.b16 %v3006, %v3006
        %v3023 = vpack.c.b16 %v3007, %v3007
        %v3024 = vpack.c.b16 %v3008, %v3008
        %v3025 = vpack.c.b16 %v3009, %v3009
        %v3026 = vpack.c.b16 %v3010, %v3010
        %v3027 = vpack.c.b16 %v3011, %v3011
        %v3028 = vpack.c.b16 %v3012, %v3012
        %v3029 = vpack.c.b16 %v3013, %v3013
        %v3031 = vshrl.u32 %v2950, 16
        %v3033 = vshll.u32 %v2950, 16
        %v3035 = vrot.slane %v3033, 1
        %v3036 = vor.u32 %v3031, %v3035
        %v3038 = vshll.u32 %v3014, 16
        %v3040 = vrot.slane %v3038, 1
        %v3041 = vsel %vm1063, %v3036, %v3040
        %v3043 = vshrl.u32 %v2951, 16
        %v3045 = vshll.u32 %v2951, 16
        %v3047 = vrot.slane %v3045, 1
        %v3048 = vor.u32 %v3043, %v3047
        %v3050 = vshll.u32 %v3015, 16
        %v3052 = vrot.slane %v3050, 1
        %v3053 = vsel %vm1063, %v3048, %v3052
        %v3055 = vshrl.u32 %v2952, 16
        %v3057 = vshll.u32 %v2952, 16
        %v3059 = vrot.slane %v3057, 1
        %v3060 = vor.u32 %v3055, %v3059
        %v3062 = vshll.u32 %v3016, 16
        %v3064 = vrot.slane %v3062, 1
        %v3065 = vsel %vm1063, %v3060, %v3064
        %v3067 = vshrl.u32 %v2953, 16
        %v3069 = vshll.u32 %v2953, 16
        %v3071 = vrot.slane %v3069, 1
        %v3072 = vor.u32 %v3067, %v3071
        %v3074 = vshll.u32 %v3017, 16
        %v3076 = vrot.slane %v3074, 1
        %v3077 = vsel %vm1063, %v3072, %v3076
        %v3079 = vshrl.u32 %v2954, 16
        %v3081 = vshll.u32 %v2954, 16
        %v3083 = vrot.slane %v3081, 1
        %v3084 = vor.u32 %v3079, %v3083
        %v3086 = vshll.u32 %v3018, 16
        %v3088 = vrot.slane %v3086, 1
        %v3089 = vsel %vm1063, %v3084, %v3088
        %v3091 = vshrl.u32 %v2955, 16
        %v3093 = vshll.u32 %v2955, 16
        %v3095 = vrot.slane %v3093, 1
        %v3096 = vor.u32 %v3091, %v3095
        %v3098 = vshll.u32 %v3019, 16
        %v3100 = vrot.slane %v3098, 1
        %v3101 = vsel %vm1063, %v3096, %v3100
        %v3103 = vshrl.u32 %v2956, 16
        %v3105 = vshll.u32 %v2956, 16
        %v3107 = vrot.slane %v3105, 1
        %v3108 = vor.u32 %v3103, %v3107
        %v3110 = vshll.u32 %v3020, 16
        %v3112 = vrot.slane %v3110, 1
        %v3113 = vsel %vm1063, %v3108, %v3112
        %v3115 = vshrl.u32 %v2957, 16
        %v3117 = vshll.u32 %v2957, 16
        %v3119 = vrot.slane %v3117, 1
        %v3120 = vor.u32 %v3115, %v3119
        %v3122 = vshll.u32 %v3021, 16
        %v3124 = vrot.slane %v3122, 1
        %v3125 = vsel %vm1063, %v3120, %v3124
        %v3127 = vshrl.u32 %v2958, 16
        %v3129 = vshll.u32 %v2958, 16
        %v3131 = vrot.slane %v3129, 1
        %v3132 = vor.u32 %v3127, %v3131
        %v3134 = vshll.u32 %v3022, 16
        %v3136 = vrot.slane %v3134, 1
        %v3137 = vsel %vm1063, %v3132, %v3136
        %v3139 = vshrl.u32 %v2959, 16
        %v3141 = vshll.u32 %v2959, 16
        %v3143 = vrot.slane %v3141, 1
        %v3144 = vor.u32 %v3139, %v3143
        %v3146 = vshll.u32 %v3023, 16
        %v3148 = vrot.slane %v3146, 1
        %v3149 = vsel %vm1063, %v3144, %v3148
        %v3151 = vshrl.u32 %v2960, 16
        %v3153 = vshll.u32 %v2960, 16
        %v3155 = vrot.slane %v3153, 1
        %v3156 = vor.u32 %v3151, %v3155
        %v3158 = vshll.u32 %v3024, 16
        %v3160 = vrot.slane %v3158, 1
        %v3161 = vsel %vm1063, %v3156, %v3160
        %v3163 = vshrl.u32 %v2961, 16
        %v3165 = vshll.u32 %v2961, 16
        %v3167 = vrot.slane %v3165, 1
        %v3168 = vor.u32 %v3163, %v3167
        %v3170 = vshll.u32 %v3025, 16
        %v3172 = vrot.slane %v3170, 1
        %v3173 = vsel %vm1063, %v3168, %v3172
        %v3175 = vshrl.u32 %v2962, 16
        %v3177 = vshll.u32 %v2962, 16
        %v3179 = vrot.slane %v3177, 1
        %v3180 = vor.u32 %v3175, %v3179
        %v3182 = vshll.u32 %v3026, 16
        %v3184 = vrot.slane %v3182, 1
        %v3185 = vsel %vm1063, %v3180, %v3184
        %v3187 = vshrl.u32 %v2963, 16
        %v3189 = vshll.u32 %v2963, 16
        %v3191 = vrot.slane %v3189, 1
        %v3192 = vor.u32 %v3187, %v3191
        %v3194 = vshll.u32 %v3027, 16
        %v3196 = vrot.slane %v3194, 1
        %v3197 = vsel %vm1063, %v3192, %v3196
        %v3199 = vshrl.u32 %v2964, 16
        %v3201 = vshll.u32 %v2964, 16
        %v3203 = vrot.slane %v3201, 1
        %v3204 = vor.u32 %v3199, %v3203
        %v3206 = vshll.u32 %v3028, 16
        %v3208 = vrot.slane %v3206, 1
        %v3209 = vsel %vm1063, %v3204, %v3208
        %v3211 = vshrl.u32 %v2965, 16
        %v3213 = vshll.u32 %v2965, 16
        %v3215 = vrot.slane %v3213, 1
        %v3216 = vor.u32 %v3211, %v3215
        %v3218 = vshll.u32 %v3029, 16
        %v3220 = vrot.slane %v3218, 1
        %v3221 = vsel %vm1063, %v3216, %v3220
        %v3238 = vrot.slane %v2950, 1
        %v3239 = vrot.slane %v3014, 1
        %v3240 = vsel %vm1272, %v3238, %v3239
        %v3241 = vrot.slane %v2951, 1
        %v3242 = vrot.slane %v3015, 1
        %v3243 = vsel %vm1272, %v3241, %v3242
        %v3244 = vrot.slane %v2952, 1
        %v3245 = vrot.slane %v3016, 1
        %v3246 = vsel %vm1272, %v3244, %v3245
        %v3247 = vrot.slane %v2953, 1
        %v3248 = vrot.slane %v3017, 1
        %v3249 = vsel %vm1272, %v3247, %v3248
        %v3250 = vrot.slane %v2954, 1
        %v3251 = vrot.slane %v3018, 1
        %v3252 = vsel %vm1272, %v3250, %v3251
        %v3253 = vrot.slane %v2955, 1
        %v3254 = vrot.slane %v3019, 1
        %v3255 = vsel %vm1272, %v3253, %v3254
        %v3256 = vrot.slane %v2956, 1
        %v3257 = vrot.slane %v3020, 1
        %v3258 = vsel %vm1272, %v3256, %v3257
        %v3259 = vrot.slane %v2957, 1
        %v3260 = vrot.slane %v3021, 1
        %v3261 = vsel %vm1272, %v3259, %v3260
        %v3262 = vrot.slane %v2958, 1
        %v3263 = vrot.slane %v3022, 1
        %v3264 = vsel %vm1272, %v3262, %v3263
        %v3265 = vrot.slane %v2959, 1
        %v3266 = vrot.slane %v3023, 1
        %v3267 = vsel %vm1272, %v3265, %v3266
        %v3268 = vrot.slane %v2960, 1
        %v3269 = vrot.slane %v3024, 1
        %v3270 = vsel %vm1272, %v3268, %v3269
        %v3271 = vrot.slane %v2961, 1
        %v3272 = vrot.slane %v3025, 1
        %v3273 = vsel %vm1272, %v3271, %v3272
        %v3274 = vrot.slane %v2962, 1
        %v3275 = vrot.slane %v3026, 1
        %v3276 = vsel %vm1272, %v3274, %v3275
        %v3277 = vrot.slane %v2963, 1
        %v3278 = vrot.slane %v3027, 1
        %v3279 = vsel %vm1272, %v3277, %v3278
        %v3280 = vrot.slane %v2964, 1
        %v3281 = vrot.slane %v3028, 1
        %v3282 = vsel %vm1272, %v3280, %v3281
        %v3283 = vrot.slane %v2965, 1
        %v3284 = vrot.slane %v3029, 1
        %v3285 = vsel %vm1272, %v3283, %v3284
        %s3302 = scalar_lea.vmem %s1, 384
        %v3303 = vld [vmem:[%s3302] sm:$0xf]
        %v3304 = vld [vmem:[%s3302 + $0x4] sm:$0xf]
        %v3305 = vld [vmem:[%s3302 + $0x8] sm:$0xf]
        %v3306 = vld [vmem:[%s3302 + $0xc] sm:$0xf]
        %v3307 = vld [vmem:[%s3302 + $0x10] sm:$0xf]
        %v3308 = vld [vmem:[%s3302 + $0x14] sm:$0xf]
        %v3309 = vld [vmem:[%s3302 + $0x18] sm:$0xf]
        %v3310 = vld [vmem:[%s3302 + $0x1c] sm:$0xf]
        %v3311 = vld [vmem:[%s3302 + $0x20] sm:$0xf]
        %v3312 = vld [vmem:[%s3302 + $0x24] sm:$0xf]
        %v3313 = vld [vmem:[%s3302 + $0x28] sm:$0xf]
        %v3314 = vld [vmem:[%s3302 + $0x2c] sm:$0xf]
        %v3315 = vld [vmem:[%s3302 + $0x30] sm:$0xf]
        %v3316 = vld [vmem:[%s3302 + $0x34] sm:$0xf]
        %v3317 = vld [vmem:[%s3302 + $0x38] sm:$0xf]
        %v3318 = vld [vmem:[%s3302 + $0x3c] sm:$0xf]
        %v3319 = vld [vmem:[%s3302 + $0x40] sm:$0xf]
        %v3320 = vld [vmem:[%s3302 + $0x44] sm:$0xf]
        %v3321 = vld [vmem:[%s3302 + $0x48] sm:$0xf]
        %v3322 = vld [vmem:[%s3302 + $0x4c] sm:$0xf]
        %v3323 = vld [vmem:[%s3302 + $0x50] sm:$0xf]
        %v3324 = vld [vmem:[%s3302 + $0x54] sm:$0xf]
        %v3325 = vld [vmem:[%s3302 + $0x58] sm:$0xf]
        %v3326 = vld [vmem:[%s3302 + $0x5c] sm:$0xf]
        %v3327 = vld [vmem:[%s3302 + $0x60] sm:$0xf]
        %v3328 = vld [vmem:[%s3302 + $0x64] sm:$0xf]
        %v3329 = vld [vmem:[%s3302 + $0x68] sm:$0xf]
        %v3330 = vld [vmem:[%s3302 + $0x6c] sm:$0xf]
        %v3331 = vld [vmem:[%s3302 + $0x70] sm:$0xf]
        %v3332 = vld [vmem:[%s3302 + $0x74] sm:$0xf]
        %v3333 = vld [vmem:[%s3302 + $0x78] sm:$0xf]
        %v3334 = vld [vmem:[%s3302 + $0x7c] sm:$0xf]
        %v3335 = vld [vmem:[%s3302 + $0x80] sm:$0xf]
        %v3336 = vld [vmem:[%s3302 + $0x84] sm:$0xf]
        %v3337 = vld [vmem:[%s3302 + $0x88] sm:$0xf]
        %v3338 = vld [vmem:[%s3302 + $0x8c] sm:$0xf]
        %v3339 = vld [vmem:[%s3302 + $0x90] sm:$0xf]
        %v3340 = vld [vmem:[%s3302 + $0x94] sm:$0xf]
        %v3341 = vld [vmem:[%s3302 + $0x98] sm:$0xf]
        %v3342 = vld [vmem:[%s3302 + $0x9c] sm:$0xf]
        %v3343 = vld [vmem:[%s3302 + $0xa0] sm:$0xf]
        %v3344 = vld [vmem:[%s3302 + $0xa4] sm:$0xf]
        %v3345 = vld [vmem:[%s3302 + $0xa8] sm:$0xf]
        %v3346 = vld [vmem:[%s3302 + $0xac] sm:$0xf]
        %v3347 = vld [vmem:[%s3302 + $0xb0] sm:$0xf]
        %v3348 = vld [vmem:[%s3302 + $0xb4] sm:$0xf]
        %v3349 = vld [vmem:[%s3302 + $0xb8] sm:$0xf]
        %v3350 = vld [vmem:[%s3302 + $0xbc] sm:$0xf]
        %v3399 = vunpack.c.l.b16 %v3303
        %v3400 = vunpack.c.l.b16 %v3304
        %v3401 = vunpack.c.l.b16 %v3305
        %v3402 = vunpack.c.l.b16 %v3306
        %v3403 = vunpack.c.l.b16 %v3307
        %v3404 = vunpack.c.l.b16 %v3308
        %v3405 = vunpack.c.l.b16 %v3309
        %v3406 = vunpack.c.l.b16 %v3310
        %v3407 = vunpack.c.l.b16 %v3311
        %v3408 = vunpack.c.l.b16 %v3312
        %v3409 = vunpack.c.l.b16 %v3313
        %v3410 = vunpack.c.l.b16 %v3314
        %v3411 = vunpack.c.l.b16 %v3315
        %v3412 = vunpack.c.l.b16 %v3316
        %v3413 = vunpack.c.l.b16 %v3317
        %v3414 = vunpack.c.l.b16 %v3318
        %v3415 = vunpack.c.l.b16 %v3319
        %v3416 = vunpack.c.l.b16 %v3320
        %v3417 = vunpack.c.l.b16 %v3321
        %v3418 = vunpack.c.l.b16 %v3322
        %v3419 = vunpack.c.l.b16 %v3323
        %v3420 = vunpack.c.l.b16 %v3324
        %v3421 = vunpack.c.l.b16 %v3325
        %v3422 = vunpack.c.l.b16 %v3326
        %v3423 = vunpack.c.l.b16 %v3327
        %v3424 = vunpack.c.l.b16 %v3328
        %v3425 = vunpack.c.l.b16 %v3329
        %v3426 = vunpack.c.l.b16 %v3330
        %v3427 = vunpack.c.l.b16 %v3331
        %v3428 = vunpack.c.l.b16 %v3332
        %v3429 = vunpack.c.l.b16 %v3333
        %v3430 = vunpack.c.l.b16 %v3334
        %v3431 = vunpack.c.l.b16 %v3335
        %v3432 = vunpack.c.l.b16 %v3336
        %v3433 = vunpack.c.l.b16 %v3337
        %v3434 = vunpack.c.l.b16 %v3338
        %v3435 = vunpack.c.l.b16 %v3339
        %v3436 = vunpack.c.l.b16 %v3340
        %v3437 = vunpack.c.l.b16 %v3341
        %v3438 = vunpack.c.l.b16 %v3342
        %v3439 = vunpack.c.l.b16 %v3343
        %v3440 = vunpack.c.l.b16 %v3344
        %v3441 = vunpack.c.l.b16 %v3345
        %v3442 = vunpack.c.l.b16 %v3346
        %v3443 = vunpack.c.l.b16 %v3347
        %v3444 = vunpack.c.l.b16 %v3348
        %v3445 = vunpack.c.l.b16 %v3349
        %v3446 = vunpack.c.l.b16 %v3350
        %v3447 = vpack.c.b16 %v3400, %v3399
        %v3448 = vpack.c.b16 %v3402, %v3401
        %v3449 = vpack.c.b16 %v3404, %v3403
        %v3450 = vpack.c.b16 %v3406, %v3405
        %v3451 = vpack.c.b16 %v3408, %v3407
        %v3452 = vpack.c.b16 %v3410, %v3409
        %v3453 = vpack.c.b16 %v3412, %v3411
        %v3454 = vpack.c.b16 %v3414, %v3413
        %v3455 = vpack.c.b16 %v3416, %v3415
        %v3456 = vpack.c.b16 %v3418, %v3417
        %v3457 = vpack.c.b16 %v3420, %v3419
        %v3458 = vpack.c.b16 %v3422, %v3421
        %v3459 = vpack.c.b16 %v3424, %v3423
        %v3460 = vpack.c.b16 %v3426, %v3425
        %v3461 = vpack.c.b16 %v3428, %v3427
        %v3462 = vpack.c.b16 %v3430, %v3429
        %v3463 = vpack.c.b16 %v3432, %v3431
        %v3464 = vpack.c.b16 %v3434, %v3433
        %v3465 = vpack.c.b16 %v3436, %v3435
        %v3466 = vpack.c.b16 %v3438, %v3437
        %v3467 = vpack.c.b16 %v3440, %v3439
        %v3468 = vpack.c.b16 %v3442, %v3441
        %v3469 = vpack.c.b16 %v3444, %v3443
        %v3470 = vpack.c.b16 %v3446, %v3445
        %3495 = vmatprep.subr.bf16.mxu0 0
        %3496 = vmatpush1.bf16.msra.mxu0 %v3447
        %3497 = vmatprep.subr.bf16.mxu0 0
        %3498 = vmatpush1.bf16.msra.mxu0 %v3448
        %3499 = vmatprep.subr.bf16.mxu0 0
        %3500 = vmatpush1.bf16.msra.mxu0 %v3449
        %3501 = vmatprep.subr.bf16.mxu0 0
        %3502 = vmatpush1.bf16.msra.mxu0 %v3450
        %3503 = vmatprep.subr.bf16.mxu0 0
        %3504 = vmatpush1.bf16.msra.mxu0 %v3451
        %3505 = vmatprep.subr.bf16.mxu0 0
        %3506 = vmatpush1.bf16.msra.mxu0 %v3452
        %3507 = vmatprep.subr.bf16.mxu0 0
        %3508 = vmatpush1.bf16.msra.mxu0 %v3453
        %3509 = vmatprep.subr.bf16.mxu0 0
        %3510 = vmatpush1.bf16.msra.mxu0 %v3454
        %3511 = vmatprep.subr.bf16.mxu0 0
        %3512 = vmatpush1.bf16.msra.mxu0 %v3455
        %3513 = vmatprep.subr.bf16.mxu0 0
        %3514 = vmatpush1.bf16.msra.mxu0 %v3456
        %3515 = vmatprep.subr.bf16.mxu0 0
        %3516 = vmatpush1.bf16.msra.mxu0 %v3457
        %3517 = vmatprep.subr.bf16.mxu0 0
        %3518 = vmatpush1.bf16.msra.mxu0 %v3458
        %3519 = vmatprep.subr.bf16.mxu0 0
        %3520 = vmatpush1.bf16.msra.mxu0 %v3459
        %3521 = vmatprep.subr.bf16.mxu0 0
        %3522 = vmatpush1.bf16.msra.mxu0 %v3460
        %3523 = vmatprep.subr.bf16.mxu0 0
        %3524 = vmatpush1.bf16.msra.mxu0 %v3461
        %3525 = vmatprep.subr.bf16.mxu0 0
        %3526 = vmatpush1.bf16.msra.mxu0 %v3462
        %3527 = vmatprep.mubr.bf16.mxu0 %v3041
        %3528 = vmatmul.mubr.bf16.gmra.mrb[0].mxu0 %v2950
        %v3529 = vpop.f32.mrb[0].mxu0
        %v3530 = vadd.f32 0.0, %v3529
        %v3531 = vpop.f32.mrb[0].mxu0
        %v3532 = vpop.f32.mrb[0].mxu0
        %v3533 = vadd.f32 0.0, %v3532
        %v3534 = vpop.f32.mrb[0].mxu0
        %3535 = vmatprep.mubr.bf16.mxu0 %v3053
        %3536 = vmatmul.mubr.bf16.gmra.mrb[0].mxu0 %v2951
        %v3537 = vpop.f32.mrb[0].mxu0
        %v3538 = vadd.f32 0.0, %v3537
        %v3539 = vpop.f32.mrb[0].mxu0
        %v3540 = vpop.f32.mrb[0].mxu0
        %v3541 = vadd.f32 0.0, %v3540
        %v3542 = vpop.f32.mrb[0].mxu0
        %3543 = vmatprep.mubr.bf16.mxu0 %v3065
        %3544 = vmatmul.mubr.bf16.gmra.mrb[0].mxu0 %v2952
        %v3545 = vpop.f32.mrb[0].mxu0
        %v3546 = vadd.f32 0.0, %v3545
        %v3547 = vpop.f32.mrb[0].mxu0
        %v3548 = vpop.f32.mrb[0].mxu0
        %v3549 = vadd.f32 0.0, %v3548
        %v3550 = vpop.f32.mrb[0].mxu0
        %3551 = vmatprep.mubr.bf16.mxu0 %v3077
        %3552 = vmatmul.mubr.bf16.gmra.mrb[0].mxu0 %v2953
        %v3553 = vpop.f32.mrb[0].mxu0
        %v3554 = vadd.f32 0.0, %v3553
        %v3555 = vpop.f32.mrb[0].mxu0
        %v3556 = vpop.f32.mrb[0].mxu0
        %v3557 = vadd.f32 0.0, %v3556
        %v3558 = vpop.f32.mrb[0].mxu0
        %3559 = vmatprep.mubr.bf16.mxu0 %v3089
        %3560 = vmatmul.mubr.bf16.gmra.mrb[0].mxu0 %v2954
        %v3561 = vpop.f32.mrb[0].mxu0
        %v3562 = vadd.f32 0.0, %v3561
        %v3563 = vpop.f32.mrb[0].mxu0
        %v3564 = vpop.f32.mrb[0].mxu0
        %v3565 = vadd.f32 0.0, %v3564
        %v3566 = vpop.f32.mrb[0].mxu0
        %3567 = vmatprep.mubr.bf16.mxu0 %v3101
        %3568 = vmatmul.mubr.bf16.gmra.mrb[0].mxu0 %v2955
        %v3569 = vpop.f32.mrb[0].mxu0
        %v3570 = vadd.f32 0.0, %v3569
        %v3571 = vpop.f32.mrb[0].mxu0
        %v3572 = vpop.f32.mrb[0].mxu0
        %v3573 = vadd.f32 0.0, %v3572
        %v3574 = vpop.f32.mrb[0].mxu0
        %3575 = vmatprep.mubr.bf16.mxu0 %v3113
        %3576 = vmatmul.mubr.bf16.gmra.mrb[0].mxu0 %v2956
        %v3577 = vpop.f32.mrb[0].mxu0
        %v3578 = vadd.f32 0.0, %v3577
        %v3579 = vpop.f32.mrb[0].mxu0
        %v3580 = vpop.f32.mrb[0].mxu0
        %v3581 = vadd.f32 0.0, %v3580
        %v3582 = vpop.f32.mrb[0].mxu0
        %3583 = vmatprep.mubr.bf16.mxu0 %v3125
        %3584 = vmatmul.mubr.bf16.gmra.mrb[0].mxu0 %v2957
        %v3585 = vpop.f32.mrb[0].mxu0
        %v3586 = vadd.f32 0.0, %v3585
        %v3587 = vpop.f32.mrb[0].mxu0
        %v3588 = vpop.f32.mrb[0].mxu0
        %v3589 = vadd.f32 0.0, %v3588
        %v3590 = vpop.f32.mrb[0].mxu0
        %3591 = vmatprep.mubr.bf16.mxu0 %v3137
        %3592 = vmatmul.mubr.bf16.gmra.mrb[0].mxu0 %v2958
        %v3593 = vpop.f32.mrb[0].mxu0
        %v3594 = vadd.f32 0.0, %v3593
        %v3595 = vpop.f32.mrb[0].mxu0
        %v3596 = vpop.f32.mrb[0].mxu0
        %v3597 = vadd.f32 0.0, %v3596
        %v3598 = vpop.f32.mrb[0].mxu0
        %3599 = vmatprep.mubr.bf16.mxu0 %v3149
        %3600 = vmatmul.mubr.bf16.gmra.mrb[0].mxu0 %v2959
        %v3601 = vpop.f32.mrb[0].mxu0
        %v3602 = vadd.f32 0.0, %v3601
        %v3603 = vpop.f32.mrb[0].mxu0
        %v3604 = vpop.f32.mrb[0].mxu0
        %v3605 = vadd.f32 0.0, %v3604
        %v3606 = vpop.f32.mrb[0].mxu0
        %3607 = vmatprep.mubr.bf16.mxu0 %v3161
        %3608 = vmatmul.mubr.bf16.gmra.mrb[0].mxu0 %v2960
        %v3609 = vpop.f32.mrb[0].mxu0
        %v3610 = vadd.f32 0.0, %v3609
        %v3611 = vpop.f32.mrb[0].mxu0
        %v3612 = vpop.f32.mrb[0].mxu0
        %v3613 = vadd.f32 0.0, %v3612
        %v3614 = vpop.f32.mrb[0].mxu0
        %3615 = vmatprep.mubr.bf16.mxu0 %v3173
        %3616 = vmatmul.mubr.bf16.gmra.mrb[0].mxu0 %v2961
        %v3617 = vpop.f32.mrb[0].mxu0
        %v3618 = vadd.f32 0.0, %v3617
        %v3619 = vpop.f32.mrb[0].mxu0
        %v3620 = vpop.f32.mrb[0].mxu0
        %v3621 = vadd.f32 0.0, %v3620
        %v3622 = vpop.f32.mrb[0].mxu0
        %3623 = vmatprep.mubr.bf16.mxu0 %v3185
        %3624 = vmatmul.mubr.bf16.gmra.mrb[0].mxu0 %v2962
        %v3625 = vpop.f32.mrb[0].mxu0
        %v3626 = vadd.f32 0.0, %v3625
        %v3627 = vpop.f32.mrb[0].mxu0
        %v3628 = vpop.f32.mrb[0].mxu0
        %v3629 = vadd.f32 0.0, %v3628
        %v3630 = vpop.f32.mrb[0].mxu0
        %3631 = vmatprep.mubr.bf16.mxu0 %v3197
        %3632 = vmatmul.mubr.bf16.gmra.mrb[0].mxu0 %v2963
        %v3633 = vpop.f32.mrb[0].mxu0
        %v3634 = vadd.f32 0.0, %v3633
        %v3635 = vpop.f32.mrb[0].mxu0
        %v3636 = vpop.f32.mrb[0].mxu0
        %v3637 = vadd.f32 0.0, %v3636
        %v3638 = vpop.f32.mrb[0].mxu0
        %3639 = vmatprep.mubr.bf16.mxu0 %v3209
        %3640 = vmatmul.mubr.bf16.gmra.mrb[0].mxu0 %v2964
        %v3641 = vpop.f32.mrb[0].mxu0
        %v3642 = vadd.f32 0.0, %v3641
        %v3643 = vpop.f32.mrb[0].mxu0
        %v3644 = vpop.f32.mrb[0].mxu0
        %v3645 = vadd.f32 0.0, %v3644
        %v3646 = vpop.f32.mrb[0].mxu0
        %3647 = vmatprep.mubr.bf16.mxu0 %v3221
        %3648 = vmatmul.mubr.bf16.gmra.mrb[0].mxu0 %v2965
        %v3649 = vpop.f32.mrb[0].mxu0
        %v3650 = vadd.f32 0.0, %v3649
        %v3651 = vpop.f32.mrb[0].mxu0
        %v3652 = vpop.f32.mrb[0].mxu0
        %v3653 = vadd.f32 0.0, %v3652
        %v3654 = vpop.f32.mrb[0].mxu0
        %3655 = vdwg.mxu0
        %3656 = vmatprep.subr.bf16.mxu0 0
        %3657 = vmatpush1.bf16.msra.mxu0 %v3463
        %3658 = vmatprep.subr.bf16.mxu0 0
        %3659 = vmatpush1.bf16.msra.mxu0 %v3464
        %3660 = vmatprep.subr.bf16.mxu0 0
        %3661 = vmatpush1.bf16.msra.mxu0 %v3465
        %3662 = vmatprep.subr.bf16.mxu0 0
        %3663 = vmatpush1.bf16.msra.mxu0 %v3466
        %3664 = vmatprep.subr.bf16.mxu0 0
        %3665 = vmatpush1.bf16.msra.mxu0 %v3467
        %3666 = vmatprep.subr.bf16.mxu0 0
        %3667 = vmatpush1.bf16.msra.mxu0 %v3468
        %3668 = vmatprep.subr.bf16.mxu0 0
        %3669 = vmatpush1.bf16.msra.mxu0 %v3469
        %3670 = vmatprep.subr.bf16.mxu0 0
        %3671 = vmatpush1.bf16.msra.mxu0 %v3470
        %3672 = vmatprep.subr.bf16.mxu0 0
        %3673 = vmatpush1.bf16.msra.mxu0 0
        %3674 = vmatprep.subr.bf16.mxu0 0
        %3675 = vmatpush1.bf16.msra.mxu0 0
        %3676 = vmatprep.subr.bf16.mxu0 0
        %3677 = vmatpush1.bf16.msra.mxu0 0
        %3678 = vmatprep.subr.bf16.mxu0 0
        %3679 = vmatpush1.bf16.msra.mxu0 0
        %3680 = vmatprep.subr.bf16.mxu0 0
        %3681 = vmatpush1.bf16.msra.mxu0 0
        %3682 = vmatprep.subr.bf16.mxu0 0
        %3683 = vmatpush1.bf16.msra.mxu0 0
        %3684 = vmatprep.subr.bf16.mxu0 0
        %3685 = vmatpush1.bf16.msra.mxu0 0
        %3686 = vmatprep.subr.bf16.mxu0 0
        %3687 = vmatpush1.bf16.msra.mxu0 0
        %3688 = vmatprep.mubr.bf16.mxu0 0
        %3689 = vmatmul.mubr.bf16.gmra.mrb[0].mxu0 %v3240
        %v3690 = vpop.f32.mrb[0].mxu0
        %v3691 = vadd.f32 %v3530, %v3690
        %v3692 = vpop.f32.mrb[0].mxu0
        %v3693 = vpop.f32.mrb[0].mxu0
        %v3694 = vadd.f32 %v3533, %v3693
        %v3695 = vpop.f32.mrb[0].mxu0
        %3696 = vmatprep.mubr.bf16.mxu0 0
        %3697 = vmatmul.mubr.bf16.gmra.mrb[0].mxu0 %v3243
        %v3698 = vpop.f32.mrb[0].mxu0
        %v3699 = vadd.f32 %v3538, %v3698
        %v3700 = vpop.f32.mrb[0].mxu0
        %v3701 = vpop.f32.mrb[0].mxu0
        %v3702 = vadd.f32 %v3541, %v3701
        %v3703 = vpop.f32.mrb[0].mxu0
        %3704 = vmatprep.mubr.bf16.mxu0 0
        %3705 = vmatmul.mubr.bf16.gmra.mrb[0].mxu0 %v3246
        %v3706 = vpop.f32.mrb[0].mxu0
        %v3707 = vadd.f32 %v3546, %v3706
        %v3708 = vpop.f32.mrb[0].mxu0
        %v3709 = vpop.f32.mrb[0].mxu0
        %v3710 = vadd.f32 %v3549, %v3709
        %v3711 = vpop.f32.mrb[0].mxu0
        %3712 = vmatprep.mubr.bf16.mxu0 0
        %3713 = vmatmul.mubr.bf16.gmra.mrb[0].mxu0 %v3249
        %v3714 = vpop.f32.mrb[0].mxu0
        %v3715 = vadd.f32 %v3554, %v3714
        %v3716 = vpop.f32.mrb[0].mxu0
        %v3717 = vpop.f32.mrb[0].mxu0
        %v3718 = vadd.f32 %v3557, %v3717
        %v3719 = vpop.f32.mrb[0].mxu0
        %3720 = vmatprep.mubr.bf16.mxu0 0
        %3721 = vmatmul.mubr.bf16.gmra.mrb[0].mxu0 %v3252
        %v3722 = vpop.f32.mrb[0].mxu0
        %v3723 = vadd.f32 %v3562, %v3722
        %v3724 = vpop.f32.mrb[0].mxu0
        %v3725 = vpop.f32.mrb[0].mxu0
        %v3726 = vadd.f32 %v3565, %v3725
        %v3727 = vpop.f32.mrb[0].mxu0
        %3728 = vmatprep.mubr.bf16.mxu0 0
        %3729 = vmatmul.mubr.bf16.gmra.mrb[0].mxu0 %v3255
        %v3730 = vpop.f32.mrb[0].mxu0
        %v3731 = vadd.f32 %v3570, %v3730
        %v3732 = vpop.f32.mrb[0].mxu0
        %v3733 = vpop.f32.mrb[0].mxu0
        %v3734 = vadd.f32 %v3573, %v3733
        %v3735 = vpop.f32.mrb[0].mxu0
        %3736 = vmatprep.mubr.bf16.mxu0 0
        %3737 = vmatmul.mubr.bf16.gmra.mrb[0].mxu0 %v3258
        %v3738 = vpop.f32.mrb[0].mxu0
        %v3739 = vadd.f32 %v3578, %v3738
        %v3740 = vpop.f32.mrb[0].mxu0
        %v3741 = vpop.f32.mrb[0].mxu0
        %v3742 = vadd.f32 %v3581, %v3741
        %v3743 = vpop.f32.mrb[0].mxu0
        %3744 = vmatprep.mubr.bf16.mxu0 0
        %3745 = vmatmul.mubr.bf16.gmra.mrb[0].mxu0 %v3261
        %v3746 = vpop.f32.mrb[0].mxu0
        %v3747 = vadd.f32 %v3586, %v3746
        %v3748 = vpop.f32.mrb[0].mxu0
        %v3749 = vpop.f32.mrb[0].mxu0
        %v3750 = vadd.f32 %v3589, %v3749
        %v3751 = vpop.f32.mrb[0].mxu0
        %3752 = vmatprep.mubr.bf16.mxu0 0
        %3753 = vmatmul.mubr.bf16.gmra.mrb[0].mxu0 %v3264
        %v3754 = vpop.f32.mrb[0].mxu0
        %v3755 = vadd.f32 %v3594, %v3754
        %v3756 = vpop.f32.mrb[0].mxu0
        %v3757 = vpop.f32.mrb[0].mxu0
        %v3758 = vadd.f32 %v3597, %v3757
        %v3759 = vpop.f32.mrb[0].mxu0
        %3760 = vmatprep.mubr.bf16.mxu0 0
        %3761 = vmatmul.mubr.bf16.gmra.mrb[0].mxu0 %v3267
        %v3762 = vpop.f32.mrb[0].mxu0
        %v3763 = vadd.f32 %v3602, %v3762
        %v3764 = vpop.f32.mrb[0].mxu0
        %v3765 = vpop.f32.mrb[0].mxu0
        %v3766 = vadd.f32 %v3605, %v3765
        %v3767 = vpop.f32.mrb[0].mxu0
        %3768 = vmatprep.mubr.bf16.mxu0 0
        %3769 = vmatmul.mubr.bf16.gmra.mrb[0].mxu0 %v3270
        %v3770 = vpop.f32.mrb[0].mxu0
        %v3771 = vadd.f32 %v3610, %v3770
        %v3772 = vpop.f32.mrb[0].mxu0
        %v3773 = vpop.f32.mrb[0].mxu0
        %v3774 = vadd.f32 %v3613, %v3773
        %v3775 = vpop.f32.mrb[0].mxu0
        %3776 = vmatprep.mubr.bf16.mxu0 0
        %3777 = vmatmul.mubr.bf16.gmra.mrb[0].mxu0 %v3273
        %v3778 = vpop.f32.mrb[0].mxu0
        %v3779 = vadd.f32 %v3618, %v3778
        %v3780 = vpop.f32.mrb[0].mxu0
        %v3781 = vpop.f32.mrb[0].mxu0
        %v3782 = vadd.f32 %v3621, %v3781
        %v3783 = vpop.f32.mrb[0].mxu0
        %3784 = vmatprep.mubr.bf16.mxu0 0
        %3785 = vmatmul.mubr.bf16.gmra.mrb[0].mxu0 %v3276
        %v3786 = vpop.f32.mrb[0].mxu0
        %v3787 = vadd.f32 %v3626, %v3786
        %v3788 = vpop.f32.mrb[0].mxu0
        %v3789 = vpop.f32.mrb[0].mxu0
        %v3790 = vadd.f32 %v3629, %v3789
        %v3791 = vpop.f32.mrb[0].mxu0
        %3792 = vmatprep.mubr.bf16.mxu0 0
        %3793 = vmatmul.mubr.bf16.gmra.mrb[0].mxu0 %v3279
        %v3794 = vpop.f32.mrb[0].mxu0
        %v3795 = vadd.f32 %v3634, %v3794
        %v3796 = vpop.f32.mrb[0].mxu0
        %v3797 = vpop.f32.mrb[0].mxu0
        %v3798 = vadd.f32 %v3637, %v3797
        %v3799 = vpop.f32.mrb[0].mxu0
        %3800 = vmatprep.mubr.bf16.mxu0 0
        %3801 = vmatmul.mubr.bf16.gmra.mrb[0].mxu0 %v3282
        %v3802 = vpop.f32.mrb[0].mxu0
        %v3803 = vadd.f32 %v3642, %v3802
        %v3804 = vpop.f32.mrb[0].mxu0
        %v3805 = vpop.f32.mrb[0].mxu0
        %v3806 = vadd.f32 %v3645, %v3805
        %v3807 = vpop.f32.mrb[0].mxu0
        %3808 = vmatprep.mubr.bf16.mxu0 0
        %3809 = vmatmul.mubr.bf16.gmra.mrb[0].mxu0 %v3285
        %v3810 = vpop.f32.mrb[0].mxu0
        %v3811 = vadd.f32 %v3650, %v3810
        %v3812 = vpop.f32.mrb[0].mxu0
        %v3813 = vpop.f32.mrb[0].mxu0
        %v3814 = vadd.f32 %v3653, %v3813
        %v3815 = vpop.f32.mrb[0].mxu0
        %3816 = vdwg.mxu0
        %v3817 = vadd.f32 %v2708, %v3691
        %v3818 = vadd.f32 %v2711, %v3694
        %v3819 = vadd.f32 %v2716, %v3699
        %v3820 = vadd.f32 %v2719, %v3702
        %v3821 = vadd.f32 %v2724, %v3707
        %v3822 = vadd.f32 %v2727, %v3710
        %v3823 = vadd.f32 %v2732, %v3715
        %v3824 = vadd.f32 %v2735, %v3718
        %v3825 = vadd.f32 %v2740, %v3723
        %v3826 = vadd.f32 %v2743, %v3726
        %v3827 = vadd.f32 %v2748, %v3731
        %v3828 = vadd.f32 %v2751, %v3734
        %v3829 = vadd.f32 %v2756, %v3739
        %v3830 = vadd.f32 %v2759, %v3742
        %v3831 = vadd.f32 %v2764, %v3747
        %v3832 = vadd.f32 %v2767, %v3750
        %v3833 = vadd.f32 %v2772, %v3755
        %v3834 = vadd.f32 %v2775, %v3758
        %v3835 = vadd.f32 %v2780, %v3763
        %v3836 = vadd.f32 %v2783, %v3766
        %v3837 = vadd.f32 %v2788, %v3771
        %v3838 = vadd.f32 %v2791, %v3774
        %v3839 = vadd.f32 %v2796, %v3779
        %v3840 = vadd.f32 %v2799, %v3782
        %v3841 = vadd.f32 %v2804, %v3787
        %v3842 = vadd.f32 %v2807, %v3790
        %v3843 = vadd.f32 %v2812, %v3795
        %v3844 = vadd.f32 %v2815, %v3798
        %v3845 = vadd.f32 %v2820, %v3803
        %v3846 = vadd.f32 %v2823, %v3806
        %v3847 = vadd.f32 %v2828, %v3811
        %v3848 = vadd.f32 %v2831, %v3814
        %v3849 = vpack.c.bf16 %v3818, %v3817
        %v3850 = vpack.c.bf16 %v3820, %v3819
        %v3851 = vpack.c.bf16 %v3822, %v3821
        %v3852 = vpack.c.bf16 %v3824, %v3823
        %v3853 = vpack.c.bf16 %v3826, %v3825
        %v3854 = vpack.c.bf16 %v3828, %v3827
        %v3855 = vpack.c.bf16 %v3830, %v3829
        %v3856 = vpack.c.bf16 %v3832, %v3831
        %v3857 = vpack.c.bf16 %v3834, %v3833
        %v3858 = vpack.c.bf16 %v3836, %v3835
        %v3859 = vpack.c.bf16 %v3838, %v3837
        %v3860 = vpack.c.bf16 %v3840, %v3839
        %v3861 = vpack.c.bf16 %v3842, %v3841
        %v3862 = vpack.c.bf16 %v3844, %v3843
        %v3863 = vpack.c.bf16 %v3846, %v3845
        %v3864 = vpack.c.bf16 %v3848, %v3847
        %v3881 = vunpack.c.l.b16 %v3849
        %v3882 = vunpack.c.h.b16 %v3849
        %v3883 = vunpack.c.l.b16 %v3850
        %v3884 = vunpack.c.h.b16 %v3850
        %v3885 = vunpack.c.l.b16 %v3851
        %v3886 = vunpack.c.h.b16 %v3851
        %v3887 = vunpack.c.l.b16 %v3852
        %v3888 = vunpack.c.h.b16 %v3852
        %v3889 = vunpack.c.l.b16 %v3853
        %v3890 = vunpack.c.h.b16 %v3853
        %v3891 = vunpack.c.l.b16 %v3854
        %v3892 = vunpack.c.h.b16 %v3854
        %v3893 = vunpack.c.l.b16 %v3855
        %v3894 = vunpack.c.h.b16 %v3855
        %v3895 = vunpack.c.l.b16 %v3856
        %v3896 = vunpack.c.h.b16 %v3856
        %v3897 = vunpack.c.l.b16 %v3857
        %v3898 = vunpack.c.h.b16 %v3857
        %v3899 = vunpack.c.l.b16 %v3858
        %v3900 = vunpack.c.h.b16 %v3858
        %v3901 = vunpack.c.l.b16 %v3859
        %v3902 = vunpack.c.h.b16 %v3859
        %v3903 = vunpack.c.l.b16 %v3860
        %v3904 = vunpack.c.h.b16 %v3860
        %v3905 = vunpack.c.l.b16 %v3861
        %v3906 = vunpack.c.h.b16 %v3861
        %v3907 = vunpack.c.l.b16 %v3862
        %v3908 = vunpack.c.h.b16 %v3862
        %v3909 = vunpack.c.l.b16 %v3863
        %v3910 = vunpack.c.h.b16 %v3863
        %v3911 = vunpack.c.l.b16 %v3864
        %v3912 = vunpack.c.h.b16 %v3864
        %v3913 = vpack.c.b16 %v3881, %v3881
        %v3914 = vpack.c.b16 %v3882, %v3882
        %v3915 = vpack.c.b16 %v3883, %v3883
        %v3916 = vpack.c.b16 %v3884, %v3884
        %v3917 = vpack.c.b16 %v3885, %v3885
        %v3918 = vpack.c.b16 %v3886, %v3886
        %v3919 = vpack.c.b16 %v3887, %v3887
        %v3920 = vpack.c.b16 %v3888, %v3888
        %v3921 = vpack.c.b16 %v3889, %v3889
        %v3922 = vpack.c.b16 %v3890, %v3890
        %v3923 = vpack.c.b16 %v3891, %v3891
        %v3924 = vpack.c.b16 %v3892, %v3892
        %v3925 = vpack.c.b16 %v3893, %v3893
        %v3926 = vpack.c.b16 %v3894, %v3894
        %v3927 = vpack.c.b16 %v3895, %v3895
        %v3928 = vpack.c.b16 %v3896, %v3896
        %v3929 = vpack.c.b16 %v3897, %v3897
        %v3930 = vpack.c.b16 %v3898, %v3898
        %v3931 = vpack.c.b16 %v3899, %v3899
        %v3932 = vpack.c.b16 %v3900, %v3900
        %v3933 = vpack.c.b16 %v3901, %v3901
        %v3934 = vpack.c.b16 %v3902, %v3902
        %v3935 = vpack.c.b16 %v3903, %v3903
        %v3936 = vpack.c.b16 %v3904, %v3904
        %v3937 = vpack.c.b16 %v3905, %v3905
        %v3938 = vpack.c.b16 %v3906, %v3906
        %v3939 = vpack.c.b16 %v3907, %v3907
        %v3940 = vpack.c.b16 %v3908, %v3908
        %v3941 = vpack.c.b16 %v3909, %v3909
        %v3942 = vpack.c.b16 %v3910, %v3910
        %v3943 = vpack.c.b16 %v3911, %v3911
        %v3944 = vpack.c.b16 %v3912, %v3912
        %3977 = vst [vmem:[%s246] sm:$0xf] %v3913
        %3978 = vst [vmem:[%s246 + $0x4] sm:$0xf] %v3914
        %3979 = vst [vmem:[%s246 + $0x8] sm:$0xf] %v3915
        %3980 = vst [vmem:[%s246 + $0xc] sm:$0xf] %v3916
        %3981 = vst [vmem:[%s246 + $0x10] sm:$0xf] %v3917
        %3982 = vst [vmem:[%s246 + $0x14] sm:$0xf] %v3918
        %3983 = vst [vmem:[%s246 + $0x18] sm:$0xf] %v3919
        %3984 = vst [vmem:[%s246 + $0x1c] sm:$0xf] %v3920
        %3985 = vst [vmem:[%s246 + $0x20] sm:$0xf] %v3921
        %3986 = vst [vmem:[%s246 + $0x24] sm:$0xf] %v3922
        %3987 = vst [vmem:[%s246 + $0x28] sm:$0xf] %v3923
        %3988 = vst [vmem:[%s246 + $0x2c] sm:$0xf] %v3924
        %3989 = vst [vmem:[%s246 + $0x30] sm:$0xf] %v3925
        %3990 = vst [vmem:[%s246 + $0x34] sm:$0xf] %v3926
        %3991 = vst [vmem:[%s246 + $0x38] sm:$0xf] %v3927
        %3992 = vst [vmem:[%s246 + $0x3c] sm:$0xf] %v3928
        %3993 = vst [vmem:[%s246 + $0x40] sm:$0xf] %v3929
        %3994 = vst [vmem:[%s246 + $0x44] sm:$0xf] %v3930
        %3995 = vst [vmem:[%s246 + $0x48] sm:$0xf] %v3931
        %3996 = vst [vmem:[%s246 + $0x4c] sm:$0xf] %v3932
        %3997 = vst [vmem:[%s246 + $0x50] sm:$0xf] %v3933
        %3998 = vst [vmem:[%s246 + $0x54] sm:$0xf] %v3934
        %3999 = vst [vmem:[%s246 + $0x58] sm:$0xf] %v3935
        %4000 = vst [vmem:[%s246 + $0x5c] sm:$0xf] %v3936
        %4001 = vst [vmem:[%s246 + $0x60] sm:$0xf] %v3937
        %4002 = vst [vmem:[%s246 + $0x64] sm:$0xf] %v3938
        %4003 = vst [vmem:[%s246 + $0x68] sm:$0xf] %v3939
        %4004 = vst [vmem:[%s246 + $0x6c] sm:$0xf] %v3940
        %4005 = vst [vmem:[%s246 + $0x70] sm:$0xf] %v3941
        %4006 = vst [vmem:[%s246 + $0x74] sm:$0xf] %v3942
        %4007 = vst [vmem:[%s246 + $0x78] sm:$0xf] %v3943
        %4008 = vst [vmem:[%s246 + $0x7c] sm:$0xf] %v3944
        %v4009 = vld [vmem:[#allocation3] sm:$0x1]
        %v4010 = vadd.f32 %v3817, %v3818
        %v4011 = vadd.f32 %v4010, %v3819
        %v4012 = vadd.f32 %v4011, %v3820
        %v4013 = vadd.f32 %v4012, %v3821
        %v4014 = vadd.f32 %v4013, %v3822
        %v4015 = vadd.f32 %v4014, %v3823
        %v4016 = vadd.f32 %v4015, %v3824
        %v4017 = vadd.f32 %v4016, %v3825
        %v4018 = vadd.f32 %v4017, %v3826
        %v4019 = vadd.f32 %v4018, %v3827
        %v4020 = vadd.f32 %v4019, %v3828
        %v4021 = vadd.f32 %v4020, %v3829
        %v4022 = vadd.f32 %v4021, %v3830
        %v4023 = vadd.f32 %v4022, %v3831
        %v4024 = vadd.f32 %v4023, %v3832
        %v4025 = vadd.f32 %v4024, %v3833
        %v4026 = vadd.f32 %v4025, %v3834
        %v4027 = vadd.f32 %v4026, %v3835
        %v4028 = vadd.f32 %v4027, %v3836
        %v4029 = vadd.f32 %v4028, %v3837
        %v4030 = vadd.f32 %v4029, %v3838
        %v4031 = vadd.f32 %v4030, %v3839
        %v4032 = vadd.f32 %v4031, %v3840
        %v4033 = vadd.f32 %v4032, %v3841
        %v4034 = vadd.f32 %v4033, %v3842
        %v4035 = vadd.f32 %v4034, %v3843
        %v4036 = vadd.f32 %v4035, %v3844
        %v4037 = vadd.f32 %v4036, %v3845
        %v4038 = vadd.f32 %v4037, %v3846
        %v4039 = vadd.f32 %v4038, %v3847
        %v4040 = vadd.f32 %v4039, %v3848
        %v4041 = vrot.slane %v4040, 4
        %v4042 = vadd.f32 %v4040, %v4041
        %v4043 = vrot.slane %v4042, 2
        %v4044 = vadd.f32 %v4042, %v4043
        %v4045 = vrot.slane %v4044, 1
        %v4046 = vadd.f32 %v4044, %v4045
        %v4047 = vadd.f32 %v4009, %v4046
        %4048 = vst [vmem:[#allocation3] sm:$0x1] %v4047
        %v4049 = vld [vmem:[#allocation3 + $0x1] sm:$0x1]
        %v4050 = vmul.f32 %v3817, %v3817
        %v4051 = vmul.f32 %v3818, %v3818
        %v4052 = vmul.f32 %v3819, %v3819
        %v4053 = vmul.f32 %v3820, %v3820
        %v4054 = vmul.f32 %v3821, %v3821
        %v4055 = vmul.f32 %v3822, %v3822
        %v4056 = vmul.f32 %v3823, %v3823
        %v4057 = vmul.f32 %v3824, %v3824
        %v4058 = vmul.f32 %v3825, %v3825
        %v4059 = vmul.f32 %v3826, %v3826
        %v4060 = vmul.f32 %v3827, %v3827
        %v4061 = vmul.f32 %v3828, %v3828
        %v4062 = vmul.f32 %v3829, %v3829
        %v4063 = vmul.f32 %v3830, %v3830
        %v4064 = vmul.f32 %v3831, %v3831
        %v4065 = vmul.f32 %v3832, %v3832
        %v4066 = vmul.f32 %v3833, %v3833
        %v4067 = vmul.f32 %v3834, %v3834
        %v4068 = vmul.f32 %v3835, %v3835
        %v4069 = vmul.f32 %v3836, %v3836
        %v4070 = vmul.f32 %v3837, %v3837
        %v4071 = vmul.f32 %v3838, %v3838
        %v4072 = vmul.f32 %v3839, %v3839
        %v4073 = vmul.f32 %v3840, %v3840
        %v4074 = vmul.f32 %v3841, %v3841
        %v4075 = vmul.f32 %v3842, %v3842
        %v4076 = vmul.f32 %v3843, %v3843
        %v4077 = vmul.f32 %v3844, %v3844
        %v4078 = vmul.f32 %v3845, %v3845
        %v4079 = vmul.f32 %v3846, %v3846
        %v4080 = vmul.f32 %v3847, %v3847
        %v4081 = vmul.f32 %v3848, %v3848
        %v4082 = vadd.f32 %v4050, %v4051
        %v4083 = vadd.f32 %v4082, %v4052
        %v4084 = vadd.f32 %v4083, %v4053
        %v4085 = vadd.f32 %v4084, %v4054
        %v4086 = vadd.f32 %v4085, %v4055
        %v4087 = vadd.f32 %v4086, %v4056
        %v4088 = vadd.f32 %v4087, %v4057
        %v4089 = vadd.f32 %v4088, %v4058
        %v4090 = vadd.f32 %v4089, %v4059
        %v4091 = vadd.f32 %v4090, %v4060
        %v4092 = vadd.f32 %v4091, %v4061
        %v4093 = vadd.f32 %v4092, %v4062
        %v4094 = vadd.f32 %v4093, %v4063
        %v4095 = vadd.f32 %v4094, %v4064
        %v4096 = vadd.f32 %v4095, %v4065
        %v4097 = vadd.f32 %v4096, %v4066
        %v4098 = vadd.f32 %v4097, %v4067
        %v4099 = vadd.f32 %v4098, %v4068
        %v4100 = vadd.f32 %v4099, %v4069
        %v4101 = vadd.f32 %v4100, %v4070
        %v4102 = vadd.f32 %v4101, %v4071
        %v4103 = vadd.f32 %v4102, %v4072
        %v4104 = vadd.f32 %v4103, %v4073
        %v4105 = vadd.f32 %v4104, %v4074
        %v4106 = vadd.f32 %v4105, %v4075
        %v4107 = vadd.f32 %v4106, %v4076
        %v4108 = vadd.f32 %v4107, %v4077
        %v4109 = vadd.f32 %v4108, %v4078
        %v4110 = vadd.f32 %v4109, %v4079
        %v4111 = vadd.f32 %v4110, %v4080
        %v4112 = vadd.f32 %v4111, %v4081
        %v4113 = vrot.slane %v4112, 4
        %v4114 = vadd.f32 %v4112, %v4113
        %v4115 = vrot.slane %v4114, 2
        %v4116 = vadd.f32 %v4114, %v4115
        %v4117 = vrot.slane %v4116, 1
        %v4118 = vadd.f32 %v4116, %v4117
        %v4119 = vadd.f32 %v4049, %v4118
        %4120 = vst [vmem:[#allocation3 + $0x1] sm:$0x1] %v4119
      $region40: #{_double_conv_impl.3} parent=27 // pred_fallthru
        _
      %p4121 = scmp.eq.s32.totalorder %s20, 1
      // Predicated region
      $region41: #{_double_conv_impl.3} parent=27 // pred_check
        %p4122 = pneg %p4121
      $region42: #{_double_conv_impl.3} parent=27 // pred_check_branch
        %4124 = sbr.rel (%p4122) target = $region44
      $region43: #{_double_conv_impl.3} parent=27 // pred_region
        %v4125 = vld [vmem:[#allocation3] sm:$0x3]
        %4126 = vst [vmem:[%s254] sm:$0x3] %v4125
      $region44: #{_double_conv_impl.3} parent=27 // pred_fallthru
        _
      %s4127 = ssub.s32 %s20, 1
      %p4128 = scmp.gt.s32.totalorder %s4127, 0
      %s4129 = scalar_select %p4128, %s4127, 0
      %s4130 = smul.u32 16, %s4129
      %p4131 = scmp.lt.s32.totalorder %s19, 1
      %s4132 = scalar_select %p4131, %s19, 1
      %p4133 = scmp.lt.s32.totalorder %s4130, 15
      %s4134 = scalar_select %p4133, %s4130, 15
      %s4135 = smul.addr %s4134, 2
      %s4136 = smul.addr %s4132, 32
      %s4137 = sadd.s32 %s4135, %s4136
      %s4138 = smul.addr %s4137, 4
      %s4139 = scalar_lea.vmem %s2, %s4138
      %p4140 = scmp.lt.s32.totalorder %s19, 1
      %s4141 = scalar_select %p4140, %s19, 1
      %s4142 = smul.addr %s4141, 2
      %s4143 = scalar_lea.vmem %s3, %s4142
      // Predicated region
      $region45: #{_double_conv_impl.3} parent=27 // pred_check
        %p4144 = pneg %p106
      $region46: #{_double_conv_impl.3} parent=27 // pred_check_branch
        %4146 = sbr.rel (%p4144) target = $region48
      $region47: #{_double_conv_impl.3} parent=27 // pred_region
        %s4147 = ssub.s32 %s20, 1
        %p4148 = scmp.gt.s32.totalorder %s4147, 0
        %s4149 = scalar_select %p4148, %s4147, 0
        %s4150 = smul.u32 16, %s4149
      $region48: #{_double_conv_impl.3} parent=27 // pred_fallthru
        _
      // Predicated region
      $region49: #{_double_conv_impl.3} parent=27 // pred_check
        %p4151 = pneg %p132
      $region50: #{_double_conv_impl.3} parent=27 // pred_check_branch
        %4153 = sbr.rel (%p4151) target = $region52
      $region51: #{_double_conv_impl.3} parent=27 // pred_region
        _
      $region52: #{_double_conv_impl.3} parent=27 // pred_fallthru
        _
    $region28: #{_double_conv_impl.3} parent=5 // pred_fallthru
      _
    %p4154 = scmp.le.s32.totalorder 2, %s10
    // Predicated region
    $region53: #{_double_conv_impl.3} parent=5 // pred_check
      %p4155 = pneg %p4154
    $region54: #{_double_conv_impl.3} parent=5 // pred_check_branch
      %4157 = sbr.rel (%p4155) target = $region56
    $region55: #{_double_conv_impl.3} parent=5 // pred_region
      %s4158 = ssub.s32 %s10, 2
      // Predicated region
      $region57: #{_double_conv_impl.3} parent=55 // pred_check
        %p4159 = pneg %p112
      $region58: #{_double_conv_impl.3} parent=55 // pred_check_branch
        %4161 = sbr.rel (%p4159) target = $region60
      $region59: #{_double_conv_impl.3} parent=55 // pred_region
        %s4162 = ssub.s32 %s22, 1
        %p4163 = scmp.gt.s32.totalorder %s4162, 0
        %s4164 = scalar_select %p4163, %s4162, 0
        %s4165 = smul.u32 16, %s4164
        %p4166 = scmp.lt.s32.totalorder %s21, 1
        %s4167 = scalar_select %p4166, %s21, 1
        %p4168 = scmp.lt.s32.totalorder %s4165, 15
        %s4169 = scalar_select %p4168, %s4165, 15
        %s4170 = smul.addr %s4169, 2
        %s4171 = smul.addr %s4167, 32
        %s4172 = sadd.s32 %s4170, %s4171
        %s4173 = smul.addr %s4172, 4
        %s4174 = scalar_lea.vmem %s2, %s4173
      $region60: #{_double_conv_impl.3} parent=55 // pred_fallthru
        _
      // Predicated region
      $region61: #{_double_conv_impl.3} parent=55 // pred_check
        %p4175 = pneg %p138
      $region62: #{_double_conv_impl.3} parent=55 // pred_check_branch
        %4177 = sbr.rel (%p4175) target = $region64
      $region63: #{_double_conv_impl.3} parent=55 // pred_region
        %p4178 = scmp.lt.s32.totalorder %s21, 1
        %s4179 = scalar_select %p4178, %s21, 1
        %s4180 = smul.addr %s4179, 2
        %s4181 = scalar_lea.vmem %s3, %s4180
      $region64: #{_double_conv_impl.3} parent=55 // pred_fallthru
        _
    $region56: #{_double_conv_impl.3} parent=5 // pred_fallthru
      _
  $region6: #{_double_conv_impl.3} parent=0 // loop_footer
    %s14 = sadd.s32 1, %s10
  $region7: #{_double_conv_impl.3} parent=0 // loop_footer_branch
    %9 = sbr.rel target = $region3
  $region8: #{_double_conv_impl.3} parent=0 // loop_exit
    _

// kernel: _double_conv_impl.4
$region0: #{_double_conv_impl.4}
  #allocation0 [shape = 'u32[]', space=smem, size = 0x4, offset = 0x4, fixed_abs, tag = 'smem constant byte address 0x4 - core index']
  #allocation1 [shape = 'u32[144,128]{1,0:T(1,128)}', space=vmem, size = 0x12000, scoped, tag = 'internal scratch']
  #allocation2 [shape = 'bf16[18,18,128]{2,1,0:T(8,128)(2,1)}', space=vmem, size = 0x1b000, scoped, tag = 'scratch operand']
  #allocation3 [shape = 'f32[2,128]{1,0:T(2,128)}', space=vmem, size = 0x400, scoped, tag = 'scratch operand']
  %s0 = inlined_call_operand.vmem [shape: bf16[2,16,16,128], index: 0, kind: input, shape index: {}]
  %s1 = inlined_call_operand.vmem [shape: bf16[3,384,128], index: 1, kind: input, shape index: {}]
  %s2 = inlined_call_operand.vmem [shape: f32[1,128], index: 2, kind: input, shape index: {}]
  %s3 = inlined_call_operand.vmem [shape: f32[1,128], index: 3, kind: input, shape index: {}]
  %s4 = inlined_call_operand.vmem [shape: bf16[2,16,16,128], index: 4, kind: output, shape index: {0}]
  %s5 = inlined_call_operand.vmem [shape: f32[2,2,128], index: 5, kind: output, shape index: {1}]
  %6 = xla_tuple %s4, %s5
  %s7 = sld [smem:[#allocation0]]
  $region73: #{_double_conv_impl.4} parent=0
    _
  %s9 = ssub.s32 1, %s7
  %s10 = scalar_select 0, %s9, %s7
  loop: start=0, step=1, limit=6
  $region2: #{_double_conv_impl.4} parent=0 // loop_pre_header
    _
  $region3: #{_double_conv_impl.4} parent=0 // loop_header
    %s12 = sphi 0, %s16
    %p13 = scmp.ge.s32.totalorder %s12, 6
    %s19 = sphi 0, %s31
    %s20 = sphi 0, %s27
    %s21 = sphi 0, %s19
    %s22 = sphi 0, %s20
    %s23 = sphi 0, %s21
    %s24 = sphi 0, %s22
    %s40 = sphi 0, %s42
    %s43 = sphi 0, %s40
    %s44 = sphi 0, %s43
    %s60 = sphi 0, %s44
    %s64 = sphi 0, %s64
    %s66 = sphi 0, %s64
    %s67 = sphi 0, %s66
    %s81 = sphi 0, %s67
    %s85 = sphi 0, %s85
    %s87 = sphi 0, %s85
    %s88 = sphi 0, %s87
    %s102 = sphi 0, %s88
    %s106 = sphi 0, %s106
    %s108 = sphi 0, %s106
    %s109 = sphi 0, %s108
    %s123 = sphi 0, %s109
    %s137 = sphi 0, %s139
    %s140 = sphi 0, %s137
    %s141 = sphi 0, %s140
    %s157 = sphi 0, %s141
    %s163 = sphi 0, %s165
    %s166 = sphi 0, %s163
    %s167 = sphi 0, %s166
    %s183 = sphi 0, %s167
  $region4: #{_double_conv_impl.4} parent=0 // loop_header_branch
    %15 = sbr.rel (%p13) target = $region8
  $region5: #{_double_conv_impl.4} parent=0 // loop_body
    %s17 = ssub.s32 %s12, 1
    %s18 = ssub.s32 %s12, 2
    %s25 = sadd.s32 1, %s20
    %p26 = scmp.ge.s32.totalorder %s25, 2
    %s27 = scalar_select %p26, 0, %s25
    %s28 = sadd.s32 1, %s19
    %s29 = scalar_select %p26, %s28, %s19
    %p30 = scmp.ge.s32.totalorder %s29, 2
    %s31 = scalar_select %p30, 0, %s29
    %p32 = scmp.lt.s32.totalorder %s20, 0
    %s33 = scalar_select %p32, %s20, 0
    %p34 = scmp.lt.s32.totalorder %s27, 0
    %s35 = scalar_select %p34, %s27, 0
    %s36 = ssub.s32 %s19, %s31
    %s37 = ssub.s32 %s33, %s35
    %s38 = sor.u32 %s36, %s37
    %p39 = scmp.eq.s32.totalorder %s38, 0
    %s41 = sadd.s32 %s40, 1
    %s42 = scalar_select %p39, %s40, %s41
    %p45 = pneg %p39
    %p46 = scmp.eq.s32.totalorder %s12, 3
    %p47 = por %p45, %p46
    %p48 = scmp.ne.s32.totalorder %s40, %s43
    %p49 = scmp.eq.s32.totalorder %s12, 0
    %p50 = por %p48, %p49
    %p51 = scmp.ne.s32.totalorder %s40, %s43
    %p52 = scmp.eq.s32.totalorder %s17, 3
    %p53 = por %p51, %p52
    %p54 = scmp.ne.s32.totalorder %s43, %s44
    %p55 = scmp.eq.s32.totalorder %s17, 0
    %p56 = por %p54, %p55
    %p57 = scmp.ne.s32.totalorder %s43, %s44
    %p58 = scmp.eq.s32.totalorder %s18, 3
    %p59 = por %p57, %p58
    %p61 = scmp.ne.s32.totalorder %s44, %s60
    %p62 = scmp.eq.s32.totalorder %s18, 0
    %p63 = por %p61, %p62
    %s65 = sadd.s32 %s64, 1
    %p68 = scmp.eq.s32.totalorder %s12, 3
    %p69 = scmp.ne.s32.totalorder %s64, %s66
    %p70 = scmp.eq.s32.totalorder %s12, 0
    %p71 = por %p69, %p70
    %p72 = scmp.ne.s32.totalorder %s64, %s66
    %p73 = scmp.eq.s32.totalorder %s17, 3
    %p74 = por %p72, %p73
    %p75 = scmp.ne.s32.totalorder %s66, %s67
    %p76 = scmp.eq.s32.totalorder %s17, 0
    %p77 = por %p75, %p76
    %p78 = scmp.ne.s32.totalorder %s66, %s67
    %p79 = scmp.eq.s32.totalorder %s18, 3
    %p80 = por %p78, %p79
    %p82 = scmp.ne.s32.totalorder %s67, %s81
    %p83 = scmp.eq.s32.totalorder %s18, 0
    %p84 = por %p82, %p83
    %s86 = sadd.s32 %s85, 1
    %p89 = scmp.eq.s32.totalorder %s12, 3
    %p90 = scmp.ne.s32.totalorder %s85, %s87
    %p91 = scmp.eq.s32.totalorder %s12, 0
    %p92 = por %p90, %p91
    %p93 = scmp.ne.s32.totalorder %s85, %s87
    %p94 = scmp.eq.s32.totalorder %s17, 3
    %p95 = por %p93, %p94
    %p96 = scmp.ne.s32.totalorder %s87, %s88
    %p97 = scmp.eq.s32.totalorder %s17, 0
    %p98 = por %p96, %p97
    %p99 = scmp.ne.s32.totalorder %s87, %s88
    %p100 = scmp.eq.s32.totalorder %s18, 3
    %p101 = por %p99, %p100
    %p103 = scmp.ne.s32.totalorder %s88, %s102
    %p104 = scmp.eq.s32.totalorder %s18, 0
    %p105 = por %p103, %p104
    %s107 = sadd.s32 %s106, 1
    %p110 = scmp.eq.s32.totalorder %s12, 3
    %p111 = scmp.ne.s32.totalorder %s106, %s108
    %p112 = scmp.eq.s32.totalorder %s12, 0
    %p113 = por %p111, %p112
    %p114 = scmp.ne.s32.totalorder %s106, %s108
    %p115 = scmp.eq.s32.totalorder %s17, 3
    %p116 = por %p114, %p115
    %p117 = scmp.ne.s32.totalorder %s108, %s109
    %p118 = scmp.eq.s32.totalorder %s17, 0
    %p119 = por %p117, %p118
    %p120 = scmp.ne.s32.totalorder %s108, %s109
    %p121 = scmp.eq.s32.totalorder %s18, 3
    %p122 = por %p120, %p121
    %p124 = scmp.ne.s32.totalorder %s109, %s123
    %p125 = scmp.eq.s32.totalorder %s18, 0
    %p126 = por %p124, %p125
    %s127 = ssub.s32 %s20, 1
    %p128 = scmp.gt.s32.totalorder %s127, 0
    %s129 = scalar_select %p128, %s127, 0
    %s130 = ssub.s32 %s27, 1
    %p131 = scmp.gt.s32.totalorder %s130, 0
    %s132 = scalar_select %p131, %s130, 0
    %s133 = ssub.s32 %s19, %s31
    %s134 = ssub.s32 %s129, %s132
    %s135 = sor.u32 %s133, %s134
    %p136 = scmp.eq.s32.totalorder %s135, 0
    %s138 = sadd.s32 %s137, 1
    %s139 = scalar_select %p136, %s137, %s138
    %p142 = pneg %p136
    %p143 = scmp.eq.s32.totalorder %s12, 3
    %p144 = por %p142, %p143
    %p145 = scmp.ne.s32.totalorder %s137, %s140
    %p146 = scmp.eq.s32.totalorder %s12, 0
    %p147 = por %p145, %p146
    %p148 = scmp.ne.s32.totalorder %s137, %s140
    %p149 = scmp.eq.s32.totalorder %s17, 3
    %p150 = por %p148, %p149
    %p151 = scmp.ne.s32.totalorder %s140, %s141
    %p152 = scmp.eq.s32.totalorder %s17, 0
    %p153 = por %p151, %p152
    %p154 = scmp.ne.s32.totalorder %s140, %s141
    %p155 = scmp.eq.s32.totalorder %s18, 3
    %p156 = por %p154, %p155
    %p158 = scmp.ne.s32.totalorder %s141, %s157
    %p159 = scmp.eq.s32.totalorder %s18, 0
    %p160 = por %p158, %p159
    %s161 = ssub.s32 %s19, %s31
    %p162 = scmp.eq.s32.totalorder %s161, 0
    %s164 = sadd.s32 %s163, 1
    %s165 = scalar_select %p162, %s163, %s164
    %p168 = pneg %p162
    %p169 = scmp.eq.s32.totalorder %s12, 3
    %p170 = por %p168, %p169
    %p171 = scmp.ne.s32.totalorder %s163, %s166
    %p172 = scmp.eq.s32.totalorder %s12, 0
    %p173 = por %p171, %p172
    %p174 = scmp.ne.s32.totalorder %s163, %s166
    %p175 = scmp.eq.s32.totalorder %s17, 3
    %p176 = por %p174, %p175
    %p177 = scmp.ne.s32.totalorder %s166, %s167
    %p178 = scmp.eq.s32.totalorder %s17, 0
    %p179 = por %p177, %p178
    %p180 = scmp.ne.s32.totalorder %s166, %s167
    %p181 = scmp.eq.s32.totalorder %s18, 3
    %p182 = por %p180, %p181
    %p184 = scmp.ne.s32.totalorder %s167, %s183
    %p185 = scmp.eq.s32.totalorder %s18, 0
    %p186 = por %p184, %p185
    %p187 = scmp.le.s32.totalorder 1, %s12
    %p188 = scmp.lt.s32.totalorder %s12, 5
    %p189 = pnand %p187, %p188
    %p190 = pneg %p189
    // Predicated region
    $region9: #{_double_conv_impl.4} parent=5 // pred_check
      _
    $region10: #{_double_conv_impl.4} parent=5 // pred_check_branch
      %192 = sbr.rel (%p189) target = $region12
    $region11: #{_double_conv_impl.4} parent=5 // pred_region
      %s193 = ssub.s32 %s12, 1
      // Predicated region
      $region13: #{_double_conv_impl.4} parent=11 // pred_check
        %p194 = pneg %p77
      $region14: #{_double_conv_impl.4} parent=11 // pred_check_branch
        %196 = sbr.rel (%p194) target = $region16
      $region15: #{_double_conv_impl.4} parent=11 // pred_region
        _
      $region16: #{_double_conv_impl.4} parent=11 // pred_fallthru
        _
      // Predicated region
      $region17: #{_double_conv_impl.4} parent=11 // pred_check
        %p197 = pneg %p98
      $region18: #{_double_conv_impl.4} parent=11 // pred_check_branch
        %199 = sbr.rel (%p197) target = $region20
      $region19: #{_double_conv_impl.4} parent=11 // pred_region
        _
      $region20: #{_double_conv_impl.4} parent=11 // pred_fallthru
        _
      // Predicated region
      $region21: #{_double_conv_impl.4} parent=11 // pred_check
        %p200 = pneg %p119
      $region22: #{_double_conv_impl.4} parent=11 // pred_check_branch
        %202 = sbr.rel (%p200) target = $region24
      $region23: #{_double_conv_impl.4} parent=11 // pred_region
        _
      $region24: #{_double_conv_impl.4} parent=11 // pred_fallthru
        _
    $region12: #{_double_conv_impl.4} parent=5 // pred_fallthru
      _
    %p203 = scmp.lt.s32.totalorder %s12, 4
    // Predicated region
    $region25: #{_double_conv_impl.4} parent=5 // pred_check
      %p204 = pneg %p203
    $region26: #{_double_conv_impl.4} parent=5 // pred_check_branch
      %206 = sbr.rel (%p204) target = $region28
    $region27: #{_double_conv_impl.4} parent=5 // pred_region
      // Predicated region
      $region29: #{_double_conv_impl.4} parent=27 // pred_check
        %p207 = pneg %p50
      $region30: #{_double_conv_impl.4} parent=27 // pred_check_branch
        %209 = sbr.rel (%p207) target = $region32
      $region31: #{_double_conv_impl.4} parent=27 // pred_region
        %p210 = scmp.lt.s32.totalorder %s20, 0
        %s211 = scalar_select %p210, %s20, 0
        %s212 = smul.u32 16, %s211
        %p213 = scmp.lt.s32.totalorder %s19, 1
        %s214 = scalar_select %p213, %s19, 1
        %p215 = scmp.lt.s32.totalorder %s212, 15
        %s216 = scalar_select %p215, %s212, 15
        %s217 = smul.addr %s216, 2
        %s218 = smul.addr %s214, 32
        %s219 = sadd.s32 %s217, %s218
        %s220 = smul.addr %s219, 4
        %s221 = scalar_lea.vmem %s0, %s220
        %p222 = scmp.lt.s32.totalorder %s20, 0
        %s223 = scalar_select %p222, %s20, 0
        %s224 = smul.u32 16, %s223
      $region32: #{_double_conv_impl.4} parent=27 // pred_fallthru
        _
    $region28: #{_double_conv_impl.4} parent=5 // pred_fallthru
      _
    %p225 = scmp.le.s32.totalorder 1, %s12
    %p226 = scmp.lt.s32.totalorder %s12, 5
    %p227 = pnand %p225, %p226
    %p228 = pneg %p227
    // Predicated region
    $region33: #{_double_conv_impl.4} parent=5 // pred_check
      _
    $region34: #{_double_conv_impl.4} parent=5 // pred_check_branch
      %230 = sbr.rel (%p227) target = $region36
    $region35: #{_double_conv_impl.4} parent=5 // pred_region
      %s231 = ssub.s32 %s12, 1
      %p232 = scmp.lt.s32.totalorder %s22, 0
      %s233 = scalar_select %p232, %s22, 0
      %s234 = smul.u32 16, %s233
      %p235 = scmp.lt.s32.totalorder %s21, 1
      %s236 = scalar_select %p235, %s21, 1
      %p237 = scmp.lt.s32.totalorder %s234, 15
      %s238 = scalar_select %p237, %s234, 15
      %s239 = smul.addr %s238, 2
      %s240 = smul.addr %s236, 32
      %s241 = sadd.s32 %s239, %s240
      %s242 = smul.addr %s241, 4
      %s243 = scalar_lea.vmem %s0, %s242
      %p244 = pneg %p56
      %p245 = pneg %p53
      %p246 = pneg %p77
      %p247 = pneg %p74
      %p248 = pneg %p98
      %p249 = pneg %p95
      %p250 = pneg %p119
      %p251 = pneg %p116
      %p252 = pneg %p153
      %p253 = pneg %p150
      %s254 = ssub.s32 %s22, 1
      %p255 = scmp.gt.s32.totalorder %s254, 0
      %s256 = scalar_select %p255, %s254, 0
      %s257 = smul.u32 16, %s256
      %p258 = scmp.lt.s32.totalorder %s21, 1
      %s259 = scalar_select %p258, %s21, 1
      %p260 = scmp.lt.s32.totalorder %s257, 15
      %s261 = scalar_select %p260, %s257, 15
      %s262 = smul.addr %s261, 2
      %s263 = smul.addr %s259, 32
      %s264 = sadd.s32 %s262, %s263
      %s265 = smul.addr %s264, 4
      %s266 = scalar_lea.vmem %s4, %s265
      %p267 = pneg %p179
      %p268 = pneg %p176
      %p269 = scmp.lt.s32.totalorder %s21, 1
      %s270 = scalar_select %p269, %s21, 1
      %s271 = smul.addr %s270, 2
      %s272 = scalar_lea.vmem %s5, %s271
      %p273 = scmp.lt.s32.totalorder %s22, 0
      %s274 = scalar_select %p273, %s22, 0
      %s275 = smul.u32 16, %s274
      %p276 = scmp.lt.s32.totalorder %s21, 1
      %s277 = scalar_select %p276, %s21, 1
      %p278 = scmp.lt.s32.totalorder %s275, 15
      %s279 = scalar_select %p278, %s275, 15
      %s280 = smul.addr %s279, 2
      %s281 = smul.addr %s277, 32
      %s282 = sadd.s32 %s280, %s281
      %s283 = smul.addr %s282, 4
      %s284 = scalar_lea.vmem %s0, %s283
      %p285 = scmp.lt.s32.totalorder %s22, 0
      %s286 = scalar_select %p285, %s22, 0
      %s287 = smul.u32 16, %s286
      %s288 = ssub.s32 %s22, 1
      %p289 = scmp.gt.s32.totalorder %s288, 0
      %s290 = scalar_select %p289, %s288, 0
      %s291 = smul.u32 16, %s290
      %p292 = scmp.lt.s32.totalorder %s21, 1
      %s293 = scalar_select %p292, %s21, 1
      %p294 = scmp.lt.s32.totalorder %s291, 15
      %s295 = scalar_select %p294, %s291, 15
      %s296 = smul.addr %s295, 2
      %s297 = smul.addr %s293, 32
      %s298 = sadd.s32 %s296, %s297
      %s299 = smul.addr %s298, 4
      %s300 = scalar_lea.vmem %s4, %s299
      %s301 = ssub.s32 %s22, 1
      %p302 = scmp.gt.s32.totalorder %s301, 0
      %s303 = scalar_select %p302, %s301, 0
      %s304 = smul.u32 16, %s303
      %p305 = scmp.lt.s32.totalorder %s21, 1
      %s306 = scalar_select %p305, %s21, 1
      %s307 = smul.addr %s306, 2
      %s308 = scalar_lea.vmem %s5, %s307
      %p310 = scmp.eq.s32.totalorder %s22, 0
      // Predicated region
      $region37: #{_double_conv_impl.4} parent=35 // pred_check
        %p311 = pneg %p310
      $region38: #{_double_conv_impl.4} parent=35 // pred_check_branch
        %313 = sbr.rel (%p311) target = $region40
      $region39: #{_double_conv_impl.4} parent=35 // pred_region
        %314 = vst [vmem:[#allocation2] sm:$0xf] 0
        %315 = vst [vmem:[#allocation2 + $0x4] sm:$0xf] 0
        %316 = vst [vmem:[#allocation2 + $0x8] sm:$0x1] 0
        %s317 = scalar_lea.vmem [#allocation2], 204
        %318 = vst [vmem:[%s317] sm:$0xf] 0
        %319 = vst [vmem:[%s317 + $0x4] sm:$0xf] 0
        %320 = vst [vmem:[%s317 + $0x8] sm:$0x1] 0
        %vm321 = vcmask 1040384
        %vm322 = vsmask.f32 256
        %vm323 = vmand %vm321, %vm322
        %v324 = vld [vmem:[#allocation2] sm:$0x1]
        %v325 = vsel %vm323, 0, %v324
        %326 = vst [vmem:[#allocation2] sm:$0x1] %v325
        %v327 = vld [vmem:[#allocation2 + $0xc] sm:$0x1]
        %v328 = vsel %vm323, 0, %v327
        %329 = vst [vmem:[#allocation2 + $0xc] sm:$0x1] %v328
        %v330 = vld [vmem:[#allocation2 + $0x18] sm:$0x1]
        %v331 = vsel %vm323, 0, %v330
        %332 = vst [vmem:[#allocation2 + $0x18] sm:$0x1] %v331
        %v333 = vld [vmem:[#allocation2 + $0x24] sm:$0x1]
        %v334 = vsel %vm323, 0, %v333
        %335 = vst [vmem:[#allocation2 + $0x24] sm:$0x1] %v334
        %v336 = vld [vmem:[#allocation2 + $0x30] sm:$0x1]
        %v337 = vsel %vm323, 0, %v336
        %338 = vst [vmem:[#allocation2 + $0x30] sm:$0x1] %v337
        %v339 = vld [vmem:[#allocation2 + $0x3c] sm:$0x1]
        %v340 = vsel %vm323, 0, %v339
        %341 = vst [vmem:[#allocation2 + $0x3c] sm:$0x1] %v340
        %v342 = vld [vmem:[#allocation2 + $0x48] sm:$0x1]
        %v343 = vsel %vm323, 0, %v342
        %344 = vst [vmem:[#allocation2 + $0x48] sm:$0x1] %v343
        %v345 = vld [vmem:[#allocation2 + $0x54] sm:$0x1]
        %v346 = vsel %vm323, 0, %v345
        %347 = vst [vmem:[#allocation2 + $0x54] sm:$0x1] %v346
        %v348 = vld [vmem:[#allocation2 + $0x60] sm:$0x1]
        %v349 = vsel %vm323, 0, %v348
        %350 = vst [vmem:[#allocation2 + $0x60] sm:$0x1] %v349
        %v351 = vld [vmem:[#allocation2 + $0x6c] sm:$0x1]
        %v352 = vsel %vm323, 0, %v351
        %353 = vst [vmem:[#allocation2 + $0x6c] sm:$0x1] %v352
        %v354 = vld [vmem:[#allocation2 + $0x78] sm:$0x1]
        %v355 = vsel %vm323, 0, %v354
        %356 = vst [vmem:[#allocation2 + $0x78] sm:$0x1] %v355
        %v357 = vld [vmem:[#allocation2 + $0x84] sm:$0x1]
        %v358 = vsel %vm323, 0, %v357
        %359 = vst [vmem:[#allocation2 + $0x84] sm:$0x1] %v358
        %v360 = vld [vmem:[#allocation2 + $0x90] sm:$0x1]
        %v361 = vsel %vm323, 0, %v360
        %362 = vst [vmem:[#allocation2 + $0x90] sm:$0x1] %v361
        %v363 = vld [vmem:[#allocation2 + $0x9c] sm:$0x1]
        %v364 = vsel %vm323, 0, %v363
        %365 = vst [vmem:[#allocation2 + $0x9c] sm:$0x1] %v364
        %v366 = vld [vmem:[#allocation2 + $0xa8] sm:$0x1]
        %v367 = vsel %vm323, 0, %v366
        %368 = vst [vmem:[#allocation2 + $0xa8] sm:$0x1] %v367
        %v369 = vld [vmem:[#allocation2 + $0xb4] sm:$0x1]
        %v370 = vsel %vm323, 0, %v369
        %371 = vst [vmem:[#allocation2 + $0xb4] sm:$0x1] %v370
        %v372 = vld [vmem:[#allocation2 + $0xc0] sm:$0x1]
        %v373 = vsel %vm323, 0, %v372
        %374 = vst [vmem:[#allocation2 + $0xc0] sm:$0x1] %v373
        %v375 = vld [vmem:[#allocation2 + $0xcc] sm:$0x1]
        %v376 = vsel %vm323, 0, %v375
        %377 = vst [vmem:[#allocation2 + $0xcc] sm:$0x1] %v376
        %vm378 = vsmask.f32 7938
        %vm379 = vmand %vm321, %vm378
        %v380 = vld [vmem:[#allocation2 + $0x8] sm:$0x1]
        %v381 = vsel %vm379, 0, %v380
        %382 = vst [vmem:[#allocation2 + $0x8] sm:$0x1] %v381
        %v383 = vld [vmem:[#allocation2 + $0x14] sm:$0x1]
        %v384 = vsel %vm379, 0, %v383
        %385 = vst [vmem:[#allocation2 + $0x14] sm:$0x1] %v384
        %v386 = vld [vmem:[#allocation2 + $0x20] sm:$0x1]
        %v387 = vsel %vm379, 0, %v386
        %388 = vst [vmem:[#allocation2 + $0x20] sm:$0x1] %v387
        %v389 = vld [vmem:[#allocation2 + $0x2c] sm:$0x1]
        %v390 = vsel %vm379, 0, %v389
        %391 = vst [vmem:[#allocation2 + $0x2c] sm:$0x1] %v390
        %v392 = vld [vmem:[#allocation2 + $0x38] sm:$0x1]
        %v393 = vsel %vm379, 0, %v392
        %394 = vst [vmem:[#allocation2 + $0x38] sm:$0x1] %v393
        %v395 = vld [vmem:[#allocation2 + $0x44] sm:$0x1]
        %v396 = vsel %vm379, 0, %v395
        %397 = vst [vmem:[#allocation2 + $0x44] sm:$0x1] %v396
        %v398 = vld [vmem:[#allocation2 + $0x50] sm:$0x1]
        %v399 = vsel %vm379, 0, %v398
        %400 = vst [vmem:[#allocation2 + $0x50] sm:$0x1] %v399
        %v401 = vld [vmem:[#allocation2 + $0x5c] sm:$0x1]
        %v402 = vsel %vm379, 0, %v401
        %403 = vst [vmem:[#allocation2 + $0x5c] sm:$0x1] %v402
        %v404 = vld [vmem:[#allocation2 + $0x68] sm:$0x1]
        %v405 = vsel %vm379, 0, %v404
        %406 = vst [vmem:[#allocation2 + $0x68] sm:$0x1] %v405
        %v407 = vld [vmem:[#allocation2 + $0x74] sm:$0x1]
        %v408 = vsel %vm379, 0, %v407
        %409 = vst [vmem:[#allocation2 + $0x74] sm:$0x1] %v408
        %v410 = vld [vmem:[#allocation2 + $0x80] sm:$0x1]
        %v411 = vsel %vm379, 0, %v410
        %412 = vst [vmem:[#allocation2 + $0x80] sm:$0x1] %v411
        %v413 = vld [vmem:[#allocation2 + $0x8c] sm:$0x1]
        %v414 = vsel %vm379, 0, %v413
        %415 = vst [vmem:[#allocation2 + $0x8c] sm:$0x1] %v414
        %v416 = vld [vmem:[#allocation2 + $0x98] sm:$0x1]
        %v417 = vsel %vm379, 0, %v416
        %418 = vst [vmem:[#allocation2 + $0x98] sm:$0x1] %v417
        %v419 = vld [vmem:[#allocation2 + $0xa4] sm:$0x1]
        %v420 = vsel %vm379, 0, %v419
        %421 = vst [vmem:[#allocation2 + $0xa4] sm:$0x1] %v420
        %v422 = vld [vmem:[#allocation2 + $0xb0] sm:$0x1]
        %v423 = vsel %vm379, 0, %v422
        %424 = vst [vmem:[#allocation2 + $0xb0] sm:$0x1] %v423
        %v425 = vld [vmem:[#allocation2 + $0xbc] sm:$0x1]
        %v426 = vsel %vm379, 0, %v425
        %427 = vst [vmem:[#allocation2 + $0xbc] sm:$0x1] %v426
        %v428 = vld [vmem:[#allocation2 + $0xc8] sm:$0x1]
        %v429 = vsel %vm379, 0, %v428
        %430 = vst [vmem:[#allocation2 + $0xc8] sm:$0x1] %v429
        %v431 = vld [vmem:[#allocation2 + $0xd4] sm:$0x1]
        %v432 = vsel %vm379, 0, %v431
        %433 = vst [vmem:[#allocation2 + $0xd4] sm:$0x1] %v432
        %434 = vst [vmem:[#allocation3] sm:$0x3] 0.0
      $region40: #{_double_conv_impl.4} parent=35 // pred_fallthru
        _
      %p435 = scmp.lt.s32.totalorder %s22, 1
      // Predicated region
      $region41: #{_double_conv_impl.4} parent=35 // pred_check
        %p436 = pneg %p435
      $region42: #{_double_conv_impl.4} parent=35 // pred_check_branch
        %438 = sbr.rel (%p436) target = $region44
      $region43: #{_double_conv_impl.4} parent=35 // pred_region
        %v439 = vld [vmem:[%s284] sm:$0xf]
        %v440 = vld [vmem:[%s284 + $0x4] sm:$0xf]
        %v441 = vld [vmem:[%s284 + $0x8] sm:$0xf]
        %v442 = vld [vmem:[%s284 + $0xc] sm:$0xf]
        %v443 = vld [vmem:[%s284 + $0x10] sm:$0xf]
        %v444 = vld [vmem:[%s284 + $0x14] sm:$0xf]
        %v445 = vld [vmem:[%s284 + $0x18] sm:$0xf]
        %v446 = vld [vmem:[%s284 + $0x1c] sm:$0xf]
        %v447 = vld [vmem:[%s284 + $0x20] sm:$0xf]
        %v448 = vld [vmem:[%s284 + $0x24] sm:$0xf]
        %v449 = vld [vmem:[%s284 + $0x28] sm:$0xf]
        %v450 = vld [vmem:[%s284 + $0x2c] sm:$0xf]
        %v451 = vld [vmem:[%s284 + $0x30] sm:$0xf]
        %v452 = vld [vmem:[%s284 + $0x34] sm:$0xf]
        %v453 = vld [vmem:[%s284 + $0x38] sm:$0xf]
        %v454 = vld [vmem:[%s284 + $0x3c] sm:$0xf]
        %v455 = vld [vmem:[%s284 + $0x40] sm:$0xf]
        %v456 = vld [vmem:[%s284 + $0x44] sm:$0xf]
        %v457 = vld [vmem:[%s284 + $0x48] sm:$0xf]
        %v458 = vld [vmem:[%s284 + $0x4c] sm:$0xf]
        %v459 = vld [vmem:[%s284 + $0x50] sm:$0xf]
        %v460 = vld [vmem:[%s284 + $0x54] sm:$0xf]
        %v461 = vld [vmem:[%s284 + $0x58] sm:$0xf]
        %v462 = vld [vmem:[%s284 + $0x5c] sm:$0xf]
        %v463 = vld [vmem:[%s284 + $0x60] sm:$0xf]
        %v464 = vld [vmem:[%s284 + $0x64] sm:$0xf]
        %v465 = vld [vmem:[%s284 + $0x68] sm:$0xf]
        %v466 = vld [vmem:[%s284 + $0x6c] sm:$0xf]
        %v467 = vld [vmem:[%s284 + $0x70] sm:$0xf]
        %v468 = vld [vmem:[%s284 + $0x74] sm:$0xf]
        %v469 = vld [vmem:[%s284 + $0x78] sm:$0xf]
        %v470 = vld [vmem:[%s284 + $0x7c] sm:$0xf]
        %v471 = vunpack.c.l.bf16 %v439
        %v472 = vunpack.c.l.bf16 %v440
        %v473 = vunpack.c.l.bf16 %v441
        %v474 = vunpack.c.l.bf16 %v442
        %v475 = vunpack.c.l.bf16 %v443
        %v476 = vunpack.c.l.bf16 %v444
        %v477 = vunpack.c.l.bf16 %v445
        %v478 = vunpack.c.l.bf16 %v446
        %v479 = vunpack.c.l.bf16 %v447
        %v480 = vunpack.c.l.bf16 %v448
        %v481 = vunpack.c.l.bf16 %v449
        %v482 = vunpack.c.l.bf16 %v450
        %v483 = vunpack.c.l.bf16 %v451
        %v484 = vunpack.c.l.bf16 %v452
        %v485 = vunpack.c.l.bf16 %v453
        %v486 = vunpack.c.l.bf16 %v454
        %v487 = vunpack.c.l.bf16 %v455
        %v488 = vunpack.c.l.bf16 %v456
        %v489 = vunpack.c.l.bf16 %v457
        %v490 = vunpack.c.l.bf16 %v458
        %v491 = vunpack.c.l.bf16 %v459
        %v492 = vunpack.c.l.bf16 %v460
        %v493 = vunpack.c.l.bf16 %v461
        %v494 = vunpack.c.l.bf16 %v462
        %v495 = vunpack.c.l.bf16 %v463
        %v496 = vunpack.c.l.bf16 %v464
        %v497 = vunpack.c.l.bf16 %v465
        %v498 = vunpack.c.l.bf16 %v466
        %v499 = vunpack.c.l.bf16 %v467
        %v500 = vunpack.c.l.bf16 %v468
        %v501 = vunpack.c.l.bf16 %v469
        %v502 = vunpack.c.l.bf16 %v470
        %v503 = vld [vmem:[%s2] sm:$0x1]
        %v505 = vlaneseq
        %v506 = vshrl.u32 %v505, 7
        %v507 = vsub.s32 0, %v506
        %v508 = vrot.slane %v503, %v507
        %v510 = vmul.f32 %v471, %v508
        %v511 = vmul.f32 %v472, %v508
        %v512 = vmul.f32 %v473, %v508
        %v513 = vmul.f32 %v474, %v508
        %v514 = vmul.f32 %v475, %v508
        %v515 = vmul.f32 %v476, %v508
        %v516 = vmul.f32 %v477, %v508
        %v517 = vmul.f32 %v478, %v508
        %v518 = vmul.f32 %v479, %v508
        %v519 = vmul.f32 %v480, %v508
        %v520 = vmul.f32 %v481, %v508
        %v521 = vmul.f32 %v482, %v508
        %v522 = vmul.f32 %v483, %v508
        %v523 = vmul.f32 %v484, %v508
        %v524 = vmul.f32 %v485, %v508
        %v525 = vmul.f32 %v486, %v508
        %v526 = vmul.f32 %v487, %v508
        %v527 = vmul.f32 %v488, %v508
        %v528 = vmul.f32 %v489, %v508
        %v529 = vmul.f32 %v490, %v508
        %v530 = vmul.f32 %v491, %v508
        %v531 = vmul.f32 %v492, %v508
        %v532 = vmul.f32 %v493, %v508
        %v533 = vmul.f32 %v494, %v508
        %v534 = vmul.f32 %v495, %v508
        %v535 = vmul.f32 %v496, %v508
        %v536 = vmul.f32 %v497, %v508
        %v537 = vmul.f32 %v498, %v508
        %v538 = vmul.f32 %v499, %v508
        %v539 = vmul.f32 %v500, %v508
        %v540 = vmul.f32 %v501, %v508
        %v541 = vmul.f32 %v502, %v508
        %v542 = vld [vmem:[%s3] sm:$0x1]
        %v544 = vlaneseq
        %v545 = vshrl.u32 %v544, 7
        %v546 = vsub.s32 0, %v545
        %v547 = vrot.slane %v542, %v546
        %v549 = vadd.f32 %v510, %v547
        %v550 = vadd.f32 %v511, %v547
        %v551 = vadd.f32 %v512, %v547
        %v552 = vadd.f32 %v513, %v547
        %v553 = vadd.f32 %v514, %v547
        %v554 = vadd.f32 %v515, %v547
        %v555 = vadd.f32 %v516, %v547
        %v556 = vadd.f32 %v517, %v547
        %v557 = vadd.f32 %v518, %v547
        %v558 = vadd.f32 %v519, %v547
        %v559 = vadd.f32 %v520, %v547
        %v560 = vadd.f32 %v521, %v547
        %v561 = vadd.f32 %v522, %v547
        %v562 = vadd.f32 %v523, %v547
        %v563 = vadd.f32 %v524, %v547
        %v564 = vadd.f32 %v525, %v547
        %v565 = vadd.f32 %v526, %v547
        %v566 = vadd.f32 %v527, %v547
        %v567 = vadd.f32 %v528, %v547
        %v568 = vadd.f32 %v529, %v547
        %v569 = vadd.f32 %v530, %v547
        %v570 = vadd.f32 %v531, %v547
        %v571 = vadd.f32 %v532, %v547
        %v572 = vadd.f32 %v533, %v547
        %v573 = vadd.f32 %v534, %v547
        %v574 = vadd.f32 %v535, %v547
        %v575 = vadd.f32 %v536, %v547
        %v576 = vadd.f32 %v537, %v547
        %v577 = vadd.f32 %v538, %v547
        %v578 = vadd.f32 %v539, %v547
        %v579 = vadd.f32 %v540, %v547
        %v580 = vadd.f32 %v541, %v547
        %v581 = vmax.f32 %v549, 0.0
        %v582 = vmax.f32 %v550, 0.0
        %v583 = vmax.f32 %v551, 0.0
        %v584 = vmax.f32 %v552, 0.0
        %v585 = vmax.f32 %v553, 0.0
        %v586 = vmax.f32 %v554, 0.0
        %v587 = vmax.f32 %v555, 0.0
        %v588 = vmax.f32 %v556, 0.0
        %v589 = vmax.f32 %v557, 0.0
        %v590 = vmax.f32 %v558, 0.0
        %v591 = vmax.f32 %v559, 0.0
        %v592 = vmax.f32 %v560, 0.0
        %v593 = vmax.f32 %v561, 0.0
        %v594 = vmax.f32 %v562, 0.0
        %v595 = vmax.f32 %v563, 0.0
        %v596 = vmax.f32 %v564, 0.0
        %v597 = vmax.f32 %v565, 0.0
        %v598 = vmax.f32 %v566, 0.0
        %v599 = vmax.f32 %v567, 0.0
        %v600 = vmax.f32 %v568, 0.0
        %v601 = vmax.f32 %v569, 0.0
        %v602 = vmax.f32 %v570, 0.0
        %v603 = vmax.f32 %v571, 0.0
        %v604 = vmax.f32 %v572, 0.0
        %v605 = vmax.f32 %v573, 0.0
        %v606 = vmax.f32 %v574, 0.0
        %v607 = vmax.f32 %v575, 0.0
        %v608 = vmax.f32 %v576, 0.0
        %v609 = vmax.f32 %v577, 0.0
        %v610 = vmax.f32 %v578, 0.0
        %v611 = vmax.f32 %v579, 0.0
        %v612 = vmax.f32 %v580, 0.0
        %v613 = vpack.c.bf16 %v582, %v581
        %v614 = vpack.c.bf16 %v584, %v583
        %v615 = vpack.c.bf16 %v586, %v585
        %v616 = vpack.c.bf16 %v588, %v587
        %v617 = vpack.c.bf16 %v590, %v589
        %v618 = vpack.c.bf16 %v592, %v591
        %v619 = vpack.c.bf16 %v594, %v593
        %v620 = vpack.c.bf16 %v596, %v595
        %v621 = vpack.c.bf16 %v598, %v597
        %v622 = vpack.c.bf16 %v600, %v599
        %v623 = vpack.c.bf16 %v602, %v601
        %v624 = vpack.c.bf16 %v604, %v603
        %v625 = vpack.c.bf16 %v606, %v605
        %v626 = vpack.c.bf16 %v608, %v607
        %v627 = vpack.c.bf16 %v610, %v609
        %v628 = vpack.c.bf16 %v612, %v611
        %s629 = smul.u32 %s22, 16
        %s630 = sadd.s32 %s629, 1
        %v647 = vunpack.c.l.b16 %v613
        %v648 = vunpack.c.h.b16 %v613
        %v649 = vunpack.c.l.b16 %v614
        %v650 = vunpack.c.h.b16 %v614
        %v651 = vunpack.c.l.b16 %v615
        %v652 = vunpack.c.h.b16 %v615
        %v653 = vunpack.c.l.b16 %v616
        %v654 = vunpack.c.h.b16 %v616
        %v655 = vunpack.c.l.b16 %v617
        %v656 = vunpack.c.h.b16 %v617
        %v657 = vunpack.c.l.b16 %v618
        %v658 = vunpack.c.h.b16 %v618
        %v659 = vunpack.c.l.b16 %v619
        %v660 = vunpack.c.h.b16 %v619
        %v661 = vunpack.c.l.b16 %v620
        %v662 = vunpack.c.h.b16 %v620
        %v663 = vunpack.c.l.b16 %v621
        %v664 = vunpack.c.h.b16 %v621
        %v665 = vunpack.c.l.b16 %v622
        %v666 = vunpack.c.h.b16 %v622
        %v667 = vunpack.c.l.b16 %v623
        %v668 = vunpack.c.h.b16 %v623
        %v669 = vunpack.c.l.b16 %v624
        %v670 = vunpack.c.h.b16 %v624
        %v671 = vunpack.c.l.b16 %v625
        %v672 = vunpack.c.h.b16 %v625
        %v673 = vunpack.c.l.b16 %v626
        %v674 = vunpack.c.h.b16 %v626
        %v675 = vunpack.c.l.b16 %v627
        %v676 = vunpack.c.h.b16 %v627
        %v677 = vunpack.c.l.b16 %v628
        %v678 = vunpack.c.h.b16 %v628
        %v679 = vpack.c.b16 %v647, %v647
        %v680 = vpack.c.b16 %v648, %v648
        %v681 = vpack.c.b16 %v649, %v649
        %v682 = vpack.c.b16 %v650, %v650
        %v683 = vpack.c.b16 %v651, %v651
        %v684 = vpack.c.b16 %v652, %v652
        %v685 = vpack.c.b16 %v653, %v653
        %v686 = vpack.c.b16 %v654, %v654
        %v687 = vpack.c.b16 %v655, %v655
        %v688 = vpack.c.b16 %v656, %v656
        %v689 = vpack.c.b16 %v657, %v657
        %v690 = vpack.c.b16 %v658, %v658
        %v691 = vpack.c.b16 %v659, %v659
        %v692 = vpack.c.b16 %v660, %v660
        %v693 = vpack.c.b16 %v661, %v661
        %v694 = vpack.c.b16 %v662, %v662
        %v695 = vpack.c.b16 %v663, %v663
        %v696 = vpack.c.b16 %v664, %v664
        %v697 = vpack.c.b16 %v665, %v665
        %v698 = vpack.c.b16 %v666, %v666
        %v699 = vpack.c.b16 %v667, %v667
        %v700 = vpack.c.b16 %v668, %v668
        %v701 = vpack.c.b16 %v669, %v669
        %v702 = vpack.c.b16 %v670, %v670
        %v703 = vpack.c.b16 %v671, %v671
        %v704 = vpack.c.b16 %v672, %v672
        %v705 = vpack.c.b16 %v673, %v673
        %v706 = vpack.c.b16 %v674, %v674
        %v707 = vpack.c.b16 %v675, %v675
        %v708 = vpack.c.b16 %v676, %v676
        %v709 = vpack.c.b16 %v677, %v677
        %v710 = vpack.c.b16 %v678, %v678
        %vm711 = vsmask.f32 256
        %vm712 = vsmask.f32 4368
        %vm713 = vmor %vm711, %vm712
        %v715 = vshrl.u32 %v679, 16
        %v717 = vrot.slane %v715, 7
        %v718 = vshll.u32 %v679, 16
        %v720 = vor.u32 %v717, %v718
        %v721 = vrot.slane %v717, 4
        %v723 = vshrl.u32 %v680, 16
        %v725 = vrot.slane %v723, 7
        %v726 = vshll.u32 %v680, 16
        %v728 = vor.u32 %v725, %v726
        %v729 = vsel %vm713, %v721, %v728
        %v730 = vrot.slane %v725, 4
        %v732 = vshrl.u32 %v681, 16
        %v734 = vrot.slane %v732, 7
        %v735 = vshll.u32 %v681, 16
        %v737 = vor.u32 %v734, %v735
        %v738 = vrot.slane %v734, 4
        %v740 = vshrl.u32 %v682, 16
        %v742 = vrot.slane %v740, 7
        %v743 = vshll.u32 %v682, 16
        %v745 = vor.u32 %v742, %v743
        %v746 = vsel %vm713, %v738, %v745
        %v747 = vrot.slane %v742, 4
        %v749 = vshrl.u32 %v683, 16
        %v751 = vrot.slane %v749, 7
        %v752 = vshll.u32 %v683, 16
        %v754 = vor.u32 %v751, %v752
        %v755 = vrot.slane %v751, 4
        %v757 = vshrl.u32 %v684, 16
        %v759 = vrot.slane %v757, 7
        %v760 = vshll.u32 %v684, 16
        %v762 = vor.u32 %v759, %v760
        %v763 = vsel %vm713, %v755, %v762
        %v764 = vrot.slane %v759, 4
        %v766 = vshrl.u32 %v685, 16
        %v768 = vrot.slane %v766, 7
        %v769 = vshll.u32 %v685, 16
        %v771 = vor.u32 %v768, %v769
        %v772 = vrot.slane %v768, 4
        %v774 = vshrl.u32 %v686, 16
        %v776 = vrot.slane %v774, 7
        %v777 = vshll.u32 %v686, 16
        %v779 = vor.u32 %v776, %v777
        %v780 = vsel %vm713, %v772, %v779
        %v781 = vrot.slane %v776, 4
        %v783 = vshrl.u32 %v687, 16
        %v785 = vrot.slane %v783, 7
        %v786 = vshll.u32 %v687, 16
        %v788 = vor.u32 %v785, %v786
        %v789 = vrot.slane %v785, 4
        %v791 = vshrl.u32 %v688, 16
        %v793 = vrot.slane %v791, 7
        %v794 = vshll.u32 %v688, 16
        %v796 = vor.u32 %v793, %v794
        %v797 = vsel %vm713, %v789, %v796
        %v798 = vrot.slane %v793, 4
        %v800 = vshrl.u32 %v689, 16
        %v802 = vrot.slane %v800, 7
        %v803 = vshll.u32 %v689, 16
        %v805 = vor.u32 %v802, %v803
        %v806 = vrot.slane %v802, 4
        %v808 = vshrl.u32 %v690, 16
        %v810 = vrot.slane %v808, 7
        %v811 = vshll.u32 %v690, 16
        %v813 = vor.u32 %v810, %v811
        %v814 = vsel %vm713, %v806, %v813
        %v815 = vrot.slane %v810, 4
        %v817 = vshrl.u32 %v691, 16
        %v819 = vrot.slane %v817, 7
        %v820 = vshll.u32 %v691, 16
        %v822 = vor.u32 %v819, %v820
        %v823 = vrot.slane %v819, 4
        %v825 = vshrl.u32 %v692, 16
        %v827 = vrot.slane %v825, 7
        %v828 = vshll.u32 %v692, 16
        %v830 = vor.u32 %v827, %v828
        %v831 = vsel %vm713, %v823, %v830
        %v832 = vrot.slane %v827, 4
        %v834 = vshrl.u32 %v693, 16
        %v836 = vrot.slane %v834, 7
        %v837 = vshll.u32 %v693, 16
        %v839 = vor.u32 %v836, %v837
        %v840 = vrot.slane %v836, 4
        %v842 = vshrl.u32 %v694, 16
        %v844 = vrot.slane %v842, 7
        %v845 = vshll.u32 %v694, 16
        %v847 = vor.u32 %v844, %v845
        %v848 = vsel %vm713, %v840, %v847
        %v849 = vrot.slane %v844, 4
        %v851 = vshrl.u32 %v695, 16
        %v853 = vrot.slane %v851, 7
        %v854 = vshll.u32 %v695, 16
        %v856 = vor.u32 %v853, %v854
        %v857 = vrot.slane %v853, 4
        %v859 = vshrl.u32 %v696, 16
        %v861 = vrot.slane %v859, 7
        %v862 = vshll.u32 %v696, 16
        %v864 = vor.u32 %v861, %v862
        %v865 = vsel %vm713, %v857, %v864
        %v866 = vrot.slane %v861, 4
        %v868 = vshrl.u32 %v697, 16
        %v870 = vrot.slane %v868, 7
        %v871 = vshll.u32 %v697, 16
        %v873 = vor.u32 %v870, %v871
        %v874 = vrot.slane %v870, 4
        %v876 = vshrl.u32 %v698, 16
        %v878 = vrot.slane %v876, 7
        %v879 = vshll.u32 %v698, 16
        %v881 = vor.u32 %v878, %v879
        %v882 = vsel %vm713, %v874, %v881
        %v883 = vrot.slane %v878, 4
        %v885 = vshrl.u32 %v699, 16
        %v887 = vrot.slane %v885, 7
        %v888 = vshll.u32 %v699, 16
        %v890 = vor.u32 %v887, %v888
        %v891 = vrot.slane %v887, 4
        %v893 = vshrl.u32 %v700, 16
        %v895 = vrot.slane %v893, 7
        %v896 = vshll.u32 %v700, 16
        %v898 = vor.u32 %v895, %v896
        %v899 = vsel %vm713, %v891, %v898
        %v900 = vrot.slane %v895, 4
        %v902 = vshrl.u32 %v701, 16
        %v904 = vrot.slane %v902, 7
        %v905 = vshll.u32 %v701, 16
        %v907 = vor.u32 %v904, %v905
        %v908 = vrot.slane %v904, 4
        %v910 = vshrl.u32 %v702, 16
        %v912 = vrot.slane %v910, 7
        %v913 = vshll.u32 %v702, 16
        %v915 = vor.u32 %v912, %v913
        %v916 = vsel %vm713, %v908, %v915
        %v917 = vrot.slane %v912, 4
        %v919 = vshrl.u32 %v703, 16
        %v921 = vrot.slane %v919, 7
        %v922 = vshll.u32 %v703, 16
        %v924 = vor.u32 %v921, %v922
        %v925 = vrot.slane %v921, 4
        %v927 = vshrl.u32 %v704, 16
        %v929 = vrot.slane %v927, 7
        %v930 = vshll.u32 %v704, 16
        %v932 = vor.u32 %v929, %v930
        %v933 = vsel %vm713, %v925, %v932
        %v934 = vrot.slane %v929, 4
        %v936 = vshrl.u32 %v705, 16
        %v938 = vrot.slane %v936, 7
        %v939 = vshll.u32 %v705, 16
        %v941 = vor.u32 %v938, %v939
        %v942 = vrot.slane %v938, 4
        %v944 = vshrl.u32 %v706, 16
        %v946 = vrot.slane %v944, 7
        %v947 = vshll.u32 %v706, 16
        %v949 = vor.u32 %v946, %v947
        %v950 = vsel %vm713, %v942, %v949
        %v951 = vrot.slane %v946, 4
        %v953 = vshrl.u32 %v707, 16
        %v955 = vrot.slane %v953, 7
        %v956 = vshll.u32 %v707, 16
        %v958 = vor.u32 %v955, %v956
        %v959 = vrot.slane %v955, 4
        %v961 = vshrl.u32 %v708, 16
        %v963 = vrot.slane %v961, 7
        %v964 = vshll.u32 %v708, 16
        %v966 = vor.u32 %v963, %v964
        %v967 = vsel %vm713, %v959, %v966
        %v968 = vrot.slane %v963, 4
        %v970 = vshrl.u32 %v709, 16
        %v972 = vrot.slane %v970, 7
        %v973 = vshll.u32 %v709, 16
        %v975 = vor.u32 %v972, %v973
        %v976 = vrot.slane %v972, 4
        %v978 = vshrl.u32 %v710, 16
        %v980 = vrot.slane %v978, 7
        %v981 = vshll.u32 %v710, 16
        %v983 = vor.u32 %v980, %v981
        %v984 = vsel %vm713, %v976, %v983
        %v985 = vrot.slane %v980, 4
        %s1034 = smul.u32 %s630, 3
        %s1035 = smul.addr %s1034, 4
        %s1036 = scalar_lea.vmem [#allocation2], %s1035
        %vm1037 = vcmask 1043456
        %vm1038 = vsmask.f32 7938
        %vm1039 = vmand %vm1037, %vm1038
        %v1040 = vld [vmem:[%s1036] sm:$0xf]
        %v1041 = vsel %vm1039, %v720, %v1040
        %1042 = vst [vmem:[%s1036] sm:$0xf] %v1041
        %1043 = vst [vmem:[%s1036 + $0x4] sm:$0xf] %v729
        %vm1044 = vcmask 1040384
        %vm1045 = vmand %vm1044, %vm711
        %v1046 = vld [vmem:[%s1036 + $0x8] sm:$0x1]
        %v1047 = vsel %vm1045, %v730, %v1046
        %1048 = vst [vmem:[%s1036 + $0x8] sm:$0x1] %v1047
        %v1049 = vld [vmem:[%s1036 + $0xc] sm:$0xf]
        %v1050 = vsel %vm1039, %v737, %v1049
        %1051 = vst [vmem:[%s1036 + $0xc] sm:$0xf] %v1050
        %1052 = vst [vmem:[%s1036 + $0x10] sm:$0xf] %v746
        %v1053 = vld [vmem:[%s1036 + $0x14] sm:$0x1]
        %v1054 = vsel %vm1045, %v747, %v1053
        %1055 = vst [vmem:[%s1036 + $0x14] sm:$0x1] %v1054
        %v1056 = vld [vmem:[%s1036 + $0x18] sm:$0xf]
        %v1057 = vsel %vm1039, %v754, %v1056
        %1058 = vst [vmem:[%s1036 + $0x18] sm:$0xf] %v1057
        %1059 = vst [vmem:[%s1036 + $0x1c] sm:$0xf] %v763
        %v1060 = vld [vmem:[%s1036 + $0x20] sm:$0x1]
        %v1061 = vsel %vm1045, %v764, %v1060
        %1062 = vst [vmem:[%s1036 + $0x20] sm:$0x1] %v1061
        %v1063 = vld [vmem:[%s1036 + $0x24] sm:$0xf]
        %v1064 = vsel %vm1039, %v771, %v1063
        %1065 = vst [vmem:[%s1036 + $0x24] sm:$0xf] %v1064
        %1066 = vst [vmem:[%s1036 + $0x28] sm:$0xf] %v780
        %v1067 = vld [vmem:[%s1036 + $0x2c] sm:$0x1]
        %v1068 = vsel %vm1045, %v781, %v1067
        %1069 = vst [vmem:[%s1036 + $0x2c] sm:$0x1] %v1068
        %v1070 = vld [vmem:[%s1036 + $0x30] sm:$0xf]
        %v1071 = vsel %vm1039, %v788, %v1070
        %1072 = vst [vmem:[%s1036 + $0x30] sm:$0xf] %v1071
        %1073 = vst [vmem:[%s1036 + $0x34] sm:$0xf] %v797
        %v1074 = vld [vmem:[%s1036 + $0x38] sm:$0x1]
        %v1075 = vsel %vm1045, %v798, %v1074
        %1076 = vst [vmem:[%s1036 + $0x38] sm:$0x1] %v1075
        %v1077 = vld [vmem:[%s1036 + $0x3c] sm:$0xf]
        %v1078 = vsel %vm1039, %v805, %v1077
        %1079 = vst [vmem:[%s1036 + $0x3c] sm:$0xf] %v1078
        %1080 = vst [vmem:[%s1036 + $0x40] sm:$0xf] %v814
        %v1081 = vld [vmem:[%s1036 + $0x44] sm:$0x1]
        %v1082 = vsel %vm1045, %v815, %v1081
        %1083 = vst [vmem:[%s1036 + $0x44] sm:$0x1] %v1082
        %v1084 = vld [vmem:[%s1036 + $0x48] sm:$0xf]
        %v1085 = vsel %vm1039, %v822, %v1084
        %1086 = vst [vmem:[%s1036 + $0x48] sm:$0xf] %v1085
        %1087 = vst [vmem:[%s1036 + $0x4c] sm:$0xf] %v831
        %v1088 = vld [vmem:[%s1036 + $0x50] sm:$0x1]
        %v1089 = vsel %vm1045, %v832, %v1088
        %1090 = vst [vmem:[%s1036 + $0x50] sm:$0x1] %v1089
        %v1091 = vld [vmem:[%s1036 + $0x54] sm:$0xf]
        %v1092 = vsel %vm1039, %v839, %v1091
        %1093 = vst [vmem:[%s1036 + $0x54] sm:$0xf] %v1092
        %1094 = vst [vmem:[%s1036 + $0x58] sm:$0xf] %v848
        %v1095 = vld [vmem:[%s1036 + $0x5c] sm:$0x1]
        %v1096 = vsel %vm1045, %v849, %v1095
        %1097 = vst [vmem:[%s1036 + $0x5c] sm:$0x1] %v1096
        %v1098 = vld [vmem:[%s1036 + $0x60] sm:$0xf]
        %v1099 = vsel %vm1039, %v856, %v1098
        %1100 = vst [vmem:[%s1036 + $0x60] sm:$0xf] %v1099
        %1101 = vst [vmem:[%s1036 + $0x64] sm:$0xf] %v865
        %v1102 = vld [vmem:[%s1036 + $0x68] sm:$0x1]
        %v1103 = vsel %vm1045, %v866, %v1102
        %1104 = vst [vmem:[%s1036 + $0x68] sm:$0x1] %v1103
        %v1105 = vld [vmem:[%s1036 + $0x6c] sm:$0xf]
        %v1106 = vsel %vm1039, %v873, %v1105
        %1107 = vst [vmem:[%s1036 + $0x6c] sm:$0xf] %v1106
        %1108 = vst [vmem:[%s1036 + $0x70] sm:$0xf] %v882
        %v1109 = vld [vmem:[%s1036 + $0x74] sm:$0x1]
        %v1110 = vsel %vm1045, %v883, %v1109
        %1111 = vst [vmem:[%s1036 + $0x74] sm:$0x1] %v1110
        %v1112 = vld [vmem:[%s1036 + $0x78] sm:$0xf]
        %v1113 = vsel %vm1039, %v890, %v1112
        %1114 = vst [vmem:[%s1036 + $0x78] sm:$0xf] %v1113
        %1115 = vst [vmem:[%s1036 + $0x7c] sm:$0xf] %v899
        %v1116 = vld [vmem:[%s1036 + $0x80] sm:$0x1]
        %v1117 = vsel %vm1045, %v900, %v1116
        %1118 = vst [vmem:[%s1036 + $0x80] sm:$0x1] %v1117
        %v1119 = vld [vmem:[%s1036 + $0x84] sm:$0xf]
        %v1120 = vsel %vm1039, %v907, %v1119
        %1121 = vst [vmem:[%s1036 + $0x84] sm:$0xf] %v1120
        %1122 = vst [vmem:[%s1036 + $0x88] sm:$0xf] %v916
        %v1123 = vld [vmem:[%s1036 + $0x8c] sm:$0x1]
        %v1124 = vsel %vm1045, %v917, %v1123
        %1125 = vst [vmem:[%s1036 + $0x8c] sm:$0x1] %v1124
        %v1126 = vld [vmem:[%s1036 + $0x90] sm:$0xf]
        %v1127 = vsel %vm1039, %v924, %v1126
        %1128 = vst [vmem:[%s1036 + $0x90] sm:$0xf] %v1127
        %1129 = vst [vmem:[%s1036 + $0x94] sm:$0xf] %v933
        %v1130 = vld [vmem:[%s1036 + $0x98] sm:$0x1]
        %v1131 = vsel %vm1045, %v934, %v1130
        %1132 = vst [vmem:[%s1036 + $0x98] sm:$0x1] %v1131
        %v1133 = vld [vmem:[%s1036 + $0x9c] sm:$0xf]
        %v1134 = vsel %vm1039, %v941, %v1133
        %1135 = vst [vmem:[%s1036 + $0x9c] sm:$0xf] %v1134
        %1136 = vst [vmem:[%s1036 + $0xa0] sm:$0xf] %v950
        %v1137 = vld [vmem:[%s1036 + $0xa4] sm:$0x1]
        %v1138 = vsel %vm1045, %v951, %v1137
        %1139 = vst [vmem:[%s1036 + $0xa4] sm:$0x1] %v1138
        %v1140 = vld [vmem:[%s1036 + $0xa8] sm:$0xf]
        %v1141 = vsel %vm1039, %v958, %v1140
        %1142 = vst [vmem:[%s1036 + $0xa8] sm:$0xf] %v1141
        %1143 = vst [vmem:[%s1036 + $0xac] sm:$0xf] %v967
        %v1144 = vld [vmem:[%s1036 + $0xb0] sm:$0x1]
        %v1145 = vsel %vm1045, %v968, %v1144
        %1146 = vst [vmem:[%s1036 + $0xb0] sm:$0x1] %v1145
        %v1147 = vld [vmem:[%s1036 + $0xb4] sm:$0xf]
        %v1148 = vsel %vm1039, %v975, %v1147
        %1149 = vst [vmem:[%s1036 + $0xb4] sm:$0xf] %v1148
        %1150 = vst [vmem:[%s1036 + $0xb8] sm:$0xf] %v984
        %v1151 = vld [vmem:[%s1036 + $0xbc] sm:$0x1]
        %v1152 = vsel %vm1045, %v985, %v1151
        %1153 = vst [vmem:[%s1036 + $0xbc] sm:$0x1] %v1152
      $region44: #{_double_conv_impl.4} parent=35 // pred_fallthru
        _
      %p1154 = scmp.ge.s32.totalorder %s22, 1
      // Predicated region
      $region45: #{_double_conv_impl.4} parent=35 // pred_check
        %p1155 = pneg %p1154
      $region46: #{_double_conv_impl.4} parent=35 // pred_check_branch
        %1157 = sbr.rel (%p1155) target = $region48
      $region47: #{_double_conv_impl.4} parent=35 // pred_region
        %s1158 = ssub.s32 %s22, 1
        %s1159 = smul.u32 %s1158, 16
        %s1160 = smul.u32 %s1159, 3
        %s1161 = smul.addr %s1160, 4
        %s1162 = scalar_lea.vmem [#allocation2], %s1161
        %v1163 = vld [vmem:[%s1162] sm:$0xf]
        %v1164 = vld [vmem:[%s1162 + $0x4] sm:$0xf]
        %v1165 = vld [vmem:[%s1162 + $0x8] sm:$0x1]
        %v1166 = vld [vmem:[%s1162 + $0xc] sm:$0xf]
        %v1167 = vld [vmem:[%s1162 + $0x10] sm:$0xf]
        %v1168 = vld [vmem:[%s1162 + $0x14] sm:$0x1]
        %v1169 = vld [vmem:[%s1162 + $0x18] sm:$0xf]
        %v1170 = vld [vmem:[%s1162 + $0x1c] sm:$0xf]
        %v1171 = vld [vmem:[%s1162 + $0x20] sm:$0x1]
        %v1172 = vld [vmem:[%s1162 + $0x24] sm:$0xf]
        %v1173 = vld [vmem:[%s1162 + $0x28] sm:$0xf]
        %v1174 = vld [vmem:[%s1162 + $0x2c] sm:$0x1]
        %v1175 = vld [vmem:[%s1162 + $0x30] sm:$0xf]
        %v1176 = vld [vmem:[%s1162 + $0x34] sm:$0xf]
        %v1177 = vld [vmem:[%s1162 + $0x38] sm:$0x1]
        %v1178 = vld [vmem:[%s1162 + $0x3c] sm:$0xf]
        %v1179 = vld [vmem:[%s1162 + $0x40] sm:$0xf]
        %v1180 = vld [vmem:[%s1162 + $0x44] sm:$0x1]
        %v1181 = vld [vmem:[%s1162 + $0x48] sm:$0xf]
        %v1182 = vld [vmem:[%s1162 + $0x4c] sm:$0xf]
        %v1183 = vld [vmem:[%s1162 + $0x50] sm:$0x1]
        %v1184 = vld [vmem:[%s1162 + $0x54] sm:$0xf]
        %v1185 = vld [vmem:[%s1162 + $0x58] sm:$0xf]
        %v1186 = vld [vmem:[%s1162 + $0x5c] sm:$0x1]
        %v1187 = vld [vmem:[%s1162 + $0x60] sm:$0xf]
        %v1188 = vld [vmem:[%s1162 + $0x64] sm:$0xf]
        %v1189 = vld [vmem:[%s1162 + $0x68] sm:$0x1]
        %v1190 = vld [vmem:[%s1162 + $0x6c] sm:$0xf]
        %v1191 = vld [vmem:[%s1162 + $0x70] sm:$0xf]
        %v1192 = vld [vmem:[%s1162 + $0x74] sm:$0x1]
        %v1193 = vld [vmem:[%s1162 + $0x78] sm:$0xf]
        %v1194 = vld [vmem:[%s1162 + $0x7c] sm:$0xf]
        %v1195 = vld [vmem:[%s1162 + $0x80] sm:$0x1]
        %v1196 = vld [vmem:[%s1162 + $0x84] sm:$0xf]
        %v1197 = vld [vmem:[%s1162 + $0x88] sm:$0xf]
        %v1198 = vld [vmem:[%s1162 + $0x8c] sm:$0x1]
        %v1199 = vld [vmem:[%s1162 + $0x90] sm:$0xf]
        %v1200 = vld [vmem:[%s1162 + $0x94] sm:$0xf]
        %v1201 = vld [vmem:[%s1162 + $0x98] sm:$0x1]
        %v1202 = vld [vmem:[%s1162 + $0x9c] sm:$0xf]
        %v1203 = vld [vmem:[%s1162 + $0xa0] sm:$0xf]
        %v1204 = vld [vmem:[%s1162 + $0xa4] sm:$0x1]
        %v1205 = vld [vmem:[%s1162 + $0xa8] sm:$0xf]
        %v1206 = vld [vmem:[%s1162 + $0xac] sm:$0xf]
        %v1207 = vld [vmem:[%s1162 + $0xb0] sm:$0x1]
        %v1208 = vld [vmem:[%s1162 + $0xb4] sm:$0xf]
        %v1209 = vld [vmem:[%s1162 + $0xb8] sm:$0xf]
        %v1210 = vld [vmem:[%s1162 + $0xbc] sm:$0x1]
        %v1243 = vunpack.c.l.b16 %v1163
        %v1244 = vunpack.c.l.b16 %v1164
        %v1245 = vunpack.c.l.b16 %v1166
        %v1246 = vunpack.c.l.b16 %v1167
        %v1247 = vunpack.c.l.b16 %v1169
        %v1248 = vunpack.c.l.b16 %v1170
        %v1249 = vunpack.c.l.b16 %v1172
        %v1250 = vunpack.c.l.b16 %v1173
        %v1251 = vunpack.c.l.b16 %v1175
        %v1252 = vunpack.c.l.b16 %v1176
        %v1253 = vunpack.c.l.b16 %v1178
        %v1254 = vunpack.c.l.b16 %v1179
        %v1255 = vunpack.c.l.b16 %v1181
        %v1256 = vunpack.c.l.b16 %v1182
        %v1257 = vunpack.c.l.b16 %v1184
        %v1258 = vunpack.c.l.b16 %v1185
        %v1259 = vunpack.c.l.b16 %v1187
        %v1260 = vunpack.c.l.b16 %v1188
        %v1261 = vunpack.c.l.b16 %v1190
        %v1262 = vunpack.c.l.b16 %v1191
        %v1263 = vunpack.c.l.b16 %v1193
        %v1264 = vunpack.c.l.b16 %v1194
        %v1265 = vunpack.c.l.b16 %v1196
        %v1266 = vunpack.c.l.b16 %v1197
        %v1267 = vunpack.c.l.b16 %v1199
        %v1268 = vunpack.c.l.b16 %v1200
        %v1269 = vunpack.c.l.b16 %v1202
        %v1270 = vunpack.c.l.b16 %v1203
        %v1271 = vunpack.c.l.b16 %v1205
        %v1272 = vunpack.c.l.b16 %v1206
        %v1273 = vunpack.c.l.b16 %v1208
        %v1274 = vunpack.c.l.b16 %v1209
        %v1275 = vpack.c.b16 %v1244, %v1243
        %v1276 = vpack.c.b16 %v1246, %v1245
        %v1277 = vpack.c.b16 %v1248, %v1247
        %v1278 = vpack.c.b16 %v1250, %v1249
        %v1279 = vpack.c.b16 %v1252, %v1251
        %v1280 = vpack.c.b16 %v1254, %v1253
        %v1281 = vpack.c.b16 %v1256, %v1255
        %v1282 = vpack.c.b16 %v1258, %v1257
        %v1283 = vpack.c.b16 %v1260, %v1259
        %v1284 = vpack.c.b16 %v1262, %v1261
        %v1285 = vpack.c.b16 %v1264, %v1263
        %v1286 = vpack.c.b16 %v1266, %v1265
        %v1287 = vpack.c.b16 %v1268, %v1267
        %v1288 = vpack.c.b16 %v1270, %v1269
        %v1289 = vpack.c.b16 %v1272, %v1271
        %v1290 = vpack.c.b16 %v1274, %v1273
        %v1323 = vunpack.c.l.b16 %v1165
        %v1324 = vunpack.c.l.b16 %v1168
        %v1325 = vunpack.c.l.b16 %v1171
        %v1326 = vunpack.c.l.b16 %v1174
        %v1327 = vunpack.c.l.b16 %v1177
        %v1328 = vunpack.c.l.b16 %v1180
        %v1329 = vunpack.c.l.b16 %v1183
        %v1330 = vunpack.c.l.b16 %v1186
        %v1331 = vunpack.c.l.b16 %v1189
        %v1332 = vunpack.c.l.b16 %v1192
        %v1333 = vunpack.c.l.b16 %v1195
        %v1334 = vunpack.c.l.b16 %v1198
        %v1335 = vunpack.c.l.b16 %v1201
        %v1336 = vunpack.c.l.b16 %v1204
        %v1337 = vunpack.c.l.b16 %v1207
        %v1338 = vunpack.c.l.b16 %v1210
        %v1339 = vpack.c.b16 %v1323, %v1323
        %v1340 = vpack.c.b16 %v1324, %v1324
        %v1341 = vpack.c.b16 %v1325, %v1325
        %v1342 = vpack.c.b16 %v1326, %v1326
        %v1343 = vpack.c.b16 %v1327, %v1327
        %v1344 = vpack.c.b16 %v1328, %v1328
        %v1345 = vpack.c.b16 %v1329, %v1329
        %v1346 = vpack.c.b16 %v1330, %v1330
        %v1347 = vpack.c.b16 %v1331, %v1331
        %v1348 = vpack.c.b16 %v1332, %v1332
        %v1349 = vpack.c.b16 %v1333, %v1333
        %v1350 = vpack.c.b16 %v1334, %v1334
        %v1351 = vpack.c.b16 %v1335, %v1335
        %v1352 = vpack.c.b16 %v1336, %v1336
        %v1353 = vpack.c.b16 %v1337, %v1337
        %v1354 = vpack.c.b16 %v1338, %v1338
        %vm1355 = vsmask.f32 7424
        %v1357 = vshrl.u32 %v1275, 16
        %v1359 = vshll.u32 %v1275, 16
        %v1361 = vrot.slane %v1359, 1
        %v1362 = vor.u32 %v1357, %v1361
        %v1364 = vshll.u32 %v1339, 16
        %v1366 = vrot.slane %v1364, 1
        %v1367 = vsel %vm1355, %v1362, %v1366
        %v1369 = vshrl.u32 %v1276, 16
        %v1371 = vshll.u32 %v1276, 16
        %v1373 = vrot.slane %v1371, 1
        %v1374 = vor.u32 %v1369, %v1373
        %v1376 = vshll.u32 %v1340, 16
        %v1378 = vrot.slane %v1376, 1
        %v1379 = vsel %vm1355, %v1374, %v1378
        %v1381 = vshrl.u32 %v1277, 16
        %v1383 = vshll.u32 %v1277, 16
        %v1385 = vrot.slane %v1383, 1
        %v1386 = vor.u32 %v1381, %v1385
        %v1388 = vshll.u32 %v1341, 16
        %v1390 = vrot.slane %v1388, 1
        %v1391 = vsel %vm1355, %v1386, %v1390
        %v1393 = vshrl.u32 %v1278, 16
        %v1395 = vshll.u32 %v1278, 16
        %v1397 = vrot.slane %v1395, 1
        %v1398 = vor.u32 %v1393, %v1397
        %v1400 = vshll.u32 %v1342, 16
        %v1402 = vrot.slane %v1400, 1
        %v1403 = vsel %vm1355, %v1398, %v1402
        %v1405 = vshrl.u32 %v1279, 16
        %v1407 = vshll.u32 %v1279, 16
        %v1409 = vrot.slane %v1407, 1
        %v1410 = vor.u32 %v1405, %v1409
        %v1412 = vshll.u32 %v1343, 16
        %v1414 = vrot.slane %v1412, 1
        %v1415 = vsel %vm1355, %v1410, %v1414
        %v1417 = vshrl.u32 %v1280, 16
        %v1419 = vshll.u32 %v1280, 16
        %v1421 = vrot.slane %v1419, 1
        %v1422 = vor.u32 %v1417, %v1421
        %v1424 = vshll.u32 %v1344, 16
        %v1426 = vrot.slane %v1424, 1
        %v1427 = vsel %vm1355, %v1422, %v1426
        %v1429 = vshrl.u32 %v1281, 16
        %v1431 = vshll.u32 %v1281, 16
        %v1433 = vrot.slane %v1431, 1
        %v1434 = vor.u32 %v1429, %v1433
        %v1436 = vshll.u32 %v1345, 16
        %v1438 = vrot.slane %v1436, 1
        %v1439 = vsel %vm1355, %v1434, %v1438
        %v1441 = vshrl.u32 %v1282, 16
        %v1443 = vshll.u32 %v1282, 16
        %v1445 = vrot.slane %v1443, 1
        %v1446 = vor.u32 %v1441, %v1445
        %v1448 = vshll.u32 %v1346, 16
        %v1450 = vrot.slane %v1448, 1
        %v1451 = vsel %vm1355, %v1446, %v1450
        %v1453 = vshrl.u32 %v1283, 16
        %v1455 = vshll.u32 %v1283, 16
        %v1457 = vrot.slane %v1455, 1
        %v1458 = vor.u32 %v1453, %v1457
        %v1460 = vshll.u32 %v1347, 16
        %v1462 = vrot.slane %v1460, 1
        %v1463 = vsel %vm1355, %v1458, %v1462
        %v1465 = vshrl.u32 %v1284, 16
        %v1467 = vshll.u32 %v1284, 16
        %v1469 = vrot.slane %v1467, 1
        %v1470 = vor.u32 %v1465, %v1469
        %v1472 = vshll.u32 %v1348, 16
        %v1474 = vrot.slane %v1472, 1
        %v1475 = vsel %vm1355, %v1470, %v1474
        %v1477 = vshrl.u32 %v1285, 16
        %v1479 = vshll.u32 %v1285, 16
        %v1481 = vrot.slane %v1479, 1
        %v1482 = vor.u32 %v1477, %v1481
        %v1484 = vshll.u32 %v1349, 16
        %v1486 = vrot.slane %v1484, 1
        %v1487 = vsel %vm1355, %v1482, %v1486
        %v1489 = vshrl.u32 %v1286, 16
        %v1491 = vshll.u32 %v1286, 16
        %v1493 = vrot.slane %v1491, 1
        %v1494 = vor.u32 %v1489, %v1493
        %v1496 = vshll.u32 %v1350, 16
        %v1498 = vrot.slane %v1496, 1
        %v1499 = vsel %vm1355, %v1494, %v1498
        %v1501 = vshrl.u32 %v1287, 16
        %v1503 = vshll.u32 %v1287, 16
        %v1505 = vrot.slane %v1503, 1
        %v1506 = vor.u32 %v1501, %v1505
        %v1508 = vshll.u32 %v1351, 16
        %v1510 = vrot.slane %v1508, 1
        %v1511 = vsel %vm1355, %v1506, %v1510
        %v1513 = vshrl.u32 %v1288, 16
        %v1515 = vshll.u32 %v1288, 16
        %v1517 = vrot.slane %v1515, 1
        %v1518 = vor.u32 %v1513, %v1517
        %v1520 = vshll.u32 %v1352, 16
        %v1522 = vrot.slane %v1520, 1
        %v1523 = vsel %vm1355, %v1518, %v1522
        %v1525 = vshrl.u32 %v1289, 16
        %v1527 = vshll.u32 %v1289, 16
        %v1529 = vrot.slane %v1527, 1
        %v1530 = vor.u32 %v1525, %v1529
        %v1532 = vshll.u32 %v1353, 16
        %v1534 = vrot.slane %v1532, 1
        %v1535 = vsel %vm1355, %v1530, %v1534
        %v1537 = vshrl.u32 %v1290, 16
        %v1539 = vshll.u32 %v1290, 16
        %v1541 = vrot.slane %v1539, 1
        %v1542 = vor.u32 %v1537, %v1541
        %v1544 = vshll.u32 %v1354, 16
        %v1546 = vrot.slane %v1544, 1
        %v1547 = vsel %vm1355, %v1542, %v1546
        %vm1564 = vcmask 1046528
        %v1565 = vrot.slane %v1275, 1
        %v1566 = vrot.slane %v1339, 1
        %v1567 = vsel %vm1564, %v1565, %v1566
        %v1568 = vrot.slane %v1276, 1
        %v1569 = vrot.slane %v1340, 1
        %v1570 = vsel %vm1564, %v1568, %v1569
        %v1571 = vrot.slane %v1277, 1
        %v1572 = vrot.slane %v1341, 1
        %v1573 = vsel %vm1564, %v1571, %v1572
        %v1574 = vrot.slane %v1278, 1
        %v1575 = vrot.slane %v1342, 1
        %v1576 = vsel %vm1564, %v1574, %v1575
        %v1577 = vrot.slane %v1279, 1
        %v1578 = vrot.slane %v1343, 1
        %v1579 = vsel %vm1564, %v1577, %v1578
        %v1580 = vrot.slane %v1280, 1
        %v1581 = vrot.slane %v1344, 1
        %v1582 = vsel %vm1564, %v1580, %v1581
        %v1583 = vrot.slane %v1281, 1
        %v1584 = vrot.slane %v1345, 1
        %v1585 = vsel %vm1564, %v1583, %v1584
        %v1586 = vrot.slane %v1282, 1
        %v1587 = vrot.slane %v1346, 1
        %v1588 = vsel %vm1564, %v1586, %v1587
        %v1589 = vrot.slane %v1283, 1
        %v1590 = vrot.slane %v1347, 1
        %v1591 = vsel %vm1564, %v1589, %v1590
        %v1592 = vrot.slane %v1284, 1
        %v1593 = vrot.slane %v1348, 1
        %v1594 = vsel %vm1564, %v1592, %v1593
        %v1595 = vrot.slane %v1285, 1
        %v1596 = vrot.slane %v1349, 1
        %v1597 = vsel %vm1564, %v1595, %v1596
        %v1598 = vrot.slane %v1286, 1
        %v1599 = vrot.slane %v1350, 1
        %v1600 = vsel %vm1564, %v1598, %v1599
        %v1601 = vrot.slane %v1287, 1
        %v1602 = vrot.slane %v1351, 1
        %v1603 = vsel %vm1564, %v1601, %v1602
        %v1604 = vrot.slane %v1288, 1
        %v1605 = vrot.slane %v1352, 1
        %v1606 = vsel %vm1564, %v1604, %v1605
        %v1607 = vrot.slane %v1289, 1
        %v1608 = vrot.slane %v1353, 1
        %v1609 = vsel %vm1564, %v1607, %v1608
        %v1610 = vrot.slane %v1290, 1
        %v1611 = vrot.slane %v1354, 1
        %v1612 = vsel %vm1564, %v1610, %v1611
        %v1629 = vld [vmem:[%s1] sm:$0xf]
        %v1630 = vld [vmem:[%s1 + $0x4] sm:$0xf]
        %v1631 = vld [vmem:[%s1 + $0x8] sm:$0xf]
        %v1632 = vld [vmem:[%s1 + $0xc] sm:$0xf]
        %v1633 = vld [vmem:[%s1 + $0x10] sm:$0xf]
        %v1634 = vld [vmem:[%s1 + $0x14] sm:$0xf]
        %v1635 = vld [vmem:[%s1 + $0x18] sm:$0xf]
        %v1636 = vld [vmem:[%s1 + $0x1c] sm:$0xf]
        %v1637 = vld [vmem:[%s1 + $0x20] sm:$0xf]
        %v1638 = vld [vmem:[%s1 + $0x24] sm:$0xf]
        %v1639 = vld [vmem:[%s1 + $0x28] sm:$0xf]
        %v1640 = vld [vmem:[%s1 + $0x2c] sm:$0xf]
        %v1641 = vld [vmem:[%s1 + $0x30] sm:$0xf]
        %v1642 = vld [vmem:[%s1 + $0x34] sm:$0xf]
        %v1643 = vld [vmem:[%s1 + $0x38] sm:$0xf]
        %v1644 = vld [vmem:[%s1 + $0x3c] sm:$0xf]
        %v1645 = vld [vmem:[%s1 + $0x40] sm:$0xf]
        %v1646 = vld [vmem:[%s1 + $0x44] sm:$0xf]
        %v1647 = vld [vmem:[%s1 + $0x48] sm:$0xf]
        %v1648 = vld [vmem:[%s1 + $0x4c] sm:$0xf]
        %v1649 = vld [vmem:[%s1 + $0x50] sm:$0xf]
        %v1650 = vld [vmem:[%s1 + $0x54] sm:$0xf]
        %v1651 = vld [vmem:[%s1 + $0x58] sm:$0xf]
        %v1652 = vld [vmem:[%s1 + $0x5c] sm:$0xf]
        %v1653 = vld [vmem:[%s1 + $0x60] sm:$0xf]
        %v1654 = vld [vmem:[%s1 + $0x64] sm:$0xf]
        %v1655 = vld [vmem:[%s1 + $0x68] sm:$0xf]
        %v1656 = vld [vmem:[%s1 + $0x6c] sm:$0xf]
        %v1657 = vld [vmem:[%s1 + $0x70] sm:$0xf]
        %v1658 = vld [vmem:[%s1 + $0x74] sm:$0xf]
        %v1659 = vld [vmem:[%s1 + $0x78] sm:$0xf]
        %v1660 = vld [vmem:[%s1 + $0x7c] sm:$0xf]
        %v1661 = vld [vmem:[%s1 + $0x80] sm:$0xf]
        %v1662 = vld [vmem:[%s1 + $0x84] sm:$0xf]
        %v1663 = vld [vmem:[%s1 + $0x88] sm:$0xf]
        %v1664 = vld [vmem:[%s1 + $0x8c] sm:$0xf]
        %v1665 = vld [vmem:[%s1 + $0x90] sm:$0xf]
        %v1666 = vld [vmem:[%s1 + $0x94] sm:$0xf]
        %v1667 = vld [vmem:[%s1 + $0x98] sm:$0xf]
        %v1668 = vld [vmem:[%s1 + $0x9c] sm:$0xf]
        %v1669 = vld [vmem:[%s1 + $0xa0] sm:$0xf]
        %v1670 = vld [vmem:[%s1 + $0xa4] sm:$0xf]
        %v1671 = vld [vmem:[%s1 + $0xa8] sm:$0xf]
        %v1672 = vld [vmem:[%s1 + $0xac] sm:$0xf]
        %v1673 = vld [vmem:[%s1 + $0xb0] sm:$0xf]
        %v1674 = vld [vmem:[%s1 + $0xb4] sm:$0xf]
        %v1675 = vld [vmem:[%s1 + $0xb8] sm:$0xf]
        %v1676 = vld [vmem:[%s1 + $0xbc] sm:$0xf]
        %s1677 = sadd.s32 %s1159, 1
        %s1678 = smul.u32 %s1677, 3
        %s1679 = smul.addr %s1678, 4
        %s1680 = scalar_lea.vmem [#allocation2], %s1679
        %v1681 = vld [vmem:[%s1680] sm:$0xf]
        %v1682 = vld [vmem:[%s1680 + $0x4] sm:$0xf]
        %v1683 = vld [vmem:[%s1680 + $0x8] sm:$0x1]
        %v1684 = vld [vmem:[%s1680 + $0xc] sm:$0xf]
        %v1685 = vld [vmem:[%s1680 + $0x10] sm:$0xf]
        %v1686 = vld [vmem:[%s1680 + $0x14] sm:$0x1]
        %v1687 = vld [vmem:[%s1680 + $0x18] sm:$0xf]
        %v1688 = vld [vmem:[%s1680 + $0x1c] sm:$0xf]
        %v1689 = vld [vmem:[%s1680 + $0x20] sm:$0x1]
        %v1690 = vld [vmem:[%s1680 + $0x24] sm:$0xf]
        %v1691 = vld [vmem:[%s1680 + $0x28] sm:$0xf]
        %v1692 = vld [vmem:[%s1680 + $0x2c] sm:$0x1]
        %v1693 = vld [vmem:[%s1680 + $0x30] sm:$0xf]
        %v1694 = vld [vmem:[%s1680 + $0x34] sm:$0xf]
        %v1695 = vld [vmem:[%s1680 + $0x38] sm:$0x1]
        %v1696 = vld [vmem:[%s1680 + $0x3c] sm:$0xf]
        %v1697 = vld [vmem:[%s1680 + $0x40] sm:$0xf]
        %v1698 = vld [vmem:[%s1680 + $0x44] sm:$0x1]
        %v1699 = vld [vmem:[%s1680 + $0x48] sm:$0xf]
        %v1700 = vld [vmem:[%s1680 + $0x4c] sm:$0xf]
        %v1701 = vld [vmem:[%s1680 + $0x50] sm:$0x1]
        %v1702 = vld [vmem:[%s1680 + $0x54] sm:$0xf]
        %v1703 = vld [vmem:[%s1680 + $0x58] sm:$0xf]
        %v1704 = vld [vmem:[%s1680 + $0x5c] sm:$0x1]
        %v1705 = vld [vmem:[%s1680 + $0x60] sm:$0xf]
        %v1706 = vld [vmem:[%s1680 + $0x64] sm:$0xf]
        %v1707 = vld [vmem:[%s1680 + $0x68] sm:$0x1]
        %v1708 = vld [vmem:[%s1680 + $0x6c] sm:$0xf]
        %v1709 = vld [vmem:[%s1680 + $0x70] sm:$0xf]
        %v1710 = vld [vmem:[%s1680 + $0x74] sm:$0x1]
        %v1711 = vld [vmem:[%s1680 + $0x78] sm:$0xf]
        %v1712 = vld [vmem:[%s1680 + $0x7c] sm:$0xf]
        %v1713 = vld [vmem:[%s1680 + $0x80] sm:$0x1]
        %v1714 = vld [vmem:[%s1680 + $0x84] sm:$0xf]
        %v1715 = vld [vmem:[%s1680 + $0x88] sm:$0xf]
        %v1716 = vld [vmem:[%s1680 + $0x8c] sm:$0x1]
        %v1717 = vld [vmem:[%s1680 + $0x90] sm:$0xf]
        %v1718 = vld [vmem:[%s1680 + $0x94] sm:$0xf]
        %v1719 = vld [vmem:[%s1680 + $0x98] sm:$0x1]
        %v1720 = vld [vmem:[%s1680 + $0x9c] sm:$0xf]
        %v1721 = vld [vmem:[%s1680 + $0xa0] sm:$0xf]
        %v1722 = vld [vmem:[%s1680 + $0xa4] sm:$0x1]
        %v1723 = vld [vmem:[%s1680 + $0xa8] sm:$0xf]
        %v1724 = vld [vmem:[%s1680 + $0xac] sm:$0xf]
        %v1725 = vld [vmem:[%s1680 + $0xb0] sm:$0x1]
        %v1726 = vld [vmem:[%s1680 + $0xb4] sm:$0xf]
        %v1727 = vld [vmem:[%s1680 + $0xb8] sm:$0xf]
        %v1728 = vld [vmem:[%s1680 + $0xbc] sm:$0x1]
        %v1761 = vunpack.c.l.b16 %v1681
        %v1762 = vunpack.c.l.b16 %v1682
        %v1763 = vunpack.c.l.b16 %v1684
        %v1764 = vunpack.c.l.b16 %v1685
        %v1765 = vunpack.c.l.b16 %v1687
        %v1766 = vunpack.c.l.b16 %v1688
        %v1767 = vunpack.c.l.b16 %v1690
        %v1768 = vunpack.c.l.b16 %v1691
        %v1769 = vunpack.c.l.b16 %v1693
        %v1770 = vunpack.c.l.b16 %v1694
        %v1771 = vunpack.c.l.b16 %v1696
        %v1772 = vunpack.c.l.b16 %v1697
        %v1773 = vunpack.c.l.b16 %v1699
        %v1774 = vunpack.c.l.b16 %v1700
        %v1775 = vunpack.c.l.b16 %v1702
        %v1776 = vunpack.c.l.b16 %v1703
        %v1777 = vunpack.c.l.b16 %v1705
        %v1778 = vunpack.c.l.b16 %v1706
        %v1779 = vunpack.c.l.b16 %v1708
        %v1780 = vunpack.c.l.b16 %v1709
        %v1781 = vunpack.c.l.b16 %v1711
        %v1782 = vunpack.c.l.b16 %v1712
        %v1783 = vunpack.c.l.b16 %v1714
        %v1784 = vunpack.c.l.b16 %v1715
        %v1785 = vunpack.c.l.b16 %v1717
        %v1786 = vunpack.c.l.b16 %v1718
        %v1787 = vunpack.c.l.b16 %v1720
        %v1788 = vunpack.c.l.b16 %v1721
        %v1789 = vunpack.c.l.b16 %v1723
        %v1790 = vunpack.c.l.b16 %v1724
        %v1791 = vunpack.c.l.b16 %v1726
        %v1792 = vunpack.c.l.b16 %v1727
        %v1793 = vpack.c.b16 %v1762, %v1761
        %v1794 = vpack.c.b16 %v1764, %v1763
        %v1795 = vpack.c.b16 %v1766, %v1765
        %v1796 = vpack.c.b16 %v1768, %v1767
        %v1797 = vpack.c.b16 %v1770, %v1769
        %v1798 = vpack.c.b16 %v1772, %v1771
        %v1799 = vpack.c.b16 %v1774, %v1773
        %v1800 = vpack.c.b16 %v1776, %v1775
        %v1801 = vpack.c.b16 %v1778, %v1777
        %v1802 = vpack.c.b16 %v1780, %v1779
        %v1803 = vpack.c.b16 %v1782, %v1781
        %v1804 = vpack.c.b16 %v1784, %v1783
        %v1805 = vpack.c.b16 %v1786, %v1785
        %v1806 = vpack.c.b16 %v1788, %v1787
        %v1807 = vpack.c.b16 %v1790, %v1789
        %v1808 = vpack.c.b16 %v1792, %v1791
        %v1841 = vunpack.c.l.b16 %v1683
        %v1842 = vunpack.c.l.b16 %v1686
        %v1843 = vunpack.c.l.b16 %v1689
        %v1844 = vunpack.c.l.b16 %v1692
        %v1845 = vunpack.c.l.b16 %v1695
        %v1846 = vunpack.c.l.b16 %v1698
        %v1847 = vunpack.c.l.b16 %v1701
        %v1848 = vunpack.c.l.b16 %v1704
        %v1849 = vunpack.c.l.b16 %v1707
        %v1850 = vunpack.c.l.b16 %v1710
        %v1851 = vunpack.c.l.b16 %v1713
        %v1852 = vunpack.c.l.b16 %v1716
        %v1853 = vunpack.c.l.b16 %v1719
        %v1854 = vunpack.c.l.b16 %v1722
        %v1855 = vunpack.c.l.b16 %v1725
        %v1856 = vunpack.c.l.b16 %v1728
        %v1857 = vpack.c.b16 %v1841, %v1841
        %v1858 = vpack.c.b16 %v1842, %v1842
        %v1859 = vpack.c.b16 %v1843, %v1843
        %v1860 = vpack.c.b16 %v1844, %v1844
        %v1861 = vpack.c.b16 %v1845, %v1845
        %v1862 = vpack.c.b16 %v1846, %v1846
        %v1863 = vpack.c.b16 %v1847, %v1847
        %v1864 = vpack.c.b16 %v1848, %v1848
        %v1865 = vpack.c.b16 %v1849, %v1849
        %v1866 = vpack.c.b16 %v1850, %v1850
        %v1867 = vpack.c.b16 %v1851, %v1851
        %v1868 = vpack.c.b16 %v1852, %v1852
        %v1869 = vpack.c.b16 %v1853, %v1853
        %v1870 = vpack.c.b16 %v1854, %v1854
        %v1871 = vpack.c.b16 %v1855, %v1855
        %v1872 = vpack.c.b16 %v1856, %v1856
        %v1874 = vshrl.u32 %v1793, 16
        %v1876 = vshll.u32 %v1793, 16
        %v1878 = vrot.slane %v1876, 1
        %v1879 = vor.u32 %v1874, %v1878
        %v1881 = vshll.u32 %v1857, 16
        %v1883 = vrot.slane %v1881, 1
        %v1884 = vsel %vm1355, %v1879, %v1883
        %v1886 = vshrl.u32 %v1794, 16
        %v1888 = vshll.u32 %v1794, 16
        %v1890 = vrot.slane %v1888, 1
        %v1891 = vor.u32 %v1886, %v1890
        %v1893 = vshll.u32 %v1858, 16
        %v1895 = vrot.slane %v1893, 1
        %v1896 = vsel %vm1355, %v1891, %v1895
        %v1898 = vshrl.u32 %v1795, 16
        %v1900 = vshll.u32 %v1795, 16
        %v1902 = vrot.slane %v1900, 1
        %v1903 = vor.u32 %v1898, %v1902
        %v1905 = vshll.u32 %v1859, 16
        %v1907 = vrot.slane %v1905, 1
        %v1908 = vsel %vm1355, %v1903, %v1907
        %v1910 = vshrl.u32 %v1796, 16
        %v1912 = vshll.u32 %v1796, 16
        %v1914 = vrot.slane %v1912, 1
        %v1915 = vor.u32 %v1910, %v1914
        %v1917 = vshll.u32 %v1860, 16
        %v1919 = vrot.slane %v1917, 1
        %v1920 = vsel %vm1355, %v1915, %v1919
        %v1922 = vshrl.u32 %v1797, 16
        %v1924 = vshll.u32 %v1797, 16
        %v1926 = vrot.slane %v1924, 1
        %v1927 = vor.u32 %v1922, %v1926
        %v1929 = vshll.u32 %v1861, 16
        %v1931 = vrot.slane %v1929, 1
        %v1932 = vsel %vm1355, %v1927, %v1931
        %v1934 = vshrl.u32 %v1798, 16
        %v1936 = vshll.u32 %v1798, 16
        %v1938 = vrot.slane %v1936, 1
        %v1939 = vor.u32 %v1934, %v1938
        %v1941 = vshll.u32 %v1862, 16
        %v1943 = vrot.slane %v1941, 1
        %v1944 = vsel %vm1355, %v1939, %v1943
        %v1946 = vshrl.u32 %v1799, 16
        %v1948 = vshll.u32 %v1799, 16
        %v1950 = vrot.slane %v1948, 1
        %v1951 = vor.u32 %v1946, %v1950
        %v1953 = vshll.u32 %v1863, 16
        %v1955 = vrot.slane %v1953, 1
        %v1956 = vsel %vm1355, %v1951, %v1955
        %v1958 = vshrl.u32 %v1800, 16
        %v1960 = vshll.u32 %v1800, 16
        %v1962 = vrot.slane %v1960, 1
        %v1963 = vor.u32 %v1958, %v1962
        %v1965 = vshll.u32 %v1864, 16
        %v1967 = vrot.slane %v1965, 1
        %v1968 = vsel %vm1355, %v1963, %v1967
        %v1970 = vshrl.u32 %v1801, 16
        %v1972 = vshll.u32 %v1801, 16
        %v1974 = vrot.slane %v1972, 1
        %v1975 = vor.u32 %v1970, %v1974
        %v1977 = vshll.u32 %v1865, 16
        %v1979 = vrot.slane %v1977, 1
        %v1980 = vsel %vm1355, %v1975, %v1979
        %v1982 = vshrl.u32 %v1802, 16
        %v1984 = vshll.u32 %v1802, 16
        %v1986 = vrot.slane %v1984, 1
        %v1987 = vor.u32 %v1982, %v1986
        %v1989 = vshll.u32 %v1866, 16
        %v1991 = vrot.slane %v1989, 1
        %v1992 = vsel %vm1355, %v1987, %v1991
        %v1994 = vshrl.u32 %v1803, 16
        %v1996 = vshll.u32 %v1803, 16
        %v1998 = vrot.slane %v1996, 1
        %v1999 = vor.u32 %v1994, %v1998
        %v2001 = vshll.u32 %v1867, 16
        %v2003 = vrot.slane %v2001, 1
        %v2004 = vsel %vm1355, %v1999, %v2003
        %v2006 = vshrl.u32 %v1804, 16
        %v2008 = vshll.u32 %v1804, 16
        %v2010 = vrot.slane %v2008, 1
        %v2011 = vor.u32 %v2006, %v2010
        %v2013 = vshll.u32 %v1868, 16
        %v2015 = vrot.slane %v2013, 1
        %v2016 = vsel %vm1355, %v2011, %v2015
        %v2018 = vshrl.u32 %v1805, 16
        %v2020 = vshll.u32 %v1805, 16
        %v2022 = vrot.slane %v2020, 1
        %v2023 = vor.u32 %v2018, %v2022
        %v2025 = vshll.u32 %v1869, 16
        %v2027 = vrot.slane %v2025, 1
        %v2028 = vsel %vm1355, %v2023, %v2027
        %v2030 = vshrl.u32 %v1806, 16
        %v2032 = vshll.u32 %v1806, 16
        %v2034 = vrot.slane %v2032, 1
        %v2035 = vor.u32 %v2030, %v2034
        %v2037 = vshll.u32 %v1870, 16
        %v2039 = vrot.slane %v2037, 1
        %v2040 = vsel %vm1355, %v2035, %v2039
        %v2042 = vshrl.u32 %v1807, 16
        %v2044 = vshll.u32 %v1807, 16
        %v2046 = vrot.slane %v2044, 1
        %v2047 = vor.u32 %v2042, %v2046
        %v2049 = vshll.u32 %v1871, 16
        %v2051 = vrot.slane %v2049, 1
        %v2052 = vsel %vm1355, %v2047, %v2051
        %v2054 = vshrl.u32 %v1808, 16
        %v2056 = vshll.u32 %v1808, 16
        %v2058 = vrot.slane %v2056, 1
        %v2059 = vor.u32 %v2054, %v2058
        %v2061 = vshll.u32 %v1872, 16
        %v2063 = vrot.slane %v2061, 1
        %v2064 = vsel %vm1355, %v2059, %v2063
        %v2081 = vrot.slane %v1793, 1
        %v2082 = vrot.slane %v1857, 1
        %v2083 = vsel %vm1564, %v2081, %v2082
        %v2084 = vrot.slane %v1794, 1
        %v2085 = vrot.slane %v1858, 1
        %v2086 = vsel %vm1564, %v2084, %v2085
        %v2087 = vrot.slane %v1795, 1
        %v2088 = vrot.slane %v1859, 1
        %v2089 = vsel %vm1564, %v2087, %v2088
        %v2090 = vrot.slane %v1796, 1
        %v2091 = vrot.slane %v1860, 1
        %v2092 = vsel %vm1564, %v2090, %v2091
        %v2093 = vrot.slane %v1797, 1
        %v2094 = vrot.slane %v1861, 1
        %v2095 = vsel %vm1564, %v2093, %v2094
        %v2096 = vrot.slane %v1798, 1
        %v2097 = vrot.slane %v1862, 1
        %v2098 = vsel %vm1564, %v2096, %v2097
        %v2099 = vrot.slane %v1799, 1
        %v2100 = vrot.slane %v1863, 1
        %v2101 = vsel %vm1564, %v2099, %v2100
        %v2102 = vrot.slane %v1800, 1
        %v2103 = vrot.slane %v1864, 1
        %v2104 = vsel %vm1564, %v2102, %v2103
        %v2105 = vrot.slane %v1801, 1
        %v2106 = vrot.slane %v1865, 1
        %v2107 = vsel %vm1564, %v2105, %v2106
        %v2108 = vrot.slane %v1802, 1
        %v2109 = vrot.slane %v1866, 1
        %v2110 = vsel %vm1564, %v2108, %v2109
        %v2111 = vrot.slane %v1803, 1
        %v2112 = vrot.slane %v1867, 1
        %v2113 = vsel %vm1564, %v2111, %v2112
        %v2114 = vrot.slane %v1804, 1
        %v2115 = vrot.slane %v1868, 1
        %v2116 = vsel %vm1564, %v2114, %v2115
        %v2117 = vrot.slane %v1805, 1
        %v2118 = vrot.slane %v1869, 1
        %v2119 = vsel %vm1564, %v2117, %v2118
        %v2120 = vrot.slane %v1806, 1
        %v2121 = vrot.slane %v1870, 1
        %v2122 = vsel %vm1564, %v2120, %v2121
        %v2123 = vrot.slane %v1807, 1
        %v2124 = vrot.slane %v1871, 1
        %v2125 = vsel %vm1564, %v2123, %v2124
        %v2126 = vrot.slane %v1808, 1
        %v2127 = vrot.slane %v1872, 1
        %v2128 = vsel %vm1564, %v2126, %v2127
        %s2145 = scalar_lea.vmem %s1, 192
        %v2146 = vld [vmem:[%s2145] sm:$0xf]
        %v2147 = vld [vmem:[%s2145 + $0x4] sm:$0xf]
        %v2148 = vld [vmem:[%s2145 + $0x8] sm:$0xf]
        %v2149 = vld [vmem:[%s2145 + $0xc] sm:$0xf]
        %v2150 = vld [vmem:[%s2145 + $0x10] sm:$0xf]
        %v2151 = vld [vmem:[%s2145 + $0x14] sm:$0xf]
        %v2152 = vld [vmem:[%s2145 + $0x18] sm:$0xf]
        %v2153 = vld [vmem:[%s2145 + $0x1c] sm:$0xf]
        %v2154 = vld [vmem:[%s2145 + $0x20] sm:$0xf]
        %v2155 = vld [vmem:[%s2145 + $0x24] sm:$0xf]
        %v2156 = vld [vmem:[%s2145 + $0x28] sm:$0xf]
        %v2157 = vld [vmem:[%s2145 + $0x2c] sm:$0xf]
        %v2158 = vld [vmem:[%s2145 + $0x30] sm:$0xf]
        %v2159 = vld [vmem:[%s2145 + $0x34] sm:$0xf]
        %v2160 = vld [vmem:[%s2145 + $0x38] sm:$0xf]
        %v2161 = vld [vmem:[%s2145 + $0x3c] sm:$0xf]
        %v2162 = vld [vmem:[%s2145 + $0x40] sm:$0xf]
        %v2163 = vld [vmem:[%s2145 + $0x44] sm:$0xf]
        %v2164 = vld [vmem:[%s2145 + $0x48] sm:$0xf]
        %v2165 = vld [vmem:[%s2145 + $0x4c] sm:$0xf]
        %v2166 = vld [vmem:[%s2145 + $0x50] sm:$0xf]
        %v2167 = vld [vmem:[%s2145 + $0x54] sm:$0xf]
        %v2168 = vld [vmem:[%s2145 + $0x58] sm:$0xf]
        %v2169 = vld [vmem:[%s2145 + $0x5c] sm:$0xf]
        %v2170 = vld [vmem:[%s2145 + $0x60] sm:$0xf]
        %v2171 = vld [vmem:[%s2145 + $0x64] sm:$0xf]
        %v2172 = vld [vmem:[%s2145 + $0x68] sm:$0xf]
        %v2173 = vld [vmem:[%s2145 + $0x6c] sm:$0xf]
        %v2174 = vld [vmem:[%s2145 + $0x70] sm:$0xf]
        %v2175 = vld [vmem:[%s2145 + $0x74] sm:$0xf]
        %v2176 = vld [vmem:[%s2145 + $0x78] sm:$0xf]
        %v2177 = vld [vmem:[%s2145 + $0x7c] sm:$0xf]
        %v2178 = vld [vmem:[%s2145 + $0x80] sm:$0xf]
        %v2179 = vld [vmem:[%s2145 + $0x84] sm:$0xf]
        %v2180 = vld [vmem:[%s2145 + $0x88] sm:$0xf]
        %v2181 = vld [vmem:[%s2145 + $0x8c] sm:$0xf]
        %v2182 = vld [vmem:[%s2145 + $0x90] sm:$0xf]
        %v2183 = vld [vmem:[%s2145 + $0x94] sm:$0xf]
        %v2184 = vld [vmem:[%s2145 + $0x98] sm:$0xf]
        %v2185 = vld [vmem:[%s2145 + $0x9c] sm:$0xf]
        %v2186 = vld [vmem:[%s2145 + $0xa0] sm:$0xf]
        %v2187 = vld [vmem:[%s2145 + $0xa4] sm:$0xf]
        %v2188 = vld [vmem:[%s2145 + $0xa8] sm:$0xf]
        %v2189 = vld [vmem:[%s2145 + $0xac] sm:$0xf]
        %v2190 = vld [vmem:[%s2145 + $0xb0] sm:$0xf]
        %v2191 = vld [vmem:[%s2145 + $0xb4] sm:$0xf]
        %v2192 = vld [vmem:[%s2145 + $0xb8] sm:$0xf]
        %v2193 = vld [vmem:[%s2145 + $0xbc] sm:$0xf]
        %v2242 = vunpack.c.l.b16 %v2146
        %v2243 = vunpack.c.l.b16 %v2147
        %v2244 = vunpack.c.l.b16 %v2148
        %v2245 = vunpack.c.l.b16 %v2149
        %v2246 = vunpack.c.l.b16 %v2150
        %v2247 = vunpack.c.l.b16 %v2151
        %v2248 = vunpack.c.l.b16 %v2152
        %v2249 = vunpack.c.l.b16 %v2153
        %v2250 = vunpack.c.l.b16 %v2154
        %v2251 = vunpack.c.l.b16 %v2155
        %v2252 = vunpack.c.l.b16 %v2156
        %v2253 = vunpack.c.l.b16 %v2157
        %v2254 = vunpack.c.l.b16 %v2158
        %v2255 = vunpack.c.l.b16 %v2159
        %v2256 = vunpack.c.l.b16 %v2160
        %v2257 = vunpack.c.l.b16 %v2161
        %v2258 = vunpack.c.l.b16 %v2162
        %v2259 = vunpack.c.l.b16 %v2163
        %v2260 = vunpack.c.l.b16 %v2164
        %v2261 = vunpack.c.l.b16 %v2165
        %v2262 = vunpack.c.l.b16 %v2166
        %v2263 = vunpack.c.l.b16 %v2167
        %v2264 = vunpack.c.l.b16 %v2168
        %v2265 = vunpack.c.l.b16 %v2169
        %v2266 = vunpack.c.l.b16 %v2170
        %v2267 = vunpack.c.l.b16 %v2171
        %v2268 = vunpack.c.l.b16 %v2172
        %v2269 = vunpack.c.l.b16 %v2173
        %v2270 = vunpack.c.l.b16 %v2174
        %v2271 = vunpack.c.l.b16 %v2175
        %v2272 = vunpack.c.l.b16 %v2176
        %v2273 = vunpack.c.l.b16 %v2177
        %v2274 = vunpack.c.l.b16 %v2178
        %v2275 = vunpack.c.l.b16 %v2179
        %v2276 = vunpack.c.l.b16 %v2180
        %v2277 = vunpack.c.l.b16 %v2181
        %v2278 = vunpack.c.l.b16 %v2182
        %v2279 = vunpack.c.l.b16 %v2183
        %v2280 = vunpack.c.l.b16 %v2184
        %v2281 = vunpack.c.l.b16 %v2185
        %v2282 = vunpack.c.l.b16 %v2186
        %v2283 = vunpack.c.l.b16 %v2187
        %v2284 = vunpack.c.l.b16 %v2188
        %v2285 = vunpack.c.l.b16 %v2189
        %v2286 = vunpack.c.l.b16 %v2190
        %v2287 = vunpack.c.l.b16 %v2191
        %v2288 = vunpack.c.l.b16 %v2192
        %v2289 = vunpack.c.l.b16 %v2193
        %v2290 = vpack.c.b16 %v2243, %v2242
        %v2291 = vpack.c.b16 %v2245, %v2244
        %v2292 = vpack.c.b16 %v2247, %v2246
        %v2293 = vpack.c.b16 %v2249, %v2248
        %v2294 = vpack.c.b16 %v2251, %v2250
        %v2295 = vpack.c.b16 %v2253, %v2252
        %v2296 = vpack.c.b16 %v2255, %v2254
        %v2297 = vpack.c.b16 %v2257, %v2256
        %v2298 = vpack.c.b16 %v2259, %v2258
        %v2299 = vpack.c.b16 %v2261, %v2260
        %v2300 = vpack.c.b16 %v2263, %v2262
        %v2301 = vpack.c.b16 %v2265, %v2264
        %v2302 = vpack.c.b16 %v2267, %v2266
        %v2303 = vpack.c.b16 %v2269, %v2268
        %v2304 = vpack.c.b16 %v2271, %v2270
        %v2305 = vpack.c.b16 %v2273, %v2272
        %v2306 = vpack.c.b16 %v2275, %v2274
        %v2307 = vpack.c.b16 %v2277, %v2276
        %v2308 = vpack.c.b16 %v2279, %v2278
        %v2309 = vpack.c.b16 %v2281, %v2280
        %v2310 = vpack.c.b16 %v2283, %v2282
        %v2311 = vpack.c.b16 %v2285, %v2284
        %v2312 = vpack.c.b16 %v2287, %v2286
        %v2313 = vpack.c.b16 %v2289, %v2288
        %2338 = vmatprep.subr.bf16.mxu0 0
        %2339 = vmatpush1.bf16.msra.mxu0 %v2290
        %2340 = vmatprep.subr.bf16.mxu0 0
        %2341 = vmatpush1.bf16.msra.mxu0 %v2291
        %2342 = vmatprep.subr.bf16.mxu0 0
        %2343 = vmatpush1.bf16.msra.mxu0 %v2292
        %2344 = vmatprep.subr.bf16.mxu0 0
        %2345 = vmatpush1.bf16.msra.mxu0 %v2293
        %2346 = vmatprep.subr.bf16.mxu0 0
        %2347 = vmatpush1.bf16.msra.mxu0 %v2294
        %2348 = vmatprep.subr.bf16.mxu0 0
        %2349 = vmatpush1.bf16.msra.mxu0 %v2295
        %2350 = vmatprep.subr.bf16.mxu0 0
        %2351 = vmatpush1.bf16.msra.mxu0 %v2296
        %2352 = vmatprep.subr.bf16.mxu0 0
        %2353 = vmatpush1.bf16.msra.mxu0 %v2297
        %2354 = vmatprep.subr.bf16.mxu0 0
        %2355 = vmatpush1.bf16.msra.mxu0 %v2298
        %2356 = vmatprep.subr.bf16.mxu0 0
        %2357 = vmatpush1.bf16.msra.mxu0 %v2299
        %2358 = vmatprep.subr.bf16.mxu0 0
        %2359 = vmatpush1.bf16.msra.mxu0 %v2300
        %2360 = vmatprep.subr.bf16.mxu0 0
        %2361 = vmatpush1.bf16.msra.mxu0 %v2301
        %2362 = vmatprep.subr.bf16.mxu0 0
        %2363 = vmatpush1.bf16.msra.mxu0 %v2302
        %2364 = vmatprep.subr.bf16.mxu0 0
        %2365 = vmatpush1.bf16.msra.mxu0 %v2303
        %2366 = vmatprep.subr.bf16.mxu0 0
        %2367 = vmatpush1.bf16.msra.mxu0 %v2304
        %2368 = vmatprep.subr.bf16.mxu0 0
        %2369 = vmatpush1.bf16.msra.mxu0 %v2305
        %2370 = vmatprep.mubr.bf16.mxu0 %v1884
        %2371 = vmatmul.mubr.bf16.gmra.mrb[0].mxu0 %v1793
        %v2372 = vpop.f32.mrb[0].mxu0
        %v2373 = vadd.f32 0.0, %v2372
        %v2374 = vpop.f32.mrb[0].mxu0
        %v2375 = vpop.f32.mrb[0].mxu0
        %v2376 = vadd.f32 0.0, %v2375
        %v2377 = vpop.f32.mrb[0].mxu0
        %2378 = vmatprep.mubr.bf16.mxu0 %v1896
        %2379 = vmatmul.mubr.bf16.gmra.mrb[0].mxu0 %v1794
        %v2380 = vpop.f32.mrb[0].mxu0
        %v2381 = vadd.f32 0.0, %v2380
        %v2382 = vpop.f32.mrb[0].mxu0
        %v2383 = vpop.f32.mrb[0].mxu0
        %v2384 = vadd.f32 0.0, %v2383
        %v2385 = vpop.f32.mrb[0].mxu0
        %2386 = vmatprep.mubr.bf16.mxu0 %v1908
        %2387 = vmatmul.mubr.bf16.gmra.mrb[0].mxu0 %v1795
        %v2388 = vpop.f32.mrb[0].mxu0
        %v2389 = vadd.f32 0.0, %v2388
        %v2390 = vpop.f32.mrb[0].mxu0
        %v2391 = vpop.f32.mrb[0].mxu0
        %v2392 = vadd.f32 0.0, %v2391
        %v2393 = vpop.f32.mrb[0].mxu0
        %2394 = vmatprep.mubr.bf16.mxu0 %v1920
        %2395 = vmatmul.mubr.bf16.gmra.mrb[0].mxu0 %v1796
        %v2396 = vpop.f32.mrb[0].mxu0
        %v2397 = vadd.f32 0.0, %v2396
        %v2398 = vpop.f32.mrb[0].mxu0
        %v2399 = vpop.f32.mrb[0].mxu0
        %v2400 = vadd.f32 0.0, %v2399
        %v2401 = vpop.f32.mrb[0].mxu0
        %2402 = vmatprep.mubr.bf16.mxu0 %v1932
        %2403 = vmatmul.mubr.bf16.gmra.mrb[0].mxu0 %v1797
        %v2404 = vpop.f32.mrb[0].mxu0
        %v2405 = vadd.f32 0.0, %v2404
        %v2406 = vpop.f32.mrb[0].mxu0
        %v2407 = vpop.f32.mrb[0].mxu0
        %v2408 = vadd.f32 0.0, %v2407
        %v2409 = vpop.f32.mrb[0].mxu0
        %2410 = vmatprep.mubr.bf16.mxu0 %v1944
        %2411 = vmatmul.mubr.bf16.gmra.mrb[0].mxu0 %v1798
        %v2412 = vpop.f32.mrb[0].mxu0
        %v2413 = vadd.f32 0.0, %v2412
        %v2414 = vpop.f32.mrb[0].mxu0
        %v2415 = vpop.f32.mrb[0].mxu0
        %v2416 = vadd.f32 0.0, %v2415
        %v2417 = vpop.f32.mrb[0].mxu0
        %2418 = vmatprep.mubr.bf16.mxu0 %v1956
        %2419 = vmatmul.mubr.bf16.gmra.mrb[0].mxu0 %v1799
        %v2420 = vpop.f32.mrb[0].mxu0
        %v2421 = vadd.f32 0.0, %v2420
        %v2422 = vpop.f32.mrb[0].mxu0
        %v2423 = vpop.f32.mrb[0].mxu0
        %v2424 = vadd.f32 0.0, %v2423
        %v2425 = vpop.f32.mrb[0].mxu0
        %2426 = vmatprep.mubr.bf16.mxu0 %v1968
        %2427 = vmatmul.mubr.bf16.gmra.mrb[0].mxu0 %v1800
        %v2428 = vpop.f32.mrb[0].mxu0
        %v2429 = vadd.f32 0.0, %v2428
        %v2430 = vpop.f32.mrb[0].mxu0
        %v2431 = vpop.f32.mrb[0].mxu0
        %v2432 = vadd.f32 0.0, %v2431
        %v2433 = vpop.f32.mrb[0].mxu0
        %2434 = vmatprep.mubr.bf16.mxu0 %v1980
        %2435 = vmatmul.mubr.bf16.gmra.mrb[0].mxu0 %v1801
        %v2436 = vpop.f32.mrb[0].mxu0
        %v2437 = vadd.f32 0.0, %v2436
        %v2438 = vpop.f32.mrb[0].mxu0
        %v2439 = vpop.f32.mrb[0].mxu0
        %v2440 = vadd.f32 0.0, %v2439
        %v2441 = vpop.f32.mrb[0].mxu0
        %2442 = vmatprep.mubr.bf16.mxu0 %v1992
        %2443 = vmatmul.mubr.bf16.gmra.mrb[0].mxu0 %v1802
        %v2444 = vpop.f32.mrb[0].mxu0
        %v2445 = vadd.f32 0.0, %v2444
        %v2446 = vpop.f32.mrb[0].mxu0
        %v2447 = vpop.f32.mrb[0].mxu0
        %v2448 = vadd.f32 0.0, %v2447
        %v2449 = vpop.f32.mrb[0].mxu0
        %2450 = vmatprep.mubr.bf16.mxu0 %v2004
        %2451 = vmatmul.mubr.bf16.gmra.mrb[0].mxu0 %v1803
        %v2452 = vpop.f32.mrb[0].mxu0
        %v2453 = vadd.f32 0.0, %v2452
        %v2454 = vpop.f32.mrb[0].mxu0
        %v2455 = vpop.f32.mrb[0].mxu0
        %v2456 = vadd.f32 0.0, %v2455
        %v2457 = vpop.f32.mrb[0].mxu0
        %2458 = vmatprep.mubr.bf16.mxu0 %v2016
        %2459 = vmatmul.mubr.bf16.gmra.mrb[0].mxu0 %v1804
        %v2460 = vpop.f32.mrb[0].mxu0
        %v2461 = vadd.f32 0.0, %v2460
        %v2462 = vpop.f32.mrb[0].mxu0
        %v2463 = vpop.f32.mrb[0].mxu0
        %v2464 = vadd.f32 0.0, %v2463
        %v2465 = vpop.f32.mrb[0].mxu0
        %2466 = vmatprep.mubr.bf16.mxu0 %v2028
        %2467 = vmatmul.mubr.bf16.gmra.mrb[0].mxu0 %v1805
        %v2468 = vpop.f32.mrb[0].mxu0
        %v2469 = vadd.f32 0.0, %v2468
        %v2470 = vpop.f32.mrb[0].mxu0
        %v2471 = vpop.f32.mrb[0].mxu0
        %v2472 = vadd.f32 0.0, %v2471
        %v2473 = vpop.f32.mrb[0].mxu0
        %2474 = vmatprep.mubr.bf16.mxu0 %v2040
        %2475 = vmatmul.mubr.bf16.gmra.mrb[0].mxu0 %v1806
        %v2476 = vpop.f32.mrb[0].mxu0
        %v2477 = vadd.f32 0.0, %v2476
        %v2478 = vpop.f32.mrb[0].mxu0
        %v2479 = vpop.f32.mrb[0].mxu0
        %v2480 = vadd.f32 0.0, %v2479
        %v2481 = vpop.f32.mrb[0].mxu0
        %2482 = vmatprep.mubr.bf16.mxu0 %v2052
        %2483 = vmatmul.mubr.bf16.gmra.mrb[0].mxu0 %v1807
        %v2484 = vpop.f32.mrb[0].mxu0
        %v2485 = vadd.f32 0.0, %v2484
        %v2486 = vpop.f32.mrb[0].mxu0
        %v2487 = vpop.f32.mrb[0].mxu0
        %v2488 = vadd.f32 0.0, %v2487
        %v2489 = vpop.f32.mrb[0].mxu0
        %2490 = vmatprep.mubr.bf16.mxu0 %v2064
        %2491 = vmatmul.mubr.bf16.gmra.mrb[0].mxu0 %v1808
        %v2492 = vpop.f32.mrb[0].mxu0
        %v2493 = vadd.f32 0.0, %v2492
        %v2494 = vpop.f32.mrb[0].mxu0
        %v2495 = vpop.f32.mrb[0].mxu0
        %v2496 = vadd.f32 0.0, %v2495
        %v2497 = vpop.f32.mrb[0].mxu0
        %2498 = vdwg.mxu0
        %2499 = vmatprep.subr.bf16.mxu0 0
        %2500 = vmatpush1.bf16.msra.mxu0 %v2306
        %2501 = vmatprep.subr.bf16.mxu0 0
        %2502 = vmatpush1.bf16.msra.mxu0 %v2307
        %2503 = vmatprep.subr.bf16.mxu0 0
        %2504 = vmatpush1.bf16.msra.mxu0 %v2308
        %2505 = vmatprep.subr.bf16.mxu0 0
        %2506 = vmatpush1.bf16.msra.mxu0 %v2309
        %2507 = vmatprep.subr.bf16.mxu0 0
        %2508 = vmatpush1.bf16.msra.mxu0 %v2310
        %2509 = vmatprep.subr.bf16.mxu0 0
        %2510 = vmatpush1.bf16.msra.mxu0 %v2311
        %2511 = vmatprep.subr.bf16.mxu0 0
        %2512 = vmatpush1.bf16.msra.mxu0 %v2312
        %2513 = vmatprep.subr.bf16.mxu0 0
        %2514 = vmatpush1.bf16.msra.mxu0 %v2313
        %2515 = vmatprep.subr.bf16.mxu0 0
        %2516 = vmatpush1.bf16.msra.mxu0 0
        %2517 = vmatprep.subr.bf16.mxu0 0
        %2518 = vmatpush1.bf16.msra.mxu0 0
        %2519 = vmatprep.subr.bf16.mxu0 0
        %2520 = vmatpush1.bf16.msra.mxu0 0
        %2521 = vmatprep.subr.bf16.mxu0 0
        %2522 = vmatpush1.bf16.msra.mxu0 0
        %2523 = vmatprep.subr.bf16.mxu0 0
        %2524 = vmatpush1.bf16.msra.mxu0 0
        %2525 = vmatprep.subr.bf16.mxu0 0
        %2526 = vmatpush1.bf16.msra.mxu0 0
        %2527 = vmatprep.subr.bf16.mxu0 0
        %2528 = vmatpush1.bf16.msra.mxu0 0
        %2529 = vmatprep.subr.bf16.mxu0 0
        %2530 = vmatpush1.bf16.msra.mxu0 0
        %2531 = vmatprep.mubr.bf16.mxu0 0
        %2532 = vmatmul.mubr.bf16.gmra.mrb[0].mxu0 %v2083
        %v2533 = vpop.f32.mrb[0].mxu0
        %v2534 = vadd.f32 %v2373, %v2533
        %v2535 = vpop.f32.mrb[0].mxu0
        %v2536 = vpop.f32.mrb[0].mxu0
        %v2537 = vadd.f32 %v2376, %v2536
        %v2538 = vpop.f32.mrb[0].mxu0
        %2539 = vmatprep.mubr.bf16.mxu0 0
        %2540 = vmatmul.mubr.bf16.gmra.mrb[0].mxu0 %v2086
        %v2541 = vpop.f32.mrb[0].mxu0
        %v2542 = vadd.f32 %v2381, %v2541
        %v2543 = vpop.f32.mrb[0].mxu0
        %v2544 = vpop.f32.mrb[0].mxu0
        %v2545 = vadd.f32 %v2384, %v2544
        %v2546 = vpop.f32.mrb[0].mxu0
        %2547 = vmatprep.mubr.bf16.mxu0 0
        %2548 = vmatmul.mubr.bf16.gmra.mrb[0].mxu0 %v2089
        %v2549 = vpop.f32.mrb[0].mxu0
        %v2550 = vadd.f32 %v2389, %v2549
        %v2551 = vpop.f32.mrb[0].mxu0
        %v2552 = vpop.f32.mrb[0].mxu0
        %v2553 = vadd.f32 %v2392, %v2552
        %v2554 = vpop.f32.mrb[0].mxu0
        %2555 = vmatprep.mubr.bf16.mxu0 0
        %2556 = vmatmul.mubr.bf16.gmra.mrb[0].mxu0 %v2092
        %v2557 = vpop.f32.mrb[0].mxu0
        %v2558 = vadd.f32 %v2397, %v2557
        %v2559 = vpop.f32.mrb[0].mxu0
        %v2560 = vpop.f32.mrb[0].mxu0
        %v2561 = vadd.f32 %v2400, %v2560
        %v2562 = vpop.f32.mrb[0].mxu0
        %2563 = vmatprep.mubr.bf16.mxu0 0
        %2564 = vmatmul.mubr.bf16.gmra.mrb[0].mxu0 %v2095
        %v2565 = vpop.f32.mrb[0].mxu0
        %v2566 = vadd.f32 %v2405, %v2565
        %v2567 = vpop.f32.mrb[0].mxu0
        %v2568 = vpop.f32.mrb[0].mxu0
        %v2569 = vadd.f32 %v2408, %v2568
        %v2570 = vpop.f32.mrb[0].mxu0
        %2571 = vmatprep.mubr.bf16.mxu0 0
        %2572 = vmatmul.mubr.bf16.gmra.mrb[0].mxu0 %v2098
        %v2573 = vpop.f32.mrb[0].mxu0
        %v2574 = vadd.f32 %v2413, %v2573
        %v2575 = vpop.f32.mrb[0].mxu0
        %v2576 = vpop.f32.mrb[0].mxu0
        %v2577 = vadd.f32 %v2416, %v2576
        %v2578 = vpop.f32.mrb[0].mxu0
        %2579 = vmatprep.mubr.bf16.mxu0 0
        %2580 = vmatmul.mubr.bf16.gmra.mrb[0].mxu0 %v2101
        %v2581 = vpop.f32.mrb[0].mxu0
        %v2582 = vadd.f32 %v2421, %v2581
        %v2583 = vpop.f32.mrb[0].mxu0
        %v2584 = vpop.f32.mrb[0].mxu0
        %v2585 = vadd.f32 %v2424, %v2584
        %v2586 = vpop.f32.mrb[0].mxu0
        %2587 = vmatprep.mubr.bf16.mxu0 0
        %2588 = vmatmul.mubr.bf16.gmra.mrb[0].mxu0 %v2104
        %v2589 = vpop.f32.mrb[0].mxu0
        %v2590 = vadd.f32 %v2429, %v2589
        %v2591 = vpop.f32.mrb[0].mxu0
        %v2592 = vpop.f32.mrb[0].mxu0
        %v2593 = vadd.f32 %v2432, %v2592
        %v2594 = vpop.f32.mrb[0].mxu0
        %2595 = vmatprep.mubr.bf16.mxu0 0
        %2596 = vmatmul.mubr.bf16.gmra.mrb[0].mxu0 %v2107
        %v2597 = vpop.f32.mrb[0].mxu0
        %v2598 = vadd.f32 %v2437, %v2597
        %v2599 = vpop.f32.mrb[0].mxu0
        %v2600 = vpop.f32.mrb[0].mxu0
        %v2601 = vadd.f32 %v2440, %v2600
        %v2602 = vpop.f32.mrb[0].mxu0
        %2603 = vmatprep.mubr.bf16.mxu0 0
        %2604 = vmatmul.mubr.bf16.gmra.mrb[0].mxu0 %v2110
        %v2605 = vpop.f32.mrb[0].mxu0
        %v2606 = vadd.f32 %v2445, %v2605
        %v2607 = vpop.f32.mrb[0].mxu0
        %v2608 = vpop.f32.mrb[0].mxu0
        %v2609 = vadd.f32 %v2448, %v2608
        %v2610 = vpop.f32.mrb[0].mxu0
        %2611 = vmatprep.mubr.bf16.mxu0 0
        %2612 = vmatmul.mubr.bf16.gmra.mrb[0].mxu0 %v2113
        %v2613 = vpop.f32.mrb[0].mxu0
        %v2614 = vadd.f32 %v2453, %v2613
        %v2615 = vpop.f32.mrb[0].mxu0
        %v2616 = vpop.f32.mrb[0].mxu0
        %v2617 = vadd.f32 %v2456, %v2616
        %v2618 = vpop.f32.mrb[0].mxu0
        %2619 = vmatprep.mubr.bf16.mxu0 0
        %2620 = vmatmul.mubr.bf16.gmra.mrb[0].mxu0 %v2116
        %v2621 = vpop.f32.mrb[0].mxu0
        %v2622 = vadd.f32 %v2461, %v2621
        %v2623 = vpop.f32.mrb[0].mxu0
        %v2624 = vpop.f32.mrb[0].mxu0
        %v2625 = vadd.f32 %v2464, %v2624
        %v2626 = vpop.f32.mrb[0].mxu0
        %2627 = vmatprep.mubr.bf16.mxu0 0
        %2628 = vmatmul.mubr.bf16.gmra.mrb[0].mxu0 %v2119
        %v2629 = vpop.f32.mrb[0].mxu0
        %v2630 = vadd.f32 %v2469, %v2629
        %v2631 = vpop.f32.mrb[0].mxu0
        %v2632 = vpop.f32.mrb[0].mxu0
        %v2633 = vadd.f32 %v2472, %v2632
        %v2634 = vpop.f32.mrb[0].mxu0
        %2635 = vmatprep.mubr.bf16.mxu0 0
        %2636 = vmatmul.mubr.bf16.gmra.mrb[0].mxu0 %v2122
        %v2637 = vpop.f32.mrb[0].mxu0
        %v2638 = vadd.f32 %v2477, %v2637
        %v2639 = vpop.f32.mrb[0].mxu0
        %v2640 = vpop.f32.mrb[0].mxu0
        %v2641 = vadd.f32 %v2480, %v2640
        %v2642 = vpop.f32.mrb[0].mxu0
        %2643 = vmatprep.mubr.bf16.mxu0 0
        %2644 = vmatmul.mubr.bf16.gmra.mrb[0].mxu0 %v2125
        %v2645 = vpop.f32.mrb[0].mxu0
        %v2646 = vadd.f32 %v2485, %v2645
        %v2647 = vpop.f32.mrb[0].mxu0
        %v2648 = vpop.f32.mrb[0].mxu0
        %v2649 = vadd.f32 %v2488, %v2648
        %v2650 = vpop.f32.mrb[0].mxu0
        %2651 = vmatprep.mubr.bf16.mxu0 0
        %2652 = vmatmul.mubr.bf16.gmra.mrb[0].mxu0 %v2128
        %v2653 = vpop.f32.mrb[0].mxu0
        %v2654 = vadd.f32 %v2493, %v2653
        %v2655 = vpop.f32.mrb[0].mxu0
        %v2656 = vpop.f32.mrb[0].mxu0
        %v2657 = vadd.f32 %v2496, %v2656
        %v2658 = vpop.f32.mrb[0].mxu0
        %2659 = vdwg.mxu0
        %v2708 = vunpack.c.l.b16 %v1629
        %v2709 = vunpack.c.l.b16 %v1630
        %v2710 = vunpack.c.l.b16 %v1631
        %v2711 = vunpack.c.l.b16 %v1632
        %v2712 = vunpack.c.l.b16 %v1633
        %v2713 = vunpack.c.l.b16 %v1634
        %v2714 = vunpack.c.l.b16 %v1635
        %v2715 = vunpack.c.l.b16 %v1636
        %v2716 = vunpack.c.l.b16 %v1637
        %v2717 = vunpack.c.l.b16 %v1638
        %v2718 = vunpack.c.l.b16 %v1639
        %v2719 = vunpack.c.l.b16 %v1640
        %v2720 = vunpack.c.l.b16 %v1641
        %v2721 = vunpack.c.l.b16 %v1642
        %v2722 = vunpack.c.l.b16 %v1643
        %v2723 = vunpack.c.l.b16 %v1644
        %v2724 = vunpack.c.l.b16 %v1645
        %v2725 = vunpack.c.l.b16 %v1646
        %v2726 = vunpack.c.l.b16 %v1647
        %v2727 = vunpack.c.l.b16 %v1648
        %v2728 = vunpack.c.l.b16 %v1649
        %v2729 = vunpack.c.l.b16 %v1650
        %v2730 = vunpack.c.l.b16 %v1651
        %v2731 = vunpack.c.l.b16 %v1652
        %v2732 = vunpack.c.l.b16 %v1653
        %v2733 = vunpack.c.l.b16 %v1654
        %v2734 = vunpack.c.l.b16 %v1655
        %v2735 = vunpack.c.l.b16 %v1656
        %v2736 = vunpack.c.l.b16 %v1657
        %v2737 = vunpack.c.l.b16 %v1658
        %v2738 = vunpack.c.l.b16 %v1659
        %v2739 = vunpack.c.l.b16 %v1660
        %v2740 = vunpack.c.l.b16 %v1661
        %v2741 = vunpack.c.l.b16 %v1662
        %v2742 = vunpack.c.l.b16 %v1663
        %v2743 = vunpack.c.l.b16 %v1664
        %v2744 = vunpack.c.l.b16 %v1665
        %v2745 = vunpack.c.l.b16 %v1666
        %v2746 = vunpack.c.l.b16 %v1667
        %v2747 = vunpack.c.l.b16 %v1668
        %v2748 = vunpack.c.l.b16 %v1669
        %v2749 = vunpack.c.l.b16 %v1670
        %v2750 = vunpack.c.l.b16 %v1671
        %v2751 = vunpack.c.l.b16 %v1672
        %v2752 = vunpack.c.l.b16 %v1673
        %v2753 = vunpack.c.l.b16 %v1674
        %v2754 = vunpack.c.l.b16 %v1675
        %v2755 = vunpack.c.l.b16 %v1676
        %v2756 = vpack.c.b16 %v2709, %v2708
        %v2757 = vpack.c.b16 %v2711, %v2710
        %v2758 = vpack.c.b16 %v2713, %v2712
        %v2759 = vpack.c.b16 %v2715, %v2714
        %v2760 = vpack.c.b16 %v2717, %v2716
        %v2761 = vpack.c.b16 %v2719, %v2718
        %v2762 = vpack.c.b16 %v2721, %v2720
        %v2763 = vpack.c.b16 %v2723, %v2722
        %v2764 = vpack.c.b16 %v2725, %v2724
        %v2765 = vpack.c.b16 %v2727, %v2726
        %v2766 = vpack.c.b16 %v2729, %v2728
        %v2767 = vpack.c.b16 %v2731, %v2730
        %v2768 = vpack.c.b16 %v2733, %v2732
        %v2769 = vpack.c.b16 %v2735, %v2734
        %v2770 = vpack.c.b16 %v2737, %v2736
        %v2771 = vpack.c.b16 %v2739, %v2738
        %v2772 = vpack.c.b16 %v2741, %v2740
        %v2773 = vpack.c.b16 %v2743, %v2742
        %v2774 = vpack.c.b16 %v2745, %v2744
        %v2775 = vpack.c.b16 %v2747, %v2746
        %v2776 = vpack.c.b16 %v2749, %v2748
        %v2777 = vpack.c.b16 %v2751, %v2750
        %v2778 = vpack.c.b16 %v2753, %v2752
        %v2779 = vpack.c.b16 %v2755, %v2754
        %2804 = vmatprep.subr.bf16.mxu0 0
        %2805 = vmatpush1.bf16.msra.mxu0 %v2756
        %2806 = vmatprep.subr.bf16.mxu0 0
        %2807 = vmatpush1.bf16.msra.mxu0 %v2757
        %2808 = vmatprep.subr.bf16.mxu0 0
        %2809 = vmatpush1.bf16.msra.mxu0 %v2758
        %2810 = vmatprep.subr.bf16.mxu0 0
        %2811 = vmatpush1.bf16.msra.mxu0 %v2759
        %2812 = vmatprep.subr.bf16.mxu0 0
        %2813 = vmatpush1.bf16.msra.mxu0 %v2760
        %2814 = vmatprep.subr.bf16.mxu0 0
        %2815 = vmatpush1.bf16.msra.mxu0 %v2761
        %2816 = vmatprep.subr.bf16.mxu0 0
        %2817 = vmatpush1.bf16.msra.mxu0 %v2762
        %2818 = vmatprep.subr.bf16.mxu0 0
        %2819 = vmatpush1.bf16.msra.mxu0 %v2763
        %2820 = vmatprep.subr.bf16.mxu0 0
        %2821 = vmatpush1.bf16.msra.mxu0 %v2764
        %2822 = vmatprep.subr.bf16.mxu0 0
        %2823 = vmatpush1.bf16.msra.mxu0 %v2765
        %2824 = vmatprep.subr.bf16.mxu0 0
        %2825 = vmatpush1.bf16.msra.mxu0 %v2766
        %2826 = vmatprep.subr.bf16.mxu0 0
        %2827 = vmatpush1.bf16.msra.mxu0 %v2767
        %2828 = vmatprep.subr.bf16.mxu0 0
        %2829 = vmatpush1.bf16.msra.mxu0 %v2768
        %2830 = vmatprep.subr.bf16.mxu0 0
        %2831 = vmatpush1.bf16.msra.mxu0 %v2769
        %2832 = vmatprep.subr.bf16.mxu0 0
        %2833 = vmatpush1.bf16.msra.mxu0 %v2770
        %2834 = vmatprep.subr.bf16.mxu0 0
        %2835 = vmatpush1.bf16.msra.mxu0 %v2771
        %2836 = vmatprep.mubr.bf16.mxu0 %v1367
        %2837 = vmatmul.mubr.bf16.gmra.mrb[0].mxu0 %v1275
        %v2838 = vpop.f32.mrb[0].mxu0
        %v2839 = vadd.f32 %v2534, %v2838
        %v2840 = vpop.f32.mrb[0].mxu0
        %v2841 = vpop.f32.mrb[0].mxu0
        %v2842 = vadd.f32 %v2537, %v2841
        %v2843 = vpop.f32.mrb[0].mxu0
        %2844 = vmatprep.mubr.bf16.mxu0 %v1379
        %2845 = vmatmul.mubr.bf16.gmra.mrb[0].mxu0 %v1276
        %v2846 = vpop.f32.mrb[0].mxu0
        %v2847 = vadd.f32 %v2542, %v2846
        %v2848 = vpop.f32.mrb[0].mxu0
        %v2849 = vpop.f32.mrb[0].mxu0
        %v2850 = vadd.f32 %v2545, %v2849
        %v2851 = vpop.f32.mrb[0].mxu0
        %2852 = vmatprep.mubr.bf16.mxu0 %v1391
        %2853 = vmatmul.mubr.bf16.gmra.mrb[0].mxu0 %v1277
        %v2854 = vpop.f32.mrb[0].mxu0
        %v2855 = vadd.f32 %v2550, %v2854
        %v2856 = vpop.f32.mrb[0].mxu0
        %v2857 = vpop.f32.mrb[0].mxu0
        %v2858 = vadd.f32 %v2553, %v2857
        %v2859 = vpop.f32.mrb[0].mxu0
        %2860 = vmatprep.mubr.bf16.mxu0 %v1403
        %2861 = vmatmul.mubr.bf16.gmra.mrb[0].mxu0 %v1278
        %v2862 = vpop.f32.mrb[0].mxu0
        %v2863 = vadd.f32 %v2558, %v2862
        %v2864 = vpop.f32.mrb[0].mxu0
        %v2865 = vpop.f32.mrb[0].mxu0
        %v2866 = vadd.f32 %v2561, %v2865
        %v2867 = vpop.f32.mrb[0].mxu0
        %2868 = vmatprep.mubr.bf16.mxu0 %v1415
        %2869 = vmatmul.mubr.bf16.gmra.mrb[0].mxu0 %v1279
        %v2870 = vpop.f32.mrb[0].mxu0
        %v2871 = vadd.f32 %v2566, %v2870
        %v2872 = vpop.f32.mrb[0].mxu0
        %v2873 = vpop.f32.mrb[0].mxu0
        %v2874 = vadd.f32 %v2569, %v2873
        %v2875 = vpop.f32.mrb[0].mxu0
        %2876 = vmatprep.mubr.bf16.mxu0 %v1427
        %2877 = vmatmul.mubr.bf16.gmra.mrb[0].mxu0 %v1280
        %v2878 = vpop.f32.mrb[0].mxu0
        %v2879 = vadd.f32 %v2574, %v2878
        %v2880 = vpop.f32.mrb[0].mxu0
        %v2881 = vpop.f32.mrb[0].mxu0
        %v2882 = vadd.f32 %v2577, %v2881
        %v2883 = vpop.f32.mrb[0].mxu0
        %2884 = vmatprep.mubr.bf16.mxu0 %v1439
        %2885 = vmatmul.mubr.bf16.gmra.mrb[0].mxu0 %v1281
        %v2886 = vpop.f32.mrb[0].mxu0
        %v2887 = vadd.f32 %v2582, %v2886
        %v2888 = vpop.f32.mrb[0].mxu0
        %v2889 = vpop.f32.mrb[0].mxu0
        %v2890 = vadd.f32 %v2585, %v2889
        %v2891 = vpop.f32.mrb[0].mxu0
        %2892 = vmatprep.mubr.bf16.mxu0 %v1451
        %2893 = vmatmul.mubr.bf16.gmra.mrb[0].mxu0 %v1282
        %v2894 = vpop.f32.mrb[0].mxu0
        %v2895 = vadd.f32 %v2590, %v2894
        %v2896 = vpop.f32.mrb[0].mxu0
        %v2897 = vpop.f32.mrb[0].mxu0
        %v2898 = vadd.f32 %v2593, %v2897
        %v2899 = vpop.f32.mrb[0].mxu0
        %2900 = vmatprep.mubr.bf16.mxu0 %v1463
        %2901 = vmatmul.mubr.bf16.gmra.mrb[0].mxu0 %v1283
        %v2902 = vpop.f32.mrb[0].mxu0
        %v2903 = vadd.f32 %v2598, %v2902
        %v2904 = vpop.f32.mrb[0].mxu0
        %v2905 = vpop.f32.mrb[0].mxu0
        %v2906 = vadd.f32 %v2601, %v2905
        %v2907 = vpop.f32.mrb[0].mxu0
        %2908 = vmatprep.mubr.bf16.mxu0 %v1475
        %2909 = vmatmul.mubr.bf16.gmra.mrb[0].mxu0 %v1284
        %v2910 = vpop.f32.mrb[0].mxu0
        %v2911 = vadd.f32 %v2606, %v2910
        %v2912 = vpop.f32.mrb[0].mxu0
        %v2913 = vpop.f32.mrb[0].mxu0
        %v2914 = vadd.f32 %v2609, %v2913
        %v2915 = vpop.f32.mrb[0].mxu0
        %2916 = vmatprep.mubr.bf16.mxu0 %v1487
        %2917 = vmatmul.mubr.bf16.gmra.mrb[0].mxu0 %v1285
        %v2918 = vpop.f32.mrb[0].mxu0
        %v2919 = vadd.f32 %v2614, %v2918
        %v2920 = vpop.f32.mrb[0].mxu0
        %v2921 = vpop.f32.mrb[0].mxu0
        %v2922 = vadd.f32 %v2617, %v2921
        %v2923 = vpop.f32.mrb[0].mxu0
        %2924 = vmatprep.mubr.bf16.mxu0 %v1499
        %2925 = vmatmul.mubr.bf16.gmra.mrb[0].mxu0 %v1286
        %v2926 = vpop.f32.mrb[0].mxu0
        %v2927 = vadd.f32 %v2622, %v2926
        %v2928 = vpop.f32.mrb[0].mxu0
        %v2929 = vpop.f32.mrb[0].mxu0
        %v2930 = vadd.f32 %v2625, %v2929
        %v2931 = vpop.f32.mrb[0].mxu0
        %2932 = vmatprep.mubr.bf16.mxu0 %v1511
        %2933 = vmatmul.mubr.bf16.gmra.mrb[0].mxu0 %v1287
        %v2934 = vpop.f32.mrb[0].mxu0
        %v2935 = vadd.f32 %v2630, %v2934
        %v2936 = vpop.f32.mrb[0].mxu0
        %v2937 = vpop.f32.mrb[0].mxu0
        %v2938 = vadd.f32 %v2633, %v2937
        %v2939 = vpop.f32.mrb[0].mxu0
        %2940 = vmatprep.mubr.bf16.mxu0 %v1523
        %2941 = vmatmul.mubr.bf16.gmra.mrb[0].mxu0 %v1288
        %v2942 = vpop.f32.mrb[0].mxu0
        %v2943 = vadd.f32 %v2638, %v2942
        %v2944 = vpop.f32.mrb[0].mxu0
        %v2945 = vpop.f32.mrb[0].mxu0
        %v2946 = vadd.f32 %v2641, %v2945
        %v2947 = vpop.f32.mrb[0].mxu0
        %2948 = vmatprep.mubr.bf16.mxu0 %v1535
        %2949 = vmatmul.mubr.bf16.gmra.mrb[0].mxu0 %v1289
        %v2950 = vpop.f32.mrb[0].mxu0
        %v2951 = vadd.f32 %v2646, %v2950
        %v2952 = vpop.f32.mrb[0].mxu0
        %v2953 = vpop.f32.mrb[0].mxu0
        %v2954 = vadd.f32 %v2649, %v2953
        %v2955 = vpop.f32.mrb[0].mxu0
        %2956 = vmatprep.mubr.bf16.mxu0 %v1547
        %2957 = vmatmul.mubr.bf16.gmra.mrb[0].mxu0 %v1290
        %v2958 = vpop.f32.mrb[0].mxu0
        %v2959 = vadd.f32 %v2654, %v2958
        %v2960 = vpop.f32.mrb[0].mxu0
        %v2961 = vpop.f32.mrb[0].mxu0
        %v2962 = vadd.f32 %v2657, %v2961
        %v2963 = vpop.f32.mrb[0].mxu0
        %2964 = vdwg.mxu0
        %2965 = vmatprep.subr.bf16.mxu0 0
        %2966 = vmatpush1.bf16.msra.mxu0 %v2772
        %2967 = vmatprep.subr.bf16.mxu0 0
        %2968 = vmatpush1.bf16.msra.mxu0 %v2773
        %2969 = vmatprep.subr.bf16.mxu0 0
        %2970 = vmatpush1.bf16.msra.mxu0 %v2774
        %2971 = vmatprep.subr.bf16.mxu0 0
        %2972 = vmatpush1.bf16.msra.mxu0 %v2775
        %2973 = vmatprep.subr.bf16.mxu0 0
        %2974 = vmatpush1.bf16.msra.mxu0 %v2776
        %2975 = vmatprep.subr.bf16.mxu0 0
        %2976 = vmatpush1.bf16.msra.mxu0 %v2777
        %2977 = vmatprep.subr.bf16.mxu0 0
        %2978 = vmatpush1.bf16.msra.mxu0 %v2778
        %2979 = vmatprep.subr.bf16.mxu0 0
        %2980 = vmatpush1.bf16.msra.mxu0 %v2779
        %2981 = vmatprep.subr.bf16.mxu0 0
        %2982 = vmatpush1.bf16.msra.mxu0 0
        %2983 = vmatprep.subr.bf16.mxu0 0
        %2984 = vmatpush1.bf16.msra.mxu0 0
        %2985 = vmatprep.subr.bf16.mxu0 0
        %2986 = vmatpush1.bf16.msra.mxu0 0
        %2987 = vmatprep.subr.bf16.mxu0 0
        %2988 = vmatpush1.bf16.msra.mxu0 0
        %2989 = vmatprep.subr.bf16.mxu0 0
        %2990 = vmatpush1.bf16.msra.mxu0 0
        %2991 = vmatprep.subr.bf16.mxu0 0
        %2992 = vmatpush1.bf16.msra.mxu0 0
        %2993 = vmatprep.subr.bf16.mxu0 0
        %2994 = vmatpush1.bf16.msra.mxu0 0
        %2995 = vmatprep.subr.bf16.mxu0 0
        %2996 = vmatpush1.bf16.msra.mxu0 0
        %2997 = vmatprep.mubr.bf16.mxu0 0
        %2998 = vmatmul.mubr.bf16.gmra.mrb[0].mxu0 %v1567
        %v2999 = vpop.f32.mrb[0].mxu0
        %v3000 = vadd.f32 %v2839, %v2999
        %v3001 = vpop.f32.mrb[0].mxu0
        %v3002 = vpop.f32.mrb[0].mxu0
        %v3003 = vadd.f32 %v2842, %v3002
        %v3004 = vpop.f32.mrb[0].mxu0
        %3005 = vmatprep.mubr.bf16.mxu0 0
        %3006 = vmatmul.mubr.bf16.gmra.mrb[0].mxu0 %v1570
        %v3007 = vpop.f32.mrb[0].mxu0
        %v3008 = vadd.f32 %v2847, %v3007
        %v3009 = vpop.f32.mrb[0].mxu0
        %v3010 = vpop.f32.mrb[0].mxu0
        %v3011 = vadd.f32 %v2850, %v3010
        %v3012 = vpop.f32.mrb[0].mxu0
        %3013 = vmatprep.mubr.bf16.mxu0 0
        %3014 = vmatmul.mubr.bf16.gmra.mrb[0].mxu0 %v1573
        %v3015 = vpop.f32.mrb[0].mxu0
        %v3016 = vadd.f32 %v2855, %v3015
        %v3017 = vpop.f32.mrb[0].mxu0
        %v3018 = vpop.f32.mrb[0].mxu0
        %v3019 = vadd.f32 %v2858, %v3018
        %v3020 = vpop.f32.mrb[0].mxu0
        %3021 = vmatprep.mubr.bf16.mxu0 0
        %3022 = vmatmul.mubr.bf16.gmra.mrb[0].mxu0 %v1576
        %v3023 = vpop.f32.mrb[0].mxu0
        %v3024 = vadd.f32 %v2863, %v3023
        %v3025 = vpop.f32.mrb[0].mxu0
        %v3026 = vpop.f32.mrb[0].mxu0
        %v3027 = vadd.f32 %v2866, %v3026
        %v3028 = vpop.f32.mrb[0].mxu0
        %3029 = vmatprep.mubr.bf16.mxu0 0
        %3030 = vmatmul.mubr.bf16.gmra.mrb[0].mxu0 %v1579
        %v3031 = vpop.f32.mrb[0].mxu0
        %v3032 = vadd.f32 %v2871, %v3031
        %v3033 = vpop.f32.mrb[0].mxu0
        %v3034 = vpop.f32.mrb[0].mxu0
        %v3035 = vadd.f32 %v2874, %v3034
        %v3036 = vpop.f32.mrb[0].mxu0
        %3037 = vmatprep.mubr.bf16.mxu0 0
        %3038 = vmatmul.mubr.bf16.gmra.mrb[0].mxu0 %v1582
        %v3039 = vpop.f32.mrb[0].mxu0
        %v3040 = vadd.f32 %v2879, %v3039
        %v3041 = vpop.f32.mrb[0].mxu0
        %v3042 = vpop.f32.mrb[0].mxu0
        %v3043 = vadd.f32 %v2882, %v3042
        %v3044 = vpop.f32.mrb[0].mxu0
        %3045 = vmatprep.mubr.bf16.mxu0 0
        %3046 = vmatmul.mubr.bf16.gmra.mrb[0].mxu0 %v1585
        %v3047 = vpop.f32.mrb[0].mxu0
        %v3048 = vadd.f32 %v2887, %v3047
        %v3049 = vpop.f32.mrb[0].mxu0
        %v3050 = vpop.f32.mrb[0].mxu0
        %v3051 = vadd.f32 %v2890, %v3050
        %v3052 = vpop.f32.mrb[0].mxu0
        %3053 = vmatprep.mubr.bf16.mxu0 0
        %3054 = vmatmul.mubr.bf16.gmra.mrb[0].mxu0 %v1588
        %v3055 = vpop.f32.mrb[0].mxu0
        %v3056 = vadd.f32 %v2895, %v3055
        %v3057 = vpop.f32.mrb[0].mxu0
        %v3058 = vpop.f32.mrb[0].mxu0
        %v3059 = vadd.f32 %v2898, %v3058
        %v3060 = vpop.f32.mrb[0].mxu0
        %3061 = vmatprep.mubr.bf16.mxu0 0
        %3062 = vmatmul.mubr.bf16.gmra.mrb[0].mxu0 %v1591
        %v3063 = vpop.f32.mrb[0].mxu0
        %v3064 = vadd.f32 %v2903, %v3063
        %v3065 = vpop.f32.mrb[0].mxu0
        %v3066 = vpop.f32.mrb[0].mxu0
        %v3067 = vadd.f32 %v2906, %v3066
        %v3068 = vpop.f32.mrb[0].mxu0
        %3069 = vmatprep.mubr.bf16.mxu0 0
        %3070 = vmatmul.mubr.bf16.gmra.mrb[0].mxu0 %v1594
        %v3071 = vpop.f32.mrb[0].mxu0
        %v3072 = vadd.f32 %v2911, %v3071
        %v3073 = vpop.f32.mrb[0].mxu0
        %v3074 = vpop.f32.mrb[0].mxu0
        %v3075 = vadd.f32 %v2914, %v3074
        %v3076 = vpop.f32.mrb[0].mxu0
        %3077 = vmatprep.mubr.bf16.mxu0 0
        %3078 = vmatmul.mubr.bf16.gmra.mrb[0].mxu0 %v1597
        %v3079 = vpop.f32.mrb[0].mxu0
        %v3080 = vadd.f32 %v2919, %v3079
        %v3081 = vpop.f32.mrb[0].mxu0
        %v3082 = vpop.f32.mrb[0].mxu0
        %v3083 = vadd.f32 %v2922, %v3082
        %v3084 = vpop.f32.mrb[0].mxu0
        %3085 = vmatprep.mubr.bf16.mxu0 0
        %3086 = vmatmul.mubr.bf16.gmra.mrb[0].mxu0 %v1600
        %v3087 = vpop.f32.mrb[0].mxu0
        %v3088 = vadd.f32 %v2927, %v3087
        %v3089 = vpop.f32.mrb[0].mxu0
        %v3090 = vpop.f32.mrb[0].mxu0
        %v3091 = vadd.f32 %v2930, %v3090
        %v3092 = vpop.f32.mrb[0].mxu0
        %3093 = vmatprep.mubr.bf16.mxu0 0
        %3094 = vmatmul.mubr.bf16.gmra.mrb[0].mxu0 %v1603
        %v3095 = vpop.f32.mrb[0].mxu0
        %v3096 = vadd.f32 %v2935, %v3095
        %v3097 = vpop.f32.mrb[0].mxu0
        %v3098 = vpop.f32.mrb[0].mxu0
        %v3099 = vadd.f32 %v2938, %v3098
        %v3100 = vpop.f32.mrb[0].mxu0
        %3101 = vmatprep.mubr.bf16.mxu0 0
        %3102 = vmatmul.mubr.bf16.gmra.mrb[0].mxu0 %v1606
        %v3103 = vpop.f32.mrb[0].mxu0
        %v3104 = vadd.f32 %v2943, %v3103
        %v3105 = vpop.f32.mrb[0].mxu0
        %v3106 = vpop.f32.mrb[0].mxu0
        %v3107 = vadd.f32 %v2946, %v3106
        %v3108 = vpop.f32.mrb[0].mxu0
        %3109 = vmatprep.mubr.bf16.mxu0 0
        %3110 = vmatmul.mubr.bf16.gmra.mrb[0].mxu0 %v1609
        %v3111 = vpop.f32.mrb[0].mxu0
        %v3112 = vadd.f32 %v2951, %v3111
        %v3113 = vpop.f32.mrb[0].mxu0
        %v3114 = vpop.f32.mrb[0].mxu0
        %v3115 = vadd.f32 %v2954, %v3114
        %v3116 = vpop.f32.mrb[0].mxu0
        %3117 = vmatprep.mubr.bf16.mxu0 0
        %3118 = vmatmul.mubr.bf16.gmra.mrb[0].mxu0 %v1612
        %v3119 = vpop.f32.mrb[0].mxu0
        %v3120 = vadd.f32 %v2959, %v3119
        %v3121 = vpop.f32.mrb[0].mxu0
        %v3122 = vpop.f32.mrb[0].mxu0
        %v3123 = vadd.f32 %v2962, %v3122
        %v3124 = vpop.f32.mrb[0].mxu0
        %3125 = vdwg.mxu0
        %s3126 = sadd.s32 %s1159, 2
        %s3127 = smul.u32 %s3126, 3
        %s3128 = smul.addr %s3127, 4
        %s3129 = scalar_lea.vmem [#allocation2], %s3128
        %v3130 = vld [vmem:[%s3129] sm:$0xf]
        %v3131 = vld [vmem:[%s3129 + $0x4] sm:$0xf]
        %v3132 = vld [vmem:[%s3129 + $0x8] sm:$0x1]
        %v3133 = vld [vmem:[%s3129 + $0xc] sm:$0xf]
        %v3134 = vld [vmem:[%s3129 + $0x10] sm:$0xf]
        %v3135 = vld [vmem:[%s3129 + $0x14] sm:$0x1]
        %v3136 = vld [vmem:[%s3129 + $0x18] sm:$0xf]
        %v3137 = vld [vmem:[%s3129 + $0x1c] sm:$0xf]
        %v3138 = vld [vmem:[%s3129 + $0x20] sm:$0x1]
        %v3139 = vld [vmem:[%s3129 + $0x24] sm:$0xf]
        %v3140 = vld [vmem:[%s3129 + $0x28] sm:$0xf]
        %v3141 = vld [vmem:[%s3129 + $0x2c] sm:$0x1]
        %v3142 = vld [vmem:[%s3129 + $0x30] sm:$0xf]
        %v3143 = vld [vmem:[%s3129 + $0x34] sm:$0xf]
        %v3144 = vld [vmem:[%s3129 + $0x38] sm:$0x1]
        %v3145 = vld [vmem:[%s3129 + $0x3c] sm:$0xf]
        %v3146 = vld [vmem:[%s3129 + $0x40] sm:$0xf]
        %v3147 = vld [vmem:[%s3129 + $0x44] sm:$0x1]
        %v3148 = vld [vmem:[%s3129 + $0x48] sm:$0xf]
        %v3149 = vld [vmem:[%s3129 + $0x4c] sm:$0xf]
        %v3150 = vld [vmem:[%s3129 + $0x50] sm:$0x1]
        %v3151 = vld [vmem:[%s3129 + $0x54] sm:$0xf]
        %v3152 = vld [vmem:[%s3129 + $0x58] sm:$0xf]
        %v3153 = vld [vmem:[%s3129 + $0x5c] sm:$0x1]
        %v3154 = vld [vmem:[%s3129 + $0x60] sm:$0xf]
        %v3155 = vld [vmem:[%s3129 + $0x64] sm:$0xf]
        %v3156 = vld [vmem:[%s3129 + $0x68] sm:$0x1]
        %v3157 = vld [vmem:[%s3129 + $0x6c] sm:$0xf]
        %v3158 = vld [vmem:[%s3129 + $0x70] sm:$0xf]
        %v3159 = vld [vmem:[%s3129 + $0x74] sm:$0x1]
        %v3160 = vld [vmem:[%s3129 + $0x78] sm:$0xf]
        %v3161 = vld [vmem:[%s3129 + $0x7c] sm:$0xf]
        %v3162 = vld [vmem:[%s3129 + $0x80] sm:$0x1]
        %v3163 = vld [vmem:[%s3129 + $0x84] sm:$0xf]
        %v3164 = vld [vmem:[%s3129 + $0x88] sm:$0xf]
        %v3165 = vld [vmem:[%s3129 + $0x8c] sm:$0x1]
        %v3166 = vld [vmem:[%s3129 + $0x90] sm:$0xf]
        %v3167 = vld [vmem:[%s3129 + $0x94] sm:$0xf]
        %v3168 = vld [vmem:[%s3129 + $0x98] sm:$0x1]
        %v3169 = vld [vmem:[%s3129 + $0x9c] sm:$0xf]
        %v3170 = vld [vmem:[%s3129 + $0xa0] sm:$0xf]
        %v3171 = vld [vmem:[%s3129 + $0xa4] sm:$0x1]
        %v3172 = vld [vmem:[%s3129 + $0xa8] sm:$0xf]
        %v3173 = vld [vmem:[%s3129 + $0xac] sm:$0xf]
        %v3174 = vld [vmem:[%s3129 + $0xb0] sm:$0x1]
        %v3175 = vld [vmem:[%s3129 + $0xb4] sm:$0xf]
        %v3176 = vld [vmem:[%s3129 + $0xb8] sm:$0xf]
        %v3177 = vld [vmem:[%s3129 + $0xbc] sm:$0x1]
        %v3210 = vunpack.c.l.b16 %v3130
        %v3211 = vunpack.c.l.b16 %v3131
        %v3212 = vunpack.c.l.b16 %v3133
        %v3213 = vunpack.c.l.b16 %v3134
        %v3214 = vunpack.c.l.b16 %v3136
        %v3215 = vunpack.c.l.b16 %v3137
        %v3216 = vunpack.c.l.b16 %v3139
        %v3217 = vunpack.c.l.b16 %v3140
        %v3218 = vunpack.c.l.b16 %v3142
        %v3219 = vunpack.c.l.b16 %v3143
        %v3220 = vunpack.c.l.b16 %v3145
        %v3221 = vunpack.c.l.b16 %v3146
        %v3222 = vunpack.c.l.b16 %v3148
        %v3223 = vunpack.c.l.b16 %v3149
        %v3224 = vunpack.c.l.b16 %v3151
        %v3225 = vunpack.c.l.b16 %v3152
        %v3226 = vunpack.c.l.b16 %v3154
        %v3227 = vunpack.c.l.b16 %v3155
        %v3228 = vunpack.c.l.b16 %v3157
        %v3229 = vunpack.c.l.b16 %v3158
        %v3230 = vunpack.c.l.b16 %v3160
        %v3231 = vunpack.c.l.b16 %v3161
        %v3232 = vunpack.c.l.b16 %v3163
        %v3233 = vunpack.c.l.b16 %v3164
        %v3234 = vunpack.c.l.b16 %v3166
        %v3235 = vunpack.c.l.b16 %v3167
        %v3236 = vunpack.c.l.b16 %v3169
        %v3237 = vunpack.c.l.b16 %v3170
        %v3238 = vunpack.c.l.b16 %v3172
        %v3239 = vunpack.c.l.b16 %v3173
        %v3240 = vunpack.c.l.b16 %v3175
        %v3241 = vunpack.c.l.b16 %v3176
        %v3242 = vpack.c.b16 %v3211, %v3210
        %v3243 = vpack.c.b16 %v3213, %v3212
        %v3244 = vpack.c.b16 %v3215, %v3214
        %v3245 = vpack.c.b16 %v3217, %v3216
        %v3246 = vpack.c.b16 %v3219, %v3218
        %v3247 = vpack.c.b16 %v3221, %v3220
        %v3248 = vpack.c.b16 %v3223, %v3222
        %v3249 = vpack.c.b16 %v3225, %v3224
        %v3250 = vpack.c.b16 %v3227, %v3226
        %v3251 = vpack.c.b16 %v3229, %v3228
        %v3252 = vpack.c.b16 %v3231, %v3230
        %v3253 = vpack.c.b16 %v3233, %v3232
        %v3254 = vpack.c.b16 %v3235, %v3234
        %v3255 = vpack.c.b16 %v3237, %v3236
        %v3256 = vpack.c.b16 %v3239, %v3238
        %v3257 = vpack.c.b16 %v3241, %v3240
        %v3290 = vunpack.c.l.b16 %v3132
        %v3291 = vunpack.c.l.b16 %v3135
        %v3292 = vunpack.c.l.b16 %v3138
        %v3293 = vunpack.c.l.b16 %v3141
        %v3294 = vunpack.c.l.b16 %v3144
        %v3295 = vunpack.c.l.b16 %v3147
        %v3296 = vunpack.c.l.b16 %v3150
        %v3297 = vunpack.c.l.b16 %v3153
        %v3298 = vunpack.c.l.b16 %v3156
        %v3299 = vunpack.c.l.b16 %v3159
        %v3300 = vunpack.c.l.b16 %v3162
        %v3301 = vunpack.c.l.b16 %v3165
        %v3302 = vunpack.c.l.b16 %v3168
        %v3303 = vunpack.c.l.b16 %v3171
        %v3304 = vunpack.c.l.b16 %v3174
        %v3305 = vunpack.c.l.b16 %v3177
        %v3306 = vpack.c.b16 %v3290, %v3290
        %v3307 = vpack.c.b16 %v3291, %v3291
        %v3308 = vpack.c.b16 %v3292, %v3292
        %v3309 = vpack.c.b16 %v3293, %v3293
        %v3310 = vpack.c.b16 %v3294, %v3294
        %v3311 = vpack.c.b16 %v3295, %v3295
        %v3312 = vpack.c.b16 %v3296, %v3296
        %v3313 = vpack.c.b16 %v3297, %v3297
        %v3314 = vpack.c.b16 %v3298, %v3298
        %v3315 = vpack.c.b16 %v3299, %v3299
        %v3316 = vpack.c.b16 %v3300, %v3300
        %v3317 = vpack.c.b16 %v3301, %v3301
        %v3318 = vpack.c.b16 %v3302, %v3302
        %v3319 = vpack.c.b16 %v3303, %v3303
        %v3320 = vpack.c.b16 %v3304, %v3304
        %v3321 = vpack.c.b16 %v3305, %v3305
        %v3323 = vshrl.u32 %v3242, 16
        %v3325 = vshll.u32 %v3242, 16
        %v3327 = vrot.slane %v3325, 1
        %v3328 = vor.u32 %v3323, %v3327
        %v3330 = vshll.u32 %v3306, 16
        %v3332 = vrot.slane %v3330, 1
        %v3333 = vsel %vm1355, %v3328, %v3332
        %v3335 = vshrl.u32 %v3243, 16
        %v3337 = vshll.u32 %v3243, 16
        %v3339 = vrot.slane %v3337, 1
        %v3340 = vor.u32 %v3335, %v3339
        %v3342 = vshll.u32 %v3307, 16
        %v3344 = vrot.slane %v3342, 1
        %v3345 = vsel %vm1355, %v3340, %v3344
        %v3347 = vshrl.u32 %v3244, 16
        %v3349 = vshll.u32 %v3244, 16
        %v3351 = vrot.slane %v3349, 1
        %v3352 = vor.u32 %v3347, %v3351
        %v3354 = vshll.u32 %v3308, 16
        %v3356 = vrot.slane %v3354, 1
        %v3357 = vsel %vm1355, %v3352, %v3356
        %v3359 = vshrl.u32 %v3245, 16
        %v3361 = vshll.u32 %v3245, 16
        %v3363 = vrot.slane %v3361, 1
        %v3364 = vor.u32 %v3359, %v3363
        %v3366 = vshll.u32 %v3309, 16
        %v3368 = vrot.slane %v3366, 1
        %v3369 = vsel %vm1355, %v3364, %v3368
        %v3371 = vshrl.u32 %v3246, 16
        %v3373 = vshll.u32 %v3246, 16
        %v3375 = vrot.slane %v3373, 1
        %v3376 = vor.u32 %v3371, %v3375
        %v3378 = vshll.u32 %v3310, 16
        %v3380 = vrot.slane %v3378, 1
        %v3381 = vsel %vm1355, %v3376, %v3380
        %v3383 = vshrl.u32 %v3247, 16
        %v3385 = vshll.u32 %v3247, 16
        %v3387 = vrot.slane %v3385, 1
        %v3388 = vor.u32 %v3383, %v3387
        %v3390 = vshll.u32 %v3311, 16
        %v3392 = vrot.slane %v3390, 1
        %v3393 = vsel %vm1355, %v3388, %v3392
        %v3395 = vshrl.u32 %v3248, 16
        %v3397 = vshll.u32 %v3248, 16
        %v3399 = vrot.slane %v3397, 1
        %v3400 = vor.u32 %v3395, %v3399
        %v3402 = vshll.u32 %v3312, 16
        %v3404 = vrot.slane %v3402, 1
        %v3405 = vsel %vm1355, %v3400, %v3404
        %v3407 = vshrl.u32 %v3249, 16
        %v3409 = vshll.u32 %v3249, 16
        %v3411 = vrot.slane %v3409, 1
        %v3412 = vor.u32 %v3407, %v3411
        %v3414 = vshll.u32 %v3313, 16
        %v3416 = vrot.slane %v3414, 1
        %v3417 = vsel %vm1355, %v3412, %v3416
        %v3419 = vshrl.u32 %v3250, 16
        %v3421 = vshll.u32 %v3250, 16
        %v3423 = vrot.slane %v3421, 1
        %v3424 = vor.u32 %v3419, %v3423
        %v3426 = vshll.u32 %v3314, 16
        %v3428 = vrot.slane %v3426, 1
        %v3429 = vsel %vm1355, %v3424, %v3428
        %v3431 = vshrl.u32 %v3251, 16
        %v3433 = vshll.u32 %v3251, 16
        %v3435 = vrot.slane %v3433, 1
        %v3436 = vor.u32 %v3431, %v3435
        %v3438 = vshll.u32 %v3315, 16
        %v3440 = vrot.slane %v3438, 1
        %v3441 = vsel %vm1355, %v3436, %v3440
        %v3443 = vshrl.u32 %v3252, 16
        %v3445 = vshll.u32 %v3252, 16
        %v3447 = vrot.slane %v3445, 1
        %v3448 = vor.u32 %v3443, %v3447
        %v3450 = vshll.u32 %v3316, 16
        %v3452 = vrot.slane %v3450, 1
        %v3453 = vsel %vm1355, %v3448, %v3452
        %v3455 = vshrl.u32 %v3253, 16
        %v3457 = vshll.u32 %v3253, 16
        %v3459 = vrot.slane %v3457, 1
        %v3460 = vor.u32 %v3455, %v3459
        %v3462 = vshll.u32 %v3317, 16
        %v3464 = vrot.slane %v3462, 1
        %v3465 = vsel %vm1355, %v3460, %v3464
        %v3467 = vshrl.u32 %v3254, 16
        %v3469 = vshll.u32 %v3254, 16
        %v3471 = vrot.slane %v3469, 1
        %v3472 = vor.u32 %v3467, %v3471
        %v3474 = vshll.u32 %v3318, 16
        %v3476 = vrot.slane %v3474, 1
        %v3477 = vsel %vm1355, %v3472, %v3476
        %v3479 = vshrl.u32 %v3255, 16
        %v3481 = vshll.u32 %v3255, 16
        %v3483 = vrot.slane %v3481, 1
        %v3484 = vor.u32 %v3479, %v3483
        %v3486 = vshll.u32 %v3319, 16
        %v3488 = vrot.slane %v3486, 1
        %v3489 = vsel %vm1355, %v3484, %v3488
        %v3491 = vshrl.u32 %v3256, 16
        %v3493 = vshll.u32 %v3256, 16
        %v3495 = vrot.slane %v3493, 1
        %v3496 = vor.u32 %v3491, %v3495
        %v3498 = vshll.u32 %v3320, 16
        %v3500 = vrot.slane %v3498, 1
        %v3501 = vsel %vm1355, %v3496, %v3500
        %v3503 = vshrl.u32 %v3257, 16
        %v3505 = vshll.u32 %v3257, 16
        %v3507 = vrot.slane %v3505, 1
        %v3508 = vor.u32 %v3503, %v3507
        %v3510 = vshll.u32 %v3321, 16
        %v3512 = vrot.slane %v3510, 1
        %v3513 = vsel %vm1355, %v3508, %v3512
        %v3530 = vrot.slane %v3242, 1
        %v3531 = vrot.slane %v3306, 1
        %v3532 = vsel %vm1564, %v3530, %v3531
        %v3533 = vrot.slane %v3243, 1
        %v3534 = vrot.slane %v3307, 1
        %v3535 = vsel %vm1564, %v3533, %v3534
        %v3536 = vrot.slane %v3244, 1
        %v3537 = vrot.slane %v3308, 1
        %v3538 = vsel %vm1564, %v3536, %v3537
        %v3539 = vrot.slane %v3245, 1
        %v3540 = vrot.slane %v3309, 1
        %v3541 = vsel %vm1564, %v3539, %v3540
        %v3542 = vrot.slane %v3246, 1
        %v3543 = vrot.slane %v3310, 1
        %v3544 = vsel %vm1564, %v3542, %v3543
        %v3545 = vrot.slane %v3247, 1
        %v3546 = vrot.slane %v3311, 1
        %v3547 = vsel %vm1564, %v3545, %v3546
        %v3548 = vrot.slane %v3248, 1
        %v3549 = vrot.slane %v3312, 1
        %v3550 = vsel %vm1564, %v3548, %v3549
        %v3551 = vrot.slane %v3249, 1
        %v3552 = vrot.slane %v3313, 1
        %v3553 = vsel %vm1564, %v3551, %v3552
        %v3554 = vrot.slane %v3250, 1
        %v3555 = vrot.slane %v3314, 1
        %v3556 = vsel %vm1564, %v3554, %v3555
        %v3557 = vrot.slane %v3251, 1
        %v3558 = vrot.slane %v3315, 1
        %v3559 = vsel %vm1564, %v3557, %v3558
        %v3560 = vrot.slane %v3252, 1
        %v3561 = vrot.slane %v3316, 1
        %v3562 = vsel %vm1564, %v3560, %v3561
        %v3563 = vrot.slane %v3253, 1
        %v3564 = vrot.slane %v3317, 1
        %v3565 = vsel %vm1564, %v3563, %v3564
        %v3566 = vrot.slane %v3254, 1
        %v3567 = vrot.slane %v3318, 1
        %v3568 = vsel %vm1564, %v3566, %v3567
        %v3569 = vrot.slane %v3255, 1
        %v3570 = vrot.slane %v3319, 1
        %v3571 = vsel %vm1564, %v3569, %v3570
        %v3572 = vrot.slane %v3256, 1
        %v3573 = vrot.slane %v3320, 1
        %v3574 = vsel %vm1564, %v3572, %v3573
        %v3575 = vrot.slane %v3257, 1
        %v3576 = vrot.slane %v3321, 1
        %v3577 = vsel %vm1564, %v3575, %v3576
        %s3594 = scalar_lea.vmem %s1, 384
        %v3595 = vld [vmem:[%s3594] sm:$0xf]
        %v3596 = vld [vmem:[%s3594 + $0x4] sm:$0xf]
        %v3597 = vld [vmem:[%s3594 + $0x8] sm:$0xf]
        %v3598 = vld [vmem:[%s3594 + $0xc] sm:$0xf]
        %v3599 = vld [vmem:[%s3594 + $0x10] sm:$0xf]
        %v3600 = vld [vmem:[%s3594 + $0x14] sm:$0xf]
        %v3601 = vld [vmem:[%s3594 + $0x18] sm:$0xf]
        %v3602 = vld [vmem:[%s3594 + $0x1c] sm:$0xf]
        %v3603 = vld [vmem:[%s3594 + $0x20] sm:$0xf]
        %v3604 = vld [vmem:[%s3594 + $0x24] sm:$0xf]
        %v3605 = vld [vmem:[%s3594 + $0x28] sm:$0xf]
        %v3606 = vld [vmem:[%s3594 + $0x2c] sm:$0xf]
        %v3607 = vld [vmem:[%s3594 + $0x30] sm:$0xf]
        %v3608 = vld [vmem:[%s3594 + $0x34] sm:$0xf]
        %v3609 = vld [vmem:[%s3594 + $0x38] sm:$0xf]
        %v3610 = vld [vmem:[%s3594 + $0x3c] sm:$0xf]
        %v3611 = vld [vmem:[%s3594 + $0x40] sm:$0xf]
        %v3612 = vld [vmem:[%s3594 + $0x44] sm:$0xf]
        %v3613 = vld [vmem:[%s3594 + $0x48] sm:$0xf]
        %v3614 = vld [vmem:[%s3594 + $0x4c] sm:$0xf]
        %v3615 = vld [vmem:[%s3594 + $0x50] sm:$0xf]
        %v3616 = vld [vmem:[%s3594 + $0x54] sm:$0xf]
        %v3617 = vld [vmem:[%s3594 + $0x58] sm:$0xf]
        %v3618 = vld [vmem:[%s3594 + $0x5c] sm:$0xf]
        %v3619 = vld [vmem:[%s3594 + $0x60] sm:$0xf]
        %v3620 = vld [vmem:[%s3594 + $0x64] sm:$0xf]
        %v3621 = vld [vmem:[%s3594 + $0x68] sm:$0xf]
        %v3622 = vld [vmem:[%s3594 + $0x6c] sm:$0xf]
        %v3623 = vld [vmem:[%s3594 + $0x70] sm:$0xf]
        %v3624 = vld [vmem:[%s3594 + $0x74] sm:$0xf]
        %v3625 = vld [vmem:[%s3594 + $0x78] sm:$0xf]
        %v3626 = vld [vmem:[%s3594 + $0x7c] sm:$0xf]
        %v3627 = vld [vmem:[%s3594 + $0x80] sm:$0xf]
        %v3628 = vld [vmem:[%s3594 + $0x84] sm:$0xf]
        %v3629 = vld [vmem:[%s3594 + $0x88] sm:$0xf]
        %v3630 = vld [vmem:[%s3594 + $0x8c] sm:$0xf]
        %v3631 = vld [vmem:[%s3594 + $0x90] sm:$0xf]
        %v3632 = vld [vmem:[%s3594 + $0x94] sm:$0xf]
        %v3633 = vld [vmem:[%s3594 + $0x98] sm:$0xf]
        %v3634 = vld [vmem:[%s3594 + $0x9c] sm:$0xf]
        %v3635 = vld [vmem:[%s3594 + $0xa0] sm:$0xf]
        %v3636 = vld [vmem:[%s3594 + $0xa4] sm:$0xf]
        %v3637 = vld [vmem:[%s3594 + $0xa8] sm:$0xf]
        %v3638 = vld [vmem:[%s3594 + $0xac] sm:$0xf]
        %v3639 = vld [vmem:[%s3594 + $0xb0] sm:$0xf]
        %v3640 = vld [vmem:[%s3594 + $0xb4] sm:$0xf]
        %v3641 = vld [vmem:[%s3594 + $0xb8] sm:$0xf]
        %v3642 = vld [vmem:[%s3594 + $0xbc] sm:$0xf]
        %v3691 = vunpack.c.l.b16 %v3595
        %v3692 = vunpack.c.l.b16 %v3596
        %v3693 = vunpack.c.l.b16 %v3597
        %v3694 = vunpack.c.l.b16 %v3598
        %v3695 = vunpack.c.l.b16 %v3599
        %v3696 = vunpack.c.l.b16 %v3600
        %v3697 = vunpack.c.l.b16 %v3601
        %v3698 = vunpack.c.l.b16 %v3602
        %v3699 = vunpack.c.l.b16 %v3603
        %v3700 = vunpack.c.l.b16 %v3604
        %v3701 = vunpack.c.l.b16 %v3605
        %v3702 = vunpack.c.l.b16 %v3606
        %v3703 = vunpack.c.l.b16 %v3607
        %v3704 = vunpack.c.l.b16 %v3608
        %v3705 = vunpack.c.l.b16 %v3609
        %v3706 = vunpack.c.l.b16 %v3610
        %v3707 = vunpack.c.l.b16 %v3611
        %v3708 = vunpack.c.l.b16 %v3612
        %v3709 = vunpack.c.l.b16 %v3613
        %v3710 = vunpack.c.l.b16 %v3614
        %v3711 = vunpack.c.l.b16 %v3615
        %v3712 = vunpack.c.l.b16 %v3616
        %v3713 = vunpack.c.l.b16 %v3617
        %v3714 = vunpack.c.l.b16 %v3618
        %v3715 = vunpack.c.l.b16 %v3619
        %v3716 = vunpack.c.l.b16 %v3620
        %v3717 = vunpack.c.l.b16 %v3621
        %v3718 = vunpack.c.l.b16 %v3622
        %v3719 = vunpack.c.l.b16 %v3623
        %v3720 = vunpack.c.l.b16 %v3624
        %v3721 = vunpack.c.l.b16 %v3625
        %v3722 = vunpack.c.l.b16 %v3626
        %v3723 = vunpack.c.l.b16 %v3627
        %v3724 = vunpack.c.l.b16 %v3628
        %v3725 = vunpack.c.l.b16 %v3629
        %v3726 = vunpack.c.l.b16 %v3630
        %v3727 = vunpack.c.l.b16 %v3631
        %v3728 = vunpack.c.l.b16 %v3632
        %v3729 = vunpack.c.l.b16 %v3633
        %v3730 = vunpack.c.l.b16 %v3634
        %v3731 = vunpack.c.l.b16 %v3635
        %v3732 = vunpack.c.l.b16 %v3636
        %v3733 = vunpack.c.l.b16 %v3637
        %v3734 = vunpack.c.l.b16 %v3638
        %v3735 = vunpack.c.l.b16 %v3639
        %v3736 = vunpack.c.l.b16 %v3640
        %v3737 = vunpack.c.l.b16 %v3641
        %v3738 = vunpack.c.l.b16 %v3642
        %v3739 = vpack.c.b16 %v3692, %v3691
        %v3740 = vpack.c.b16 %v3694, %v3693
        %v3741 = vpack.c.b16 %v3696, %v3695
        %v3742 = vpack.c.b16 %v3698, %v3697
        %v3743 = vpack.c.b16 %v3700, %v3699
        %v3744 = vpack.c.b16 %v3702, %v3701
        %v3745 = vpack.c.b16 %v3704, %v3703
        %v3746 = vpack.c.b16 %v3706, %v3705
        %v3747 = vpack.c.b16 %v3708, %v3707
        %v3748 = vpack.c.b16 %v3710, %v3709
        %v3749 = vpack.c.b16 %v3712, %v3711
        %v3750 = vpack.c.b16 %v3714, %v3713
        %v3751 = vpack.c.b16 %v3716, %v3715
        %v3752 = vpack.c.b16 %v3718, %v3717
        %v3753 = vpack.c.b16 %v3720, %v3719
        %v3754 = vpack.c.b16 %v3722, %v3721
        %v3755 = vpack.c.b16 %v3724, %v3723
        %v3756 = vpack.c.b16 %v3726, %v3725
        %v3757 = vpack.c.b16 %v3728, %v3727
        %v3758 = vpack.c.b16 %v3730, %v3729
        %v3759 = vpack.c.b16 %v3732, %v3731
        %v3760 = vpack.c.b16 %v3734, %v3733
        %v3761 = vpack.c.b16 %v3736, %v3735
        %v3762 = vpack.c.b16 %v3738, %v3737
        %3787 = vmatprep.subr.bf16.mxu0 0
        %3788 = vmatpush1.bf16.msra.mxu0 %v3739
        %3789 = vmatprep.subr.bf16.mxu0 0
        %3790 = vmatpush1.bf16.msra.mxu0 %v3740
        %3791 = vmatprep.subr.bf16.mxu0 0
        %3792 = vmatpush1.bf16.msra.mxu0 %v3741
        %3793 = vmatprep.subr.bf16.mxu0 0
        %3794 = vmatpush1.bf16.msra.mxu0 %v3742
        %3795 = vmatprep.subr.bf16.mxu0 0
        %3796 = vmatpush1.bf16.msra.mxu0 %v3743
        %3797 = vmatprep.subr.bf16.mxu0 0
        %3798 = vmatpush1.bf16.msra.mxu0 %v3744
        %3799 = vmatprep.subr.bf16.mxu0 0
        %3800 = vmatpush1.bf16.msra.mxu0 %v3745
        %3801 = vmatprep.subr.bf16.mxu0 0
        %3802 = vmatpush1.bf16.msra.mxu0 %v3746
        %3803 = vmatprep.subr.bf16.mxu0 0
        %3804 = vmatpush1.bf16.msra.mxu0 %v3747
        %3805 = vmatprep.subr.bf16.mxu0 0
        %3806 = vmatpush1.bf16.msra.mxu0 %v3748
        %3807 = vmatprep.subr.bf16.mxu0 0
        %3808 = vmatpush1.bf16.msra.mxu0 %v3749
        %3809 = vmatprep.subr.bf16.mxu0 0
        %3810 = vmatpush1.bf16.msra.mxu0 %v3750
        %3811 = vmatprep.subr.bf16.mxu0 0
        %3812 = vmatpush1.bf16.msra.mxu0 %v3751
        %3813 = vmatprep.subr.bf16.mxu0 0
        %3814 = vmatpush1.bf16.msra.mxu0 %v3752
        %3815 = vmatprep.subr.bf16.mxu0 0
        %3816 = vmatpush1.bf16.msra.mxu0 %v3753
        %3817 = vmatprep.subr.bf16.mxu0 0
        %3818 = vmatpush1.bf16.msra.mxu0 %v3754
        %3819 = vmatprep.mubr.bf16.mxu0 %v3333
        %3820 = vmatmul.mubr.bf16.gmra.mrb[0].mxu0 %v3242
        %v3821 = vpop.f32.mrb[0].mxu0
        %v3822 = vadd.f32 0.0, %v3821
        %v3823 = vpop.f32.mrb[0].mxu0
        %v3824 = vpop.f32.mrb[0].mxu0
        %v3825 = vadd.f32 0.0, %v3824
        %v3826 = vpop.f32.mrb[0].mxu0
        %3827 = vmatprep.mubr.bf16.mxu0 %v3345
        %3828 = vmatmul.mubr.bf16.gmra.mrb[0].mxu0 %v3243
        %v3829 = vpop.f32.mrb[0].mxu0
        %v3830 = vadd.f32 0.0, %v3829
        %v3831 = vpop.f32.mrb[0].mxu0
        %v3832 = vpop.f32.mrb[0].mxu0
        %v3833 = vadd.f32 0.0, %v3832
        %v3834 = vpop.f32.mrb[0].mxu0
        %3835 = vmatprep.mubr.bf16.mxu0 %v3357
        %3836 = vmatmul.mubr.bf16.gmra.mrb[0].mxu0 %v3244
        %v3837 = vpop.f32.mrb[0].mxu0
        %v3838 = vadd.f32 0.0, %v3837
        %v3839 = vpop.f32.mrb[0].mxu0
        %v3840 = vpop.f32.mrb[0].mxu0
        %v3841 = vadd.f32 0.0, %v3840
        %v3842 = vpop.f32.mrb[0].mxu0
        %3843 = vmatprep.mubr.bf16.mxu0 %v3369
        %3844 = vmatmul.mubr.bf16.gmra.mrb[0].mxu0 %v3245
        %v3845 = vpop.f32.mrb[0].mxu0
        %v3846 = vadd.f32 0.0, %v3845
        %v3847 = vpop.f32.mrb[0].mxu0
        %v3848 = vpop.f32.mrb[0].mxu0
        %v3849 = vadd.f32 0.0, %v3848
        %v3850 = vpop.f32.mrb[0].mxu0
        %3851 = vmatprep.mubr.bf16.mxu0 %v3381
        %3852 = vmatmul.mubr.bf16.gmra.mrb[0].mxu0 %v3246
        %v3853 = vpop.f32.mrb[0].mxu0
        %v3854 = vadd.f32 0.0, %v3853
        %v3855 = vpop.f32.mrb[0].mxu0
        %v3856 = vpop.f32.mrb[0].mxu0
        %v3857 = vadd.f32 0.0, %v3856
        %v3858 = vpop.f32.mrb[0].mxu0
        %3859 = vmatprep.mubr.bf16.mxu0 %v3393
        %3860 = vmatmul.mubr.bf16.gmra.mrb[0].mxu0 %v3247
        %v3861 = vpop.f32.mrb[0].mxu0
        %v3862 = vadd.f32 0.0, %v3861
        %v3863 = vpop.f32.mrb[0].mxu0
        %v3864 = vpop.f32.mrb[0].mxu0
        %v3865 = vadd.f32 0.0, %v3864
        %v3866 = vpop.f32.mrb[0].mxu0
        %3867 = vmatprep.mubr.bf16.mxu0 %v3405
        %3868 = vmatmul.mubr.bf16.gmra.mrb[0].mxu0 %v3248
        %v3869 = vpop.f32.mrb[0].mxu0
        %v3870 = vadd.f32 0.0, %v3869
        %v3871 = vpop.f32.mrb[0].mxu0
        %v3872 = vpop.f32.mrb[0].mxu0
        %v3873 = vadd.f32 0.0, %v3872
        %v3874 = vpop.f32.mrb[0].mxu0
        %3875 = vmatprep.mubr.bf16.mxu0 %v3417
        %3876 = vmatmul.mubr.bf16.gmra.mrb[0].mxu0 %v3249
        %v3877 = vpop.f32.mrb[0].mxu0
        %v3878 = vadd.f32 0.0, %v3877
        %v3879 = vpop.f32.mrb[0].mxu0
        %v3880 = vpop.f32.mrb[0].mxu0
        %v3881 = vadd.f32 0.0, %v3880
        %v3882 = vpop.f32.mrb[0].mxu0
        %3883 = vmatprep.mubr.bf16.mxu0 %v3429
        %3884 = vmatmul.mubr.bf16.gmra.mrb[0].mxu0 %v3250
        %v3885 = vpop.f32.mrb[0].mxu0
        %v3886 = vadd.f32 0.0, %v3885
        %v3887 = vpop.f32.mrb[0].mxu0
        %v3888 = vpop.f32.mrb[0].mxu0
        %v3889 = vadd.f32 0.0, %v3888
        %v3890 = vpop.f32.mrb[0].mxu0
        %3891 = vmatprep.mubr.bf16.mxu0 %v3441
        %3892 = vmatmul.mubr.bf16.gmra.mrb[0].mxu0 %v3251
        %v3893 = vpop.f32.mrb[0].mxu0
        %v3894 = vadd.f32 0.0, %v3893
        %v3895 = vpop.f32.mrb[0].mxu0
        %v3896 = vpop.f32.mrb[0].mxu0
        %v3897 = vadd.f32 0.0, %v3896
        %v3898 = vpop.f32.mrb[0].mxu0
        %3899 = vmatprep.mubr.bf16.mxu0 %v3453
        %3900 = vmatmul.mubr.bf16.gmra.mrb[0].mxu0 %v3252
        %v3901 = vpop.f32.mrb[0].mxu0
        %v3902 = vadd.f32 0.0, %v3901
        %v3903 = vpop.f32.mrb[0].mxu0
        %v3904 = vpop.f32.mrb[0].mxu0
        %v3905 = vadd.f32 0.0, %v3904
        %v3906 = vpop.f32.mrb[0].mxu0
        %3907 = vmatprep.mubr.bf16.mxu0 %v3465
        %3908 = vmatmul.mubr.bf16.gmra.mrb[0].mxu0 %v3253
        %v3909 = vpop.f32.mrb[0].mxu0
        %v3910 = vadd.f32 0.0, %v3909
        %v3911 = vpop.f32.mrb[0].mxu0
        %v3912 = vpop.f32.mrb[0].mxu0
        %v3913 = vadd.f32 0.0, %v3912
        %v3914 = vpop.f32.mrb[0].mxu0
        %3915 = vmatprep.mubr.bf16.mxu0 %v3477
        %3916 = vmatmul.mubr.bf16.gmra.mrb[0].mxu0 %v3254
        %v3917 = vpop.f32.mrb[0].mxu0
        %v3918 = vadd.f32 0.0, %v3917
        %v3919 = vpop.f32.mrb[0].mxu0
        %v3920 = vpop.f32.mrb[0].mxu0
        %v3921 = vadd.f32 0.0, %v3920
        %v3922 = vpop.f32.mrb[0].mxu0
        %3923 = vmatprep.mubr.bf16.mxu0 %v3489
        %3924 = vmatmul.mubr.bf16.gmra.mrb[0].mxu0 %v3255
        %v3925 = vpop.f32.mrb[0].mxu0
        %v3926 = vadd.f32 0.0, %v3925
        %v3927 = vpop.f32.mrb[0].mxu0
        %v3928 = vpop.f32.mrb[0].mxu0
        %v3929 = vadd.f32 0.0, %v3928
        %v3930 = vpop.f32.mrb[0].mxu0
        %3931 = vmatprep.mubr.bf16.mxu0 %v3501
        %3932 = vmatmul.mubr.bf16.gmra.mrb[0].mxu0 %v3256
        %v3933 = vpop.f32.mrb[0].mxu0
        %v3934 = vadd.f32 0.0, %v3933
        %v3935 = vpop.f32.mrb[0].mxu0
        %v3936 = vpop.f32.mrb[0].mxu0
        %v3937 = vadd.f32 0.0, %v3936
        %v3938 = vpop.f32.mrb[0].mxu0
        %3939 = vmatprep.mubr.bf16.mxu0 %v3513
        %3940 = vmatmul.mubr.bf16.gmra.mrb[0].mxu0 %v3257
        %v3941 = vpop.f32.mrb[0].mxu0
        %v3942 = vadd.f32 0.0, %v3941
        %v3943 = vpop.f32.mrb[0].mxu0
        %v3944 = vpop.f32.mrb[0].mxu0
        %v3945 = vadd.f32 0.0, %v3944
        %v3946 = vpop.f32.mrb[0].mxu0
        %3947 = vdwg.mxu0
        %3948 = vmatprep.subr.bf16.mxu0 0
        %3949 = vmatpush1.bf16.msra.mxu0 %v3755
        %3950 = vmatprep.subr.bf16.mxu0 0
        %3951 = vmatpush1.bf16.msra.mxu0 %v3756
        %3952 = vmatprep.subr.bf16.mxu0 0
        %3953 = vmatpush1.bf16.msra.mxu0 %v3757
        %3954 = vmatprep.subr.bf16.mxu0 0
        %3955 = vmatpush1.bf16.msra.mxu0 %v3758
        %3956 = vmatprep.subr.bf16.mxu0 0
        %3957 = vmatpush1.bf16.msra.mxu0 %v3759
        %3958 = vmatprep.subr.bf16.mxu0 0
        %3959 = vmatpush1.bf16.msra.mxu0 %v3760
        %3960 = vmatprep.subr.bf16.mxu0 0
        %3961 = vmatpush1.bf16.msra.mxu0 %v3761
        %3962 = vmatprep.subr.bf16.mxu0 0
        %3963 = vmatpush1.bf16.msra.mxu0 %v3762
        %3964 = vmatprep.subr.bf16.mxu0 0
        %3965 = vmatpush1.bf16.msra.mxu0 0
        %3966 = vmatprep.subr.bf16.mxu0 0
        %3967 = vmatpush1.bf16.msra.mxu0 0
        %3968 = vmatprep.subr.bf16.mxu0 0
        %3969 = vmatpush1.bf16.msra.mxu0 0
        %3970 = vmatprep.subr.bf16.mxu0 0
        %3971 = vmatpush1.bf16.msra.mxu0 0
        %3972 = vmatprep.subr.bf16.mxu0 0
        %3973 = vmatpush1.bf16.msra.mxu0 0
        %3974 = vmatprep.subr.bf16.mxu0 0
        %3975 = vmatpush1.bf16.msra.mxu0 0
        %3976 = vmatprep.subr.bf16.mxu0 0
        %3977 = vmatpush1.bf16.msra.mxu0 0
        %3978 = vmatprep.subr.bf16.mxu0 0
        %3979 = vmatpush1.bf16.msra.mxu0 0
        %3980 = vmatprep.mubr.bf16.mxu0 0
        %3981 = vmatmul.mubr.bf16.gmra.mrb[0].mxu0 %v3532
        %v3982 = vpop.f32.mrb[0].mxu0
        %v3983 = vadd.f32 %v3822, %v3982
        %v3984 = vpop.f32.mrb[0].mxu0
        %v3985 = vpop.f32.mrb[0].mxu0
        %v3986 = vadd.f32 %v3825, %v3985
        %v3987 = vpop.f32.mrb[0].mxu0
        %3988 = vmatprep.mubr.bf16.mxu0 0
        %3989 = vmatmul.mubr.bf16.gmra.mrb[0].mxu0 %v3535
        %v3990 = vpop.f32.mrb[0].mxu0
        %v3991 = vadd.f32 %v3830, %v3990
        %v3992 = vpop.f32.mrb[0].mxu0
        %v3993 = vpop.f32.mrb[0].mxu0
        %v3994 = vadd.f32 %v3833, %v3993
        %v3995 = vpop.f32.mrb[0].mxu0
        %3996 = vmatprep.mubr.bf16.mxu0 0
        %3997 = vmatmul.mubr.bf16.gmra.mrb[0].mxu0 %v3538
        %v3998 = vpop.f32.mrb[0].mxu0
        %v3999 = vadd.f32 %v3838, %v3998
        %v4000 = vpop.f32.mrb[0].mxu0
        %v4001 = vpop.f32.mrb[0].mxu0
        %v4002 = vadd.f32 %v3841, %v4001
        %v4003 = vpop.f32.mrb[0].mxu0
        %4004 = vmatprep.mubr.bf16.mxu0 0
        %4005 = vmatmul.mubr.bf16.gmra.mrb[0].mxu0 %v3541
        %v4006 = vpop.f32.mrb[0].mxu0
        %v4007 = vadd.f32 %v3846, %v4006
        %v4008 = vpop.f32.mrb[0].mxu0
        %v4009 = vpop.f32.mrb[0].mxu0
        %v4010 = vadd.f32 %v3849, %v4009
        %v4011 = vpop.f32.mrb[0].mxu0
        %4012 = vmatprep.mubr.bf16.mxu0 0
        %4013 = vmatmul.mubr.bf16.gmra.mrb[0].mxu0 %v3544
        %v4014 = vpop.f32.mrb[0].mxu0
        %v4015 = vadd.f32 %v3854, %v4014
        %v4016 = vpop.f32.mrb[0].mxu0
        %v4017 = vpop.f32.mrb[0].mxu0
        %v4018 = vadd.f32 %v3857, %v4017
        %v4019 = vpop.f32.mrb[0].mxu0
        %4020 = vmatprep.mubr.bf16.mxu0 0
        %4021 = vmatmul.mubr.bf16.gmra.mrb[0].mxu0 %v3547
        %v4022 = vpop.f32.mrb[0].mxu0
        %v4023 = vadd.f32 %v3862, %v4022
        %v4024 = vpop.f32.mrb[0].mxu0
        %v4025 = vpop.f32.mrb[0].mxu0
        %v4026 = vadd.f32 %v3865, %v4025
        %v4027 = vpop.f32.mrb[0].mxu0
        %4028 = vmatprep.mubr.bf16.mxu0 0
        %4029 = vmatmul.mubr.bf16.gmra.mrb[0].mxu0 %v3550
        %v4030 = vpop.f32.mrb[0].mxu0
        %v4031 = vadd.f32 %v3870, %v4030
        %v4032 = vpop.f32.mrb[0].mxu0
        %v4033 = vpop.f32.mrb[0].mxu0
        %v4034 = vadd.f32 %v3873, %v4033
        %v4035 = vpop.f32.mrb[0].mxu0
        %4036 = vmatprep.mubr.bf16.mxu0 0
        %4037 = vmatmul.mubr.bf16.gmra.mrb[0].mxu0 %v3553
        %v4038 = vpop.f32.mrb[0].mxu0
        %v4039 = vadd.f32 %v3878, %v4038
        %v4040 = vpop.f32.mrb[0].mxu0
        %v4041 = vpop.f32.mrb[0].mxu0
        %v4042 = vadd.f32 %v3881, %v4041
        %v4043 = vpop.f32.mrb[0].mxu0
        %4044 = vmatprep.mubr.bf16.mxu0 0
        %4045 = vmatmul.mubr.bf16.gmra.mrb[0].mxu0 %v3556
        %v4046 = vpop.f32.mrb[0].mxu0
        %v4047 = vadd.f32 %v3886, %v4046
        %v4048 = vpop.f32.mrb[0].mxu0
        %v4049 = vpop.f32.mrb[0].mxu0
        %v4050 = vadd.f32 %v3889, %v4049
        %v4051 = vpop.f32.mrb[0].mxu0
        %4052 = vmatprep.mubr.bf16.mxu0 0
        %4053 = vmatmul.mubr.bf16.gmra.mrb[0].mxu0 %v3559
        %v4054 = vpop.f32.mrb[0].mxu0
        %v4055 = vadd.f32 %v3894, %v4054
        %v4056 = vpop.f32.mrb[0].mxu0
        %v4057 = vpop.f32.mrb[0].mxu0
        %v4058 = vadd.f32 %v3897, %v4057
        %v4059 = vpop.f32.mrb[0].mxu0
        %4060 = vmatprep.mubr.bf16.mxu0 0
        %4061 = vmatmul.mubr.bf16.gmra.mrb[0].mxu0 %v3562
        %v4062 = vpop.f32.mrb[0].mxu0
        %v4063 = vadd.f32 %v3902, %v4062
        %v4064 = vpop.f32.mrb[0].mxu0
        %v4065 = vpop.f32.mrb[0].mxu0
        %v4066 = vadd.f32 %v3905, %v4065
        %v4067 = vpop.f32.mrb[0].mxu0
        %4068 = vmatprep.mubr.bf16.mxu0 0
        %4069 = vmatmul.mubr.bf16.gmra.mrb[0].mxu0 %v3565
        %v4070 = vpop.f32.mrb[0].mxu0
        %v4071 = vadd.f32 %v3910, %v4070
        %v4072 = vpop.f32.mrb[0].mxu0
        %v4073 = vpop.f32.mrb[0].mxu0
        %v4074 = vadd.f32 %v3913, %v4073
        %v4075 = vpop.f32.mrb[0].mxu0
        %4076 = vmatprep.mubr.bf16.mxu0 0
        %4077 = vmatmul.mubr.bf16.gmra.mrb[0].mxu0 %v3568
        %v4078 = vpop.f32.mrb[0].mxu0
        %v4079 = vadd.f32 %v3918, %v4078
        %v4080 = vpop.f32.mrb[0].mxu0
        %v4081 = vpop.f32.mrb[0].mxu0
        %v4082 = vadd.f32 %v3921, %v4081
        %v4083 = vpop.f32.mrb[0].mxu0
        %4084 = vmatprep.mubr.bf16.mxu0 0
        %4085 = vmatmul.mubr.bf16.gmra.mrb[0].mxu0 %v3571
        %v4086 = vpop.f32.mrb[0].mxu0
        %v4087 = vadd.f32 %v3926, %v4086
        %v4088 = vpop.f32.mrb[0].mxu0
        %v4089 = vpop.f32.mrb[0].mxu0
        %v4090 = vadd.f32 %v3929, %v4089
        %v4091 = vpop.f32.mrb[0].mxu0
        %4092 = vmatprep.mubr.bf16.mxu0 0
        %4093 = vmatmul.mubr.bf16.gmra.mrb[0].mxu0 %v3574
        %v4094 = vpop.f32.mrb[0].mxu0
        %v4095 = vadd.f32 %v3934, %v4094
        %v4096 = vpop.f32.mrb[0].mxu0
        %v4097 = vpop.f32.mrb[0].mxu0
        %v4098 = vadd.f32 %v3937, %v4097
        %v4099 = vpop.f32.mrb[0].mxu0
        %4100 = vmatprep.mubr.bf16.mxu0 0
        %4101 = vmatmul.mubr.bf16.gmra.mrb[0].mxu0 %v3577
        %v4102 = vpop.f32.mrb[0].mxu0
        %v4103 = vadd.f32 %v3942, %v4102
        %v4104 = vpop.f32.mrb[0].mxu0
        %v4105 = vpop.f32.mrb[0].mxu0
        %v4106 = vadd.f32 %v3945, %v4105
        %v4107 = vpop.f32.mrb[0].mxu0
        %4108 = vdwg.mxu0
        %v4109 = vadd.f32 %v3000, %v3983
        %v4110 = vadd.f32 %v3003, %v3986
        %v4111 = vadd.f32 %v3008, %v3991
        %v4112 = vadd.f32 %v3011, %v3994
        %v4113 = vadd.f32 %v3016, %v3999
        %v4114 = vadd.f32 %v3019, %v4002
        %v4115 = vadd.f32 %v3024, %v4007
        %v4116 = vadd.f32 %v3027, %v4010
        %v4117 = vadd.f32 %v3032, %v4015
        %v4118 = vadd.f32 %v3035, %v4018
        %v4119 = vadd.f32 %v3040, %v4023
        %v4120 = vadd.f32 %v3043, %v4026
        %v4121 = vadd.f32 %v3048, %v4031
        %v4122 = vadd.f32 %v3051, %v4034
        %v4123 = vadd.f32 %v3056, %v4039
        %v4124 = vadd.f32 %v3059, %v4042
        %v4125 = vadd.f32 %v3064, %v4047
        %v4126 = vadd.f32 %v3067, %v4050
        %v4127 = vadd.f32 %v3072, %v4055
        %v4128 = vadd.f32 %v3075, %v4058
        %v4129 = vadd.f32 %v3080, %v4063
        %v4130 = vadd.f32 %v3083, %v4066
        %v4131 = vadd.f32 %v3088, %v4071
        %v4132 = vadd.f32 %v3091, %v4074
        %v4133 = vadd.f32 %v3096, %v4079
        %v4134 = vadd.f32 %v3099, %v4082
        %v4135 = vadd.f32 %v3104, %v4087
        %v4136 = vadd.f32 %v3107, %v4090
        %v4137 = vadd.f32 %v3112, %v4095
        %v4138 = vadd.f32 %v3115, %v4098
        %v4139 = vadd.f32 %v3120, %v4103
        %v4140 = vadd.f32 %v3123, %v4106
        %v4141 = vpack.c.bf16 %v4110, %v4109
        %v4142 = vpack.c.bf16 %v4112, %v4111
        %v4143 = vpack.c.bf16 %v4114, %v4113
        %v4144 = vpack.c.bf16 %v4116, %v4115
        %v4145 = vpack.c.bf16 %v4118, %v4117
        %v4146 = vpack.c.bf16 %v4120, %v4119
        %v4147 = vpack.c.bf16 %v4122, %v4121
        %v4148 = vpack.c.bf16 %v4124, %v4123
        %v4149 = vpack.c.bf16 %v4126, %v4125
        %v4150 = vpack.c.bf16 %v4128, %v4127
        %v4151 = vpack.c.bf16 %v4130, %v4129
        %v4152 = vpack.c.bf16 %v4132, %v4131
        %v4153 = vpack.c.bf16 %v4134, %v4133
        %v4154 = vpack.c.bf16 %v4136, %v4135
        %v4155 = vpack.c.bf16 %v4138, %v4137
        %v4156 = vpack.c.bf16 %v4140, %v4139
        %v4173 = vunpack.c.l.b16 %v4141
        %v4174 = vunpack.c.h.b16 %v4141
        %v4175 = vunpack.c.l.b16 %v4142
        %v4176 = vunpack.c.h.b16 %v4142
        %v4177 = vunpack.c.l.b16 %v4143
        %v4178 = vunpack.c.h.b16 %v4143
        %v4179 = vunpack.c.l.b16 %v4144
        %v4180 = vunpack.c.h.b16 %v4144
        %v4181 = vunpack.c.l.b16 %v4145
        %v4182 = vunpack.c.h.b16 %v4145
        %v4183 = vunpack.c.l.b16 %v4146
        %v4184 = vunpack.c.h.b16 %v4146
        %v4185 = vunpack.c.l.b16 %v4147
        %v4186 = vunpack.c.h.b16 %v4147
        %v4187 = vunpack.c.l.b16 %v4148
        %v4188 = vunpack.c.h.b16 %v4148
        %v4189 = vunpack.c.l.b16 %v4149
        %v4190 = vunpack.c.h.b16 %v4149
        %v4191 = vunpack.c.l.b16 %v4150
        %v4192 = vunpack.c.h.b16 %v4150
        %v4193 = vunpack.c.l.b16 %v4151
        %v4194 = vunpack.c.h.b16 %v4151
        %v4195 = vunpack.c.l.b16 %v4152
        %v4196 = vunpack.c.h.b16 %v4152
        %v4197 = vunpack.c.l.b16 %v4153
        %v4198 = vunpack.c.h.b16 %v4153
        %v4199 = vunpack.c.l.b16 %v4154
        %v4200 = vunpack.c.h.b16 %v4154
        %v4201 = vunpack.c.l.b16 %v4155
        %v4202 = vunpack.c.h.b16 %v4155
        %v4203 = vunpack.c.l.b16 %v4156
        %v4204 = vunpack.c.h.b16 %v4156
        %v4205 = vpack.c.b16 %v4173, %v4173
        %v4206 = vpack.c.b16 %v4174, %v4174
        %v4207 = vpack.c.b16 %v4175, %v4175
        %v4208 = vpack.c.b16 %v4176, %v4176
        %v4209 = vpack.c.b16 %v4177, %v4177
        %v4210 = vpack.c.b16 %v4178, %v4178
        %v4211 = vpack.c.b16 %v4179, %v4179
        %v4212 = vpack.c.b16 %v4180, %v4180
        %v4213 = vpack.c.b16 %v4181, %v4181
        %v4214 = vpack.c.b16 %v4182, %v4182
        %v4215 = vpack.c.b16 %v4183, %v4183
        %v4216 = vpack.c.b16 %v4184, %v4184
        %v4217 = vpack.c.b16 %v4185, %v4185
        %v4218 = vpack.c.b16 %v4186, %v4186
        %v4219 = vpack.c.b16 %v4187, %v4187
        %v4220 = vpack.c.b16 %v4188, %v4188
        %v4221 = vpack.c.b16 %v4189, %v4189
        %v4222 = vpack.c.b16 %v4190, %v4190
        %v4223 = vpack.c.b16 %v4191, %v4191
        %v4224 = vpack.c.b16 %v4192, %v4192
        %v4225 = vpack.c.b16 %v4193, %v4193
        %v4226 = vpack.c.b16 %v4194, %v4194
        %v4227 = vpack.c.b16 %v4195, %v4195
        %v4228 = vpack.c.b16 %v4196, %v4196
        %v4229 = vpack.c.b16 %v4197, %v4197
        %v4230 = vpack.c.b16 %v4198, %v4198
        %v4231 = vpack.c.b16 %v4199, %v4199
        %v4232 = vpack.c.b16 %v4200, %v4200
        %v4233 = vpack.c.b16 %v4201, %v4201
        %v4234 = vpack.c.b16 %v4202, %v4202
        %v4235 = vpack.c.b16 %v4203, %v4203
        %v4236 = vpack.c.b16 %v4204, %v4204
        %4269 = vst [vmem:[%s300] sm:$0xf] %v4205
        %4270 = vst [vmem:[%s300 + $0x4] sm:$0xf] %v4206
        %4271 = vst [vmem:[%s300 + $0x8] sm:$0xf] %v4207
        %4272 = vst [vmem:[%s300 + $0xc] sm:$0xf] %v4208
        %4273 = vst [vmem:[%s300 + $0x10] sm:$0xf] %v4209
        %4274 = vst [vmem:[%s300 + $0x14] sm:$0xf] %v4210
        %4275 = vst [vmem:[%s300 + $0x18] sm:$0xf] %v4211
        %4276 = vst [vmem:[%s300 + $0x1c] sm:$0xf] %v4212
        %4277 = vst [vmem:[%s300 + $0x20] sm:$0xf] %v4213
        %4278 = vst [vmem:[%s300 + $0x24] sm:$0xf] %v4214
        %4279 = vst [vmem:[%s300 + $0x28] sm:$0xf] %v4215
        %4280 = vst [vmem:[%s300 + $0x2c] sm:$0xf] %v4216
        %4281 = vst [vmem:[%s300 + $0x30] sm:$0xf] %v4217
        %4282 = vst [vmem:[%s300 + $0x34] sm:$0xf] %v4218
        %4283 = vst [vmem:[%s300 + $0x38] sm:$0xf] %v4219
        %4284 = vst [vmem:[%s300 + $0x3c] sm:$0xf] %v4220
        %4285 = vst [vmem:[%s300 + $0x40] sm:$0xf] %v4221
        %4286 = vst [vmem:[%s300 + $0x44] sm:$0xf] %v4222
        %4287 = vst [vmem:[%s300 + $0x48] sm:$0xf] %v4223
        %4288 = vst [vmem:[%s300 + $0x4c] sm:$0xf] %v4224
        %4289 = vst [vmem:[%s300 + $0x50] sm:$0xf] %v4225
        %4290 = vst [vmem:[%s300 + $0x54] sm:$0xf] %v4226
        %4291 = vst [vmem:[%s300 + $0x58] sm:$0xf] %v4227
        %4292 = vst [vmem:[%s300 + $0x5c] sm:$0xf] %v4228
        %4293 = vst [vmem:[%s300 + $0x60] sm:$0xf] %v4229
        %4294 = vst [vmem:[%s300 + $0x64] sm:$0xf] %v4230
        %4295 = vst [vmem:[%s300 + $0x68] sm:$0xf] %v4231
        %4296 = vst [vmem:[%s300 + $0x6c] sm:$0xf] %v4232
        %4297 = vst [vmem:[%s300 + $0x70] sm:$0xf] %v4233
        %4298 = vst [vmem:[%s300 + $0x74] sm:$0xf] %v4234
        %4299 = vst [vmem:[%s300 + $0x78] sm:$0xf] %v4235
        %4300 = vst [vmem:[%s300 + $0x7c] sm:$0xf] %v4236
        %v4301 = vld [vmem:[#allocation3] sm:$0x1]
        %v4302 = vadd.f32 %v4109, %v4110
        %v4303 = vadd.f32 %v4302, %v4111
        %v4304 = vadd.f32 %v4303, %v4112
        %v4305 = vadd.f32 %v4304, %v4113
        %v4306 = vadd.f32 %v4305, %v4114
        %v4307 = vadd.f32 %v4306, %v4115
        %v4308 = vadd.f32 %v4307, %v4116
        %v4309 = vadd.f32 %v4308, %v4117
        %v4310 = vadd.f32 %v4309, %v4118
        %v4311 = vadd.f32 %v4310, %v4119
        %v4312 = vadd.f32 %v4311, %v4120
        %v4313 = vadd.f32 %v4312, %v4121
        %v4314 = vadd.f32 %v4313, %v4122
        %v4315 = vadd.f32 %v4314, %v4123
        %v4316 = vadd.f32 %v4315, %v4124
        %v4317 = vadd.f32 %v4316, %v4125
        %v4318 = vadd.f32 %v4317, %v4126
        %v4319 = vadd.f32 %v4318, %v4127
        %v4320 = vadd.f32 %v4319, %v4128
        %v4321 = vadd.f32 %v4320, %v4129
        %v4322 = vadd.f32 %v4321, %v4130
        %v4323 = vadd.f32 %v4322, %v4131
        %v4324 = vadd.f32 %v4323, %v4132
        %v4325 = vadd.f32 %v4324, %v4133
        %v4326 = vadd.f32 %v4325, %v4134
        %v4327 = vadd.f32 %v4326, %v4135
        %v4328 = vadd.f32 %v4327, %v4136
        %v4329 = vadd.f32 %v4328, %v4137
        %v4330 = vadd.f32 %v4329, %v4138
        %v4331 = vadd.f32 %v4330, %v4139
        %v4332 = vadd.f32 %v4331, %v4140
        %v4333 = vrot.slane %v4332, 4
        %v4334 = vadd.f32 %v4332, %v4333
        %v4335 = vrot.slane %v4334, 2
        %v4336 = vadd.f32 %v4334, %v4335
        %v4337 = vrot.slane %v4336, 1
        %v4338 = vadd.f32 %v4336, %v4337
        %v4339 = vadd.f32 %v4301, %v4338
        %4340 = vst [vmem:[#allocation3] sm:$0x1] %v4339
        %v4341 = vld [vmem:[#allocation3 + $0x1] sm:$0x1]
        %v4342 = vmul.f32 %v4109, %v4109
        %v4343 = vmul.f32 %v4110, %v4110
        %v4344 = vmul.f32 %v4111, %v4111
        %v4345 = vmul.f32 %v4112, %v4112
        %v4346 = vmul.f32 %v4113, %v4113
        %v4347 = vmul.f32 %v4114, %v4114
        %v4348 = vmul.f32 %v4115, %v4115
        %v4349 = vmul.f32 %v4116, %v4116
        %v4350 = vmul.f32 %v4117, %v4117
        %v4351 = vmul.f32 %v4118, %v4118
        %v4352 = vmul.f32 %v4119, %v4119
        %v4353 = vmul.f32 %v4120, %v4120
        %v4354 = vmul.f32 %v4121, %v4121
        %v4355 = vmul.f32 %v4122, %v4122
        %v4356 = vmul.f32 %v4123, %v4123
        %v4357 = vmul.f32 %v4124, %v4124
        %v4358 = vmul.f32 %v4125, %v4125
        %v4359 = vmul.f32 %v4126, %v4126
        %v4360 = vmul.f32 %v4127, %v4127
        %v4361 = vmul.f32 %v4128, %v4128
        %v4362 = vmul.f32 %v4129, %v4129
        %v4363 = vmul.f32 %v4130, %v4130
        %v4364 = vmul.f32 %v4131, %v4131
        %v4365 = vmul.f32 %v4132, %v4132
        %v4366 = vmul.f32 %v4133, %v4133
        %v4367 = vmul.f32 %v4134, %v4134
        %v4368 = vmul.f32 %v4135, %v4135
        %v4369 = vmul.f32 %v4136, %v4136
        %v4370 = vmul.f32 %v4137, %v4137
        %v4371 = vmul.f32 %v4138, %v4138
        %v4372 = vmul.f32 %v4139, %v4139
        %v4373 = vmul.f32 %v4140, %v4140
        %v4374 = vadd.f32 %v4342, %v4343
        %v4375 = vadd.f32 %v4374, %v4344
        %v4376 = vadd.f32 %v4375, %v4345
        %v4377 = vadd.f32 %v4376, %v4346
        %v4378 = vadd.f32 %v4377, %v4347
        %v4379 = vadd.f32 %v4378, %v4348
        %v4380 = vadd.f32 %v4379, %v4349
        %v4381 = vadd.f32 %v4380, %v4350
        %v4382 = vadd.f32 %v4381, %v4351
        %v4383 = vadd.f32 %v4382, %v4352
        %v4384 = vadd.f32 %v4383, %v4353
        %v4385 = vadd.f32 %v4384, %v4354
        %v4386 = vadd.f32 %v4385, %v4355
        %v4387 = vadd.f32 %v4386, %v4356
        %v4388 = vadd.f32 %v4387, %v4357
        %v4389 = vadd.f32 %v4388, %v4358
        %v4390 = vadd.f32 %v4389, %v4359
        %v4391 = vadd.f32 %v4390, %v4360
        %v4392 = vadd.f32 %v4391, %v4361
        %v4393 = vadd.f32 %v4392, %v4362
        %v4394 = vadd.f32 %v4393, %v4363
        %v4395 = vadd.f32 %v4394, %v4364
        %v4396 = vadd.f32 %v4395, %v4365
        %v4397 = vadd.f32 %v4396, %v4366
        %v4398 = vadd.f32 %v4397, %v4367
        %v4399 = vadd.f32 %v4398, %v4368
        %v4400 = vadd.f32 %v4399, %v4369
        %v4401 = vadd.f32 %v4400, %v4370
        %v4402 = vadd.f32 %v4401, %v4371
        %v4403 = vadd.f32 %v4402, %v4372
        %v4404 = vadd.f32 %v4403, %v4373
        %v4405 = vrot.slane %v4404, 4
        %v4406 = vadd.f32 %v4404, %v4405
        %v4407 = vrot.slane %v4406, 2
        %v4408 = vadd.f32 %v4406, %v4407
        %v4409 = vrot.slane %v4408, 1
        %v4410 = vadd.f32 %v4408, %v4409
        %v4411 = vadd.f32 %v4341, %v4410
        %4412 = vst [vmem:[#allocation3 + $0x1] sm:$0x1] %v4411
      $region48: #{_double_conv_impl.4} parent=35 // pred_fallthru
        _
      %p4413 = scmp.eq.s32.totalorder %s22, 1
      // Predicated region
      $region49: #{_double_conv_impl.4} parent=35 // pred_check
        %p4414 = pneg %p4413
      $region50: #{_double_conv_impl.4} parent=35 // pred_check_branch
        %4416 = sbr.rel (%p4414) target = $region52
      $region51: #{_double_conv_impl.4} parent=35 // pred_region
        %v4417 = vld [vmem:[#allocation3] sm:$0x3]
        %4418 = vst [vmem:[%s308] sm:$0x3] %v4417
      $region52: #{_double_conv_impl.4} parent=35 // pred_fallthru
        _
      %s4419 = ssub.s32 %s22, 1
      %p4420 = scmp.gt.s32.totalorder %s4419, 0
      %s4421 = scalar_select %p4420, %s4419, 0
      %s4422 = smul.u32 16, %s4421
      %p4423 = scmp.lt.s32.totalorder %s21, 1
      %s4424 = scalar_select %p4423, %s21, 1
      %p4425 = scmp.lt.s32.totalorder %s4422, 15
      %s4426 = scalar_select %p4425, %s4422, 15
      %s4427 = smul.addr %s4426, 2
      %s4428 = smul.addr %s4424, 32
      %s4429 = sadd.s32 %s4427, %s4428
      %s4430 = smul.addr %s4429, 4
      %s4431 = scalar_lea.vmem %s4, %s4430
      %p4432 = scmp.lt.s32.totalorder %s21, 1
      %s4433 = scalar_select %p4432, %s21, 1
      %s4434 = smul.addr %s4433, 2
      %s4435 = scalar_lea.vmem %s5, %s4434
      // Predicated region
      $region53: #{_double_conv_impl.4} parent=35 // pred_check
        %p4436 = pneg %p150
      $region54: #{_double_conv_impl.4} parent=35 // pred_check_branch
        %4438 = sbr.rel (%p4436) target = $region56
      $region55: #{_double_conv_impl.4} parent=35 // pred_region
        %s4439 = ssub.s32 %s22, 1
        %p4440 = scmp.gt.s32.totalorder %s4439, 0
        %s4441 = scalar_select %p4440, %s4439, 0
        %s4442 = smul.u32 16, %s4441
      $region56: #{_double_conv_impl.4} parent=35 // pred_fallthru
        _
      // Predicated region
      $region57: #{_double_conv_impl.4} parent=35 // pred_check
        %p4443 = pneg %p176
      $region58: #{_double_conv_impl.4} parent=35 // pred_check_branch
        %4445 = sbr.rel (%p4443) target = $region60
      $region59: #{_double_conv_impl.4} parent=35 // pred_region
        _
      $region60: #{_double_conv_impl.4} parent=35 // pred_fallthru
        _
    $region36: #{_double_conv_impl.4} parent=5 // pred_fallthru
      _
    %p4446 = scmp.le.s32.totalorder 2, %s12
    // Predicated region
    $region61: #{_double_conv_impl.4} parent=5 // pred_check
      %p4447 = pneg %p4446
    $region62: #{_double_conv_impl.4} parent=5 // pred_check_branch
      %4449 = sbr.rel (%p4447) target = $region64
    $region63: #{_double_conv_impl.4} parent=5 // pred_region
      %s4450 = ssub.s32 %s12, 2
      // Predicated region
      $region65: #{_double_conv_impl.4} parent=63 // pred_check
        %p4451 = pneg %p156
      $region66: #{_double_conv_impl.4} parent=63 // pred_check_branch
        %4453 = sbr.rel (%p4451) target = $region68
      $region67: #{_double_conv_impl.4} parent=63 // pred_region
        %s4454 = ssub.s32 %s24, 1
        %p4455 = scmp.gt.s32.totalorder %s4454, 0
        %s4456 = scalar_select %p4455, %s4454, 0
        %s4457 = smul.u32 16, %s4456
        %p4458 = scmp.lt.s32.totalorder %s23, 1
        %s4459 = scalar_select %p4458, %s23, 1
        %p4460 = scmp.lt.s32.totalorder %s4457, 15
        %s4461 = scalar_select %p4460, %s4457, 15
        %s4462 = smul.addr %s4461, 2
        %s4463 = smul.addr %s4459, 32
        %s4464 = sadd.s32 %s4462, %s4463
        %s4465 = smul.addr %s4464, 4
        %s4466 = scalar_lea.vmem %s4, %s4465
      $region68: #{_double_conv_impl.4} parent=63 // pred_fallthru
        _
      // Predicated region
      $region69: #{_double_conv_impl.4} parent=63 // pred_check
        %p4467 = pneg %p182
      $region70: #{_double_conv_impl.4} parent=63 // pred_check_branch
        %4469 = sbr.rel (%p4467) target = $region72
      $region71: #{_double_conv_impl.4} parent=63 // pred_region
        %p4470 = scmp.lt.s32.totalorder %s23, 1
        %s4471 = scalar_select %p4470, %s23, 1
        %s4472 = smul.addr %s4471, 2
        %s4473 = scalar_lea.vmem %s5, %s4472
      $region72: #{_double_conv_impl.4} parent=63 // pred_fallthru
        _
    $region64: #{_double_conv_impl.4} parent=5 // pred_fallthru
      _
  $region6: #{_double_conv_impl.4} parent=0 // loop_footer
    %s16 = sadd.s32 1, %s12
  $region7: #{_double_conv_impl.4} parent=0 // loop_footer_branch
    %11 = sbr.rel target = $region3
  $region8: #{_double_conv_impl.4} parent=0 // loop_exit
    _

</llo_original>
